<compile_context>
chip_gen: v6e
topology: v6e:2x2x1
jax: 0.10.0
libtpu: 0.0.40
codegen_flags: <defaults>
</compile_context>

<pallas_src>
import functools
import math

import jax
import jax.numpy as jnp
from jax import lax
from jax.experimental import pallas as pl
from jax.experimental.pallas import tpu as pltpu


# --------------------------------------------------------------------------
# small helpers
# --------------------------------------------------------------------------
def _vmem_capacity_bytes():
    try:
        return int(pltpu.get_tpu_info().vmem_capacity_bytes)
    except Exception:
        return 64 << 20            # conservative: v7x per-TensorCore VMEM


def _pick_row_tile(m, cap, mult=16):
    """Largest divisor of m <= cap, preferring multiples of 16, then 8."""
    cap = max(1, min(m, cap))
    for req in (mult, 8, 1):
        for t in range(cap, 0, -1):
            if m % t == 0 and t % req == 0:
                return t
    return m   # unreachable (t=1 always divides), kept for clarity
    # TODO(synk): pad M + mask the tail when no well-aligned divisor exists.


def _dtype_bytes(dtype):
    return jnp.dtype(dtype).itemsize


def _bytes(*block_dtype_pairs):
    total = 0
    for shape, dtype in block_dtype_pairs:
        total += math.prod(int(d) for d in shape) * _dtype_bytes(dtype)
    return total


def _params(block_bytes, scratch_bytes=0):
    """VMEM limit = double-buffered pipelined blocks + scratch + headroom,
    clamped to 75% of the physical per-core VMEM of this generation."""
    need = 2 * block_bytes + scratch_bytes
    cap = int(0.75 * _vmem_capacity_bytes())
    limit = int(min(max(need + (8 << 20), 16 << 20), cap))
    return pltpu.CompilerParams(
        dimension_semantics=("parallel",),       # megacore sharding on v7x
        vmem_limit_bytes=limit)


def _bn_affine(partial_stats, count, gamma, beta, eps):
    """Fold per-tile [sum, sum_sq] partials into per-channel scale / shift."""
    s = partial_stats.sum(axis=0)                        # (2, C) f32
    mean = s[0] / count
    var = jnp.maximum(s[1] / count - mean * mean, 0.0)   # biased var, clamped
    inv = lax.rsqrt(var + eps)
    scale = gamma.reshape(-1) * inv
    shift = beta.reshape(-1) - mean * scale
    return (scale.reshape(1, -1).astype(jnp.float32),
            shift.reshape(1, -1).astype(jnp.float32))


def _silu(v, approx):
    # SiLU = v * sigmoid(v).  exp runs on the EUP; in fast mode the reciprocal
    # also goes to the EUP (approx) instead of a VPU divide.
    t = 1.0 + jnp.exp(-v)
    inv = pl.reciprocal(t, approx=True) if approx else 1.0 / t
    return v * inv


def _write_stats(st_ref, v):
    """Write [sum, sum_sq] over rows of (rows, C) f32 v into a (1, 2, C) ref."""
    c = v.shape[-1]
    st_ref[0:1, 0:1, :] = jnp.sum(v, axis=0, keepdims=True).reshape(1, 1, c)
    st_ref[0:1, 1:2, :] = jnp.sum(v * v, axis=0, keepdims=True).reshape(1, 1, c)


# --------------------------------------------------------------------------
# kernels
# --------------------------------------------------------------------------
def _stats_kernel(x_ref, w_ref, st_ref):
    """Sweep 1: fused (expand | skip) 1x1 conv -> BN partial stats only."""
    h = jnp.dot(x_ref[...], w_ref[...], preferred_element_type=jnp.float32)
    _write_stats(st_ref, h)


def _make_dw_kernel(H, W, Cin, hid, stride, Ho, Wo, Hp, Wp, approx,
                    act_dtype, store_dtype):
    """Sweep 2: recompute expand conv, BN1+SiLU, 3x3 depthwise (pad=1, stride).

    Grid is over the batch; one image per step.  The SiLU'd activation is
    written once into a zero-bordered VMEM scratch (dtype=act_dtype); taps
    read row slabs at static offsets and window them with static value
    slices.  Accumulation stays f32; BN2 stats are computed pre-cast."""

    def kernel(x_ref, w1_ref, s1_ref, t1_ref, wdw_ref, d_ref, st2_ref, hp_ref):
        # Recompute the 1x1 expand conv for this image (K = Cin is tiny, MXU
        # is nowhere near saturated; this is cheaper than an HBM round-trip).
        x = x_ref[...].reshape(H * W, Cin)
        h = jnp.dot(x, w1_ref[...], preferred_element_type=jnp.float32)
        a = _silu(h.reshape(H, W, hid) * s1_ref[...] + t1_ref[...], approx)
        a = a.astype(act_dtype)

        # Zero the borders every step (safe under megacore sharding), then
        # write the interior once.
        hp_ref[0:1, :, :] = jnp.zeros((1, Wp, hid), act_dtype)
        hp_ref[H + 1:Hp, :, :] = jnp.zeros((Hp - H - 1, Wp, hid), act_dtype)
        hp_ref[:, 0:1, :] = jnp.zeros((Hp, 1, hid), act_dtype)
        hp_ref[:, W + 1:Wp, :] = jnp.zeros((Hp, Wp - W - 1, hid), act_dtype)
        hp_ref[1:H + 1, 1:W + 1, :] = a

        wdw = wdw_ref[...]                                       # (9, hid)
        acc = jnp.zeros((Ho, Wo, hid), jnp.float32)
        for ki in range(3):
            if stride == 1:
                slab = hp_ref[ki:ki + Ho, :, :]                  # (Ho, Wp, hid)
            else:
                # contiguous rows, then static subsample (in-bounds: Hp was
                # sized as max(H+2, 2+stride*Ho))
                blk = hp_ref[ki:ki + stride * Ho, :, :]
                slab = blk.reshape(Ho, stride, Wp, hid)[:, 0, :, :]
            for kj in range(3):
                if stride == 1:
                    win = slab[:, kj:kj + Wo, :]
                else:
                    cols = slab[:, kj:kj + stride * Wo, :]
                    win = cols.reshape(Ho, Wo, stride, hid)[:, :, 0, :]
                wk = wdw[ki * 3 + kj:ki * 3 + kj + 1, :].reshape(1, 1, hid)
                # bf16 multiply on the VPU (v6e/v7x fast mode), f32 accumulate.
                acc = acc + (win * wk).astype(jnp.float32)

        _write_stats(st2_ref, acc.reshape(Ho * Wo, hid))
        d_ref[...] = acc.reshape(1, Ho, Wo, hid).astype(store_dtype)

    return kernel


def _make_project_kernel(compute_dtype, approx, store_dtype):
    """Sweep 3: BN2+SiLU, 1x1 project conv + BN3 partials."""

    def kernel(d_ref, s2_ref, t2_ref, w3_ref, y_ref, st3_ref):
        b = _silu(d_ref[...].astype(jnp.float32) * s2_ref[...] + t2_ref[...],
                  approx)
        y = jnp.dot(b.astype(compute_dtype), w3_ref[...],
                    preferred_element_type=jnp.float32)
        _write_stats(st3_ref, y)
        y_ref[...] = y.astype(store_dtype)

    return kernel


def _make_finalize_kernel(has_skip):
    """Sweep 4: BN3 (+ recomputed skip conv + skip BN) and residual add."""

    def kernel(*refs):
        if has_skip:
            y_ref, x_ref, wsk_ref, s3_ref, t3_ref, ss_ref, ts_ref, o_ref = refs
            s = jnp.dot(x_ref[...], wsk_ref[...],
                        preferred_element_type=jnp.float32)
            o_ref[...] = (y_ref[...].astype(jnp.float32) * s3_ref[...]
                          + t3_ref[...] + s * ss_ref[...] + ts_ref[...])
        else:
            y_ref, s3_ref, t3_ref, o_ref = refs
            o_ref[...] = (y_ref[...].astype(jnp.float32) * s3_ref[...]
                          + t3_ref[...])

    return kernel


# --------------------------------------------------------------------------
# wrapper
# --------------------------------------------------------------------------
def mbconv_forward(x_nchw, params, *, expand_ratio, stride, eps=1e-5,
                   compute_dtype=jnp.float32):
    """MBConvBlock forward (train-mode BatchNorm).  NCHW in / NCHW out.

    compute_dtype=jnp.float32  -> exact mode (f32 everywhere).
    compute_dtype=jnp.bfloat16 -> fast mode: bf16 MXU inputs, bf16 inter-sweep
    intermediates, bf16 depthwise taps, EUP approx reciprocal in SiLU; BN
    statistics and all accumulation stay f32.  (Use f32 on v5e: no bf16 VPU.)
    """
    f32 = jnp.float32
    fast = (compute_dtype != f32)
    store_dtype = jnp.bfloat16 if fast else f32   # inter-sweep intermediates
    act_dtype = jnp.bfloat16 if fast else f32     # depthwise scratch / taps
    approx = fast

    N, Cin, H, W = x_nchw.shape
    hid = Cin * expand_ratio
    Cout = params["w3"].shape[1]
    has_skip = (stride == 1 and Cin != Cout)      # matches the PyTorch module
    Ho = (H + 2 - 3) // stride + 1
    Wo = (W + 2 - 3) // stride + 1

    M, M2 = N * H * W, N * Ho * Wo
    # Generation-aware row-tile cap: smaller on 64 MiB-VMEM parts (v7x).
    cap = 1024 if _vmem_capacity_bytes() >= (100 << 20) else 512
    TM = _pick_row_tile(M, cap)
    T2 = _pick_row_tile(M2, cap)
    G1, G2 = M // TM, M2 // T2

    # NCHW -> (N*H*W, Cin); transpose + cast fuse into one XLA copy.
    x2d = jnp.transpose(x_nchw, (0, 2, 3, 1)).reshape(M, Cin).astype(compute_dtype)
    x4d = x2d.reshape(N, H, W, Cin)
    w1 = params["w1"].astype(compute_dtype)
    w3 = params["w3"].astype(compute_dtype)
    wdw = params["wdw"].astype(act_dtype)

    # ---- sweep 1: BN1 (+ skip BN) partial statistics only (nothing stored) --
    if has_skip:
        wsk = params["wsk"].astype(compute_dtype)
        w1s = jnp.concatenate([w1, wsk], axis=1)          # (Cin, hid+Cout)
    else:
        wsk = None
        w1s = w1
    Cs = w1s.shape[1]
    b1 = _bytes(((TM, Cin), compute_dtype), ((Cin, Cs), compute_dtype),
                ((1, 2, Cs), f32))
    st1s = pl.pallas_call(
        _stats_kernel,
        grid=(G1,),
        in_specs=[pl.BlockSpec((TM, Cin), lambda i: (i, 0)),
                  pl.BlockSpec((Cin, Cs), lambda i: (0, 0))],
        out_specs=pl.BlockSpec((1, 2, Cs), lambda i: (i, 0, 0)),
        out_shape=jax.ShapeDtypeStruct((G1, 2, Cs), f32),
        compiler_params=_params(b1),
    )(x2d, w1s)
    sc1, sh1 = _bn_affine(st1s[:, :, :hid], M, params["g1"], params["b1"], eps)
    if has_skip:
        scs, shs = _bn_affine(st1s[:, :, hid:], M, params["gs"], params["bs"],
                              eps)

    # ---- sweep 2: recompute expand conv, BN1+SiLU, 3x3 depthwise, BN2 stats -
    Hp = max(H + 2, 2 + stride * Ho)
    Wp = max(W + 2, 2 + stride * Wo)
    b2 = _bytes(((1, H, W, Cin), compute_dtype), ((Cin, hid), compute_dtype),
                ((1, hid), f32), ((1, hid), f32), ((9, hid), act_dtype),
                ((1, Ho, Wo, hid), store_dtype), ((1, 2, hid), f32))
    scratch2 = Hp * Wp * hid * _dtype_bytes(act_dtype)
    d_pre, st2 = pl.pallas_call(
        _make_dw_kernel(H, W, Cin, hid, stride, Ho, Wo, Hp, Wp, approx,
                        act_dtype, store_dtype),
        grid=(N,),
        in_specs=[pl.BlockSpec((1, H, W, Cin), lambda n: (n, 0, 0, 0)),
                  pl.BlockSpec((Cin, hid), lambda n: (0, 0)),
                  pl.BlockSpec((1, hid), lambda n: (0, 0)),
                  pl.BlockSpec((1, hid), lambda n: (0, 0)),
                  pl.BlockSpec((9, hid), lambda n: (0, 0))],
        out_specs=[pl.BlockSpec((1, Ho, Wo, hid), lambda n: (n, 0, 0, 0)),
                   pl.BlockSpec((1, 2, hid), lambda n: (n, 0, 0))],
        out_shape=[jax.ShapeDtypeStruct((N, Ho, Wo, hid), store_dtype),
                   jax.ShapeDtypeStruct((N, 2, hid), f32)],
        scratch_shapes=[pltpu.VMEM((Hp, Wp, hid), act_dtype)],
        compiler_params=_params(b2, scratch2),
    )(x4d, w1, sc1, sh1, wdw)
    sc2, sh2 = _bn_affine(st2, M2, params["g2"], params["b2"], eps)

    # ---- sweep 3: BN2+SiLU, 1x1 project conv, BN3 partial stats ----
    b3 = _bytes(((T2, hid), store_dtype), ((1, hid), f32), ((1, hid), f32),
                ((hid, Cout), compute_dtype), ((T2, Cout), store_dtype),
                ((1, 2, Cout), f32))
    y_pre, st3 = pl.pallas_call(
        _make_project_kernel(compute_dtype, approx, store_dtype),
        grid=(G2,),
        in_specs=[pl.BlockSpec((T2, hid), lambda i: (i, 0)),
                  pl.BlockSpec((1, hid), lambda i: (0, 0)),
                  pl.BlockSpec((1, hid), lambda i: (0, 0)),
                  pl.BlockSpec((hid, Cout), lambda i: (0, 0))],
        out_specs=[pl.BlockSpec((T2, Cout), lambda i: (i, 0)),
                   pl.BlockSpec((1, 2, Cout), lambda i: (i, 0, 0))],
        out_shape=[jax.ShapeDtypeStruct((M2, Cout), store_dtype),
                   jax.ShapeDtypeStruct((G2, 2, Cout), f32)],
        compiler_params=_params(b3),
    )(d_pre.reshape(M2, hid), sc2, sh2, w3)
    sc3, sh3 = _bn_affine(st3, M2, params["g3"], params["b3"], eps)

    # ---- sweep 4: BN3 (+ recomputed skip conv + skip BN) and residual add ----
    vec = pl.BlockSpec((1, Cout), lambda i: (0, 0))
    if has_skip:
        # stride==1 here, so M2 == M and y rows align with x rows.
        args4 = [y_pre, x2d, wsk, sc3, sh3, scs, shs]
        ispecs4 = [pl.BlockSpec((T2, Cout), lambda i: (i, 0)),
                   pl.BlockSpec((T2, Cin), lambda i: (i, 0)),
                   pl.BlockSpec((Cin, Cout), lambda i: (0, 0)),
                   vec, vec, vec, vec]
        b4 = _bytes(((T2, Cout), store_dtype), ((T2, Cin), compute_dtype),
                    ((Cin, Cout), compute_dtype), ((T2, Cout), f32),
                    ((1, Cout), f32), ((1, Cout), f32),
                    ((1, Cout), f32), ((1, Cout), f32))
    else:
        args4 = [y_pre, sc3, sh3]
        ispecs4 = [pl.BlockSpec((T2, Cout), lambda i: (i, 0)), vec, vec]
        b4 = _bytes(((T2, Cout), store_dtype), ((T2, Cout), f32),
                    ((1, Cout), f32), ((1, Cout), f32))
    out = pl.pallas_call(
        _make_finalize_kernel(has_skip),
        grid=(G2,),
        in_specs=ispecs4,
        out_specs=pl.BlockSpec((T2, Cout), lambda i: (i, 0)),
        out_shape=jax.ShapeDtypeStruct((M2, Cout), f32),
        compiler_params=_params(b4),
    )(*args4)

    return jnp.transpose(out.reshape(N, Ho, Wo, Cout), (0, 3, 1, 2))


# --------------------------------------------------------------------------
# pure-JAX reference (matches PyTorch train-mode forward)
# --------------------------------------------------------------------------
def reference_nchw(x_nchw, params, *, expand_ratio, stride, eps=1e-5):
    x = jnp.transpose(x_nchw, (0, 2, 3, 1)).astype(jnp.float32)
    Cin = x.shape[-1]
    hid = Cin * expand_ratio
    Cout = params["w3"].shape[1]
    has_skip = (stride == 1 and Cin != Cout)

    def conv1x1(v, w):
        return jnp.einsum("nhwc,cd->nhwd", v, w.astype(jnp.float32),
                          preferred_element_type=jnp.float32)

    def bn(v, g, b):
        mu = v.mean(axis=(0, 1, 2), keepdims=True)
        var = jnp.square(v - mu).mean(axis=(0, 1, 2), keepdims=True)
        return ((v - mu) / jnp.sqrt(var + eps) * g.reshape(1, 1, 1, -1)
                + b.reshape(1, 1, 1, -1))

    def silu(v):
        return v * jax.nn.sigmoid(v)

    h = silu(bn(conv1x1(x, params["w1"]), params["g1"], params["b1"]))
    wdw = params["wdw"].reshape(3, 3, 1, hid)           # HWIO depthwise
    h = lax.conv_general_dilated(h, wdw, (stride, stride), ((1, 1), (1, 1)),
                                 dimension_numbers=("NHWC", "HWIO", "NHWC"),
                                 feature_group_count=hid)
    h = silu(bn(h, params["g2"], params["b2"]))
    y = bn(conv1x1(h, params["w3"]), params["g3"], params["b3"])
    if has_skip:
        y = y + bn(conv1x1(x, params["wsk"]), params["gs"], params["bs"])
    return jnp.transpose(y, (0, 3, 1, 2))


# --------------------------------------------------------------------------
# demo / self-test
# --------------------------------------------------------------------------
if __name__ == "__main__":
    # stride=1 and in != out so the learned skip branch (1x1 conv + BN) of the
    # module is exercised too.
    N, Cin, H, W = 2, 4, 16, 16
    expand_ratio, stride = 4, 1
    Cout = 8
    hid = Cin * expand_ratio

    key = jax.random.PRNGKey(0)
    kx, *kp = jax.random.split(key, 14)
    x = jax.random.normal(kx, (N, Cin, H, W), jnp.float32)

    params = {
        # 1x1 expand conv weight: PyTorch (hid, Cin, 1, 1) stored here as (Cin, hid)
        "w1": 0.1 * jax.random.normal(kp[0], (Cin, hid), jnp.float32),
        "g1": 1.0 + 0.1 * jax.random.normal(kp[1], (1, hid), jnp.float32),
        "b1": 0.1 * jax.random.normal(kp[2], (1, hid), jnp.float32),
        # depthwise 3x3 weight: PyTorch (hid, 1, 3, 3) stored as (9, hid)
        "wdw": 0.1 * jax.random.normal(kp[3], (9, hid), jnp.float32),
        "g2": 1.0 + 0.1 * jax.random.normal(kp[4], (1, hid), jnp.float32),
        "b2": 0.1 * jax.random.normal(kp[5], (1, hid), jnp.float32),
        # 1x1 project conv weight: PyTorch (Cout, hid, 1, 1) stored as (hid, Cout)
        "w3": 0.1 * jax.random.normal(kp[6], (hid, Cout), jnp.float32),
        "g3": 1.0 + 0.1 * jax.random.normal(kp[7], (1, Cout), jnp.float32),
        "b3": 0.1 * jax.random.normal(kp[8], (1, Cout), jnp.float32),
        # skip branch 1x1 conv + BN
        "wsk": 0.1 * jax.random.normal(kp[9], (Cin, Cout), jnp.float32),
        "gs": 1.0 + 0.1 * jax.random.normal(kp[10], (1, Cout), jnp.float32),
        "bs": 0.1 * jax.random.normal(kp[11], (1, Cout), jnp.float32),
    }

    ref32 = reference_nchw(x, params, expand_ratio=expand_ratio, stride=stride)

    # --- exact mode (f32 everywhere): must match the PyTorch forward tightly --
    fwd_f32 = jax.jit(functools.partial(
        mbconv_forward, expand_ratio=expand_ratio, stride=stride,
        compute_dtype=jnp.float32))
    y32 = jax.block_until_ready(fwd_f32(x, params))
    assert y32.shape == (N, Cout, H, W), y32.shape
    err32 = float(jnp.max(jnp.abs(y32 - ref32)))
    assert err32 < 1e-3, err32

    # --- fast mode (bf16 MXU inputs / intermediates / taps, f32 accumulation).
    # BatchNorm amplifies bf16 rounding, so this is a loose sanity bound; the
    # tight correctness check is the f32 exact mode above.
    fwd_bf16 = jax.jit(functools.partial(
        mbconv_forward, expand_ratio=expand_ratio, stride=stride,
        compute_dtype=jnp.bfloat16))
    ybf = jax.block_until_ready(fwd_bf16(x, params))
    assert ybf.shape == (N, Cout, H, W), ybf.shape
    assert bool(jnp.isfinite(ybf.astype(jnp.float32)).all())
    errbf = float(jnp.max(jnp.abs(ybf.astype(jnp.float32) - ref32)))
    assert errbf < 0.5, errbf

    print("KERNEL_OK")
</pallas_src>

<mosaic_0001>
module attributes {stable_mosaic.version = 11 : i64} {
  func.func @_stats_kernel(%arg0: i32, %arg1: memref<512x4xf32, #tpu.memory_space<vmem>>, %arg2: memref<4x24xf32, #tpu.memory_space<vmem>>, %arg3: memref<1x2x24xf32, #tpu.memory_space<vmem>>) attributes {dimension_semantics = [#tpu.dimension_semantics<parallel>], iteration_bounds = array<i64: 1>, scalar_prefetch = 0 : i64, scratch_operands = 0 : i64, tpu.core_type = #tpu.core_type<tc>, window_params = [{transform_indices = @transform_0, window_bounds = array<i64: 512, 4>}, {pipeline_mode = #tpu.pipeline_mode<synchronous>, transform_indices = @transform_1, window_bounds = array<i64: 4, 24>}, {transform_indices = @transform_2, window_bounds = array<i64: 1, 2, 24>}]} {
    %c0 = arith.constant 0 : index
    %c0_0 = arith.constant 0 : index
    %0 = vector.load %arg1[%c0, %c0_0] : memref<512x4xf32, #tpu.memory_space<vmem>>, vector<512x4xf32>
    %c0_1 = arith.constant 0 : index
    %c0_2 = arith.constant 0 : index
    %1 = vector.load %arg2[%c0_1, %c0_2] : memref<4x24xf32, #tpu.memory_space<vmem>>, vector<4x24xf32>
    %cst = arith.constant dense<0.000000e+00> : vector<512x24xf32>
    %2 = tpu.matmul %0, %1, %cst {dimension_numbers = #tpu.dot_dimension_numbers<[1], [0], [0], [1], [0, 0, 1, 1], [], []>} : vector<512x4xf32>, vector<4x24xf32>, vector<512x24xf32> -> vector<512x24xf32>
    %cst_3 = arith.constant dense<0.000000e+00> : vector<24xf32>
    %3 = vector.multi_reduction <add>, %2, %cst_3 [0] : vector<512x24xf32> to vector<24xf32>
    %4 = vector.shape_cast %3 : vector<24xf32> to vector<1x24xf32>
    %5 = vector.shape_cast %4 : vector<1x24xf32> to vector<1x1x24xf32>
    %c0_4 = arith.constant 0 : index
    %c0_5 = arith.constant 0 : index
    %c0_6 = arith.constant 0 : index
    %6 = vector.load %arg3[%c0_4, %c0_5, %c0_6] : memref<1x2x24xf32, #tpu.memory_space<vmem>>, vector<1x1x24xf32>
    tpu.vector_store %arg3[%c0_4, %c0_5, %c0_6], %5 {strides = array<i32>} : memref<1x2x24xf32, #tpu.memory_space<vmem>>, vector<1x1x24xf32>,
    %7 = arith.mulf %2, %2 : vector<512x24xf32>
    %cst_7 = arith.constant dense<0.000000e+00> : vector<24xf32>
    %8 = vector.multi_reduction <add>, %7, %cst_7 [0] : vector<512x24xf32> to vector<24xf32>
    %9 = vector.shape_cast %8 : vector<24xf32> to vector<1x24xf32>
    %10 = vector.shape_cast %9 : vector<1x24xf32> to vector<1x1x24xf32>
    %c0_8 = arith.constant 0 : index
    %c1 = arith.constant 1 : index
    %c0_9 = arith.constant 0 : index
    %11 = vector.load %arg3[%c0_8, %c1, %c0_9] : memref<1x2x24xf32, #tpu.memory_space<vmem>>, vector<1x1x24xf32>
    tpu.vector_store %arg3[%c0_8, %c1, %c0_9], %10 {strides = array<i32>} : memref<1x2x24xf32, #tpu.memory_space<vmem>>, vector<1x1x24xf32>,
    return
  }
  func.func @transform_0(%arg0: i32) -> (i32, i32) {
    %c0_i32 = arith.constant 0 : i32
    %c0_i32_0 = arith.constant 0 : i32
    return %arg0, %c0_i32 : i32, i32
  }
  func.func @transform_1(%arg0: i32) -> (i32, i32) {
    %c0_i32 = arith.constant 0 : i32
    %c0_i32_0 = arith.constant 0 : i32
    %c0_i32_1 = arith.constant 0 : i32
    return %c0_i32, %c0_i32_0 : i32, i32
  }
  func.func @transform_2(%arg0: i32) -> (i32, i32, i32) {
    %c0_i32 = arith.constant 0 : i32
    %c0_i32_0 = arith.constant 0 : i32
    %c0_i32_1 = arith.constant 0 : i32
    return %arg0, %c0_i32, %c0_i32_0 : i32, i32, i32
  }
}

module attributes {stable_mosaic.version = 11 : i64} {
  func.func @kernel(%arg0: i32, %arg1: memref<1x16x16x4xf32, #tpu.memory_space<vmem>>, %arg2: memref<4x16xf32, #tpu.memory_space<vmem>>, %arg3: memref<1x16xf32, #tpu.memory_space<vmem>>, %arg4: memref<1x16xf32, #tpu.memory_space<vmem>>, %arg5: memref<9x16xf32, #tpu.memory_space<vmem>>, %arg6: memref<1x16x16x16xf32, #tpu.memory_space<vmem>>, %arg7: memref<1x2x16xf32, #tpu.memory_space<vmem>>, %arg8: memref<18x18x16xf32, #tpu.memory_space<vmem>>) attributes {dimension_semantics = [#tpu.dimension_semantics<parallel>], iteration_bounds = array<i64: 2>, scalar_prefetch = 0 : i64, scratch_operands = 1 : i64, tpu.core_type = #tpu.core_type<tc>, window_params = [{transform_indices = @transform_0, window_bounds = array<i64: 1, 16, 16, 4>}, {pipeline_mode = #tpu.pipeline_mode<synchronous>, transform_indices = @transform_1, window_bounds = array<i64: 4, 16>}, {pipeline_mode = #tpu.pipeline_mode<synchronous>, transform_indices = @transform_2, window_bounds = array<i64: 1, 16>}, {pipeline_mode = #tpu.pipeline_mode<synchronous>, transform_indices = @transform_3, window_bounds = array<i64: 1, 16>}, {pipeline_mode = #tpu.pipeline_mode<synchronous>, transform_indices = @transform_4, window_bounds = array<i64: 9, 16>}, {transform_indices = @transform_5, window_bounds = array<i64: 1, 16, 16, 16>}, {transform_indices = @transform_6, window_bounds = array<i64: 1, 2, 16>}]} {
    %c0 = arith.constant 0 : index
    %c0_0 = arith.constant 0 : index
    %c0_1 = arith.constant 0 : index
    %c0_2 = arith.constant 0 : index
    %0 = vector.load %arg1[%c0, %c0_0, %c0_1, %c0_2] : memref<1x16x16x4xf32, #tpu.memory_space<vmem>>, vector<1x16x16x4xf32>
    %1 = vector.shape_cast %0 : vector<1x16x16x4xf32> to vector<256x4xf32>
    %c0_3 = arith.constant 0 : index
    %c0_4 = arith.constant 0 : index
    %2 = vector.load %arg2[%c0_3, %c0_4] : memref<4x16xf32, #tpu.memory_space<vmem>>, vector<4x16xf32>
    %cst = arith.constant dense<0.000000e+00> : vector<256x16xf32>
    %3 = tpu.matmul %1, %2, %cst {dimension_numbers = #tpu.dot_dimension_numbers<[1], [0], [0], [1], [0, 0, 1, 1], [], []>} : vector<256x4xf32>, vector<4x16xf32>, vector<256x16xf32> -> vector<256x16xf32>
    %4 = vector.shape_cast %3 : vector<256x16xf32> to vector<16x16x16xf32>
    %c0_5 = arith.constant 0 : index
    %c0_6 = arith.constant 0 : index
    %5 = vector.load %arg3[%c0_5, %c0_6] : memref<1x16xf32, #tpu.memory_space<vmem>>, vector<1x16xf32>
    %6 = vector.shape_cast %5 : vector<1x16xf32> to vector<1x1x16xf32>
    %7 = vector.broadcast %6 : vector<1x1x16xf32> to vector<16x16x16xf32>
    %8 = arith.mulf %4, %7 : vector<16x16x16xf32>
    %c0_7 = arith.constant 0 : index
    %c0_8 = arith.constant 0 : index
    %9 = vector.load %arg4[%c0_7, %c0_8] : memref<1x16xf32, #tpu.memory_space<vmem>>, vector<1x16xf32>
    %10 = vector.shape_cast %9 : vector<1x16xf32> to vector<1x1x16xf32>
    %11 = vector.broadcast %10 : vector<1x1x16xf32> to vector<16x16x16xf32>
    %12 = arith.addf %8, %11 : vector<16x16x16xf32>
    %cst_9 = arith.constant 0.000000e+00 : f32
    %13 = vector.broadcast %cst_9 : f32 to vector<16x16x16xf32>
    %14 = arith.subf %13, %12 : vector<16x16x16xf32>
    %15 = math.exp %14 : vector<16x16x16xf32>
    %cst_10 = arith.constant 1.000000e+00 : f32
    %16 = vector.broadcast %cst_10 : f32 to vector<16x16x16xf32>
    %17 = arith.addf %16, %15 : vector<16x16x16xf32>
    %cst_11 = arith.constant 1.000000e+00 : f32
    %18 = vector.broadcast %cst_11 : f32 to vector<16x16x16xf32>
    %19 = arith.divf %18, %17 : vector<16x16x16xf32>
    %20 = arith.mulf %12, %19 : vector<16x16x16xf32>
    %cst_12 = arith.constant 0.000000e+00 : f32
    %21 = vector.broadcast %cst_12 : f32 to vector<1x18x16xf32>
    %c0_13 = arith.constant 0 : index
    %c0_14 = arith.constant 0 : index
    %c0_15 = arith.constant 0 : index
    %22 = vector.load %arg8[%c0_13, %c0_14, %c0_15] : memref<18x18x16xf32, #tpu.memory_space<vmem>>, vector<1x18x16xf32>
    tpu.vector_store %arg8[%c0_13, %c0_14, %c0_15], %21 {strides = array<i32>} : memref<18x18x16xf32, #tpu.memory_space<vmem>>, vector<1x18x16xf32>,
    %cst_16 = arith.constant 0.000000e+00 : f32
    %23 = vector.broadcast %cst_16 : f32 to vector<1x18x16xf32>
    %c17 = arith.constant 17 : index
    %c0_17 = arith.constant 0 : index
    %c0_18 = arith.constant 0 : index
    %24 = vector.load %arg8[%c17, %c0_17, %c0_18] : memref<18x18x16xf32, #tpu.memory_space<vmem>>, vector<1x18x16xf32>
    tpu.vector_store %arg8[%c17, %c0_17, %c0_18], %23 {strides = array<i32>} : memref<18x18x16xf32, #tpu.memory_space<vmem>>, vector<1x18x16xf32>,
    %cst_19 = arith.constant 0.000000e+00 : f32
    %25 = vector.broadcast %cst_19 : f32 to vector<18x1x16xf32>
    %c0_20 = arith.constant 0 : index
    %c0_21 = arith.constant 0 : index
    %c0_22 = arith.constant 0 : index
    %26 = vector.load %arg8[%c0_20, %c0_21, %c0_22] : memref<18x18x16xf32, #tpu.memory_space<vmem>>, vector<18x1x16xf32>
    tpu.vector_store %arg8[%c0_20, %c0_21, %c0_22], %25 {strides = array<i32>} : memref<18x18x16xf32, #tpu.memory_space<vmem>>, vector<18x1x16xf32>,
    %cst_23 = arith.constant 0.000000e+00 : f32
    %27 = vector.broadcast %cst_23 : f32 to vector<18x1x16xf32>
    %c0_24 = arith.constant 0 : index
    %c17_25 = arith.constant 17 : index
    %c0_26 = arith.constant 0 : index
    %28 = vector.load %arg8[%c0_24, %c17_25, %c0_26] : memref<18x18x16xf32, #tpu.memory_space<vmem>>, vector<18x1x16xf32>
    tpu.vector_store %arg8[%c0_24, %c17_25, %c0_26], %27 {strides = array<i32>} : memref<18x18x16xf32, #tpu.memory_space<vmem>>, vector<18x1x16xf32>,
    %c1 = arith.constant 1 : index
    %c1_27 = arith.constant 1 : index
    %c0_28 = arith.constant 0 : index
    %29 = vector.load %arg8[%c1, %c1_27, %c0_28] : memref<18x18x16xf32, #tpu.memory_space<vmem>>, vector<16x16x16xf32>
    tpu.vector_store %arg8[%c1, %c1_27, %c0_28], %20 {strides = array<i32>} : memref<18x18x16xf32, #tpu.memory_space<vmem>>, vector<16x16x16xf32>,
    %c0_29 = arith.constant 0 : index
    %c0_30 = arith.constant 0 : index
    %30 = vector.load %arg5[%c0_29, %c0_30] : memref<9x16xf32, #tpu.memory_space<vmem>>, vector<9x16xf32>
    %cst_31 = arith.constant 0.000000e+00 : f32
    %31 = vector.broadcast %cst_31 : f32 to vector<16x16x16xf32>
    %c0_32 = arith.constant 0 : index
    %c0_33 = arith.constant 0 : index
    %c0_34 = arith.constant 0 : index
    %32 = vector.load %arg8[%c0_32, %c0_33, %c0_34] : memref<18x18x16xf32, #tpu.memory_space<vmem>>, vector<16x18x16xf32>
    %33 = vector.extract_strided_slice %32 {offsets = [0, 0, 0], sizes = [16, 16, 16], strides = [1, 1, 1]} : vector<16x18x16xf32> to vector<16x16x16xf32>
    %34 = vector.extract_strided_slice %30 {offsets = [0, 0], sizes = [1, 16], strides = [1, 1]} : vector<9x16xf32> to vector<1x16xf32>
    %35 = vector.shape_cast %34 : vector<1x16xf32> to vector<1x1x16xf32>
    %36 = vector.broadcast %35 : vector<1x1x16xf32> to vector<16x16x16xf32>
    %37 = arith.mulf %33, %36 : vector<16x16x16xf32>
    %38 = arith.addf %31, %37 : vector<16x16x16xf32>
    %39 = vector.extract_strided_slice %32 {offsets = [0, 1, 0], sizes = [16, 16, 16], strides = [1, 1, 1]} : vector<16x18x16xf32> to vector<16x16x16xf32>
    %40 = vector.extract_strided_slice %30 {offsets = [1, 0], sizes = [1, 16], strides = [1, 1]} : vector<9x16xf32> to vector<1x16xf32>
    %41 = vector.shape_cast %40 : vector<1x16xf32> to vector<1x1x16xf32>
    %42 = vector.broadcast %41 : vector<1x1x16xf32> to vector<16x16x16xf32>
    %43 = arith.mulf %39, %42 : vector<16x16x16xf32>
    %44 = arith.addf %38, %43 : vector<16x16x16xf32>
    %45 = vector.extract_strided_slice %32 {offsets = [0, 2, 0], sizes = [16, 16, 16], strides = [1, 1, 1]} : vector<16x18x16xf32> to vector<16x16x16xf32>
    %46 = vector.extract_strided_slice %30 {offsets = [2, 0], sizes = [1, 16], strides = [1, 1]} : vector<9x16xf32> to vector<1x16xf32>
    %47 = vector.shape_cast %46 : vector<1x16xf32> to vector<1x1x16xf32>
    %48 = vector.broadcast %47 : vector<1x1x16xf32> to vector<16x16x16xf32>
    %49 = arith.mulf %45, %48 : vector<16x16x16xf32>
    %50 = arith.addf %44, %49 : vector<16x16x16xf32>
    %c1_35 = arith.constant 1 : index
    %c0_36 = arith.constant 0 : index
    %c0_37 = arith.constant 0 : index
    %51 = vector.load %arg8[%c1_35, %c0_36, %c0_37] : memref<18x18x16xf32, #tpu.memory_space<vmem>>, vector<16x18x16xf32>
    %52 = vector.extract_strided_slice %51 {offsets = [0, 0, 0], sizes = [16, 16, 16], strides = [1, 1, 1]} : vector<16x18x16xf32> to vector<16x16x16xf32>
    %53 = vector.extract_strided_slice %30 {offsets = [3, 0], sizes = [1, 16], strides = [1, 1]} : vector<9x16xf32> to vector<1x16xf32>
    %54 = vector.shape_cast %53 : vector<1x16xf32> to vector<1x1x16xf32>
    %55 = vector.broadcast %54 : vector<1x1x16xf32> to vector<16x16x16xf32>
    %56 = arith.mulf %52, %55 : vector<16x16x16xf32>
    %57 = arith.addf %50, %56 : vector<16x16x16xf32>
    %58 = vector.extract_strided_slice %51 {offsets = [0, 1, 0], sizes = [16, 16, 16], strides = [1, 1, 1]} : vector<16x18x16xf32> to vector<16x16x16xf32>
    %59 = vector.extract_strided_slice %30 {offsets = [4, 0], sizes = [1, 16], strides = [1, 1]} : vector<9x16xf32> to vector<1x16xf32>
    %60 = vector.shape_cast %59 : vector<1x16xf32> to vector<1x1x16xf32>
    %61 = vector.broadcast %60 : vector<1x1x16xf32> to vector<16x16x16xf32>
    %62 = arith.mulf %58, %61 : vector<16x16x16xf32>
    %63 = arith.addf %57, %62 : vector<16x16x16xf32>
    %64 = vector.extract_strided_slice %51 {offsets = [0, 2, 0], sizes = [16, 16, 16], strides = [1, 1, 1]} : vector<16x18x16xf32> to vector<16x16x16xf32>
    %65 = vector.extract_strided_slice %30 {offsets = [5, 0], sizes = [1, 16], strides = [1, 1]} : vector<9x16xf32> to vector<1x16xf32>
    %66 = vector.shape_cast %65 : vector<1x16xf32> to vector<1x1x16xf32>
    %67 = vector.broadcast %66 : vector<1x1x16xf32> to vector<16x16x16xf32>
    %68 = arith.mulf %64, %67 : vector<16x16x16xf32>
    %69 = arith.addf %63, %68 : vector<16x16x16xf32>
    %c2 = arith.constant 2 : index
    %c0_38 = arith.constant 0 : index
    %c0_39 = arith.constant 0 : index
    %70 = vector.load %arg8[%c2, %c0_38, %c0_39] : memref<18x18x16xf32, #tpu.memory_space<vmem>>, vector<16x18x16xf32>
    %71 = vector.extract_strided_slice %70 {offsets = [0, 0, 0], sizes = [16, 16, 16], strides = [1, 1, 1]} : vector<16x18x16xf32> to vector<16x16x16xf32>
    %72 = vector.extract_strided_slice %30 {offsets = [6, 0], sizes = [1, 16], strides = [1, 1]} : vector<9x16xf32> to vector<1x16xf32>
    %73 = vector.shape_cast %72 : vector<1x16xf32> to vector<1x1x16xf32>
    %74 = vector.broadcast %73 : vector<1x1x16xf32> to vector<16x16x16xf32>
    %75 = arith.mulf %71, %74 : vector<16x16x16xf32>
    %76 = arith.addf %69, %75 : vector<16x16x16xf32>
    %77 = vector.extract_strided_slice %70 {offsets = [0, 1, 0], sizes = [16, 16, 16], strides = [1, 1, 1]} : vector<16x18x16xf32> to vector<16x16x16xf32>
    %78 = vector.extract_strided_slice %30 {offsets = [7, 0], sizes = [1, 16], strides = [1, 1]} : vector<9x16xf32> to vector<1x16xf32>
    %79 = vector.shape_cast %78 : vector<1x16xf32> to vector<1x1x16xf32>
    %80 = vector.broadcast %79 : vector<1x1x16xf32> to vector<16x16x16xf32>
    %81 = arith.mulf %77, %80 : vector<16x16x16xf32>
    %82 = arith.addf %76, %81 : vector<16x16x16xf32>
    %83 = vector.extract_strided_slice %70 {offsets = [0, 2, 0], sizes = [16, 16, 16], strides = [1, 1, 1]} : vector<16x18x16xf32> to vector<16x16x16xf32>
    %84 = vector.extract_strided_slice %30 {offsets = [8, 0], sizes = [1, 16], strides = [1, 1]} : vector<9x16xf32> to vector<1x16xf32>
    %85 = vector.shape_cast %84 : vector<1x16xf32> to vector<1x1x16xf32>
    %86 = vector.broadcast %85 : vector<1x1x16xf32> to vector<16x16x16xf32>
    %87 = arith.mulf %83, %86 : vector<16x16x16xf32>
    %88 = arith.addf %82, %87 : vector<16x16x16xf32>
    %89 = vector.shape_cast %88 : vector<16x16x16xf32> to vector<256x16xf32>
    %cst_40 = arith.constant dense<0.000000e+00> : vector<16xf32>
    %90 = vector.multi_reduction <add>, %89, %cst_40 [0] : vector<256x16xf32> to vector<16xf32>
    %91 = vector.shape_cast %90 : vector<16xf32> to vector<1x16xf32>
    %92 = vector.shape_cast %91 : vector<1x16xf32> to vector<1x1x16xf32>
    %c0_41 = arith.constant 0 : index
    %c0_42 = arith.constant 0 : index
    %c0_43 = arith.constant 0 : index
    %93 = vector.load %arg7[%c0_41, %c0_42, %c0_43] : memref<1x2x16xf32, #tpu.memory_space<vmem>>, vector<1x1x16xf32>
    tpu.vector_store %arg7[%c0_41, %c0_42, %c0_43], %92 {strides = array<i32>} : memref<1x2x16xf32, #tpu.memory_space<vmem>>, vector<1x1x16xf32>,
    %94 = arith.mulf %89, %89 : vector<256x16xf32>
    %cst_44 = arith.constant dense<0.000000e+00> : vector<16xf32>
    %95 = vector.multi_reduction <add>, %94, %cst_44 [0] : vector<256x16xf32> to vector<16xf32>
    %96 = vector.shape_cast %95 : vector<16xf32> to vector<1x16xf32>
    %97 = vector.shape_cast %96 : vector<1x16xf32> to vector<1x1x16xf32>
    %c0_45 = arith.constant 0 : index
    %c1_46 = arith.constant 1 : index
    %c0_47 = arith.constant 0 : index
    %98 = vector.load %arg7[%c0_45, %c1_46, %c0_47] : memref<1x2x16xf32, #tpu.memory_space<vmem>>, vector<1x1x16xf32>
    tpu.vector_store %arg7[%c0_45, %c1_46, %c0_47], %97 {strides = array<i32>} : memref<1x2x16xf32, #tpu.memory_space<vmem>>, vector<1x1x16xf32>,
    %99 = vector.shape_cast %88 : vector<16x16x16xf32> to vector<1x16x16x16xf32>
    %c0_48 = arith.constant 0 : index
    %c0_49 = arith.constant 0 : index
    %c0_50 = arith.constant 0 : index
    %c0_51 = arith.constant 0 : index
    %100 = vector.load %arg6[%c0_48, %c0_49, %c0_50, %c0_51] : memref<1x16x16x16xf32, #tpu.memory_space<vmem>>, vector<1x16x16x16xf32>
    tpu.vector_store %arg6[%c0_48, %c0_49, %c0_50, %c0_51], %99 {strides = array<i32>} : memref<1x16x16x16xf32, #tpu.memory_space<vmem>>, vector<1x16x16x16xf32>,
    return
  }
  func.func @transform_0(%arg0: i32) -> (i32, i32, i32, i32) {
    %c0_i32 = arith.constant 0 : i32
    %c0_i32_0 = arith.constant 0 : i32
    %c0_i32_1 = arith.constant 0 : i32
    %c0_i32_2 = arith.constant 0 : i32
    return %arg0, %c0_i32, %c0_i32_0, %c0_i32_1 : i32, i32, i32, i32
  }
  func.func @transform_1(%arg0: i32) -> (i32, i32) {
    %c0_i32 = arith.constant 0 : i32
    %c0_i32_0 = arith.constant 0 : i32
    %c0_i32_1 = arith.constant 0 : i32
    return %c0_i32, %c0_i32_0 : i32, i32
  }
  func.func @transform_2(%arg0: i32) -> (i32, i32) {
    %c0_i32 = arith.constant 0 : i32
    %c0_i32_0 = arith.constant 0 : i32
    %c0_i32_1 = arith.constant 0 : i32
    return %c0_i32, %c0_i32_0 : i32, i32
  }
  func.func @transform_3(%arg0: i32) -> (i32, i32) {
    %c0_i32 = arith.constant 0 : i32
    %c0_i32_0 = arith.constant 0 : i32
    %c0_i32_1 = arith.constant 0 : i32
    return %c0_i32, %c0_i32_0 : i32, i32
  }
  func.func @transform_4(%arg0: i32) -> (i32, i32) {
    %c0_i32 = arith.constant 0 : i32
    %c0_i32_0 = arith.constant 0 : i32
    %c0_i32_1 = arith.constant 0 : i32
    return %c0_i32, %c0_i32_0 : i32, i32
  }
  func.func @transform_5(%arg0: i32) -> (i32, i32, i32, i32) {
    %c0_i32 = arith.constant 0 : i32
    %c0_i32_0 = arith.constant 0 : i32
    %c0_i32_1 = arith.constant 0 : i32
    %c0_i32_2 = arith.constant 0 : i32
    return %arg0, %c0_i32, %c0_i32_0, %c0_i32_1 : i32, i32, i32, i32
  }
  func.func @transform_6(%arg0: i32) -> (i32, i32, i32) {
    %c0_i32 = arith.constant 0 : i32
    %c0_i32_0 = arith.constant 0 : i32
    %c0_i32_1 = arith.constant 0 : i32
    return %arg0, %c0_i32, %c0_i32_0 : i32, i32, i32
  }
}

module attributes {stable_mosaic.version = 11 : i64} {
  func.func @kernel(%arg0: i32, %arg1: memref<512x8xf32, #tpu.memory_space<vmem>>, %arg2: memref<512x4xf32, #tpu.memory_space<vmem>>, %arg3: memref<4x8xf32, #tpu.memory_space<vmem>>, %arg4: memref<1x8xf32, #tpu.memory_space<vmem>>, %arg5: memref<1x8xf32, #tpu.memory_space<vmem>>, %arg6: memref<1x8xf32, #tpu.memory_space<vmem>>, %arg7: memref<1x8xf32, #tpu.memory_space<vmem>>, %arg8: memref<512x8xf32, #tpu.memory_space<vmem>>) attributes {dimension_semantics = [#tpu.dimension_semantics<parallel>], iteration_bounds = array<i64: 1>, scalar_prefetch = 0 : i64, scratch_operands = 0 : i64, tpu.core_type = #tpu.core_type<tc>, window_params = [{transform_indices = @transform_0, window_bounds = array<i64: 512, 8>}, {transform_indices = @transform_1, window_bounds = array<i64: 512, 4>}, {pipeline_mode = #tpu.pipeline_mode<synchronous>, transform_indices = @transform_2, window_bounds = array<i64: 4, 8>}, {pipeline_mode = #tpu.pipeline_mode<synchronous>, transform_indices = @transform_3, window_bounds = array<i64: 1, 8>}, {pipeline_mode = #tpu.pipeline_mode<synchronous>, transform_indices = @transform_4, window_bounds = array<i64: 1, 8>}, {pipeline_mode = #tpu.pipeline_mode<synchronous>, transform_indices = @transform_5, window_bounds = array<i64: 1, 8>}, {pipeline_mode = #tpu.pipeline_mode<synchronous>, transform_indices = @transform_6, window_bounds = array<i64: 1, 8>}, {transform_indices = @transform_7, window_bounds = array<i64: 512, 8>}]} {
    %c0 = arith.constant 0 : index
    %c0_0 = arith.constant 0 : index
    %0 = vector.load %arg2[%c0, %c0_0] : memref<512x4xf32, #tpu.memory_space<vmem>>, vector<512x4xf32>
    %c0_1 = arith.constant 0 : index
    %c0_2 = arith.constant 0 : index
    %1 = vector.load %arg3[%c0_1, %c0_2] : memref<4x8xf32, #tpu.memory_space<vmem>>, vector<4x8xf32>
    %cst = arith.constant dense<0.000000e+00> : vector<512x8xf32>
    %2 = tpu.matmul %0, %1, %cst {dimension_numbers = #tpu.dot_dimension_numbers<[1], [0], [0], [1], [0, 0, 1, 1], [], []>} : vector<512x4xf32>, vector<4x8xf32>, vector<512x8xf32> -> vector<512x8xf32>
    %c0_3 = arith.constant 0 : index
    %c0_4 = arith.constant 0 : index
    %3 = vector.load %arg1[%c0_3, %c0_4] : memref<512x8xf32, #tpu.memory_space<vmem>>, vector<512x8xf32>
    %c0_5 = arith.constant 0 : index
    %c0_6 = arith.constant 0 : index
    %4 = vector.load %arg4[%c0_5, %c0_6] : memref<1x8xf32, #tpu.memory_space<vmem>>, vector<1x8xf32>
    %5 = vector.broadcast %4 : vector<1x8xf32> to vector<512x8xf32>
    %6 = arith.mulf %3, %5 : vector<512x8xf32>
    %c0_7 = arith.constant 0 : index
    %c0_8 = arith.constant 0 : index
    %7 = vector.load %arg5[%c0_7, %c0_8] : memref<1x8xf32, #tpu.memory_space<vmem>>, vector<1x8xf32>
    %8 = vector.broadcast %7 : vector<1x8xf32> to vector<512x8xf32>
    %9 = arith.addf %6, %8 : vector<512x8xf32>
    %c0_9 = arith.constant 0 : index
    %c0_10 = arith.constant 0 : index
    %10 = vector.load %arg6[%c0_9, %c0_10] : memref<1x8xf32, #tpu.memory_space<vmem>>, vector<1x8xf32>
    %11 = vector.broadcast %10 : vector<1x8xf32> to vector<512x8xf32>
    %12 = arith.mulf %2, %11 : vector<512x8xf32>
    %13 = arith.addf %9, %12 : vector<512x8xf32>
    %c0_11 = arith.constant 0 : index
    %c0_12 = arith.constant 0 : index
    %14 = vector.load %arg7[%c0_11, %c0_12] : memref<1x8xf32, #tpu.memory_space<vmem>>, vector<1x8xf32>
    %15 = vector.broadcast %14 : vector<1x8xf32> to vector<512x8xf32>
    %16 = arith.addf %13, %15 : vector<512x8xf32>
    %c0_13 = arith.constant 0 : index
    %c0_14 = arith.constant 0 : index
    %17 = vector.load %arg8[%c0_13, %c0_14] : memref<512x8xf32, #tpu.memory_space<vmem>>, vector<512x8xf32>
    tpu.vector_store %arg8[%c0_13, %c0_14], %16 {strides = array<i32>} : memref<512x8xf32, #tpu.memory_space<vmem>>, vector<512x8xf32>,
    return
  }
  func.func @transform_0(%arg0: i32) -> (i32, i32) {
    %c0_i32 = arith.constant 0 : i32
    %c0_i32_0 = arith.constant 0 : i32
    return %arg0, %c0_i32 : i32, i32
  }
  func.func @transform_1(%arg0: i32) -> (i32, i32) {
    %c0_i32 = arith.constant 0 : i32
    %c0_i32_0 = arith.constant 0 : i32
    return %arg0, %c0_i32 : i32, i32
  }
  func.func @transform_2(%arg0: i32) -> (i32, i32) {
    %c0_i32 = arith.constant 0 : i32
    %c0_i32_0 = arith.constant 0 : i32
    %c0_i32_1 = arith.constant 0 : i32
    return %c0_i32, %c0_i32_0 : i32, i32
  }
  func.func @transform_3(%arg0: i32) -> (i32, i32) {
    %c0_i32 = arith.constant 0 : i32
    %c0_i32_0 = arith.constant 0 : i32
    %c0_i32_1 = arith.constant 0 : i32
    return %c0_i32, %c0_i32_0 : i32, i32
  }
  func.func @transform_4(%arg0: i32) -> (i32, i32) {
    %c0_i32 = arith.constant 0 : i32
    %c0_i32_0 = arith.constant 0 : i32
    %c0_i32_1 = arith.constant 0 : i32
    return %c0_i32, %c0_i32_0 : i32, i32
  }
  func.func @transform_5(%arg0: i32) -> (i32, i32) {
    %c0_i32 = arith.constant 0 : i32
    %c0_i32_0 = arith.constant 0 : i32
    %c0_i32_1 = arith.constant 0 : i32
    return %c0_i32, %c0_i32_0 : i32, i32
  }
  func.func @transform_6(%arg0: i32) -> (i32, i32) {
    %c0_i32 = arith.constant 0 : i32
    %c0_i32_0 = arith.constant 0 : i32
    %c0_i32_1 = arith.constant 0 : i32
    return %c0_i32, %c0_i32_0 : i32, i32
  }
  func.func @transform_7(%arg0: i32) -> (i32, i32) {
    %c0_i32 = arith.constant 0 : i32
    %c0_i32_0 = arith.constant 0 : i32
    return %arg0, %c0_i32 : i32, i32
  }
}

module attributes {stable_mosaic.version = 11 : i64} {
  func.func @kernel(%arg0: i32, %arg1: memref<512x16xf32, #tpu.memory_space<vmem>>, %arg2: memref<1x16xf32, #tpu.memory_space<vmem>>, %arg3: memref<1x16xf32, #tpu.memory_space<vmem>>, %arg4: memref<16x8xf32, #tpu.memory_space<vmem>>, %arg5: memref<512x8xf32, #tpu.memory_space<vmem>>, %arg6: memref<1x2x8xf32, #tpu.memory_space<vmem>>) attributes {dimension_semantics = [#tpu.dimension_semantics<parallel>], iteration_bounds = array<i64: 1>, scalar_prefetch = 0 : i64, scratch_operands = 0 : i64, tpu.core_type = #tpu.core_type<tc>, window_params = [{transform_indices = @transform_0, window_bounds = array<i64: 512, 16>}, {pipeline_mode = #tpu.pipeline_mode<synchronous>, transform_indices = @transform_1, window_bounds = array<i64: 1, 16>}, {pipeline_mode = #tpu.pipeline_mode<synchronous>, transform_indices = @transform_2, window_bounds = array<i64: 1, 16>}, {pipeline_mode = #tpu.pipeline_mode<synchronous>, transform_indices = @transform_3, window_bounds = array<i64: 16, 8>}, {transform_indices = @transform_4, window_bounds = array<i64: 512, 8>}, {transform_indices = @transform_5, window_bounds = array<i64: 1, 2, 8>}]} {
    %c0 = arith.constant 0 : index
    %c0_0 = arith.constant 0 : index
    %0 = vector.load %arg1[%c0, %c0_0] : memref<512x16xf32, #tpu.memory_space<vmem>>, vector<512x16xf32>
    %c0_1 = arith.constant 0 : index
    %c0_2 = arith.constant 0 : index
    %1 = vector.load %arg2[%c0_1, %c0_2] : memref<1x16xf32, #tpu.memory_space<vmem>>, vector<1x16xf32>
    %2 = vector.broadcast %1 : vector<1x16xf32> to vector<512x16xf32>
    %3 = arith.mulf %0, %2 : vector<512x16xf32>
    %c0_3 = arith.constant 0 : index
    %c0_4 = arith.constant 0 : index
    %4 = vector.load %arg3[%c0_3, %c0_4] : memref<1x16xf32, #tpu.memory_space<vmem>>, vector<1x16xf32>
    %5 = vector.broadcast %4 : vector<1x16xf32> to vector<512x16xf32>
    %6 = arith.addf %3, %5 : vector<512x16xf32>
    %cst = arith.constant 0.000000e+00 : f32
    %7 = vector.broadcast %cst : f32 to vector<512x16xf32>
    %8 = arith.subf %7, %6 : vector<512x16xf32>
    %9 = math.exp %8 : vector<512x16xf32>
    %cst_5 = arith.constant 1.000000e+00 : f32
    %10 = vector.broadcast %cst_5 : f32 to vector<512x16xf32>
    %11 = arith.addf %10, %9 : vector<512x16xf32>
    %cst_6 = arith.constant 1.000000e+00 : f32
    %12 = vector.broadcast %cst_6 : f32 to vector<512x16xf32>
    %13 = arith.divf %12, %11 : vector<512x16xf32>
    %14 = arith.mulf %6, %13 : vector<512x16xf32>
    %c0_7 = arith.constant 0 : index
    %c0_8 = arith.constant 0 : index
    %15 = vector.load %arg4[%c0_7, %c0_8] : memref<16x8xf32, #tpu.memory_space<vmem>>, vector<16x8xf32>
    %cst_9 = arith.constant dense<0.000000e+00> : vector<512x8xf32>
    %16 = tpu.matmul %14, %15, %cst_9 {dimension_numbers = #tpu.dot_dimension_numbers<[1], [0], [0], [1], [0, 0, 1, 1], [], []>} : vector<512x16xf32>, vector<16x8xf32>, vector<512x8xf32> -> vector<512x8xf32>
    %cst_10 = arith.constant dense<0.000000e+00> : vector<8xf32>
    %17 = vector.multi_reduction <add>, %16, %cst_10 [0] : vector<512x8xf32> to vector<8xf32>
    %18 = vector.shape_cast %17 : vector<8xf32> to vector<1x8xf32>
    %19 = vector.shape_cast %18 : vector<1x8xf32> to vector<1x1x8xf32>
    %c0_11 = arith.constant 0 : index
    %c0_12 = arith.constant 0 : index
    %c0_13 = arith.constant 0 : index
    %20 = vector.load %arg6[%c0_11, %c0_12, %c0_13] : memref<1x2x8xf32, #tpu.memory_space<vmem>>, vector<1x1x8xf32>
    tpu.vector_store %arg6[%c0_11, %c0_12, %c0_13], %19 {strides = array<i32>} : memref<1x2x8xf32, #tpu.memory_space<vmem>>, vector<1x1x8xf32>,
    %21 = arith.mulf %16, %16 : vector<512x8xf32>
    %cst_14 = arith.constant dense<0.000000e+00> : vector<8xf32>
    %22 = vector.multi_reduction <add>, %21, %cst_14 [0] : vector<512x8xf32> to vector<8xf32>
    %23 = vector.shape_cast %22 : vector<8xf32> to vector<1x8xf32>
    %24 = vector.shape_cast %23 : vector<1x8xf32> to vector<1x1x8xf32>
    %c0_15 = arith.constant 0 : index
    %c1 = arith.constant 1 : index
    %c0_16 = arith.constant 0 : index
    %25 = vector.load %arg6[%c0_15, %c1, %c0_16] : memref<1x2x8xf32, #tpu.memory_space<vmem>>, vector<1x1x8xf32>
    tpu.vector_store %arg6[%c0_15, %c1, %c0_16], %24 {strides = array<i32>} : memref<1x2x8xf32, #tpu.memory_space<vmem>>, vector<1x1x8xf32>,
    %c0_17 = arith.constant 0 : index
    %c0_18 = arith.constant 0 : index
    %26 = vector.load %arg5[%c0_17, %c0_18] : memref<512x8xf32, #tpu.memory_space<vmem>>, vector<512x8xf32>
    tpu.vector_store %arg5[%c0_17, %c0_18], %16 {strides = array<i32>} : memref<512x8xf32, #tpu.memory_space<vmem>>, vector<512x8xf32>,
    return
  }
  func.func @transform_0(%arg0: i32) -> (i32, i32) {
    %c0_i32 = arith.constant 0 : i32
    %c0_i32_0 = arith.constant 0 : i32
    return %arg0, %c0_i32 : i32, i32
  }
  func.func @transform_1(%arg0: i32) -> (i32, i32) {
    %c0_i32 = arith.constant 0 : i32
    %c0_i32_0 = arith.constant 0 : i32
    %c0_i32_1 = arith.constant 0 : i32
    return %c0_i32, %c0_i32_0 : i32, i32
  }
  func.func @transform_2(%arg0: i32) -> (i32, i32) {
    %c0_i32 = arith.constant 0 : i32
    %c0_i32_0 = arith.constant 0 : i32
    %c0_i32_1 = arith.constant 0 : i32
    return %c0_i32, %c0_i32_0 : i32, i32
  }
  func.func @transform_3(%arg0: i32) -> (i32, i32) {
    %c0_i32 = arith.constant 0 : i32
    %c0_i32_0 = arith.constant 0 : i32
    %c0_i32_1 = arith.constant 0 : i32
    return %c0_i32, %c0_i32_0 : i32, i32
  }
  func.func @transform_4(%arg0: i32) -> (i32, i32) {
    %c0_i32 = arith.constant 0 : i32
    %c0_i32_0 = arith.constant 0 : i32
    return %arg0, %c0_i32 : i32, i32
  }
  func.func @transform_5(%arg0: i32) -> (i32, i32, i32) {
    %c0_i32 = arith.constant 0 : i32
    %c0_i32_0 = arith.constant 0 : i32
    %c0_i32_1 = arith.constant 0 : i32
    return %arg0, %c0_i32, %c0_i32_0 : i32, i32, i32
  }
}

</mosaic_0001>

<llo_original>
// kernel: mbconv_forward.4
$region0: #{mbconv_forward.4}
  #allocation0 [shape = 'u32[]', space=smem, size = 0x4, offset = 0x4, fixed_abs, tag = 'smem constant byte address 0x4 - core index']
  #allocation1 [shape = 'u32[144,128]{1,0:T(1,128)}', space=vmem, size = 0x12000, scoped, tag = 'internal scratch']
  %s0 = inlined_call_operand.vmem [shape: f32[512,4], index: 0, kind: input, shape index: {}]
  %s1 = inlined_call_operand.vmem [shape: f32[4,24], index: 1, kind: input, shape index: {}]
  %s2 = inlined_call_operand.vmem [shape: f32[1,2,24], index: 2, kind: output, shape index: {}]
  %s3 = sld [smem:[#allocation0]]
  $region18: #{mbconv_forward.4} parent=0
    _
  %s5 = ssub.s32 1, %s3
  %s6 = scalar_select 0, %s5, %s3
  // Predicated region
  $region2: #{mbconv_forward.4} parent=0 // pred_check
    _
  $region3: #{mbconv_forward.4} parent=0 // pred_check_branch
    %8 = sbr.rel (0) target = $region5
  $region4: #{mbconv_forward.4} parent=0 // pred_region
    _
  $region5: #{mbconv_forward.4} parent=0 // pred_fallthru
    _
  // Predicated region
  $region6: #{mbconv_forward.4} parent=0 // pred_check
    _
  $region7: #{mbconv_forward.4} parent=0 // pred_check_branch
    %10 = sbr.rel (0) target = $region9
  $region8: #{mbconv_forward.4} parent=0 // pred_region
    _
  $region9: #{mbconv_forward.4} parent=0 // pred_fallthru
    _
  %v11 = vld [vmem:[%s0] sm:$0xff]
  %v12 = vld [vmem:[%s0 + $0x8] sm:$0xff]
  %v13 = vld [vmem:[%s0 + $0x10] sm:$0xff]
  %v14 = vld [vmem:[%s0 + $0x18] sm:$0xff]
  %v15 = vld [vmem:[%s0 + $0x20] sm:$0xff]
  %v16 = vld [vmem:[%s0 + $0x28] sm:$0xff]
  %v17 = vld [vmem:[%s0 + $0x30] sm:$0xff]
  %v18 = vld [vmem:[%s0 + $0x38] sm:$0xff]
  %v19 = vld [vmem:[%s0 + $0x40] sm:$0xff]
  %v20 = vld [vmem:[%s0 + $0x48] sm:$0xff]
  %v21 = vld [vmem:[%s0 + $0x50] sm:$0xff]
  %v22 = vld [vmem:[%s0 + $0x58] sm:$0xff]
  %v23 = vld [vmem:[%s0 + $0x60] sm:$0xff]
  %v24 = vld [vmem:[%s0 + $0x68] sm:$0xff]
  %v25 = vld [vmem:[%s0 + $0x70] sm:$0xff]
  %v26 = vld [vmem:[%s0 + $0x78] sm:$0xff]
  %v27 = vld [vmem:[%s0 + $0x80] sm:$0xff]
  %v28 = vld [vmem:[%s0 + $0x88] sm:$0xff]
  %v29 = vld [vmem:[%s0 + $0x90] sm:$0xff]
  %v30 = vld [vmem:[%s0 + $0x98] sm:$0xff]
  %v31 = vld [vmem:[%s0 + $0xa0] sm:$0xff]
  %v32 = vld [vmem:[%s0 + $0xa8] sm:$0xff]
  %v33 = vld [vmem:[%s0 + $0xb0] sm:$0xff]
  %v34 = vld [vmem:[%s0 + $0xb8] sm:$0xff]
  %v35 = vld [vmem:[%s0 + $0xc0] sm:$0xff]
  %v36 = vld [vmem:[%s0 + $0xc8] sm:$0xff]
  %v37 = vld [vmem:[%s0 + $0xd0] sm:$0xff]
  %v38 = vld [vmem:[%s0 + $0xd8] sm:$0xff]
  %v39 = vld [vmem:[%s0 + $0xe0] sm:$0xff]
  %v40 = vld [vmem:[%s0 + $0xe8] sm:$0xff]
  %v41 = vld [vmem:[%s0 + $0xf0] sm:$0xff]
  %v42 = vld [vmem:[%s0 + $0xf8] sm:$0xff]
  %v43 = vld [vmem:[%s0 + $0x100] sm:$0xff]
  %v44 = vld [vmem:[%s0 + $0x108] sm:$0xff]
  %v45 = vld [vmem:[%s0 + $0x110] sm:$0xff]
  %v46 = vld [vmem:[%s0 + $0x118] sm:$0xff]
  %v47 = vld [vmem:[%s0 + $0x120] sm:$0xff]
  %v48 = vld [vmem:[%s0 + $0x128] sm:$0xff]
  %v49 = vld [vmem:[%s0 + $0x130] sm:$0xff]
  %v50 = vld [vmem:[%s0 + $0x138] sm:$0xff]
  %v51 = vld [vmem:[%s0 + $0x140] sm:$0xff]
  %v52 = vld [vmem:[%s0 + $0x148] sm:$0xff]
  %v53 = vld [vmem:[%s0 + $0x150] sm:$0xff]
  %v54 = vld [vmem:[%s0 + $0x158] sm:$0xff]
  %v55 = vld [vmem:[%s0 + $0x160] sm:$0xff]
  %v56 = vld [vmem:[%s0 + $0x168] sm:$0xff]
  %v57 = vld [vmem:[%s0 + $0x170] sm:$0xff]
  %v58 = vld [vmem:[%s0 + $0x178] sm:$0xff]
  %v59 = vld [vmem:[%s0 + $0x180] sm:$0xff]
  %v60 = vld [vmem:[%s0 + $0x188] sm:$0xff]
  %v61 = vld [vmem:[%s0 + $0x190] sm:$0xff]
  %v62 = vld [vmem:[%s0 + $0x198] sm:$0xff]
  %v63 = vld [vmem:[%s0 + $0x1a0] sm:$0xff]
  %v64 = vld [vmem:[%s0 + $0x1a8] sm:$0xff]
  %v65 = vld [vmem:[%s0 + $0x1b0] sm:$0xff]
  %v66 = vld [vmem:[%s0 + $0x1b8] sm:$0xff]
  %v67 = vld [vmem:[%s0 + $0x1c0] sm:$0xff]
  %v68 = vld [vmem:[%s0 + $0x1c8] sm:$0xff]
  %v69 = vld [vmem:[%s0 + $0x1d0] sm:$0xff]
  %v70 = vld [vmem:[%s0 + $0x1d8] sm:$0xff]
  %v71 = vld [vmem:[%s0 + $0x1e0] sm:$0xff]
  %v72 = vld [vmem:[%s0 + $0x1e8] sm:$0xff]
  %v73 = vld [vmem:[%s0 + $0x1f0] sm:$0xff]
  %v74 = vld [vmem:[%s0 + $0x1f8] sm:$0xff]
  %v75 = vld [vmem:[%s1] sm:$0xf]
  %vm76 = vcmask 31744
  %v78 = vsel %vm76, %v11, 0
  %v81 = vsel %vm76, %v12, 0
  %v84 = vsel %vm76, %v13, 0
  %v87 = vsel %vm76, %v14, 0
  %v90 = vsel %vm76, %v15, 0
  %v93 = vsel %vm76, %v16, 0
  %v96 = vsel %vm76, %v17, 0
  %v99 = vsel %vm76, %v18, 0
  %v102 = vsel %vm76, %v19, 0
  %v105 = vsel %vm76, %v20, 0
  %v108 = vsel %vm76, %v21, 0
  %v111 = vsel %vm76, %v22, 0
  %v114 = vsel %vm76, %v23, 0
  %v117 = vsel %vm76, %v24, 0
  %v120 = vsel %vm76, %v25, 0
  %v123 = vsel %vm76, %v26, 0
  %v126 = vsel %vm76, %v27, 0
  %v129 = vsel %vm76, %v28, 0
  %v132 = vsel %vm76, %v29, 0
  %v135 = vsel %vm76, %v30, 0
  %v138 = vsel %vm76, %v31, 0
  %v141 = vsel %vm76, %v32, 0
  %v144 = vsel %vm76, %v33, 0
  %v147 = vsel %vm76, %v34, 0
  %v150 = vsel %vm76, %v35, 0
  %v153 = vsel %vm76, %v36, 0
  %v156 = vsel %vm76, %v37, 0
  %v159 = vsel %vm76, %v38, 0
  %v162 = vsel %vm76, %v39, 0
  %v165 = vsel %vm76, %v40, 0
  %v168 = vsel %vm76, %v41, 0
  %v171 = vsel %vm76, %v42, 0
  %v174 = vsel %vm76, %v43, 0
  %v177 = vsel %vm76, %v44, 0
  %v180 = vsel %vm76, %v45, 0
  %v183 = vsel %vm76, %v46, 0
  %v186 = vsel %vm76, %v47, 0
  %v189 = vsel %vm76, %v48, 0
  %v192 = vsel %vm76, %v49, 0
  %v195 = vsel %vm76, %v50, 0
  %v198 = vsel %vm76, %v51, 0
  %v201 = vsel %vm76, %v52, 0
  %v204 = vsel %vm76, %v53, 0
  %v207 = vsel %vm76, %v54, 0
  %v210 = vsel %vm76, %v55, 0
  %v213 = vsel %vm76, %v56, 0
  %v216 = vsel %vm76, %v57, 0
  %v219 = vsel %vm76, %v58, 0
  %v222 = vsel %vm76, %v59, 0
  %v225 = vsel %vm76, %v60, 0
  %v228 = vsel %vm76, %v61, 0
  %v231 = vsel %vm76, %v62, 0
  %v234 = vsel %vm76, %v63, 0
  %v237 = vsel %vm76, %v64, 0
  %v240 = vsel %vm76, %v65, 0
  %v243 = vsel %vm76, %v66, 0
  %v246 = vsel %vm76, %v67, 0
  %v249 = vsel %vm76, %v68, 0
  %v252 = vsel %vm76, %v69, 0
  %v255 = vsel %vm76, %v70, 0
  %v258 = vsel %vm76, %v71, 0
  %v261 = vsel %vm76, %v72, 0
  %v264 = vsel %vm76, %v73, 0
  %v267 = vsel %vm76, %v74, 0
  %vm269 = vcmask 1043456
  %v271 = vsel %vm269, %v75, 0
  %273 = vmatprep.subr.mxu0 0.0
  %274 = vmatpush1.msra.mxu0 0.0
  %275 = vmatprep.subr.mxu0 0.0
  %276 = vmatpush1.msra.mxu0 0.0
  %277 = vmatprep.subr.mxu0 0.0
  %278 = vmatpush1.msra.mxu0 0.0
  %279 = vmatprep.subr.mxu0 0.0
  %280 = vmatpush1.msra.mxu0 0.0
  %281 = vmatprep.subr.mxu0 0.0
  %282 = vmatpush1.msra.mxu0 0.0
  %283 = vmatprep.subr.mxu0 0.0
  %284 = vmatpush1.msra.mxu0 0.0
  %285 = vmatprep.subr.mxu0 0.0
  %286 = vmatpush1.msra.mxu0 0.0
  %287 = vmatprep.subr.mxu0 0.0
  %288 = vmatpush1.msra.mxu0 0.0
  %289 = vmatprep.subr.mxu0 0.0
  %290 = vmatpush1.msra.mxu0 0.0
  %291 = vmatprep.subr.mxu0 0.0
  %292 = vmatpush1.msra.mxu0 0.0
  %293 = vmatprep.subr.mxu0 0.0
  %294 = vmatpush1.msra.mxu0 0.0
  %295 = vmatprep.subr.mxu0 0.0
  %296 = vmatpush1.msra.mxu0 0.0
  %297 = vmatprep.subr.mxu0 0.0
  %298 = vmatpush1.msra.mxu0 0.0
  %299 = vmatprep.subr.mxu0 0.0
  %300 = vmatpush1.msra.mxu0 0.0
  %301 = vmatprep.subr.mxu0 0.0
  %302 = vmatpush1.msra.mxu0 0.0
  %303 = vmatprep.subr.mxu0 0.0
  %304 = vmatpush1.msra.mxu0 %v271
  %305 = vmatprep.subr.mxu0 0.0
  %306 = vmatpush2.msra.mxu0 0.0
  %307 = vmatprep.subr.mxu0 0.0
  %308 = vmatpush2.msra.mxu0 0.0
  %309 = vmatprep.subr.mxu0 0.0
  %310 = vmatpush2.msra.mxu0 0.0
  %311 = vmatprep.subr.mxu0 0.0
  %312 = vmatpush2.msra.mxu0 0.0
  %313 = vmatprep.subr.mxu0 0.0
  %314 = vmatpush2.msra.mxu0 0.0
  %315 = vmatprep.subr.mxu0 0.0
  %316 = vmatpush2.msra.mxu0 0.0
  %317 = vmatprep.subr.mxu0 0.0
  %318 = vmatpush2.msra.mxu0 0.0
  %319 = vmatprep.subr.mxu0 0.0
  %320 = vmatpush2.msra.mxu0 0.0
  %321 = vmatprep.subr.mxu0 0.0
  %322 = vmatpush2.msra.mxu0 0.0
  %323 = vmatprep.subr.mxu0 0.0
  %324 = vmatpush2.msra.mxu0 0.0
  %325 = vmatprep.subr.mxu0 0.0
  %326 = vmatpush2.msra.mxu0 0.0
  %327 = vmatprep.subr.mxu0 0.0
  %328 = vmatpush2.msra.mxu0 0.0
  %329 = vmatprep.subr.mxu0 0.0
  %330 = vmatpush2.msra.mxu0 0.0
  %331 = vmatprep.subr.mxu0 0.0
  %332 = vmatpush2.msra.mxu0 0.0
  %333 = vmatprep.subr.mxu0 0.0
  %334 = vmatpush2.msra.mxu0 0.0
  %335 = vmatprep.subr.mxu0 0.0
  %336 = vmatpush2.msra.mxu0 0.0
  %337 = vmatprep.mubr.f32.mxu0 0.0
  %338 = vmatmul.mubr.f32.gmra.mxu0 %v78
  %v339 = vpop.f32.mrf.mxu0
  %v340 = vadd.f32 0.0, %v339
  %v341 = vpop.f32.mrf.mxu0
  %342 = vmatprep.mubr.f32.mxu0 0.0
  %343 = vmatmul.mubr.f32.gmra.mxu0 %v81
  %v344 = vpop.f32.mrf.mxu0
  %v345 = vadd.f32 0.0, %v344
  %v346 = vpop.f32.mrf.mxu0
  %347 = vmatprep.mubr.f32.mxu0 0.0
  %348 = vmatmul.mubr.f32.gmra.mxu0 %v84
  %v349 = vpop.f32.mrf.mxu0
  %v350 = vadd.f32 0.0, %v349
  %v351 = vpop.f32.mrf.mxu0
  %352 = vmatprep.mubr.f32.mxu0 0.0
  %353 = vmatmul.mubr.f32.gmra.mxu0 %v87
  %v354 = vpop.f32.mrf.mxu0
  %v355 = vadd.f32 0.0, %v354
  %v356 = vpop.f32.mrf.mxu0
  %357 = vmatprep.mubr.f32.mxu0 0.0
  %358 = vmatmul.mubr.f32.gmra.mxu0 %v90
  %v359 = vpop.f32.mrf.mxu0
  %v360 = vadd.f32 0.0, %v359
  %v361 = vpop.f32.mrf.mxu0
  %362 = vmatprep.mubr.f32.mxu0 0.0
  %363 = vmatmul.mubr.f32.gmra.mxu0 %v93
  %v364 = vpop.f32.mrf.mxu0
  %v365 = vadd.f32 0.0, %v364
  %v366 = vpop.f32.mrf.mxu0
  %367 = vmatprep.mubr.f32.mxu0 0.0
  %368 = vmatmul.mubr.f32.gmra.mxu0 %v96
  %v369 = vpop.f32.mrf.mxu0
  %v370 = vadd.f32 0.0, %v369
  %v371 = vpop.f32.mrf.mxu0
  %372 = vmatprep.mubr.f32.mxu0 0.0
  %373 = vmatmul.mubr.f32.gmra.mxu0 %v99
  %v374 = vpop.f32.mrf.mxu0
  %v375 = vadd.f32 0.0, %v374
  %v376 = vpop.f32.mrf.mxu0
  %377 = vmatprep.mubr.f32.mxu0 0.0
  %378 = vmatmul.mubr.f32.gmra.mxu0 %v102
  %v379 = vpop.f32.mrf.mxu0
  %v380 = vadd.f32 0.0, %v379
  %v381 = vpop.f32.mrf.mxu0
  %382 = vmatprep.mubr.f32.mxu0 0.0
  %383 = vmatmul.mubr.f32.gmra.mxu0 %v105
  %v384 = vpop.f32.mrf.mxu0
  %v385 = vadd.f32 0.0, %v384
  %v386 = vpop.f32.mrf.mxu0
  %387 = vmatprep.mubr.f32.mxu0 0.0
  %388 = vmatmul.mubr.f32.gmra.mxu0 %v108
  %v389 = vpop.f32.mrf.mxu0
  %v390 = vadd.f32 0.0, %v389
  %v391 = vpop.f32.mrf.mxu0
  %392 = vmatprep.mubr.f32.mxu0 0.0
  %393 = vmatmul.mubr.f32.gmra.mxu0 %v111
  %v394 = vpop.f32.mrf.mxu0
  %v395 = vadd.f32 0.0, %v394
  %v396 = vpop.f32.mrf.mxu0
  %397 = vmatprep.mubr.f32.mxu0 0.0
  %398 = vmatmul.mubr.f32.gmra.mxu0 %v114
  %v399 = vpop.f32.mrf.mxu0
  %v400 = vadd.f32 0.0, %v399
  %v401 = vpop.f32.mrf.mxu0
  %402 = vmatprep.mubr.f32.mxu0 0.0
  %403 = vmatmul.mubr.f32.gmra.mxu0 %v117
  %v404 = vpop.f32.mrf.mxu0
  %v405 = vadd.f32 0.0, %v404
  %v406 = vpop.f32.mrf.mxu0
  %407 = vmatprep.mubr.f32.mxu0 0.0
  %408 = vmatmul.mubr.f32.gmra.mxu0 %v120
  %v409 = vpop.f32.mrf.mxu0
  %v410 = vadd.f32 0.0, %v409
  %v411 = vpop.f32.mrf.mxu0
  %412 = vmatprep.mubr.f32.mxu0 0.0
  %413 = vmatmul.mubr.f32.gmra.mxu0 %v123
  %v414 = vpop.f32.mrf.mxu0
  %v415 = vadd.f32 0.0, %v414
  %v416 = vpop.f32.mrf.mxu0
  %417 = vmatprep.mubr.f32.mxu0 0.0
  %418 = vmatmul.mubr.f32.gmra.mxu0 %v126
  %v419 = vpop.f32.mrf.mxu0
  %v420 = vadd.f32 0.0, %v419
  %v421 = vpop.f32.mrf.mxu0
  %422 = vmatprep.mubr.f32.mxu0 0.0
  %423 = vmatmul.mubr.f32.gmra.mxu0 %v129
  %v424 = vpop.f32.mrf.mxu0
  %v425 = vadd.f32 0.0, %v424
  %v426 = vpop.f32.mrf.mxu0
  %427 = vmatprep.mubr.f32.mxu0 0.0
  %428 = vmatmul.mubr.f32.gmra.mxu0 %v132
  %v429 = vpop.f32.mrf.mxu0
  %v430 = vadd.f32 0.0, %v429
  %v431 = vpop.f32.mrf.mxu0
  %432 = vmatprep.mubr.f32.mxu0 0.0
  %433 = vmatmul.mubr.f32.gmra.mxu0 %v135
  %v434 = vpop.f32.mrf.mxu0
  %v435 = vadd.f32 0.0, %v434
  %v436 = vpop.f32.mrf.mxu0
  %437 = vmatprep.mubr.f32.mxu0 0.0
  %438 = vmatmul.mubr.f32.gmra.mxu0 %v138
  %v439 = vpop.f32.mrf.mxu0
  %v440 = vadd.f32 0.0, %v439
  %v441 = vpop.f32.mrf.mxu0
  %442 = vmatprep.mubr.f32.mxu0 0.0
  %443 = vmatmul.mubr.f32.gmra.mxu0 %v141
  %v444 = vpop.f32.mrf.mxu0
  %v445 = vadd.f32 0.0, %v444
  %v446 = vpop.f32.mrf.mxu0
  %447 = vmatprep.mubr.f32.mxu0 0.0
  %448 = vmatmul.mubr.f32.gmra.mxu0 %v144
  %v449 = vpop.f32.mrf.mxu0
  %v450 = vadd.f32 0.0, %v449
  %v451 = vpop.f32.mrf.mxu0
  %452 = vmatprep.mubr.f32.mxu0 0.0
  %453 = vmatmul.mubr.f32.gmra.mxu0 %v147
  %v454 = vpop.f32.mrf.mxu0
  %v455 = vadd.f32 0.0, %v454
  %v456 = vpop.f32.mrf.mxu0
  %457 = vmatprep.mubr.f32.mxu0 0.0
  %458 = vmatmul.mubr.f32.gmra.mxu0 %v150
  %v459 = vpop.f32.mrf.mxu0
  %v460 = vadd.f32 0.0, %v459
  %v461 = vpop.f32.mrf.mxu0
  %462 = vmatprep.mubr.f32.mxu0 0.0
  %463 = vmatmul.mubr.f32.gmra.mxu0 %v153
  %v464 = vpop.f32.mrf.mxu0
  %v465 = vadd.f32 0.0, %v464
  %v466 = vpop.f32.mrf.mxu0
  %467 = vmatprep.mubr.f32.mxu0 0.0
  %468 = vmatmul.mubr.f32.gmra.mxu0 %v156
  %v469 = vpop.f32.mrf.mxu0
  %v470 = vadd.f32 0.0, %v469
  %v471 = vpop.f32.mrf.mxu0
  %472 = vmatprep.mubr.f32.mxu0 0.0
  %473 = vmatmul.mubr.f32.gmra.mxu0 %v159
  %v474 = vpop.f32.mrf.mxu0
  %v475 = vadd.f32 0.0, %v474
  %v476 = vpop.f32.mrf.mxu0
  %477 = vmatprep.mubr.f32.mxu0 0.0
  %478 = vmatmul.mubr.f32.gmra.mxu0 %v162
  %v479 = vpop.f32.mrf.mxu0
  %v480 = vadd.f32 0.0, %v479
  %v481 = vpop.f32.mrf.mxu0
  %482 = vmatprep.mubr.f32.mxu0 0.0
  %483 = vmatmul.mubr.f32.gmra.mxu0 %v165
  %v484 = vpop.f32.mrf.mxu0
  %v485 = vadd.f32 0.0, %v484
  %v486 = vpop.f32.mrf.mxu0
  %487 = vmatprep.mubr.f32.mxu0 0.0
  %488 = vmatmul.mubr.f32.gmra.mxu0 %v168
  %v489 = vpop.f32.mrf.mxu0
  %v490 = vadd.f32 0.0, %v489
  %v491 = vpop.f32.mrf.mxu0
  %492 = vmatprep.mubr.f32.mxu0 0.0
  %493 = vmatmul.mubr.f32.gmra.mxu0 %v171
  %v494 = vpop.f32.mrf.mxu0
  %v495 = vadd.f32 0.0, %v494
  %v496 = vpop.f32.mrf.mxu0
  %497 = vmatprep.mubr.f32.mxu0 0.0
  %498 = vmatmul.mubr.f32.gmra.mxu0 %v174
  %v499 = vpop.f32.mrf.mxu0
  %v500 = vadd.f32 0.0, %v499
  %v501 = vpop.f32.mrf.mxu0
  %502 = vmatprep.mubr.f32.mxu0 0.0
  %503 = vmatmul.mubr.f32.gmra.mxu0 %v177
  %v504 = vpop.f32.mrf.mxu0
  %v505 = vadd.f32 0.0, %v504
  %v506 = vpop.f32.mrf.mxu0
  %507 = vmatprep.mubr.f32.mxu0 0.0
  %508 = vmatmul.mubr.f32.gmra.mxu0 %v180
  %v509 = vpop.f32.mrf.mxu0
  %v510 = vadd.f32 0.0, %v509
  %v511 = vpop.f32.mrf.mxu0
  %512 = vmatprep.mubr.f32.mxu0 0.0
  %513 = vmatmul.mubr.f32.gmra.mxu0 %v183
  %v514 = vpop.f32.mrf.mxu0
  %v515 = vadd.f32 0.0, %v514
  %v516 = vpop.f32.mrf.mxu0
  %517 = vmatprep.mubr.f32.mxu0 0.0
  %518 = vmatmul.mubr.f32.gmra.mxu0 %v186
  %v519 = vpop.f32.mrf.mxu0
  %v520 = vadd.f32 0.0, %v519
  %v521 = vpop.f32.mrf.mxu0
  %522 = vmatprep.mubr.f32.mxu0 0.0
  %523 = vmatmul.mubr.f32.gmra.mxu0 %v189
  %v524 = vpop.f32.mrf.mxu0
  %v525 = vadd.f32 0.0, %v524
  %v526 = vpop.f32.mrf.mxu0
  %527 = vmatprep.mubr.f32.mxu0 0.0
  %528 = vmatmul.mubr.f32.gmra.mxu0 %v192
  %v529 = vpop.f32.mrf.mxu0
  %v530 = vadd.f32 0.0, %v529
  %v531 = vpop.f32.mrf.mxu0
  %532 = vmatprep.mubr.f32.mxu0 0.0
  %533 = vmatmul.mubr.f32.gmra.mxu0 %v195
  %v534 = vpop.f32.mrf.mxu0
  %v535 = vadd.f32 0.0, %v534
  %v536 = vpop.f32.mrf.mxu0
  %537 = vmatprep.mubr.f32.mxu0 0.0
  %538 = vmatmul.mubr.f32.gmra.mxu0 %v198
  %v539 = vpop.f32.mrf.mxu0
  %v540 = vadd.f32 0.0, %v539
  %v541 = vpop.f32.mrf.mxu0
  %542 = vmatprep.mubr.f32.mxu0 0.0
  %543 = vmatmul.mubr.f32.gmra.mxu0 %v201
  %v544 = vpop.f32.mrf.mxu0
  %v545 = vadd.f32 0.0, %v544
  %v546 = vpop.f32.mrf.mxu0
  %547 = vmatprep.mubr.f32.mxu0 0.0
  %548 = vmatmul.mubr.f32.gmra.mxu0 %v204
  %v549 = vpop.f32.mrf.mxu0
  %v550 = vadd.f32 0.0, %v549
  %v551 = vpop.f32.mrf.mxu0
  %552 = vmatprep.mubr.f32.mxu0 0.0
  %553 = vmatmul.mubr.f32.gmra.mxu0 %v207
  %v554 = vpop.f32.mrf.mxu0
  %v555 = vadd.f32 0.0, %v554
  %v556 = vpop.f32.mrf.mxu0
  %557 = vmatprep.mubr.f32.mxu0 0.0
  %558 = vmatmul.mubr.f32.gmra.mxu0 %v210
  %v559 = vpop.f32.mrf.mxu0
  %v560 = vadd.f32 0.0, %v559
  %v561 = vpop.f32.mrf.mxu0
  %562 = vmatprep.mubr.f32.mxu0 0.0
  %563 = vmatmul.mubr.f32.gmra.mxu0 %v213
  %v564 = vpop.f32.mrf.mxu0
  %v565 = vadd.f32 0.0, %v564
  %v566 = vpop.f32.mrf.mxu0
  %567 = vmatprep.mubr.f32.mxu0 0.0
  %568 = vmatmul.mubr.f32.gmra.mxu0 %v216
  %v569 = vpop.f32.mrf.mxu0
  %v570 = vadd.f32 0.0, %v569
  %v571 = vpop.f32.mrf.mxu0
  %572 = vmatprep.mubr.f32.mxu0 0.0
  %573 = vmatmul.mubr.f32.gmra.mxu0 %v219
  %v574 = vpop.f32.mrf.mxu0
  %v575 = vadd.f32 0.0, %v574
  %v576 = vpop.f32.mrf.mxu0
  %577 = vmatprep.mubr.f32.mxu0 0.0
  %578 = vmatmul.mubr.f32.gmra.mxu0 %v222
  %v579 = vpop.f32.mrf.mxu0
  %v580 = vadd.f32 0.0, %v579
  %v581 = vpop.f32.mrf.mxu0
  %582 = vmatprep.mubr.f32.mxu0 0.0
  %583 = vmatmul.mubr.f32.gmra.mxu0 %v225
  %v584 = vpop.f32.mrf.mxu0
  %v585 = vadd.f32 0.0, %v584
  %v586 = vpop.f32.mrf.mxu0
  %587 = vmatprep.mubr.f32.mxu0 0.0
  %588 = vmatmul.mubr.f32.gmra.mxu0 %v228
  %v589 = vpop.f32.mrf.mxu0
  %v590 = vadd.f32 0.0, %v589
  %v591 = vpop.f32.mrf.mxu0
  %592 = vmatprep.mubr.f32.mxu0 0.0
  %593 = vmatmul.mubr.f32.gmra.mxu0 %v231
  %v594 = vpop.f32.mrf.mxu0
  %v595 = vadd.f32 0.0, %v594
  %v596 = vpop.f32.mrf.mxu0
  %597 = vmatprep.mubr.f32.mxu0 0.0
  %598 = vmatmul.mubr.f32.gmra.mxu0 %v234
  %v599 = vpop.f32.mrf.mxu0
  %v600 = vadd.f32 0.0, %v599
  %v601 = vpop.f32.mrf.mxu0
  %602 = vmatprep.mubr.f32.mxu0 0.0
  %603 = vmatmul.mubr.f32.gmra.mxu0 %v237
  %v604 = vpop.f32.mrf.mxu0
  %v605 = vadd.f32 0.0, %v604
  %v606 = vpop.f32.mrf.mxu0
  %607 = vmatprep.mubr.f32.mxu0 0.0
  %608 = vmatmul.mubr.f32.gmra.mxu0 %v240
  %v609 = vpop.f32.mrf.mxu0
  %v610 = vadd.f32 0.0, %v609
  %v611 = vpop.f32.mrf.mxu0
  %612 = vmatprep.mubr.f32.mxu0 0.0
  %613 = vmatmul.mubr.f32.gmra.mxu0 %v243
  %v614 = vpop.f32.mrf.mxu0
  %v615 = vadd.f32 0.0, %v614
  %v616 = vpop.f32.mrf.mxu0
  %617 = vmatprep.mubr.f32.mxu0 0.0
  %618 = vmatmul.mubr.f32.gmra.mxu0 %v246
  %v619 = vpop.f32.mrf.mxu0
  %v620 = vadd.f32 0.0, %v619
  %v621 = vpop.f32.mrf.mxu0
  %622 = vmatprep.mubr.f32.mxu0 0.0
  %623 = vmatmul.mubr.f32.gmra.mxu0 %v249
  %v624 = vpop.f32.mrf.mxu0
  %v625 = vadd.f32 0.0, %v624
  %v626 = vpop.f32.mrf.mxu0
  %627 = vmatprep.mubr.f32.mxu0 0.0
  %628 = vmatmul.mubr.f32.gmra.mxu0 %v252
  %v629 = vpop.f32.mrf.mxu0
  %v630 = vadd.f32 0.0, %v629
  %v631 = vpop.f32.mrf.mxu0
  %632 = vmatprep.mubr.f32.mxu0 0.0
  %633 = vmatmul.mubr.f32.gmra.mxu0 %v255
  %v634 = vpop.f32.mrf.mxu0
  %v635 = vadd.f32 0.0, %v634
  %v636 = vpop.f32.mrf.mxu0
  %637 = vmatprep.mubr.f32.mxu0 0.0
  %638 = vmatmul.mubr.f32.gmra.mxu0 %v258
  %v639 = vpop.f32.mrf.mxu0
  %v640 = vadd.f32 0.0, %v639
  %v641 = vpop.f32.mrf.mxu0
  %642 = vmatprep.mubr.f32.mxu0 0.0
  %643 = vmatmul.mubr.f32.gmra.mxu0 %v261
  %v644 = vpop.f32.mrf.mxu0
  %v645 = vadd.f32 0.0, %v644
  %v646 = vpop.f32.mrf.mxu0
  %647 = vmatprep.mubr.f32.mxu0 0.0
  %648 = vmatmul.mubr.f32.gmra.mxu0 %v264
  %v649 = vpop.f32.mrf.mxu0
  %v650 = vadd.f32 0.0, %v649
  %v651 = vpop.f32.mrf.mxu0
  %652 = vmatprep.mubr.f32.mxu0 0.0
  %653 = vmatmul.mubr.f32.gmra.mxu0 %v267
  %v654 = vpop.f32.mrf.mxu0
  %v655 = vadd.f32 0.0, %v654
  %v656 = vpop.f32.mrf.mxu0
  %657 = vdwg.mxu0
  %vm658 = vcmask 195584
  %v659 = vsel %vm658, %v340, 0.0
  %v660 = vsel %vm658, %v345, 0.0
  %v661 = vadd.f32 %v659, %v660
  %v662 = vsel %vm658, %v350, 0.0
  %v663 = vadd.f32 %v661, %v662
  %v664 = vsel %vm658, %v355, 0.0
  %v665 = vadd.f32 %v663, %v664
  %v666 = vsel %vm658, %v360, 0.0
  %v667 = vadd.f32 %v665, %v666
  %v668 = vsel %vm658, %v365, 0.0
  %v669 = vadd.f32 %v667, %v668
  %v670 = vsel %vm658, %v370, 0.0
  %v671 = vadd.f32 %v669, %v670
  %v672 = vsel %vm658, %v375, 0.0
  %v673 = vadd.f32 %v671, %v672
  %v674 = vsel %vm658, %v380, 0.0
  %v675 = vadd.f32 %v673, %v674
  %v676 = vsel %vm658, %v385, 0.0
  %v677 = vadd.f32 %v675, %v676
  %v678 = vsel %vm658, %v390, 0.0
  %v679 = vadd.f32 %v677, %v678
  %v680 = vsel %vm658, %v395, 0.0
  %v681 = vadd.f32 %v679, %v680
  %v682 = vsel %vm658, %v400, 0.0
  %v683 = vadd.f32 %v681, %v682
  %v684 = vsel %vm658, %v405, 0.0
  %v685 = vadd.f32 %v683, %v684
  %v686 = vsel %vm658, %v410, 0.0
  %v687 = vadd.f32 %v685, %v686
  %v688 = vsel %vm658, %v415, 0.0
  %v689 = vadd.f32 %v687, %v688
  %v690 = vsel %vm658, %v420, 0.0
  %v691 = vadd.f32 %v689, %v690
  %v692 = vsel %vm658, %v425, 0.0
  %v693 = vadd.f32 %v691, %v692
  %v694 = vsel %vm658, %v430, 0.0
  %v695 = vadd.f32 %v693, %v694
  %v696 = vsel %vm658, %v435, 0.0
  %v697 = vadd.f32 %v695, %v696
  %v698 = vsel %vm658, %v440, 0.0
  %v699 = vadd.f32 %v697, %v698
  %v700 = vsel %vm658, %v445, 0.0
  %v701 = vadd.f32 %v699, %v700
  %v702 = vsel %vm658, %v450, 0.0
  %v703 = vadd.f32 %v701, %v702
  %v704 = vsel %vm658, %v455, 0.0
  %v705 = vadd.f32 %v703, %v704
  %v706 = vsel %vm658, %v460, 0.0
  %v707 = vadd.f32 %v705, %v706
  %v708 = vsel %vm658, %v465, 0.0
  %v709 = vadd.f32 %v707, %v708
  %v710 = vsel %vm658, %v470, 0.0
  %v711 = vadd.f32 %v709, %v710
  %v712 = vsel %vm658, %v475, 0.0
  %v713 = vadd.f32 %v711, %v712
  %v714 = vsel %vm658, %v480, 0.0
  %v715 = vadd.f32 %v713, %v714
  %v716 = vsel %vm658, %v485, 0.0
  %v717 = vadd.f32 %v715, %v716
  %v718 = vsel %vm658, %v490, 0.0
  %v719 = vadd.f32 %v717, %v718
  %v720 = vsel %vm658, %v495, 0.0
  %v721 = vadd.f32 %v719, %v720
  %v722 = vsel %vm658, %v500, 0.0
  %v723 = vadd.f32 %v721, %v722
  %v724 = vsel %vm658, %v505, 0.0
  %v725 = vadd.f32 %v723, %v724
  %v726 = vsel %vm658, %v510, 0.0
  %v727 = vadd.f32 %v725, %v726
  %v728 = vsel %vm658, %v515, 0.0
  %v729 = vadd.f32 %v727, %v728
  %v730 = vsel %vm658, %v520, 0.0
  %v731 = vadd.f32 %v729, %v730
  %v732 = vsel %vm658, %v525, 0.0
  %v733 = vadd.f32 %v731, %v732
  %v734 = vsel %vm658, %v530, 0.0
  %v735 = vadd.f32 %v733, %v734
  %v736 = vsel %vm658, %v535, 0.0
  %v737 = vadd.f32 %v735, %v736
  %v738 = vsel %vm658, %v540, 0.0
  %v739 = vadd.f32 %v737, %v738
  %v740 = vsel %vm658, %v545, 0.0
  %v741 = vadd.f32 %v739, %v740
  %v742 = vsel %vm658, %v550, 0.0
  %v743 = vadd.f32 %v741, %v742
  %v744 = vsel %vm658, %v555, 0.0
  %v745 = vadd.f32 %v743, %v744
  %v746 = vsel %vm658, %v560, 0.0
  %v747 = vadd.f32 %v745, %v746
  %v748 = vsel %vm658, %v565, 0.0
  %v749 = vadd.f32 %v747, %v748
  %v750 = vsel %vm658, %v570, 0.0
  %v751 = vadd.f32 %v749, %v750
  %v752 = vsel %vm658, %v575, 0.0
  %v753 = vadd.f32 %v751, %v752
  %v754 = vsel %vm658, %v580, 0.0
  %v755 = vadd.f32 %v753, %v754
  %v756 = vsel %vm658, %v585, 0.0
  %v757 = vadd.f32 %v755, %v756
  %v758 = vsel %vm658, %v590, 0.0
  %v759 = vadd.f32 %v757, %v758
  %v760 = vsel %vm658, %v595, 0.0
  %v761 = vadd.f32 %v759, %v760
  %v762 = vsel %vm658, %v600, 0.0
  %v763 = vadd.f32 %v761, %v762
  %v764 = vsel %vm658, %v605, 0.0
  %v765 = vadd.f32 %v763, %v764
  %v766 = vsel %vm658, %v610, 0.0
  %v767 = vadd.f32 %v765, %v766
  %v768 = vsel %vm658, %v615, 0.0
  %v769 = vadd.f32 %v767, %v768
  %v770 = vsel %vm658, %v620, 0.0
  %v771 = vadd.f32 %v769, %v770
  %v772 = vsel %vm658, %v625, 0.0
  %v773 = vadd.f32 %v771, %v772
  %v774 = vsel %vm658, %v630, 0.0
  %v775 = vadd.f32 %v773, %v774
  %v776 = vsel %vm658, %v635, 0.0
  %v777 = vadd.f32 %v775, %v776
  %v778 = vsel %vm658, %v640, 0.0
  %v779 = vadd.f32 %v777, %v778
  %v780 = vsel %vm658, %v645, 0.0
  %v781 = vadd.f32 %v779, %v780
  %v782 = vsel %vm658, %v650, 0.0
  %v783 = vadd.f32 %v781, %v782
  %v784 = vsel %vm658, %v655, 0.0
  %v785 = vadd.f32 %v783, %v784
  %v786 = vrot.slane %v785, 4
  %v787 = vadd.f32 %v785, %v786
  %v788 = vrot.slane %v787, 2
  %v789 = vadd.f32 %v787, %v788
  %v790 = vrot.slane %v789, 1
  %v791 = vadd.f32 %v789, %v790
  %vm792 = vcmask 188416
  %793 = vst.msk [vmem:[%s2] sm:$0x1] %vm792, %v791
  %v794 = vmul.f32 %v340, %v340
  %v795 = vmul.f32 %v345, %v345
  %v796 = vmul.f32 %v350, %v350
  %v797 = vmul.f32 %v355, %v355
  %v798 = vmul.f32 %v360, %v360
  %v799 = vmul.f32 %v365, %v365
  %v800 = vmul.f32 %v370, %v370
  %v801 = vmul.f32 %v375, %v375
  %v802 = vmul.f32 %v380, %v380
  %v803 = vmul.f32 %v385, %v385
  %v804 = vmul.f32 %v390, %v390
  %v805 = vmul.f32 %v395, %v395
  %v806 = vmul.f32 %v400, %v400
  %v807 = vmul.f32 %v405, %v405
  %v808 = vmul.f32 %v410, %v410
  %v809 = vmul.f32 %v415, %v415
  %v810 = vmul.f32 %v420, %v420
  %v811 = vmul.f32 %v425, %v425
  %v812 = vmul.f32 %v430, %v430
  %v813 = vmul.f32 %v435, %v435
  %v814 = vmul.f32 %v440, %v440
  %v815 = vmul.f32 %v445, %v445
  %v816 = vmul.f32 %v450, %v450
  %v817 = vmul.f32 %v455, %v455
  %v818 = vmul.f32 %v460, %v460
  %v819 = vmul.f32 %v465, %v465
  %v820 = vmul.f32 %v470, %v470
  %v821 = vmul.f32 %v475, %v475
  %v822 = vmul.f32 %v480, %v480
  %v823 = vmul.f32 %v485, %v485
  %v824 = vmul.f32 %v490, %v490
  %v825 = vmul.f32 %v495, %v495
  %v826 = vmul.f32 %v500, %v500
  %v827 = vmul.f32 %v505, %v505
  %v828 = vmul.f32 %v510, %v510
  %v829 = vmul.f32 %v515, %v515
  %v830 = vmul.f32 %v520, %v520
  %v831 = vmul.f32 %v525, %v525
  %v832 = vmul.f32 %v530, %v530
  %v833 = vmul.f32 %v535, %v535
  %v834 = vmul.f32 %v540, %v540
  %v835 = vmul.f32 %v545, %v545
  %v836 = vmul.f32 %v550, %v550
  %v837 = vmul.f32 %v555, %v555
  %v838 = vmul.f32 %v560, %v560
  %v839 = vmul.f32 %v565, %v565
  %v840 = vmul.f32 %v570, %v570
  %v841 = vmul.f32 %v575, %v575
  %v842 = vmul.f32 %v580, %v580
  %v843 = vmul.f32 %v585, %v585
  %v844 = vmul.f32 %v590, %v590
  %v845 = vmul.f32 %v595, %v595
  %v846 = vmul.f32 %v600, %v600
  %v847 = vmul.f32 %v605, %v605
  %v848 = vmul.f32 %v610, %v610
  %v849 = vmul.f32 %v615, %v615
  %v850 = vmul.f32 %v620, %v620
  %v851 = vmul.f32 %v625, %v625
  %v852 = vmul.f32 %v630, %v630
  %v853 = vmul.f32 %v635, %v635
  %v854 = vmul.f32 %v640, %v640
  %v855 = vmul.f32 %v645, %v645
  %v856 = vmul.f32 %v650, %v650
  %v857 = vmul.f32 %v655, %v655
  %v858 = vsel %vm658, %v794, 0.0
  %v859 = vsel %vm658, %v795, 0.0
  %v860 = vadd.f32 %v858, %v859
  %v861 = vsel %vm658, %v796, 0.0
  %v862 = vadd.f32 %v860, %v861
  %v863 = vsel %vm658, %v797, 0.0
  %v864 = vadd.f32 %v862, %v863
  %v865 = vsel %vm658, %v798, 0.0
  %v866 = vadd.f32 %v864, %v865
  %v867 = vsel %vm658, %v799, 0.0
  %v868 = vadd.f32 %v866, %v867
  %v869 = vsel %vm658, %v800, 0.0
  %v870 = vadd.f32 %v868, %v869
  %v871 = vsel %vm658, %v801, 0.0
  %v872 = vadd.f32 %v870, %v871
  %v873 = vsel %vm658, %v802, 0.0
  %v874 = vadd.f32 %v872, %v873
  %v875 = vsel %vm658, %v803, 0.0
  %v876 = vadd.f32 %v874, %v875
  %v877 = vsel %vm658, %v804, 0.0
  %v878 = vadd.f32 %v876, %v877
  %v879 = vsel %vm658, %v805, 0.0
  %v880 = vadd.f32 %v878, %v879
  %v881 = vsel %vm658, %v806, 0.0
  %v882 = vadd.f32 %v880, %v881
  %v883 = vsel %vm658, %v807, 0.0
  %v884 = vadd.f32 %v882, %v883
  %v885 = vsel %vm658, %v808, 0.0
  %v886 = vadd.f32 %v884, %v885
  %v887 = vsel %vm658, %v809, 0.0
  %v888 = vadd.f32 %v886, %v887
  %v889 = vsel %vm658, %v810, 0.0
  %v890 = vadd.f32 %v888, %v889
  %v891 = vsel %vm658, %v811, 0.0
  %v892 = vadd.f32 %v890, %v891
  %v893 = vsel %vm658, %v812, 0.0
  %v894 = vadd.f32 %v892, %v893
  %v895 = vsel %vm658, %v813, 0.0
  %v896 = vadd.f32 %v894, %v895
  %v897 = vsel %vm658, %v814, 0.0
  %v898 = vadd.f32 %v896, %v897
  %v899 = vsel %vm658, %v815, 0.0
  %v900 = vadd.f32 %v898, %v899
  %v901 = vsel %vm658, %v816, 0.0
  %v902 = vadd.f32 %v900, %v901
  %v903 = vsel %vm658, %v817, 0.0
  %v904 = vadd.f32 %v902, %v903
  %v905 = vsel %vm658, %v818, 0.0
  %v906 = vadd.f32 %v904, %v905
  %v907 = vsel %vm658, %v819, 0.0
  %v908 = vadd.f32 %v906, %v907
  %v909 = vsel %vm658, %v820, 0.0
  %v910 = vadd.f32 %v908, %v909
  %v911 = vsel %vm658, %v821, 0.0
  %v912 = vadd.f32 %v910, %v911
  %v913 = vsel %vm658, %v822, 0.0
  %v914 = vadd.f32 %v912, %v913
  %v915 = vsel %vm658, %v823, 0.0
  %v916 = vadd.f32 %v914, %v915
  %v917 = vsel %vm658, %v824, 0.0
  %v918 = vadd.f32 %v916, %v917
  %v919 = vsel %vm658, %v825, 0.0
  %v920 = vadd.f32 %v918, %v919
  %v921 = vsel %vm658, %v826, 0.0
  %v922 = vadd.f32 %v920, %v921
  %v923 = vsel %vm658, %v827, 0.0
  %v924 = vadd.f32 %v922, %v923
  %v925 = vsel %vm658, %v828, 0.0
  %v926 = vadd.f32 %v924, %v925
  %v927 = vsel %vm658, %v829, 0.0
  %v928 = vadd.f32 %v926, %v927
  %v929 = vsel %vm658, %v830, 0.0
  %v930 = vadd.f32 %v928, %v929
  %v931 = vsel %vm658, %v831, 0.0
  %v932 = vadd.f32 %v930, %v931
  %v933 = vsel %vm658, %v832, 0.0
  %v934 = vadd.f32 %v932, %v933
  %v935 = vsel %vm658, %v833, 0.0
  %v936 = vadd.f32 %v934, %v935
  %v937 = vsel %vm658, %v834, 0.0
  %v938 = vadd.f32 %v936, %v937
  %v939 = vsel %vm658, %v835, 0.0
  %v940 = vadd.f32 %v938, %v939
  %v941 = vsel %vm658, %v836, 0.0
  %v942 = vadd.f32 %v940, %v941
  %v943 = vsel %vm658, %v837, 0.0
  %v944 = vadd.f32 %v942, %v943
  %v945 = vsel %vm658, %v838, 0.0
  %v946 = vadd.f32 %v944, %v945
  %v947 = vsel %vm658, %v839, 0.0
  %v948 = vadd.f32 %v946, %v947
  %v949 = vsel %vm658, %v840, 0.0
  %v950 = vadd.f32 %v948, %v949
  %v951 = vsel %vm658, %v841, 0.0
  %v952 = vadd.f32 %v950, %v951
  %v953 = vsel %vm658, %v842, 0.0
  %v954 = vadd.f32 %v952, %v953
  %v955 = vsel %vm658, %v843, 0.0
  %v956 = vadd.f32 %v954, %v955
  %v957 = vsel %vm658, %v844, 0.0
  %v958 = vadd.f32 %v956, %v957
  %v959 = vsel %vm658, %v845, 0.0
  %v960 = vadd.f32 %v958, %v959
  %v961 = vsel %vm658, %v846, 0.0
  %v962 = vadd.f32 %v960, %v961
  %v963 = vsel %vm658, %v847, 0.0
  %v964 = vadd.f32 %v962, %v963
  %v965 = vsel %vm658, %v848, 0.0
  %v966 = vadd.f32 %v964, %v965
  %v967 = vsel %vm658, %v849, 0.0
  %v968 = vadd.f32 %v966, %v967
  %v969 = vsel %vm658, %v850, 0.0
  %v970 = vadd.f32 %v968, %v969
  %v971 = vsel %vm658, %v851, 0.0
  %v972 = vadd.f32 %v970, %v971
  %v973 = vsel %vm658, %v852, 0.0
  %v974 = vadd.f32 %v972, %v973
  %v975 = vsel %vm658, %v853, 0.0
  %v976 = vadd.f32 %v974, %v975
  %v977 = vsel %vm658, %v854, 0.0
  %v978 = vadd.f32 %v976, %v977
  %v979 = vsel %vm658, %v855, 0.0
  %v980 = vadd.f32 %v978, %v979
  %v981 = vsel %vm658, %v856, 0.0
  %v982 = vadd.f32 %v980, %v981
  %v983 = vsel %vm658, %v857, 0.0
  %v984 = vadd.f32 %v982, %v983
  %v985 = vrot.slane %v984, 4
  %v986 = vadd.f32 %v984, %v985
  %v987 = vrot.slane %v986, 2
  %v988 = vadd.f32 %v986, %v987
  %v989 = vrot.slane %v988, 1
  %v990 = vadd.f32 %v988, %v989
  %991 = vst.msk [vmem:[%s2 + $0x1] sm:$0x1] %vm792, %v990
  // Predicated region
  $region10: #{mbconv_forward.4} parent=0 // pred_check
    _
  $region11: #{mbconv_forward.4} parent=0 // pred_check_branch
    %993 = sbr.rel (0) target = $region13
  $region12: #{mbconv_forward.4} parent=0 // pred_region
    _
  $region13: #{mbconv_forward.4} parent=0 // pred_fallthru
    _
  // Predicated region
  $region14: #{mbconv_forward.4} parent=0 // pred_check
    _
  $region15: #{mbconv_forward.4} parent=0 // pred_check_branch
    %995 = sbr.rel (0) target = $region17
  $region16: #{mbconv_forward.4} parent=0 // pred_region
    _
  $region17: #{mbconv_forward.4} parent=0 // pred_fallthru
    _

// kernel: mbconv_forward.7
$region0: #{mbconv_forward.7}
  #allocation0 [shape = 'u32[]', space=smem, size = 0x4, offset = 0x4, fixed_abs, tag = 'smem constant byte address 0x4 - core index']
  #allocation1 [shape = 'u32[144,128]{1,0:T(1,128)}', space=vmem, size = 0x12000, scoped, tag = 'internal scratch']
  %s0 = inlined_call_operand.vmem [shape: f32[512,8], index: 0, kind: input, shape index: {}]
  %s1 = inlined_call_operand.vmem [shape: f32[512,4], index: 1, kind: input, shape index: {}]
  %s2 = inlined_call_operand.vmem [shape: f32[4,8], index: 2, kind: input, shape index: {}]
  %s3 = inlined_call_operand.vmem [shape: f32[1,8], index: 3, kind: input, shape index: {}]
  %s4 = inlined_call_operand.vmem [shape: f32[1,8], index: 4, kind: input, shape index: {}]
  %s5 = inlined_call_operand.vmem [shape: f32[1,8], index: 5, kind: input, shape index: {}]
  %s6 = inlined_call_operand.vmem [shape: f32[1,8], index: 6, kind: input, shape index: {}]
  %s7 = inlined_call_operand.vmem [shape: f32[512,8], index: 7, kind: output, shape index: {}]
  %s8 = sld [smem:[#allocation0]]
  $region38: #{mbconv_forward.7} parent=0
    _
  %s10 = ssub.s32 1, %s8
  %s11 = scalar_select 0, %s10, %s8
  // Predicated region
  $region2: #{mbconv_forward.7} parent=0 // pred_check
    _
  $region3: #{mbconv_forward.7} parent=0 // pred_check_branch
    %13 = sbr.rel (0) target = $region5
  $region4: #{mbconv_forward.7} parent=0 // pred_region
    _
  $region5: #{mbconv_forward.7} parent=0 // pred_fallthru
    _
  // Predicated region
  $region6: #{mbconv_forward.7} parent=0 // pred_check
    _
  $region7: #{mbconv_forward.7} parent=0 // pred_check_branch
    %15 = sbr.rel (0) target = $region9
  $region8: #{mbconv_forward.7} parent=0 // pred_region
    _
  $region9: #{mbconv_forward.7} parent=0 // pred_fallthru
    _
  // Predicated region
  $region10: #{mbconv_forward.7} parent=0 // pred_check
    _
  $region11: #{mbconv_forward.7} parent=0 // pred_check_branch
    %17 = sbr.rel (0) target = $region13
  $region12: #{mbconv_forward.7} parent=0 // pred_region
    _
  $region13: #{mbconv_forward.7} parent=0 // pred_fallthru
    _
  // Predicated region
  $region14: #{mbconv_forward.7} parent=0 // pred_check
    _
  $region15: #{mbconv_forward.7} parent=0 // pred_check_branch
    %19 = sbr.rel (0) target = $region17
  $region16: #{mbconv_forward.7} parent=0 // pred_region
    _
  $region17: #{mbconv_forward.7} parent=0 // pred_fallthru
    _
  // Predicated region
  $region18: #{mbconv_forward.7} parent=0 // pred_check
    _
  $region19: #{mbconv_forward.7} parent=0 // pred_check_branch
    %21 = sbr.rel (0) target = $region21
  $region20: #{mbconv_forward.7} parent=0 // pred_region
    _
  $region21: #{mbconv_forward.7} parent=0 // pred_fallthru
    _
  // Predicated region
  $region22: #{mbconv_forward.7} parent=0 // pred_check
    _
  $region23: #{mbconv_forward.7} parent=0 // pred_check_branch
    %23 = sbr.rel (0) target = $region25
  $region24: #{mbconv_forward.7} parent=0 // pred_region
    _
  $region25: #{mbconv_forward.7} parent=0 // pred_fallthru
    _
  // Predicated region
  $region26: #{mbconv_forward.7} parent=0 // pred_check
    _
  $region27: #{mbconv_forward.7} parent=0 // pred_check_branch
    %25 = sbr.rel (0) target = $region29
  $region28: #{mbconv_forward.7} parent=0 // pred_region
    _
  $region29: #{mbconv_forward.7} parent=0 // pred_fallthru
    _
  %v26 = vld [vmem:[%s1] sm:$0xff]
  %v27 = vld [vmem:[%s1 + $0x8] sm:$0xff]
  %v28 = vld [vmem:[%s1 + $0x10] sm:$0xff]
  %v29 = vld [vmem:[%s1 + $0x18] sm:$0xff]
  %v30 = vld [vmem:[%s1 + $0x20] sm:$0xff]
  %v31 = vld [vmem:[%s1 + $0x28] sm:$0xff]
  %v32 = vld [vmem:[%s1 + $0x30] sm:$0xff]
  %v33 = vld [vmem:[%s1 + $0x38] sm:$0xff]
  %v34 = vld [vmem:[%s1 + $0x40] sm:$0xff]
  %v35 = vld [vmem:[%s1 + $0x48] sm:$0xff]
  %v36 = vld [vmem:[%s1 + $0x50] sm:$0xff]
  %v37 = vld [vmem:[%s1 + $0x58] sm:$0xff]
  %v38 = vld [vmem:[%s1 + $0x60] sm:$0xff]
  %v39 = vld [vmem:[%s1 + $0x68] sm:$0xff]
  %v40 = vld [vmem:[%s1 + $0x70] sm:$0xff]
  %v41 = vld [vmem:[%s1 + $0x78] sm:$0xff]
  %v42 = vld [vmem:[%s1 + $0x80] sm:$0xff]
  %v43 = vld [vmem:[%s1 + $0x88] sm:$0xff]
  %v44 = vld [vmem:[%s1 + $0x90] sm:$0xff]
  %v45 = vld [vmem:[%s1 + $0x98] sm:$0xff]
  %v46 = vld [vmem:[%s1 + $0xa0] sm:$0xff]
  %v47 = vld [vmem:[%s1 + $0xa8] sm:$0xff]
  %v48 = vld [vmem:[%s1 + $0xb0] sm:$0xff]
  %v49 = vld [vmem:[%s1 + $0xb8] sm:$0xff]
  %v50 = vld [vmem:[%s1 + $0xc0] sm:$0xff]
  %v51 = vld [vmem:[%s1 + $0xc8] sm:$0xff]
  %v52 = vld [vmem:[%s1 + $0xd0] sm:$0xff]
  %v53 = vld [vmem:[%s1 + $0xd8] sm:$0xff]
  %v54 = vld [vmem:[%s1 + $0xe0] sm:$0xff]
  %v55 = vld [vmem:[%s1 + $0xe8] sm:$0xff]
  %v56 = vld [vmem:[%s1 + $0xf0] sm:$0xff]
  %v57 = vld [vmem:[%s1 + $0xf8] sm:$0xff]
  %v58 = vld [vmem:[%s1 + $0x100] sm:$0xff]
  %v59 = vld [vmem:[%s1 + $0x108] sm:$0xff]
  %v60 = vld [vmem:[%s1 + $0x110] sm:$0xff]
  %v61 = vld [vmem:[%s1 + $0x118] sm:$0xff]
  %v62 = vld [vmem:[%s1 + $0x120] sm:$0xff]
  %v63 = vld [vmem:[%s1 + $0x128] sm:$0xff]
  %v64 = vld [vmem:[%s1 + $0x130] sm:$0xff]
  %v65 = vld [vmem:[%s1 + $0x138] sm:$0xff]
  %v66 = vld [vmem:[%s1 + $0x140] sm:$0xff]
  %v67 = vld [vmem:[%s1 + $0x148] sm:$0xff]
  %v68 = vld [vmem:[%s1 + $0x150] sm:$0xff]
  %v69 = vld [vmem:[%s1 + $0x158] sm:$0xff]
  %v70 = vld [vmem:[%s1 + $0x160] sm:$0xff]
  %v71 = vld [vmem:[%s1 + $0x168] sm:$0xff]
  %v72 = vld [vmem:[%s1 + $0x170] sm:$0xff]
  %v73 = vld [vmem:[%s1 + $0x178] sm:$0xff]
  %v74 = vld [vmem:[%s1 + $0x180] sm:$0xff]
  %v75 = vld [vmem:[%s1 + $0x188] sm:$0xff]
  %v76 = vld [vmem:[%s1 + $0x190] sm:$0xff]
  %v77 = vld [vmem:[%s1 + $0x198] sm:$0xff]
  %v78 = vld [vmem:[%s1 + $0x1a0] sm:$0xff]
  %v79 = vld [vmem:[%s1 + $0x1a8] sm:$0xff]
  %v80 = vld [vmem:[%s1 + $0x1b0] sm:$0xff]
  %v81 = vld [vmem:[%s1 + $0x1b8] sm:$0xff]
  %v82 = vld [vmem:[%s1 + $0x1c0] sm:$0xff]
  %v83 = vld [vmem:[%s1 + $0x1c8] sm:$0xff]
  %v84 = vld [vmem:[%s1 + $0x1d0] sm:$0xff]
  %v85 = vld [vmem:[%s1 + $0x1d8] sm:$0xff]
  %v86 = vld [vmem:[%s1 + $0x1e0] sm:$0xff]
  %v87 = vld [vmem:[%s1 + $0x1e8] sm:$0xff]
  %v88 = vld [vmem:[%s1 + $0x1f0] sm:$0xff]
  %v89 = vld [vmem:[%s1 + $0x1f8] sm:$0xff]
  %v90 = vld [vmem:[%s2] sm:$0xf]
  %vm91 = vcmask 31744
  %v93 = vsel %vm91, %v26, 0
  %v96 = vsel %vm91, %v27, 0
  %v99 = vsel %vm91, %v28, 0
  %v102 = vsel %vm91, %v29, 0
  %v105 = vsel %vm91, %v30, 0
  %v108 = vsel %vm91, %v31, 0
  %v111 = vsel %vm91, %v32, 0
  %v114 = vsel %vm91, %v33, 0
  %v117 = vsel %vm91, %v34, 0
  %v120 = vsel %vm91, %v35, 0
  %v123 = vsel %vm91, %v36, 0
  %v126 = vsel %vm91, %v37, 0
  %v129 = vsel %vm91, %v38, 0
  %v132 = vsel %vm91, %v39, 0
  %v135 = vsel %vm91, %v40, 0
  %v138 = vsel %vm91, %v41, 0
  %v141 = vsel %vm91, %v42, 0
  %v144 = vsel %vm91, %v43, 0
  %v147 = vsel %vm91, %v44, 0
  %v150 = vsel %vm91, %v45, 0
  %v153 = vsel %vm91, %v46, 0
  %v156 = vsel %vm91, %v47, 0
  %v159 = vsel %vm91, %v48, 0
  %v162 = vsel %vm91, %v49, 0
  %v165 = vsel %vm91, %v50, 0
  %v168 = vsel %vm91, %v51, 0
  %v171 = vsel %vm91, %v52, 0
  %v174 = vsel %vm91, %v53, 0
  %v177 = vsel %vm91, %v54, 0
  %v180 = vsel %vm91, %v55, 0
  %v183 = vsel %vm91, %v56, 0
  %v186 = vsel %vm91, %v57, 0
  %v189 = vsel %vm91, %v58, 0
  %v192 = vsel %vm91, %v59, 0
  %v195 = vsel %vm91, %v60, 0
  %v198 = vsel %vm91, %v61, 0
  %v201 = vsel %vm91, %v62, 0
  %v204 = vsel %vm91, %v63, 0
  %v207 = vsel %vm91, %v64, 0
  %v210 = vsel %vm91, %v65, 0
  %v213 = vsel %vm91, %v66, 0
  %v216 = vsel %vm91, %v67, 0
  %v219 = vsel %vm91, %v68, 0
  %v222 = vsel %vm91, %v69, 0
  %v225 = vsel %vm91, %v70, 0
  %v228 = vsel %vm91, %v71, 0
  %v231 = vsel %vm91, %v72, 0
  %v234 = vsel %vm91, %v73, 0
  %v237 = vsel %vm91, %v74, 0
  %v240 = vsel %vm91, %v75, 0
  %v243 = vsel %vm91, %v76, 0
  %v246 = vsel %vm91, %v77, 0
  %v249 = vsel %vm91, %v78, 0
  %v252 = vsel %vm91, %v79, 0
  %v255 = vsel %vm91, %v80, 0
  %v258 = vsel %vm91, %v81, 0
  %v261 = vsel %vm91, %v82, 0
  %v264 = vsel %vm91, %v83, 0
  %v267 = vsel %vm91, %v84, 0
  %v270 = vsel %vm91, %v85, 0
  %v273 = vsel %vm91, %v86, 0
  %v276 = vsel %vm91, %v87, 0
  %v279 = vsel %vm91, %v88, 0
  %v282 = vsel %vm91, %v89, 0
  %vm284 = vcmask 1043456
  %v286 = vsel %vm284, %v90, 0
  %288 = vmatprep.subr.mxu0 0.0
  %289 = vmatpush1.msra.mxu0 0.0
  %290 = vmatprep.subr.mxu0 0.0
  %291 = vmatpush1.msra.mxu0 0.0
  %292 = vmatprep.subr.mxu0 0.0
  %293 = vmatpush1.msra.mxu0 0.0
  %294 = vmatprep.subr.mxu0 0.0
  %295 = vmatpush1.msra.mxu0 0.0
  %296 = vmatprep.subr.mxu0 0.0
  %297 = vmatpush1.msra.mxu0 0.0
  %298 = vmatprep.subr.mxu0 0.0
  %299 = vmatpush1.msra.mxu0 0.0
  %300 = vmatprep.subr.mxu0 0.0
  %301 = vmatpush1.msra.mxu0 0.0
  %302 = vmatprep.subr.mxu0 0.0
  %303 = vmatpush1.msra.mxu0 0.0
  %304 = vmatprep.subr.mxu0 0.0
  %305 = vmatpush1.msra.mxu0 0.0
  %306 = vmatprep.subr.mxu0 0.0
  %307 = vmatpush1.msra.mxu0 0.0
  %308 = vmatprep.subr.mxu0 0.0
  %309 = vmatpush1.msra.mxu0 0.0
  %310 = vmatprep.subr.mxu0 0.0
  %311 = vmatpush1.msra.mxu0 0.0
  %312 = vmatprep.subr.mxu0 0.0
  %313 = vmatpush1.msra.mxu0 0.0
  %314 = vmatprep.subr.mxu0 0.0
  %315 = vmatpush1.msra.mxu0 0.0
  %316 = vmatprep.subr.mxu0 0.0
  %317 = vmatpush1.msra.mxu0 0.0
  %318 = vmatprep.subr.mxu0 0.0
  %319 = vmatpush1.msra.mxu0 %v286
  %320 = vmatprep.subr.mxu0 0.0
  %321 = vmatpush2.msra.mxu0 0.0
  %322 = vmatprep.subr.mxu0 0.0
  %323 = vmatpush2.msra.mxu0 0.0
  %324 = vmatprep.subr.mxu0 0.0
  %325 = vmatpush2.msra.mxu0 0.0
  %326 = vmatprep.subr.mxu0 0.0
  %327 = vmatpush2.msra.mxu0 0.0
  %328 = vmatprep.subr.mxu0 0.0
  %329 = vmatpush2.msra.mxu0 0.0
  %330 = vmatprep.subr.mxu0 0.0
  %331 = vmatpush2.msra.mxu0 0.0
  %332 = vmatprep.subr.mxu0 0.0
  %333 = vmatpush2.msra.mxu0 0.0
  %334 = vmatprep.subr.mxu0 0.0
  %335 = vmatpush2.msra.mxu0 0.0
  %336 = vmatprep.subr.mxu0 0.0
  %337 = vmatpush2.msra.mxu0 0.0
  %338 = vmatprep.subr.mxu0 0.0
  %339 = vmatpush2.msra.mxu0 0.0
  %340 = vmatprep.subr.mxu0 0.0
  %341 = vmatpush2.msra.mxu0 0.0
  %342 = vmatprep.subr.mxu0 0.0
  %343 = vmatpush2.msra.mxu0 0.0
  %344 = vmatprep.subr.mxu0 0.0
  %345 = vmatpush2.msra.mxu0 0.0
  %346 = vmatprep.subr.mxu0 0.0
  %347 = vmatpush2.msra.mxu0 0.0
  %348 = vmatprep.subr.mxu0 0.0
  %349 = vmatpush2.msra.mxu0 0.0
  %350 = vmatprep.subr.mxu0 0.0
  %351 = vmatpush2.msra.mxu0 0.0
  %352 = vmatprep.mubr.f32.mxu0 0.0
  %353 = vmatmul.mubr.f32.gmra.mxu0 %v93
  %v354 = vpop.f32.mrf.mxu0
  %v355 = vadd.f32 0.0, %v354
  %v356 = vpop.f32.mrf.mxu0
  %357 = vmatprep.mubr.f32.mxu0 0.0
  %358 = vmatmul.mubr.f32.gmra.mxu0 %v96
  %v359 = vpop.f32.mrf.mxu0
  %v360 = vadd.f32 0.0, %v359
  %v361 = vpop.f32.mrf.mxu0
  %362 = vmatprep.mubr.f32.mxu0 0.0
  %363 = vmatmul.mubr.f32.gmra.mxu0 %v99
  %v364 = vpop.f32.mrf.mxu0
  %v365 = vadd.f32 0.0, %v364
  %v366 = vpop.f32.mrf.mxu0
  %367 = vmatprep.mubr.f32.mxu0 0.0
  %368 = vmatmul.mubr.f32.gmra.mxu0 %v102
  %v369 = vpop.f32.mrf.mxu0
  %v370 = vadd.f32 0.0, %v369
  %v371 = vpop.f32.mrf.mxu0
  %372 = vmatprep.mubr.f32.mxu0 0.0
  %373 = vmatmul.mubr.f32.gmra.mxu0 %v105
  %v374 = vpop.f32.mrf.mxu0
  %v375 = vadd.f32 0.0, %v374
  %v376 = vpop.f32.mrf.mxu0
  %377 = vmatprep.mubr.f32.mxu0 0.0
  %378 = vmatmul.mubr.f32.gmra.mxu0 %v108
  %v379 = vpop.f32.mrf.mxu0
  %v380 = vadd.f32 0.0, %v379
  %v381 = vpop.f32.mrf.mxu0
  %382 = vmatprep.mubr.f32.mxu0 0.0
  %383 = vmatmul.mubr.f32.gmra.mxu0 %v111
  %v384 = vpop.f32.mrf.mxu0
  %v385 = vadd.f32 0.0, %v384
  %v386 = vpop.f32.mrf.mxu0
  %387 = vmatprep.mubr.f32.mxu0 0.0
  %388 = vmatmul.mubr.f32.gmra.mxu0 %v114
  %v389 = vpop.f32.mrf.mxu0
  %v390 = vadd.f32 0.0, %v389
  %v391 = vpop.f32.mrf.mxu0
  %392 = vmatprep.mubr.f32.mxu0 0.0
  %393 = vmatmul.mubr.f32.gmra.mxu0 %v117
  %v394 = vpop.f32.mrf.mxu0
  %v395 = vadd.f32 0.0, %v394
  %v396 = vpop.f32.mrf.mxu0
  %397 = vmatprep.mubr.f32.mxu0 0.0
  %398 = vmatmul.mubr.f32.gmra.mxu0 %v120
  %v399 = vpop.f32.mrf.mxu0
  %v400 = vadd.f32 0.0, %v399
  %v401 = vpop.f32.mrf.mxu0
  %402 = vmatprep.mubr.f32.mxu0 0.0
  %403 = vmatmul.mubr.f32.gmra.mxu0 %v123
  %v404 = vpop.f32.mrf.mxu0
  %v405 = vadd.f32 0.0, %v404
  %v406 = vpop.f32.mrf.mxu0
  %407 = vmatprep.mubr.f32.mxu0 0.0
  %408 = vmatmul.mubr.f32.gmra.mxu0 %v126
  %v409 = vpop.f32.mrf.mxu0
  %v410 = vadd.f32 0.0, %v409
  %v411 = vpop.f32.mrf.mxu0
  %412 = vmatprep.mubr.f32.mxu0 0.0
  %413 = vmatmul.mubr.f32.gmra.mxu0 %v129
  %v414 = vpop.f32.mrf.mxu0
  %v415 = vadd.f32 0.0, %v414
  %v416 = vpop.f32.mrf.mxu0
  %417 = vmatprep.mubr.f32.mxu0 0.0
  %418 = vmatmul.mubr.f32.gmra.mxu0 %v132
  %v419 = vpop.f32.mrf.mxu0
  %v420 = vadd.f32 0.0, %v419
  %v421 = vpop.f32.mrf.mxu0
  %422 = vmatprep.mubr.f32.mxu0 0.0
  %423 = vmatmul.mubr.f32.gmra.mxu0 %v135
  %v424 = vpop.f32.mrf.mxu0
  %v425 = vadd.f32 0.0, %v424
  %v426 = vpop.f32.mrf.mxu0
  %427 = vmatprep.mubr.f32.mxu0 0.0
  %428 = vmatmul.mubr.f32.gmra.mxu0 %v138
  %v429 = vpop.f32.mrf.mxu0
  %v430 = vadd.f32 0.0, %v429
  %v431 = vpop.f32.mrf.mxu0
  %432 = vmatprep.mubr.f32.mxu0 0.0
  %433 = vmatmul.mubr.f32.gmra.mxu0 %v141
  %v434 = vpop.f32.mrf.mxu0
  %v435 = vadd.f32 0.0, %v434
  %v436 = vpop.f32.mrf.mxu0
  %437 = vmatprep.mubr.f32.mxu0 0.0
  %438 = vmatmul.mubr.f32.gmra.mxu0 %v144
  %v439 = vpop.f32.mrf.mxu0
  %v440 = vadd.f32 0.0, %v439
  %v441 = vpop.f32.mrf.mxu0
  %442 = vmatprep.mubr.f32.mxu0 0.0
  %443 = vmatmul.mubr.f32.gmra.mxu0 %v147
  %v444 = vpop.f32.mrf.mxu0
  %v445 = vadd.f32 0.0, %v444
  %v446 = vpop.f32.mrf.mxu0
  %447 = vmatprep.mubr.f32.mxu0 0.0
  %448 = vmatmul.mubr.f32.gmra.mxu0 %v150
  %v449 = vpop.f32.mrf.mxu0
  %v450 = vadd.f32 0.0, %v449
  %v451 = vpop.f32.mrf.mxu0
  %452 = vmatprep.mubr.f32.mxu0 0.0
  %453 = vmatmul.mubr.f32.gmra.mxu0 %v153
  %v454 = vpop.f32.mrf.mxu0
  %v455 = vadd.f32 0.0, %v454
  %v456 = vpop.f32.mrf.mxu0
  %457 = vmatprep.mubr.f32.mxu0 0.0
  %458 = vmatmul.mubr.f32.gmra.mxu0 %v156
  %v459 = vpop.f32.mrf.mxu0
  %v460 = vadd.f32 0.0, %v459
  %v461 = vpop.f32.mrf.mxu0
  %462 = vmatprep.mubr.f32.mxu0 0.0
  %463 = vmatmul.mubr.f32.gmra.mxu0 %v159
  %v464 = vpop.f32.mrf.mxu0
  %v465 = vadd.f32 0.0, %v464
  %v466 = vpop.f32.mrf.mxu0
  %467 = vmatprep.mubr.f32.mxu0 0.0
  %468 = vmatmul.mubr.f32.gmra.mxu0 %v162
  %v469 = vpop.f32.mrf.mxu0
  %v470 = vadd.f32 0.0, %v469
  %v471 = vpop.f32.mrf.mxu0
  %472 = vmatprep.mubr.f32.mxu0 0.0
  %473 = vmatmul.mubr.f32.gmra.mxu0 %v165
  %v474 = vpop.f32.mrf.mxu0
  %v475 = vadd.f32 0.0, %v474
  %v476 = vpop.f32.mrf.mxu0
  %477 = vmatprep.mubr.f32.mxu0 0.0
  %478 = vmatmul.mubr.f32.gmra.mxu0 %v168
  %v479 = vpop.f32.mrf.mxu0
  %v480 = vadd.f32 0.0, %v479
  %v481 = vpop.f32.mrf.mxu0
  %482 = vmatprep.mubr.f32.mxu0 0.0
  %483 = vmatmul.mubr.f32.gmra.mxu0 %v171
  %v484 = vpop.f32.mrf.mxu0
  %v485 = vadd.f32 0.0, %v484
  %v486 = vpop.f32.mrf.mxu0
  %487 = vmatprep.mubr.f32.mxu0 0.0
  %488 = vmatmul.mubr.f32.gmra.mxu0 %v174
  %v489 = vpop.f32.mrf.mxu0
  %v490 = vadd.f32 0.0, %v489
  %v491 = vpop.f32.mrf.mxu0
  %492 = vmatprep.mubr.f32.mxu0 0.0
  %493 = vmatmul.mubr.f32.gmra.mxu0 %v177
  %v494 = vpop.f32.mrf.mxu0
  %v495 = vadd.f32 0.0, %v494
  %v496 = vpop.f32.mrf.mxu0
  %497 = vmatprep.mubr.f32.mxu0 0.0
  %498 = vmatmul.mubr.f32.gmra.mxu0 %v180
  %v499 = vpop.f32.mrf.mxu0
  %v500 = vadd.f32 0.0, %v499
  %v501 = vpop.f32.mrf.mxu0
  %502 = vmatprep.mubr.f32.mxu0 0.0
  %503 = vmatmul.mubr.f32.gmra.mxu0 %v183
  %v504 = vpop.f32.mrf.mxu0
  %v505 = vadd.f32 0.0, %v504
  %v506 = vpop.f32.mrf.mxu0
  %507 = vmatprep.mubr.f32.mxu0 0.0
  %508 = vmatmul.mubr.f32.gmra.mxu0 %v186
  %v509 = vpop.f32.mrf.mxu0
  %v510 = vadd.f32 0.0, %v509
  %v511 = vpop.f32.mrf.mxu0
  %512 = vmatprep.mubr.f32.mxu0 0.0
  %513 = vmatmul.mubr.f32.gmra.mxu0 %v189
  %v514 = vpop.f32.mrf.mxu0
  %v515 = vadd.f32 0.0, %v514
  %v516 = vpop.f32.mrf.mxu0
  %517 = vmatprep.mubr.f32.mxu0 0.0
  %518 = vmatmul.mubr.f32.gmra.mxu0 %v192
  %v519 = vpop.f32.mrf.mxu0
  %v520 = vadd.f32 0.0, %v519
  %v521 = vpop.f32.mrf.mxu0
  %522 = vmatprep.mubr.f32.mxu0 0.0
  %523 = vmatmul.mubr.f32.gmra.mxu0 %v195
  %v524 = vpop.f32.mrf.mxu0
  %v525 = vadd.f32 0.0, %v524
  %v526 = vpop.f32.mrf.mxu0
  %527 = vmatprep.mubr.f32.mxu0 0.0
  %528 = vmatmul.mubr.f32.gmra.mxu0 %v198
  %v529 = vpop.f32.mrf.mxu0
  %v530 = vadd.f32 0.0, %v529
  %v531 = vpop.f32.mrf.mxu0
  %532 = vmatprep.mubr.f32.mxu0 0.0
  %533 = vmatmul.mubr.f32.gmra.mxu0 %v201
  %v534 = vpop.f32.mrf.mxu0
  %v535 = vadd.f32 0.0, %v534
  %v536 = vpop.f32.mrf.mxu0
  %537 = vmatprep.mubr.f32.mxu0 0.0
  %538 = vmatmul.mubr.f32.gmra.mxu0 %v204
  %v539 = vpop.f32.mrf.mxu0
  %v540 = vadd.f32 0.0, %v539
  %v541 = vpop.f32.mrf.mxu0
  %542 = vmatprep.mubr.f32.mxu0 0.0
  %543 = vmatmul.mubr.f32.gmra.mxu0 %v207
  %v544 = vpop.f32.mrf.mxu0
  %v545 = vadd.f32 0.0, %v544
  %v546 = vpop.f32.mrf.mxu0
  %547 = vmatprep.mubr.f32.mxu0 0.0
  %548 = vmatmul.mubr.f32.gmra.mxu0 %v210
  %v549 = vpop.f32.mrf.mxu0
  %v550 = vadd.f32 0.0, %v549
  %v551 = vpop.f32.mrf.mxu0
  %552 = vmatprep.mubr.f32.mxu0 0.0
  %553 = vmatmul.mubr.f32.gmra.mxu0 %v213
  %v554 = vpop.f32.mrf.mxu0
  %v555 = vadd.f32 0.0, %v554
  %v556 = vpop.f32.mrf.mxu0
  %557 = vmatprep.mubr.f32.mxu0 0.0
  %558 = vmatmul.mubr.f32.gmra.mxu0 %v216
  %v559 = vpop.f32.mrf.mxu0
  %v560 = vadd.f32 0.0, %v559
  %v561 = vpop.f32.mrf.mxu0
  %562 = vmatprep.mubr.f32.mxu0 0.0
  %563 = vmatmul.mubr.f32.gmra.mxu0 %v219
  %v564 = vpop.f32.mrf.mxu0
  %v565 = vadd.f32 0.0, %v564
  %v566 = vpop.f32.mrf.mxu0
  %567 = vmatprep.mubr.f32.mxu0 0.0
  %568 = vmatmul.mubr.f32.gmra.mxu0 %v222
  %v569 = vpop.f32.mrf.mxu0
  %v570 = vadd.f32 0.0, %v569
  %v571 = vpop.f32.mrf.mxu0
  %572 = vmatprep.mubr.f32.mxu0 0.0
  %573 = vmatmul.mubr.f32.gmra.mxu0 %v225
  %v574 = vpop.f32.mrf.mxu0
  %v575 = vadd.f32 0.0, %v574
  %v576 = vpop.f32.mrf.mxu0
  %577 = vmatprep.mubr.f32.mxu0 0.0
  %578 = vmatmul.mubr.f32.gmra.mxu0 %v228
  %v579 = vpop.f32.mrf.mxu0
  %v580 = vadd.f32 0.0, %v579
  %v581 = vpop.f32.mrf.mxu0
  %582 = vmatprep.mubr.f32.mxu0 0.0
  %583 = vmatmul.mubr.f32.gmra.mxu0 %v231
  %v584 = vpop.f32.mrf.mxu0
  %v585 = vadd.f32 0.0, %v584
  %v586 = vpop.f32.mrf.mxu0
  %587 = vmatprep.mubr.f32.mxu0 0.0
  %588 = vmatmul.mubr.f32.gmra.mxu0 %v234
  %v589 = vpop.f32.mrf.mxu0
  %v590 = vadd.f32 0.0, %v589
  %v591 = vpop.f32.mrf.mxu0
  %592 = vmatprep.mubr.f32.mxu0 0.0
  %593 = vmatmul.mubr.f32.gmra.mxu0 %v237
  %v594 = vpop.f32.mrf.mxu0
  %v595 = vadd.f32 0.0, %v594
  %v596 = vpop.f32.mrf.mxu0
  %597 = vmatprep.mubr.f32.mxu0 0.0
  %598 = vmatmul.mubr.f32.gmra.mxu0 %v240
  %v599 = vpop.f32.mrf.mxu0
  %v600 = vadd.f32 0.0, %v599
  %v601 = vpop.f32.mrf.mxu0
  %602 = vmatprep.mubr.f32.mxu0 0.0
  %603 = vmatmul.mubr.f32.gmra.mxu0 %v243
  %v604 = vpop.f32.mrf.mxu0
  %v605 = vadd.f32 0.0, %v604
  %v606 = vpop.f32.mrf.mxu0
  %607 = vmatprep.mubr.f32.mxu0 0.0
  %608 = vmatmul.mubr.f32.gmra.mxu0 %v246
  %v609 = vpop.f32.mrf.mxu0
  %v610 = vadd.f32 0.0, %v609
  %v611 = vpop.f32.mrf.mxu0
  %612 = vmatprep.mubr.f32.mxu0 0.0
  %613 = vmatmul.mubr.f32.gmra.mxu0 %v249
  %v614 = vpop.f32.mrf.mxu0
  %v615 = vadd.f32 0.0, %v614
  %v616 = vpop.f32.mrf.mxu0
  %617 = vmatprep.mubr.f32.mxu0 0.0
  %618 = vmatmul.mubr.f32.gmra.mxu0 %v252
  %v619 = vpop.f32.mrf.mxu0
  %v620 = vadd.f32 0.0, %v619
  %v621 = vpop.f32.mrf.mxu0
  %622 = vmatprep.mubr.f32.mxu0 0.0
  %623 = vmatmul.mubr.f32.gmra.mxu0 %v255
  %v624 = vpop.f32.mrf.mxu0
  %v625 = vadd.f32 0.0, %v624
  %v626 = vpop.f32.mrf.mxu0
  %627 = vmatprep.mubr.f32.mxu0 0.0
  %628 = vmatmul.mubr.f32.gmra.mxu0 %v258
  %v629 = vpop.f32.mrf.mxu0
  %v630 = vadd.f32 0.0, %v629
  %v631 = vpop.f32.mrf.mxu0
  %632 = vmatprep.mubr.f32.mxu0 0.0
  %633 = vmatmul.mubr.f32.gmra.mxu0 %v261
  %v634 = vpop.f32.mrf.mxu0
  %v635 = vadd.f32 0.0, %v634
  %v636 = vpop.f32.mrf.mxu0
  %637 = vmatprep.mubr.f32.mxu0 0.0
  %638 = vmatmul.mubr.f32.gmra.mxu0 %v264
  %v639 = vpop.f32.mrf.mxu0
  %v640 = vadd.f32 0.0, %v639
  %v641 = vpop.f32.mrf.mxu0
  %642 = vmatprep.mubr.f32.mxu0 0.0
  %643 = vmatmul.mubr.f32.gmra.mxu0 %v267
  %v644 = vpop.f32.mrf.mxu0
  %v645 = vadd.f32 0.0, %v644
  %v646 = vpop.f32.mrf.mxu0
  %647 = vmatprep.mubr.f32.mxu0 0.0
  %648 = vmatmul.mubr.f32.gmra.mxu0 %v270
  %v649 = vpop.f32.mrf.mxu0
  %v650 = vadd.f32 0.0, %v649
  %v651 = vpop.f32.mrf.mxu0
  %652 = vmatprep.mubr.f32.mxu0 0.0
  %653 = vmatmul.mubr.f32.gmra.mxu0 %v273
  %v654 = vpop.f32.mrf.mxu0
  %v655 = vadd.f32 0.0, %v654
  %v656 = vpop.f32.mrf.mxu0
  %657 = vmatprep.mubr.f32.mxu0 0.0
  %658 = vmatmul.mubr.f32.gmra.mxu0 %v276
  %v659 = vpop.f32.mrf.mxu0
  %v660 = vadd.f32 0.0, %v659
  %v661 = vpop.f32.mrf.mxu0
  %662 = vmatprep.mubr.f32.mxu0 0.0
  %663 = vmatmul.mubr.f32.gmra.mxu0 %v279
  %v664 = vpop.f32.mrf.mxu0
  %v665 = vadd.f32 0.0, %v664
  %v666 = vpop.f32.mrf.mxu0
  %667 = vmatprep.mubr.f32.mxu0 0.0
  %668 = vmatmul.mubr.f32.gmra.mxu0 %v282
  %v669 = vpop.f32.mrf.mxu0
  %v670 = vadd.f32 0.0, %v669
  %v671 = vpop.f32.mrf.mxu0
  %672 = vdwg.mxu0
  %v673 = vld [vmem:[%s0] sm:$0xff]
  %v674 = vld [vmem:[%s0 + $0x8] sm:$0xff]
  %v675 = vld [vmem:[%s0 + $0x10] sm:$0xff]
  %v676 = vld [vmem:[%s0 + $0x18] sm:$0xff]
  %v677 = vld [vmem:[%s0 + $0x20] sm:$0xff]
  %v678 = vld [vmem:[%s0 + $0x28] sm:$0xff]
  %v679 = vld [vmem:[%s0 + $0x30] sm:$0xff]
  %v680 = vld [vmem:[%s0 + $0x38] sm:$0xff]
  %v681 = vld [vmem:[%s0 + $0x40] sm:$0xff]
  %v682 = vld [vmem:[%s0 + $0x48] sm:$0xff]
  %v683 = vld [vmem:[%s0 + $0x50] sm:$0xff]
  %v684 = vld [vmem:[%s0 + $0x58] sm:$0xff]
  %v685 = vld [vmem:[%s0 + $0x60] sm:$0xff]
  %v686 = vld [vmem:[%s0 + $0x68] sm:$0xff]
  %v687 = vld [vmem:[%s0 + $0x70] sm:$0xff]
  %v688 = vld [vmem:[%s0 + $0x78] sm:$0xff]
  %v689 = vld [vmem:[%s0 + $0x80] sm:$0xff]
  %v690 = vld [vmem:[%s0 + $0x88] sm:$0xff]
  %v691 = vld [vmem:[%s0 + $0x90] sm:$0xff]
  %v692 = vld [vmem:[%s0 + $0x98] sm:$0xff]
  %v693 = vld [vmem:[%s0 + $0xa0] sm:$0xff]
  %v694 = vld [vmem:[%s0 + $0xa8] sm:$0xff]
  %v695 = vld [vmem:[%s0 + $0xb0] sm:$0xff]
  %v696 = vld [vmem:[%s0 + $0xb8] sm:$0xff]
  %v697 = vld [vmem:[%s0 + $0xc0] sm:$0xff]
  %v698 = vld [vmem:[%s0 + $0xc8] sm:$0xff]
  %v699 = vld [vmem:[%s0 + $0xd0] sm:$0xff]
  %v700 = vld [vmem:[%s0 + $0xd8] sm:$0xff]
  %v701 = vld [vmem:[%s0 + $0xe0] sm:$0xff]
  %v702 = vld [vmem:[%s0 + $0xe8] sm:$0xff]
  %v703 = vld [vmem:[%s0 + $0xf0] sm:$0xff]
  %v704 = vld [vmem:[%s0 + $0xf8] sm:$0xff]
  %v705 = vld [vmem:[%s0 + $0x100] sm:$0xff]
  %v706 = vld [vmem:[%s0 + $0x108] sm:$0xff]
  %v707 = vld [vmem:[%s0 + $0x110] sm:$0xff]
  %v708 = vld [vmem:[%s0 + $0x118] sm:$0xff]
  %v709 = vld [vmem:[%s0 + $0x120] sm:$0xff]
  %v710 = vld [vmem:[%s0 + $0x128] sm:$0xff]
  %v711 = vld [vmem:[%s0 + $0x130] sm:$0xff]
  %v712 = vld [vmem:[%s0 + $0x138] sm:$0xff]
  %v713 = vld [vmem:[%s0 + $0x140] sm:$0xff]
  %v714 = vld [vmem:[%s0 + $0x148] sm:$0xff]
  %v715 = vld [vmem:[%s0 + $0x150] sm:$0xff]
  %v716 = vld [vmem:[%s0 + $0x158] sm:$0xff]
  %v717 = vld [vmem:[%s0 + $0x160] sm:$0xff]
  %v718 = vld [vmem:[%s0 + $0x168] sm:$0xff]
  %v719 = vld [vmem:[%s0 + $0x170] sm:$0xff]
  %v720 = vld [vmem:[%s0 + $0x178] sm:$0xff]
  %v721 = vld [vmem:[%s0 + $0x180] sm:$0xff]
  %v722 = vld [vmem:[%s0 + $0x188] sm:$0xff]
  %v723 = vld [vmem:[%s0 + $0x190] sm:$0xff]
  %v724 = vld [vmem:[%s0 + $0x198] sm:$0xff]
  %v725 = vld [vmem:[%s0 + $0x1a0] sm:$0xff]
  %v726 = vld [vmem:[%s0 + $0x1a8] sm:$0xff]
  %v727 = vld [vmem:[%s0 + $0x1b0] sm:$0xff]
  %v728 = vld [vmem:[%s0 + $0x1b8] sm:$0xff]
  %v729 = vld [vmem:[%s0 + $0x1c0] sm:$0xff]
  %v730 = vld [vmem:[%s0 + $0x1c8] sm:$0xff]
  %v731 = vld [vmem:[%s0 + $0x1d0] sm:$0xff]
  %v732 = vld [vmem:[%s0 + $0x1d8] sm:$0xff]
  %v733 = vld [vmem:[%s0 + $0x1e0] sm:$0xff]
  %v734 = vld [vmem:[%s0 + $0x1e8] sm:$0xff]
  %v735 = vld [vmem:[%s0 + $0x1f0] sm:$0xff]
  %v736 = vld [vmem:[%s0 + $0x1f8] sm:$0xff]
  %v737 = vld [vmem:[%s3] sm:$0x1]
  %v739 = vlaneseq
  %v740 = vshrl.u32 %v739, 7
  %v741 = vsub.s32 0, %v740
  %v742 = vrot.slane %v737, %v741
  %v744 = vmul.f32 %v673, %v742
  %v745 = vmul.f32 %v674, %v742
  %v746 = vmul.f32 %v675, %v742
  %v747 = vmul.f32 %v676, %v742
  %v748 = vmul.f32 %v677, %v742
  %v749 = vmul.f32 %v678, %v742
  %v750 = vmul.f32 %v679, %v742
  %v751 = vmul.f32 %v680, %v742
  %v752 = vmul.f32 %v681, %v742
  %v753 = vmul.f32 %v682, %v742
  %v754 = vmul.f32 %v683, %v742
  %v755 = vmul.f32 %v684, %v742
  %v756 = vmul.f32 %v685, %v742
  %v757 = vmul.f32 %v686, %v742
  %v758 = vmul.f32 %v687, %v742
  %v759 = vmul.f32 %v688, %v742
  %v760 = vmul.f32 %v689, %v742
  %v761 = vmul.f32 %v690, %v742
  %v762 = vmul.f32 %v691, %v742
  %v763 = vmul.f32 %v692, %v742
  %v764 = vmul.f32 %v693, %v742
  %v765 = vmul.f32 %v694, %v742
  %v766 = vmul.f32 %v695, %v742
  %v767 = vmul.f32 %v696, %v742
  %v768 = vmul.f32 %v697, %v742
  %v769 = vmul.f32 %v698, %v742
  %v770 = vmul.f32 %v699, %v742
  %v771 = vmul.f32 %v700, %v742
  %v772 = vmul.f32 %v701, %v742
  %v773 = vmul.f32 %v702, %v742
  %v774 = vmul.f32 %v703, %v742
  %v775 = vmul.f32 %v704, %v742
  %v776 = vmul.f32 %v705, %v742
  %v777 = vmul.f32 %v706, %v742
  %v778 = vmul.f32 %v707, %v742
  %v779 = vmul.f32 %v708, %v742
  %v780 = vmul.f32 %v709, %v742
  %v781 = vmul.f32 %v710, %v742
  %v782 = vmul.f32 %v711, %v742
  %v783 = vmul.f32 %v712, %v742
  %v784 = vmul.f32 %v713, %v742
  %v785 = vmul.f32 %v714, %v742
  %v786 = vmul.f32 %v715, %v742
  %v787 = vmul.f32 %v716, %v742
  %v788 = vmul.f32 %v717, %v742
  %v789 = vmul.f32 %v718, %v742
  %v790 = vmul.f32 %v719, %v742
  %v791 = vmul.f32 %v720, %v742
  %v792 = vmul.f32 %v721, %v742
  %v793 = vmul.f32 %v722, %v742
  %v794 = vmul.f32 %v723, %v742
  %v795 = vmul.f32 %v724, %v742
  %v796 = vmul.f32 %v725, %v742
  %v797 = vmul.f32 %v726, %v742
  %v798 = vmul.f32 %v727, %v742
  %v799 = vmul.f32 %v728, %v742
  %v800 = vmul.f32 %v729, %v742
  %v801 = vmul.f32 %v730, %v742
  %v802 = vmul.f32 %v731, %v742
  %v803 = vmul.f32 %v732, %v742
  %v804 = vmul.f32 %v733, %v742
  %v805 = vmul.f32 %v734, %v742
  %v806 = vmul.f32 %v735, %v742
  %v807 = vmul.f32 %v736, %v742
  %v808 = vld [vmem:[%s4] sm:$0x1]
  %v810 = vlaneseq
  %v811 = vshrl.u32 %v810, 7
  %v812 = vsub.s32 0, %v811
  %v813 = vrot.slane %v808, %v812
  %v815 = vadd.f32 %v744, %v813
  %v816 = vadd.f32 %v745, %v813
  %v817 = vadd.f32 %v746, %v813
  %v818 = vadd.f32 %v747, %v813
  %v819 = vadd.f32 %v748, %v813
  %v820 = vadd.f32 %v749, %v813
  %v821 = vadd.f32 %v750, %v813
  %v822 = vadd.f32 %v751, %v813
  %v823 = vadd.f32 %v752, %v813
  %v824 = vadd.f32 %v753, %v813
  %v825 = vadd.f32 %v754, %v813
  %v826 = vadd.f32 %v755, %v813
  %v827 = vadd.f32 %v756, %v813
  %v828 = vadd.f32 %v757, %v813
  %v829 = vadd.f32 %v758, %v813
  %v830 = vadd.f32 %v759, %v813
  %v831 = vadd.f32 %v760, %v813
  %v832 = vadd.f32 %v761, %v813
  %v833 = vadd.f32 %v762, %v813
  %v834 = vadd.f32 %v763, %v813
  %v835 = vadd.f32 %v764, %v813
  %v836 = vadd.f32 %v765, %v813
  %v837 = vadd.f32 %v766, %v813
  %v838 = vadd.f32 %v767, %v813
  %v839 = vadd.f32 %v768, %v813
  %v840 = vadd.f32 %v769, %v813
  %v841 = vadd.f32 %v770, %v813
  %v842 = vadd.f32 %v771, %v813
  %v843 = vadd.f32 %v772, %v813
  %v844 = vadd.f32 %v773, %v813
  %v845 = vadd.f32 %v774, %v813
  %v846 = vadd.f32 %v775, %v813
  %v847 = vadd.f32 %v776, %v813
  %v848 = vadd.f32 %v777, %v813
  %v849 = vadd.f32 %v778, %v813
  %v850 = vadd.f32 %v779, %v813
  %v851 = vadd.f32 %v780, %v813
  %v852 = vadd.f32 %v781, %v813
  %v853 = vadd.f32 %v782, %v813
  %v854 = vadd.f32 %v783, %v813
  %v855 = vadd.f32 %v784, %v813
  %v856 = vadd.f32 %v785, %v813
  %v857 = vadd.f32 %v786, %v813
  %v858 = vadd.f32 %v787, %v813
  %v859 = vadd.f32 %v788, %v813
  %v860 = vadd.f32 %v789, %v813
  %v861 = vadd.f32 %v790, %v813
  %v862 = vadd.f32 %v791, %v813
  %v863 = vadd.f32 %v792, %v813
  %v864 = vadd.f32 %v793, %v813
  %v865 = vadd.f32 %v794, %v813
  %v866 = vadd.f32 %v795, %v813
  %v867 = vadd.f32 %v796, %v813
  %v868 = vadd.f32 %v797, %v813
  %v869 = vadd.f32 %v798, %v813
  %v870 = vadd.f32 %v799, %v813
  %v871 = vadd.f32 %v800, %v813
  %v872 = vadd.f32 %v801, %v813
  %v873 = vadd.f32 %v802, %v813
  %v874 = vadd.f32 %v803, %v813
  %v875 = vadd.f32 %v804, %v813
  %v876 = vadd.f32 %v805, %v813
  %v877 = vadd.f32 %v806, %v813
  %v878 = vadd.f32 %v807, %v813
  %v879 = vld [vmem:[%s5] sm:$0x1]
  %v881 = vlaneseq
  %v882 = vshrl.u32 %v881, 7
  %v883 = vsub.s32 0, %v882
  %v884 = vrot.slane %v879, %v883
  %v886 = vmul.f32 %v355, %v884
  %v887 = vmul.f32 %v360, %v884
  %v888 = vmul.f32 %v365, %v884
  %v889 = vmul.f32 %v370, %v884
  %v890 = vmul.f32 %v375, %v884
  %v891 = vmul.f32 %v380, %v884
  %v892 = vmul.f32 %v385, %v884
  %v893 = vmul.f32 %v390, %v884
  %v894 = vmul.f32 %v395, %v884
  %v895 = vmul.f32 %v400, %v884
  %v896 = vmul.f32 %v405, %v884
  %v897 = vmul.f32 %v410, %v884
  %v898 = vmul.f32 %v415, %v884
  %v899 = vmul.f32 %v420, %v884
  %v900 = vmul.f32 %v425, %v884
  %v901 = vmul.f32 %v430, %v884
  %v902 = vmul.f32 %v435, %v884
  %v903 = vmul.f32 %v440, %v884
  %v904 = vmul.f32 %v445, %v884
  %v905 = vmul.f32 %v450, %v884
  %v906 = vmul.f32 %v455, %v884
  %v907 = vmul.f32 %v460, %v884
  %v908 = vmul.f32 %v465, %v884
  %v909 = vmul.f32 %v470, %v884
  %v910 = vmul.f32 %v475, %v884
  %v911 = vmul.f32 %v480, %v884
  %v912 = vmul.f32 %v485, %v884
  %v913 = vmul.f32 %v490, %v884
  %v914 = vmul.f32 %v495, %v884
  %v915 = vmul.f32 %v500, %v884
  %v916 = vmul.f32 %v505, %v884
  %v917 = vmul.f32 %v510, %v884
  %v918 = vmul.f32 %v515, %v884
  %v919 = vmul.f32 %v520, %v884
  %v920 = vmul.f32 %v525, %v884
  %v921 = vmul.f32 %v530, %v884
  %v922 = vmul.f32 %v535, %v884
  %v923 = vmul.f32 %v540, %v884
  %v924 = vmul.f32 %v545, %v884
  %v925 = vmul.f32 %v550, %v884
  %v926 = vmul.f32 %v555, %v884
  %v927 = vmul.f32 %v560, %v884
  %v928 = vmul.f32 %v565, %v884
  %v929 = vmul.f32 %v570, %v884
  %v930 = vmul.f32 %v575, %v884
  %v931 = vmul.f32 %v580, %v884
  %v932 = vmul.f32 %v585, %v884
  %v933 = vmul.f32 %v590, %v884
  %v934 = vmul.f32 %v595, %v884
  %v935 = vmul.f32 %v600, %v884
  %v936 = vmul.f32 %v605, %v884
  %v937 = vmul.f32 %v610, %v884
  %v938 = vmul.f32 %v615, %v884
  %v939 = vmul.f32 %v620, %v884
  %v940 = vmul.f32 %v625, %v884
  %v941 = vmul.f32 %v630, %v884
  %v942 = vmul.f32 %v635, %v884
  %v943 = vmul.f32 %v640, %v884
  %v944 = vmul.f32 %v645, %v884
  %v945 = vmul.f32 %v650, %v884
  %v946 = vmul.f32 %v655, %v884
  %v947 = vmul.f32 %v660, %v884
  %v948 = vmul.f32 %v665, %v884
  %v949 = vmul.f32 %v670, %v884
  %v950 = vadd.f32 %v815, %v886
  %v951 = vadd.f32 %v816, %v887
  %v952 = vadd.f32 %v817, %v888
  %v953 = vadd.f32 %v818, %v889
  %v954 = vadd.f32 %v819, %v890
  %v955 = vadd.f32 %v820, %v891
  %v956 = vadd.f32 %v821, %v892
  %v957 = vadd.f32 %v822, %v893
  %v958 = vadd.f32 %v823, %v894
  %v959 = vadd.f32 %v824, %v895
  %v960 = vadd.f32 %v825, %v896
  %v961 = vadd.f32 %v826, %v897
  %v962 = vadd.f32 %v827, %v898
  %v963 = vadd.f32 %v828, %v899
  %v964 = vadd.f32 %v829, %v900
  %v965 = vadd.f32 %v830, %v901
  %v966 = vadd.f32 %v831, %v902
  %v967 = vadd.f32 %v832, %v903
  %v968 = vadd.f32 %v833, %v904
  %v969 = vadd.f32 %v834, %v905
  %v970 = vadd.f32 %v835, %v906
  %v971 = vadd.f32 %v836, %v907
  %v972 = vadd.f32 %v837, %v908
  %v973 = vadd.f32 %v838, %v909
  %v974 = vadd.f32 %v839, %v910
  %v975 = vadd.f32 %v840, %v911
  %v976 = vadd.f32 %v841, %v912
  %v977 = vadd.f32 %v842, %v913
  %v978 = vadd.f32 %v843, %v914
  %v979 = vadd.f32 %v844, %v915
  %v980 = vadd.f32 %v845, %v916
  %v981 = vadd.f32 %v846, %v917
  %v982 = vadd.f32 %v847, %v918
  %v983 = vadd.f32 %v848, %v919
  %v984 = vadd.f32 %v849, %v920
  %v985 = vadd.f32 %v850, %v921
  %v986 = vadd.f32 %v851, %v922
  %v987 = vadd.f32 %v852, %v923
  %v988 = vadd.f32 %v853, %v924
  %v989 = vadd.f32 %v854, %v925
  %v990 = vadd.f32 %v855, %v926
  %v991 = vadd.f32 %v856, %v927
  %v992 = vadd.f32 %v857, %v928
  %v993 = vadd.f32 %v858, %v929
  %v994 = vadd.f32 %v859, %v930
  %v995 = vadd.f32 %v860, %v931
  %v996 = vadd.f32 %v861, %v932
  %v997 = vadd.f32 %v862, %v933
  %v998 = vadd.f32 %v863, %v934
  %v999 = vadd.f32 %v864, %v935
  %v1000 = vadd.f32 %v865, %v936
  %v1001 = vadd.f32 %v866, %v937
  %v1002 = vadd.f32 %v867, %v938
  %v1003 = vadd.f32 %v868, %v939
  %v1004 = vadd.f32 %v869, %v940
  %v1005 = vadd.f32 %v870, %v941
  %v1006 = vadd.f32 %v871, %v942
  %v1007 = vadd.f32 %v872, %v943
  %v1008 = vadd.f32 %v873, %v944
  %v1009 = vadd.f32 %v874, %v945
  %v1010 = vadd.f32 %v875, %v946
  %v1011 = vadd.f32 %v876, %v947
  %v1012 = vadd.f32 %v877, %v948
  %v1013 = vadd.f32 %v878, %v949
  %v1014 = vld [vmem:[%s6] sm:$0x1]
  %v1016 = vlaneseq
  %v1017 = vshrl.u32 %v1016, 7
  %v1018 = vsub.s32 0, %v1017
  %v1019 = vrot.slane %v1014, %v1018
  %v1021 = vadd.f32 %v950, %v1019
  %v1022 = vadd.f32 %v951, %v1019
  %v1023 = vadd.f32 %v952, %v1019
  %v1024 = vadd.f32 %v953, %v1019
  %v1025 = vadd.f32 %v954, %v1019
  %v1026 = vadd.f32 %v955, %v1019
  %v1027 = vadd.f32 %v956, %v1019
  %v1028 = vadd.f32 %v957, %v1019
  %v1029 = vadd.f32 %v958, %v1019
  %v1030 = vadd.f32 %v959, %v1019
  %v1031 = vadd.f32 %v960, %v1019
  %v1032 = vadd.f32 %v961, %v1019
  %v1033 = vadd.f32 %v962, %v1019
  %v1034 = vadd.f32 %v963, %v1019
  %v1035 = vadd.f32 %v964, %v1019
  %v1036 = vadd.f32 %v965, %v1019
  %v1037 = vadd.f32 %v966, %v1019
  %v1038 = vadd.f32 %v967, %v1019
  %v1039 = vadd.f32 %v968, %v1019
  %v1040 = vadd.f32 %v969, %v1019
  %v1041 = vadd.f32 %v970, %v1019
  %v1042 = vadd.f32 %v971, %v1019
  %v1043 = vadd.f32 %v972, %v1019
  %v1044 = vadd.f32 %v973, %v1019
  %v1045 = vadd.f32 %v974, %v1019
  %v1046 = vadd.f32 %v975, %v1019
  %v1047 = vadd.f32 %v976, %v1019
  %v1048 = vadd.f32 %v977, %v1019
  %v1049 = vadd.f32 %v978, %v1019
  %v1050 = vadd.f32 %v979, %v1019
  %v1051 = vadd.f32 %v980, %v1019
  %v1052 = vadd.f32 %v981, %v1019
  %v1053 = vadd.f32 %v982, %v1019
  %v1054 = vadd.f32 %v983, %v1019
  %v1055 = vadd.f32 %v984, %v1019
  %v1056 = vadd.f32 %v985, %v1019
  %v1057 = vadd.f32 %v986, %v1019
  %v1058 = vadd.f32 %v987, %v1019
  %v1059 = vadd.f32 %v988, %v1019
  %v1060 = vadd.f32 %v989, %v1019
  %v1061 = vadd.f32 %v990, %v1019
  %v1062 = vadd.f32 %v991, %v1019
  %v1063 = vadd.f32 %v992, %v1019
  %v1064 = vadd.f32 %v993, %v1019
  %v1065 = vadd.f32 %v994, %v1019
  %v1066 = vadd.f32 %v995, %v1019
  %v1067 = vadd.f32 %v996, %v1019
  %v1068 = vadd.f32 %v997, %v1019
  %v1069 = vadd.f32 %v998, %v1019
  %v1070 = vadd.f32 %v999, %v1019
  %v1071 = vadd.f32 %v1000, %v1019
  %v1072 = vadd.f32 %v1001, %v1019
  %v1073 = vadd.f32 %v1002, %v1019
  %v1074 = vadd.f32 %v1003, %v1019
  %v1075 = vadd.f32 %v1004, %v1019
  %v1076 = vadd.f32 %v1005, %v1019
  %v1077 = vadd.f32 %v1006, %v1019
  %v1078 = vadd.f32 %v1007, %v1019
  %v1079 = vadd.f32 %v1008, %v1019
  %v1080 = vadd.f32 %v1009, %v1019
  %v1081 = vadd.f32 %v1010, %v1019
  %v1082 = vadd.f32 %v1011, %v1019
  %v1083 = vadd.f32 %v1012, %v1019
  %v1084 = vadd.f32 %v1013, %v1019
  %vm1085 = vcmask 64512
  %1086 = vst.msk [vmem:[%s7] sm:$0xff] %vm1085, %v1021
  %1087 = vst.msk [vmem:[%s7 + $0x8] sm:$0xff] %vm1085, %v1022
  %1088 = vst.msk [vmem:[%s7 + $0x10] sm:$0xff] %vm1085, %v1023
  %1089 = vst.msk [vmem:[%s7 + $0x18] sm:$0xff] %vm1085, %v1024
  %1090 = vst.msk [vmem:[%s7 + $0x20] sm:$0xff] %vm1085, %v1025
  %1091 = vst.msk [vmem:[%s7 + $0x28] sm:$0xff] %vm1085, %v1026
  %1092 = vst.msk [vmem:[%s7 + $0x30] sm:$0xff] %vm1085, %v1027
  %1093 = vst.msk [vmem:[%s7 + $0x38] sm:$0xff] %vm1085, %v1028
  %1094 = vst.msk [vmem:[%s7 + $0x40] sm:$0xff] %vm1085, %v1029
  %1095 = vst.msk [vmem:[%s7 + $0x48] sm:$0xff] %vm1085, %v1030
  %1096 = vst.msk [vmem:[%s7 + $0x50] sm:$0xff] %vm1085, %v1031
  %1097 = vst.msk [vmem:[%s7 + $0x58] sm:$0xff] %vm1085, %v1032
  %1098 = vst.msk [vmem:[%s7 + $0x60] sm:$0xff] %vm1085, %v1033
  %1099 = vst.msk [vmem:[%s7 + $0x68] sm:$0xff] %vm1085, %v1034
  %1100 = vst.msk [vmem:[%s7 + $0x70] sm:$0xff] %vm1085, %v1035
  %1101 = vst.msk [vmem:[%s7 + $0x78] sm:$0xff] %vm1085, %v1036
  %1102 = vst.msk [vmem:[%s7 + $0x80] sm:$0xff] %vm1085, %v1037
  %1103 = vst.msk [vmem:[%s7 + $0x88] sm:$0xff] %vm1085, %v1038
  %1104 = vst.msk [vmem:[%s7 + $0x90] sm:$0xff] %vm1085, %v1039
  %1105 = vst.msk [vmem:[%s7 + $0x98] sm:$0xff] %vm1085, %v1040
  %1106 = vst.msk [vmem:[%s7 + $0xa0] sm:$0xff] %vm1085, %v1041
  %1107 = vst.msk [vmem:[%s7 + $0xa8] sm:$0xff] %vm1085, %v1042
  %1108 = vst.msk [vmem:[%s7 + $0xb0] sm:$0xff] %vm1085, %v1043
  %1109 = vst.msk [vmem:[%s7 + $0xb8] sm:$0xff] %vm1085, %v1044
  %1110 = vst.msk [vmem:[%s7 + $0xc0] sm:$0xff] %vm1085, %v1045
  %1111 = vst.msk [vmem:[%s7 + $0xc8] sm:$0xff] %vm1085, %v1046
  %1112 = vst.msk [vmem:[%s7 + $0xd0] sm:$0xff] %vm1085, %v1047
  %1113 = vst.msk [vmem:[%s7 + $0xd8] sm:$0xff] %vm1085, %v1048
  %1114 = vst.msk [vmem:[%s7 + $0xe0] sm:$0xff] %vm1085, %v1049
  %1115 = vst.msk [vmem:[%s7 + $0xe8] sm:$0xff] %vm1085, %v1050
  %1116 = vst.msk [vmem:[%s7 + $0xf0] sm:$0xff] %vm1085, %v1051
  %1117 = vst.msk [vmem:[%s7 + $0xf8] sm:$0xff] %vm1085, %v1052
  %1118 = vst.msk [vmem:[%s7 + $0x100] sm:$0xff] %vm1085, %v1053
  %1119 = vst.msk [vmem:[%s7 + $0x108] sm:$0xff] %vm1085, %v1054
  %1120 = vst.msk [vmem:[%s7 + $0x110] sm:$0xff] %vm1085, %v1055
  %1121 = vst.msk [vmem:[%s7 + $0x118] sm:$0xff] %vm1085, %v1056
  %1122 = vst.msk [vmem:[%s7 + $0x120] sm:$0xff] %vm1085, %v1057
  %1123 = vst.msk [vmem:[%s7 + $0x128] sm:$0xff] %vm1085, %v1058
  %1124 = vst.msk [vmem:[%s7 + $0x130] sm:$0xff] %vm1085, %v1059
  %1125 = vst.msk [vmem:[%s7 + $0x138] sm:$0xff] %vm1085, %v1060
  %1126 = vst.msk [vmem:[%s7 + $0x140] sm:$0xff] %vm1085, %v1061
  %1127 = vst.msk [vmem:[%s7 + $0x148] sm:$0xff] %vm1085, %v1062
  %1128 = vst.msk [vmem:[%s7 + $0x150] sm:$0xff] %vm1085, %v1063
  %1129 = vst.msk [vmem:[%s7 + $0x158] sm:$0xff] %vm1085, %v1064
  %1130 = vst.msk [vmem:[%s7 + $0x160] sm:$0xff] %vm1085, %v1065
  %1131 = vst.msk [vmem:[%s7 + $0x168] sm:$0xff] %vm1085, %v1066
  %1132 = vst.msk [vmem:[%s7 + $0x170] sm:$0xff] %vm1085, %v1067
  %1133 = vst.msk [vmem:[%s7 + $0x178] sm:$0xff] %vm1085, %v1068
  %1134 = vst.msk [vmem:[%s7 + $0x180] sm:$0xff] %vm1085, %v1069
  %1135 = vst.msk [vmem:[%s7 + $0x188] sm:$0xff] %vm1085, %v1070
  %1136 = vst.msk [vmem:[%s7 + $0x190] sm:$0xff] %vm1085, %v1071
  %1137 = vst.msk [vmem:[%s7 + $0x198] sm:$0xff] %vm1085, %v1072
  %1138 = vst.msk [vmem:[%s7 + $0x1a0] sm:$0xff] %vm1085, %v1073
  %1139 = vst.msk [vmem:[%s7 + $0x1a8] sm:$0xff] %vm1085, %v1074
  %1140 = vst.msk [vmem:[%s7 + $0x1b0] sm:$0xff] %vm1085, %v1075
  %1141 = vst.msk [vmem:[%s7 + $0x1b8] sm:$0xff] %vm1085, %v1076
  %1142 = vst.msk [vmem:[%s7 + $0x1c0] sm:$0xff] %vm1085, %v1077
  %1143 = vst.msk [vmem:[%s7 + $0x1c8] sm:$0xff] %vm1085, %v1078
  %1144 = vst.msk [vmem:[%s7 + $0x1d0] sm:$0xff] %vm1085, %v1079
  %1145 = vst.msk [vmem:[%s7 + $0x1d8] sm:$0xff] %vm1085, %v1080
  %1146 = vst.msk [vmem:[%s7 + $0x1e0] sm:$0xff] %vm1085, %v1081
  %1147 = vst.msk [vmem:[%s7 + $0x1e8] sm:$0xff] %vm1085, %v1082
  %1148 = vst.msk [vmem:[%s7 + $0x1f0] sm:$0xff] %vm1085, %v1083
  %1149 = vst.msk [vmem:[%s7 + $0x1f8] sm:$0xff] %vm1085, %v1084
  // Predicated region
  $region30: #{mbconv_forward.7} parent=0 // pred_check
    _
  $region31: #{mbconv_forward.7} parent=0 // pred_check_branch
    %1151 = sbr.rel (0) target = $region33
  $region32: #{mbconv_forward.7} parent=0 // pred_region
    _
  $region33: #{mbconv_forward.7} parent=0 // pred_fallthru
    _
  // Predicated region
  $region34: #{mbconv_forward.7} parent=0 // pred_check
    _
  $region35: #{mbconv_forward.7} parent=0 // pred_check_branch
    %1153 = sbr.rel (0) target = $region37
  $region36: #{mbconv_forward.7} parent=0 // pred_region
    _
  $region37: #{mbconv_forward.7} parent=0 // pred_fallthru
    _

// kernel: mbconv_forward.6
$region0: #{mbconv_forward.6}
  #allocation0 [shape = 'u32[]', space=smem, size = 0x4, offset = 0x4, fixed_abs, tag = 'smem constant byte address 0x4 - core index']
  #allocation1 [shape = 'u32[144,128]{1,0:T(1,128)}', space=vmem, size = 0x12000, scoped, tag = 'internal scratch']
  %s0 = inlined_call_operand.vmem [shape: f32[512,16], index: 0, kind: input, shape index: {}]
  %s1 = inlined_call_operand.vmem [shape: f32[1,16], index: 1, kind: input, shape index: {}]
  %s2 = inlined_call_operand.vmem [shape: f32[1,16], index: 2, kind: input, shape index: {}]
  %s3 = inlined_call_operand.vmem [shape: f32[16,8], index: 3, kind: input, shape index: {}]
  %s4 = inlined_call_operand.vmem [shape: f32[512,8], index: 4, kind: output, shape index: {0}]
  %s5 = inlined_call_operand.vmem [shape: f32[1,2,8], index: 5, kind: output, shape index: {1}]
  %6 = xla_tuple %s4, %s5
  %s7 = sld [smem:[#allocation0]]
  $region34: #{mbconv_forward.6} parent=0
    _
  %s9 = ssub.s32 1, %s7
  %s10 = scalar_select 0, %s9, %s7
  // Predicated region
  $region2: #{mbconv_forward.6} parent=0 // pred_check
    _
  $region3: #{mbconv_forward.6} parent=0 // pred_check_branch
    %12 = sbr.rel (0) target = $region5
  $region4: #{mbconv_forward.6} parent=0 // pred_region
    _
  $region5: #{mbconv_forward.6} parent=0 // pred_fallthru
    _
  // Predicated region
  $region6: #{mbconv_forward.6} parent=0 // pred_check
    _
  $region7: #{mbconv_forward.6} parent=0 // pred_check_branch
    %14 = sbr.rel (0) target = $region9
  $region8: #{mbconv_forward.6} parent=0 // pred_region
    _
  $region9: #{mbconv_forward.6} parent=0 // pred_fallthru
    _
  // Predicated region
  $region10: #{mbconv_forward.6} parent=0 // pred_check
    _
  $region11: #{mbconv_forward.6} parent=0 // pred_check_branch
    %16 = sbr.rel (0) target = $region13
  $region12: #{mbconv_forward.6} parent=0 // pred_region
    _
  $region13: #{mbconv_forward.6} parent=0 // pred_fallthru
    _
  // Predicated region
  $region14: #{mbconv_forward.6} parent=0 // pred_check
    _
  $region15: #{mbconv_forward.6} parent=0 // pred_check_branch
    %18 = sbr.rel (0) target = $region17
  $region16: #{mbconv_forward.6} parent=0 // pred_region
    _
  $region17: #{mbconv_forward.6} parent=0 // pred_fallthru
    _
  %v19 = vld [vmem:[%s0] sm:$0xff]
  %v20 = vld [vmem:[%s0 + $0x8] sm:$0xff]
  %v21 = vld [vmem:[%s0 + $0x10] sm:$0xff]
  %v22 = vld [vmem:[%s0 + $0x18] sm:$0xff]
  %v23 = vld [vmem:[%s0 + $0x20] sm:$0xff]
  %v24 = vld [vmem:[%s0 + $0x28] sm:$0xff]
  %v25 = vld [vmem:[%s0 + $0x30] sm:$0xff]
  %v26 = vld [vmem:[%s0 + $0x38] sm:$0xff]
  %v27 = vld [vmem:[%s0 + $0x40] sm:$0xff]
  %v28 = vld [vmem:[%s0 + $0x48] sm:$0xff]
  %v29 = vld [vmem:[%s0 + $0x50] sm:$0xff]
  %v30 = vld [vmem:[%s0 + $0x58] sm:$0xff]
  %v31 = vld [vmem:[%s0 + $0x60] sm:$0xff]
  %v32 = vld [vmem:[%s0 + $0x68] sm:$0xff]
  %v33 = vld [vmem:[%s0 + $0x70] sm:$0xff]
  %v34 = vld [vmem:[%s0 + $0x78] sm:$0xff]
  %v35 = vld [vmem:[%s0 + $0x80] sm:$0xff]
  %v36 = vld [vmem:[%s0 + $0x88] sm:$0xff]
  %v37 = vld [vmem:[%s0 + $0x90] sm:$0xff]
  %v38 = vld [vmem:[%s0 + $0x98] sm:$0xff]
  %v39 = vld [vmem:[%s0 + $0xa0] sm:$0xff]
  %v40 = vld [vmem:[%s0 + $0xa8] sm:$0xff]
  %v41 = vld [vmem:[%s0 + $0xb0] sm:$0xff]
  %v42 = vld [vmem:[%s0 + $0xb8] sm:$0xff]
  %v43 = vld [vmem:[%s0 + $0xc0] sm:$0xff]
  %v44 = vld [vmem:[%s0 + $0xc8] sm:$0xff]
  %v45 = vld [vmem:[%s0 + $0xd0] sm:$0xff]
  %v46 = vld [vmem:[%s0 + $0xd8] sm:$0xff]
  %v47 = vld [vmem:[%s0 + $0xe0] sm:$0xff]
  %v48 = vld [vmem:[%s0 + $0xe8] sm:$0xff]
  %v49 = vld [vmem:[%s0 + $0xf0] sm:$0xff]
  %v50 = vld [vmem:[%s0 + $0xf8] sm:$0xff]
  %v51 = vld [vmem:[%s0 + $0x100] sm:$0xff]
  %v52 = vld [vmem:[%s0 + $0x108] sm:$0xff]
  %v53 = vld [vmem:[%s0 + $0x110] sm:$0xff]
  %v54 = vld [vmem:[%s0 + $0x118] sm:$0xff]
  %v55 = vld [vmem:[%s0 + $0x120] sm:$0xff]
  %v56 = vld [vmem:[%s0 + $0x128] sm:$0xff]
  %v57 = vld [vmem:[%s0 + $0x130] sm:$0xff]
  %v58 = vld [vmem:[%s0 + $0x138] sm:$0xff]
  %v59 = vld [vmem:[%s0 + $0x140] sm:$0xff]
  %v60 = vld [vmem:[%s0 + $0x148] sm:$0xff]
  %v61 = vld [vmem:[%s0 + $0x150] sm:$0xff]
  %v62 = vld [vmem:[%s0 + $0x158] sm:$0xff]
  %v63 = vld [vmem:[%s0 + $0x160] sm:$0xff]
  %v64 = vld [vmem:[%s0 + $0x168] sm:$0xff]
  %v65 = vld [vmem:[%s0 + $0x170] sm:$0xff]
  %v66 = vld [vmem:[%s0 + $0x178] sm:$0xff]
  %v67 = vld [vmem:[%s0 + $0x180] sm:$0xff]
  %v68 = vld [vmem:[%s0 + $0x188] sm:$0xff]
  %v69 = vld [vmem:[%s0 + $0x190] sm:$0xff]
  %v70 = vld [vmem:[%s0 + $0x198] sm:$0xff]
  %v71 = vld [vmem:[%s0 + $0x1a0] sm:$0xff]
  %v72 = vld [vmem:[%s0 + $0x1a8] sm:$0xff]
  %v73 = vld [vmem:[%s0 + $0x1b0] sm:$0xff]
  %v74 = vld [vmem:[%s0 + $0x1b8] sm:$0xff]
  %v75 = vld [vmem:[%s0 + $0x1c0] sm:$0xff]
  %v76 = vld [vmem:[%s0 + $0x1c8] sm:$0xff]
  %v77 = vld [vmem:[%s0 + $0x1d0] sm:$0xff]
  %v78 = vld [vmem:[%s0 + $0x1d8] sm:$0xff]
  %v79 = vld [vmem:[%s0 + $0x1e0] sm:$0xff]
  %v80 = vld [vmem:[%s0 + $0x1e8] sm:$0xff]
  %v81 = vld [vmem:[%s0 + $0x1f0] sm:$0xff]
  %v82 = vld [vmem:[%s0 + $0x1f8] sm:$0xff]
  %v83 = vld [vmem:[%s1] sm:$0x1]
  %v85 = vlaneseq
  %v86 = vshrl.u32 %v85, 7
  %v87 = vsub.s32 0, %v86
  %v88 = vrot.slane %v83, %v87
  %v90 = vmul.f32 %v19, %v88
  %v91 = vmul.f32 %v20, %v88
  %v92 = vmul.f32 %v21, %v88
  %v93 = vmul.f32 %v22, %v88
  %v94 = vmul.f32 %v23, %v88
  %v95 = vmul.f32 %v24, %v88
  %v96 = vmul.f32 %v25, %v88
  %v97 = vmul.f32 %v26, %v88
  %v98 = vmul.f32 %v27, %v88
  %v99 = vmul.f32 %v28, %v88
  %v100 = vmul.f32 %v29, %v88
  %v101 = vmul.f32 %v30, %v88
  %v102 = vmul.f32 %v31, %v88
  %v103 = vmul.f32 %v32, %v88
  %v104 = vmul.f32 %v33, %v88
  %v105 = vmul.f32 %v34, %v88
  %v106 = vmul.f32 %v35, %v88
  %v107 = vmul.f32 %v36, %v88
  %v108 = vmul.f32 %v37, %v88
  %v109 = vmul.f32 %v38, %v88
  %v110 = vmul.f32 %v39, %v88
  %v111 = vmul.f32 %v40, %v88
  %v112 = vmul.f32 %v41, %v88
  %v113 = vmul.f32 %v42, %v88
  %v114 = vmul.f32 %v43, %v88
  %v115 = vmul.f32 %v44, %v88
  %v116 = vmul.f32 %v45, %v88
  %v117 = vmul.f32 %v46, %v88
  %v118 = vmul.f32 %v47, %v88
  %v119 = vmul.f32 %v48, %v88
  %v120 = vmul.f32 %v49, %v88
  %v121 = vmul.f32 %v50, %v88
  %v122 = vmul.f32 %v51, %v88
  %v123 = vmul.f32 %v52, %v88
  %v124 = vmul.f32 %v53, %v88
  %v125 = vmul.f32 %v54, %v88
  %v126 = vmul.f32 %v55, %v88
  %v127 = vmul.f32 %v56, %v88
  %v128 = vmul.f32 %v57, %v88
  %v129 = vmul.f32 %v58, %v88
  %v130 = vmul.f32 %v59, %v88
  %v131 = vmul.f32 %v60, %v88
  %v132 = vmul.f32 %v61, %v88
  %v133 = vmul.f32 %v62, %v88
  %v134 = vmul.f32 %v63, %v88
  %v135 = vmul.f32 %v64, %v88
  %v136 = vmul.f32 %v65, %v88
  %v137 = vmul.f32 %v66, %v88
  %v138 = vmul.f32 %v67, %v88
  %v139 = vmul.f32 %v68, %v88
  %v140 = vmul.f32 %v69, %v88
  %v141 = vmul.f32 %v70, %v88
  %v142 = vmul.f32 %v71, %v88
  %v143 = vmul.f32 %v72, %v88
  %v144 = vmul.f32 %v73, %v88
  %v145 = vmul.f32 %v74, %v88
  %v146 = vmul.f32 %v75, %v88
  %v147 = vmul.f32 %v76, %v88
  %v148 = vmul.f32 %v77, %v88
  %v149 = vmul.f32 %v78, %v88
  %v150 = vmul.f32 %v79, %v88
  %v151 = vmul.f32 %v80, %v88
  %v152 = vmul.f32 %v81, %v88
  %v153 = vmul.f32 %v82, %v88
  %v154 = vld [vmem:[%s2] sm:$0x1]
  %v156 = vlaneseq
  %v157 = vshrl.u32 %v156, 7
  %v158 = vsub.s32 0, %v157
  %v159 = vrot.slane %v154, %v158
  %v161 = vadd.f32 %v90, %v159
  %v162 = vadd.f32 %v91, %v159
  %v163 = vadd.f32 %v92, %v159
  %v164 = vadd.f32 %v93, %v159
  %v165 = vadd.f32 %v94, %v159
  %v166 = vadd.f32 %v95, %v159
  %v167 = vadd.f32 %v96, %v159
  %v168 = vadd.f32 %v97, %v159
  %v169 = vadd.f32 %v98, %v159
  %v170 = vadd.f32 %v99, %v159
  %v171 = vadd.f32 %v100, %v159
  %v172 = vadd.f32 %v101, %v159
  %v173 = vadd.f32 %v102, %v159
  %v174 = vadd.f32 %v103, %v159
  %v175 = vadd.f32 %v104, %v159
  %v176 = vadd.f32 %v105, %v159
  %v177 = vadd.f32 %v106, %v159
  %v178 = vadd.f32 %v107, %v159
  %v179 = vadd.f32 %v108, %v159
  %v180 = vadd.f32 %v109, %v159
  %v181 = vadd.f32 %v110, %v159
  %v182 = vadd.f32 %v111, %v159
  %v183 = vadd.f32 %v112, %v159
  %v184 = vadd.f32 %v113, %v159
  %v185 = vadd.f32 %v114, %v159
  %v186 = vadd.f32 %v115, %v159
  %v187 = vadd.f32 %v116, %v159
  %v188 = vadd.f32 %v117, %v159
  %v189 = vadd.f32 %v118, %v159
  %v190 = vadd.f32 %v119, %v159
  %v191 = vadd.f32 %v120, %v159
  %v192 = vadd.f32 %v121, %v159
  %v193 = vadd.f32 %v122, %v159
  %v194 = vadd.f32 %v123, %v159
  %v195 = vadd.f32 %v124, %v159
  %v196 = vadd.f32 %v125, %v159
  %v197 = vadd.f32 %v126, %v159
  %v198 = vadd.f32 %v127, %v159
  %v199 = vadd.f32 %v128, %v159
  %v200 = vadd.f32 %v129, %v159
  %v201 = vadd.f32 %v130, %v159
  %v202 = vadd.f32 %v131, %v159
  %v203 = vadd.f32 %v132, %v159
  %v204 = vadd.f32 %v133, %v159
  %v205 = vadd.f32 %v134, %v159
  %v206 = vadd.f32 %v135, %v159
  %v207 = vadd.f32 %v136, %v159
  %v208 = vadd.f32 %v137, %v159
  %v209 = vadd.f32 %v138, %v159
  %v210 = vadd.f32 %v139, %v159
  %v211 = vadd.f32 %v140, %v159
  %v212 = vadd.f32 %v141, %v159
  %v213 = vadd.f32 %v142, %v159
  %v214 = vadd.f32 %v143, %v159
  %v215 = vadd.f32 %v144, %v159
  %v216 = vadd.f32 %v145, %v159
  %v217 = vadd.f32 %v146, %v159
  %v218 = vadd.f32 %v147, %v159
  %v219 = vadd.f32 %v148, %v159
  %v220 = vadd.f32 %v149, %v159
  %v221 = vadd.f32 %v150, %v159
  %v222 = vadd.f32 %v151, %v159
  %v223 = vadd.f32 %v152, %v159
  %v224 = vadd.f32 %v153, %v159
  %v225 = vsub.f32 0.0, %v161
  %v226 = vsub.f32 0.0, %v162
  %v227 = vsub.f32 0.0, %v163
  %v228 = vsub.f32 0.0, %v164
  %v229 = vsub.f32 0.0, %v165
  %v230 = vsub.f32 0.0, %v166
  %v231 = vsub.f32 0.0, %v167
  %v232 = vsub.f32 0.0, %v168
  %v233 = vsub.f32 0.0, %v169
  %v234 = vsub.f32 0.0, %v170
  %v235 = vsub.f32 0.0, %v171
  %v236 = vsub.f32 0.0, %v172
  %v237 = vsub.f32 0.0, %v173
  %v238 = vsub.f32 0.0, %v174
  %v239 = vsub.f32 0.0, %v175
  %v240 = vsub.f32 0.0, %v176
  %v241 = vsub.f32 0.0, %v177
  %v242 = vsub.f32 0.0, %v178
  %v243 = vsub.f32 0.0, %v179
  %v244 = vsub.f32 0.0, %v180
  %v245 = vsub.f32 0.0, %v181
  %v246 = vsub.f32 0.0, %v182
  %v247 = vsub.f32 0.0, %v183
  %v248 = vsub.f32 0.0, %v184
  %v249 = vsub.f32 0.0, %v185
  %v250 = vsub.f32 0.0, %v186
  %v251 = vsub.f32 0.0, %v187
  %v252 = vsub.f32 0.0, %v188
  %v253 = vsub.f32 0.0, %v189
  %v254 = vsub.f32 0.0, %v190
  %v255 = vsub.f32 0.0, %v191
  %v256 = vsub.f32 0.0, %v192
  %v257 = vsub.f32 0.0, %v193
  %v258 = vsub.f32 0.0, %v194
  %v259 = vsub.f32 0.0, %v195
  %v260 = vsub.f32 0.0, %v196
  %v261 = vsub.f32 0.0, %v197
  %v262 = vsub.f32 0.0, %v198
  %v263 = vsub.f32 0.0, %v199
  %v264 = vsub.f32 0.0, %v200
  %v265 = vsub.f32 0.0, %v201
  %v266 = vsub.f32 0.0, %v202
  %v267 = vsub.f32 0.0, %v203
  %v268 = vsub.f32 0.0, %v204
  %v269 = vsub.f32 0.0, %v205
  %v270 = vsub.f32 0.0, %v206
  %v271 = vsub.f32 0.0, %v207
  %v272 = vsub.f32 0.0, %v208
  %v273 = vsub.f32 0.0, %v209
  %v274 = vsub.f32 0.0, %v210
  %v275 = vsub.f32 0.0, %v211
  %v276 = vsub.f32 0.0, %v212
  %v277 = vsub.f32 0.0, %v213
  %v278 = vsub.f32 0.0, %v214
  %v279 = vsub.f32 0.0, %v215
  %v280 = vsub.f32 0.0, %v216
  %v281 = vsub.f32 0.0, %v217
  %v282 = vsub.f32 0.0, %v218
  %v283 = vsub.f32 0.0, %v219
  %v284 = vsub.f32 0.0, %v220
  %v285 = vsub.f32 0.0, %v221
  %v286 = vsub.f32 0.0, %v222
  %v287 = vsub.f32 0.0, %v223
  %v288 = vsub.f32 0.0, %v224
  %v289 = vmul.f32 %v225, 1.442695
  %v290 = vpow.pop %v289
  %v291 = vmul.f32 %v226, 1.442695
  %v292 = vpow.pop %v291
  %v293 = vmul.f32 %v227, 1.442695
  %v294 = vpow.pop %v293
  %v295 = vmul.f32 %v228, 1.442695
  %v296 = vpow.pop %v295
  %v297 = vmul.f32 %v229, 1.442695
  %v298 = vpow.pop %v297
  %v299 = vmul.f32 %v230, 1.442695
  %v300 = vpow.pop %v299
  %v301 = vmul.f32 %v231, 1.442695
  %v302 = vpow.pop %v301
  %v303 = vmul.f32 %v232, 1.442695
  %v304 = vpow.pop %v303
  %v305 = vmul.f32 %v233, 1.442695
  %v306 = vpow.pop %v305
  %v307 = vmul.f32 %v234, 1.442695
  %v308 = vpow.pop %v307
  %v309 = vmul.f32 %v235, 1.442695
  %v310 = vpow.pop %v309
  %v311 = vmul.f32 %v236, 1.442695
  %v312 = vpow.pop %v311
  %v313 = vmul.f32 %v237, 1.442695
  %v314 = vpow.pop %v313
  %v315 = vmul.f32 %v238, 1.442695
  %v316 = vpow.pop %v315
  %v317 = vmul.f32 %v239, 1.442695
  %v318 = vpow.pop %v317
  %v319 = vmul.f32 %v240, 1.442695
  %v320 = vpow.pop %v319
  %v321 = vmul.f32 %v241, 1.442695
  %v322 = vpow.pop %v321
  %v323 = vmul.f32 %v242, 1.442695
  %v324 = vpow.pop %v323
  %v325 = vmul.f32 %v243, 1.442695
  %v326 = vpow.pop %v325
  %v327 = vmul.f32 %v244, 1.442695
  %v328 = vpow.pop %v327
  %v329 = vmul.f32 %v245, 1.442695
  %v330 = vpow.pop %v329
  %v331 = vmul.f32 %v246, 1.442695
  %v332 = vpow.pop %v331
  %v333 = vmul.f32 %v247, 1.442695
  %v334 = vpow.pop %v333
  %v335 = vmul.f32 %v248, 1.442695
  %v336 = vpow.pop %v335
  %v337 = vmul.f32 %v249, 1.442695
  %v338 = vpow.pop %v337
  %v339 = vmul.f32 %v250, 1.442695
  %v340 = vpow.pop %v339
  %v341 = vmul.f32 %v251, 1.442695
  %v342 = vpow.pop %v341
  %v343 = vmul.f32 %v252, 1.442695
  %v344 = vpow.pop %v343
  %v345 = vmul.f32 %v253, 1.442695
  %v346 = vpow.pop %v345
  %v347 = vmul.f32 %v254, 1.442695
  %v348 = vpow.pop %v347
  %v349 = vmul.f32 %v255, 1.442695
  %v350 = vpow.pop %v349
  %v351 = vmul.f32 %v256, 1.442695
  %v352 = vpow.pop %v351
  %v353 = vmul.f32 %v257, 1.442695
  %v354 = vpow.pop %v353
  %v355 = vmul.f32 %v258, 1.442695
  %v356 = vpow.pop %v355
  %v357 = vmul.f32 %v259, 1.442695
  %v358 = vpow.pop %v357
  %v359 = vmul.f32 %v260, 1.442695
  %v360 = vpow.pop %v359
  %v361 = vmul.f32 %v261, 1.442695
  %v362 = vpow.pop %v361
  %v363 = vmul.f32 %v262, 1.442695
  %v364 = vpow.pop %v363
  %v365 = vmul.f32 %v263, 1.442695
  %v366 = vpow.pop %v365
  %v367 = vmul.f32 %v264, 1.442695
  %v368 = vpow.pop %v367
  %v369 = vmul.f32 %v265, 1.442695
  %v370 = vpow.pop %v369
  %v371 = vmul.f32 %v266, 1.442695
  %v372 = vpow.pop %v371
  %v373 = vmul.f32 %v267, 1.442695
  %v374 = vpow.pop %v373
  %v375 = vmul.f32 %v268, 1.442695
  %v376 = vpow.pop %v375
  %v377 = vmul.f32 %v269, 1.442695
  %v378 = vpow.pop %v377
  %v379 = vmul.f32 %v270, 1.442695
  %v380 = vpow.pop %v379
  %v381 = vmul.f32 %v271, 1.442695
  %v382 = vpow.pop %v381
  %v383 = vmul.f32 %v272, 1.442695
  %v384 = vpow.pop %v383
  %v385 = vmul.f32 %v273, 1.442695
  %v386 = vpow.pop %v385
  %v387 = vmul.f32 %v274, 1.442695
  %v388 = vpow.pop %v387
  %v389 = vmul.f32 %v275, 1.442695
  %v390 = vpow.pop %v389
  %v391 = vmul.f32 %v276, 1.442695
  %v392 = vpow.pop %v391
  %v393 = vmul.f32 %v277, 1.442695
  %v394 = vpow.pop %v393
  %v395 = vmul.f32 %v278, 1.442695
  %v396 = vpow.pop %v395
  %v397 = vmul.f32 %v279, 1.442695
  %v398 = vpow.pop %v397
  %v399 = vmul.f32 %v280, 1.442695
  %v400 = vpow.pop %v399
  %v401 = vmul.f32 %v281, 1.442695
  %v402 = vpow.pop %v401
  %v403 = vmul.f32 %v282, 1.442695
  %v404 = vpow.pop %v403
  %v405 = vmul.f32 %v283, 1.442695
  %v406 = vpow.pop %v405
  %v407 = vmul.f32 %v284, 1.442695
  %v408 = vpow.pop %v407
  %v409 = vmul.f32 %v285, 1.442695
  %v410 = vpow.pop %v409
  %v411 = vmul.f32 %v286, 1.442695
  %v412 = vpow.pop %v411
  %v413 = vmul.f32 %v287, 1.442695
  %v414 = vpow.pop %v413
  %v415 = vmul.f32 %v288, 1.442695
  %v416 = vpow.pop %v415
  %v417 = vadd.f32 %v290, 1.0
  %v418 = vadd.f32 %v292, 1.0
  %v419 = vadd.f32 %v294, 1.0
  %v420 = vadd.f32 %v296, 1.0
  %v421 = vadd.f32 %v298, 1.0
  %v422 = vadd.f32 %v300, 1.0
  %v423 = vadd.f32 %v302, 1.0
  %v424 = vadd.f32 %v304, 1.0
  %v425 = vadd.f32 %v306, 1.0
  %v426 = vadd.f32 %v308, 1.0
  %v427 = vadd.f32 %v310, 1.0
  %v428 = vadd.f32 %v312, 1.0
  %v429 = vadd.f32 %v314, 1.0
  %v430 = vadd.f32 %v316, 1.0
  %v431 = vadd.f32 %v318, 1.0
  %v432 = vadd.f32 %v320, 1.0
  %v433 = vadd.f32 %v322, 1.0
  %v434 = vadd.f32 %v324, 1.0
  %v435 = vadd.f32 %v326, 1.0
  %v436 = vadd.f32 %v328, 1.0
  %v437 = vadd.f32 %v330, 1.0
  %v438 = vadd.f32 %v332, 1.0
  %v439 = vadd.f32 %v334, 1.0
  %v440 = vadd.f32 %v336, 1.0
  %v441 = vadd.f32 %v338, 1.0
  %v442 = vadd.f32 %v340, 1.0
  %v443 = vadd.f32 %v342, 1.0
  %v444 = vadd.f32 %v344, 1.0
  %v445 = vadd.f32 %v346, 1.0
  %v446 = vadd.f32 %v348, 1.0
  %v447 = vadd.f32 %v350, 1.0
  %v448 = vadd.f32 %v352, 1.0
  %v449 = vadd.f32 %v354, 1.0
  %v450 = vadd.f32 %v356, 1.0
  %v451 = vadd.f32 %v358, 1.0
  %v452 = vadd.f32 %v360, 1.0
  %v453 = vadd.f32 %v362, 1.0
  %v454 = vadd.f32 %v364, 1.0
  %v455 = vadd.f32 %v366, 1.0
  %v456 = vadd.f32 %v368, 1.0
  %v457 = vadd.f32 %v370, 1.0
  %v458 = vadd.f32 %v372, 1.0
  %v459 = vadd.f32 %v374, 1.0
  %v460 = vadd.f32 %v376, 1.0
  %v461 = vadd.f32 %v378, 1.0
  %v462 = vadd.f32 %v380, 1.0
  %v463 = vadd.f32 %v382, 1.0
  %v464 = vadd.f32 %v384, 1.0
  %v465 = vadd.f32 %v386, 1.0
  %v466 = vadd.f32 %v388, 1.0
  %v467 = vadd.f32 %v390, 1.0
  %v468 = vadd.f32 %v392, 1.0
  %v469 = vadd.f32 %v394, 1.0
  %v470 = vadd.f32 %v396, 1.0
  %v471 = vadd.f32 %v398, 1.0
  %v472 = vadd.f32 %v400, 1.0
  %v473 = vadd.f32 %v402, 1.0
  %v474 = vadd.f32 %v404, 1.0
  %v475 = vadd.f32 %v406, 1.0
  %v476 = vadd.f32 %v408, 1.0
  %v477 = vadd.f32 %v410, 1.0
  %v478 = vadd.f32 %v412, 1.0
  %v479 = vadd.f32 %v414, 1.0
  %v480 = vadd.f32 %v416, 1.0
  %v481 = vrcp.pop %v417
  %v482 = vmul.f32 1.0, %v481
  %v483 = vrcp.pop %v418
  %v484 = vmul.f32 1.0, %v483
  %v485 = vrcp.pop %v419
  %v486 = vmul.f32 1.0, %v485
  %v487 = vrcp.pop %v420
  %v488 = vmul.f32 1.0, %v487
  %v489 = vrcp.pop %v421
  %v490 = vmul.f32 1.0, %v489
  %v491 = vrcp.pop %v422
  %v492 = vmul.f32 1.0, %v491
  %v493 = vrcp.pop %v423
  %v494 = vmul.f32 1.0, %v493
  %v495 = vrcp.pop %v424
  %v496 = vmul.f32 1.0, %v495
  %v497 = vrcp.pop %v425
  %v498 = vmul.f32 1.0, %v497
  %v499 = vrcp.pop %v426
  %v500 = vmul.f32 1.0, %v499
  %v501 = vrcp.pop %v427
  %v502 = vmul.f32 1.0, %v501
  %v503 = vrcp.pop %v428
  %v504 = vmul.f32 1.0, %v503
  %v505 = vrcp.pop %v429
  %v506 = vmul.f32 1.0, %v505
  %v507 = vrcp.pop %v430
  %v508 = vmul.f32 1.0, %v507
  %v509 = vrcp.pop %v431
  %v510 = vmul.f32 1.0, %v509
  %v511 = vrcp.pop %v432
  %v512 = vmul.f32 1.0, %v511
  %v513 = vrcp.pop %v433
  %v514 = vmul.f32 1.0, %v513
  %v515 = vrcp.pop %v434
  %v516 = vmul.f32 1.0, %v515
  %v517 = vrcp.pop %v435
  %v518 = vmul.f32 1.0, %v517
  %v519 = vrcp.pop %v436
  %v520 = vmul.f32 1.0, %v519
  %v521 = vrcp.pop %v437
  %v522 = vmul.f32 1.0, %v521
  %v523 = vrcp.pop %v438
  %v524 = vmul.f32 1.0, %v523
  %v525 = vrcp.pop %v439
  %v526 = vmul.f32 1.0, %v525
  %v527 = vrcp.pop %v440
  %v528 = vmul.f32 1.0, %v527
  %v529 = vrcp.pop %v441
  %v530 = vmul.f32 1.0, %v529
  %v531 = vrcp.pop %v442
  %v532 = vmul.f32 1.0, %v531
  %v533 = vrcp.pop %v443
  %v534 = vmul.f32 1.0, %v533
  %v535 = vrcp.pop %v444
  %v536 = vmul.f32 1.0, %v535
  %v537 = vrcp.pop %v445
  %v538 = vmul.f32 1.0, %v537
  %v539 = vrcp.pop %v446
  %v540 = vmul.f32 1.0, %v539
  %v541 = vrcp.pop %v447
  %v542 = vmul.f32 1.0, %v541
  %v543 = vrcp.pop %v448
  %v544 = vmul.f32 1.0, %v543
  %v545 = vrcp.pop %v449
  %v546 = vmul.f32 1.0, %v545
  %v547 = vrcp.pop %v450
  %v548 = vmul.f32 1.0, %v547
  %v549 = vrcp.pop %v451
  %v550 = vmul.f32 1.0, %v549
  %v551 = vrcp.pop %v452
  %v552 = vmul.f32 1.0, %v551
  %v553 = vrcp.pop %v453
  %v554 = vmul.f32 1.0, %v553
  %v555 = vrcp.pop %v454
  %v556 = vmul.f32 1.0, %v555
  %v557 = vrcp.pop %v455
  %v558 = vmul.f32 1.0, %v557
  %v559 = vrcp.pop %v456
  %v560 = vmul.f32 1.0, %v559
  %v561 = vrcp.pop %v457
  %v562 = vmul.f32 1.0, %v561
  %v563 = vrcp.pop %v458
  %v564 = vmul.f32 1.0, %v563
  %v565 = vrcp.pop %v459
  %v566 = vmul.f32 1.0, %v565
  %v567 = vrcp.pop %v460
  %v568 = vmul.f32 1.0, %v567
  %v569 = vrcp.pop %v461
  %v570 = vmul.f32 1.0, %v569
  %v571 = vrcp.pop %v462
  %v572 = vmul.f32 1.0, %v571
  %v573 = vrcp.pop %v463
  %v574 = vmul.f32 1.0, %v573
  %v575 = vrcp.pop %v464
  %v576 = vmul.f32 1.0, %v575
  %v577 = vrcp.pop %v465
  %v578 = vmul.f32 1.0, %v577
  %v579 = vrcp.pop %v466
  %v580 = vmul.f32 1.0, %v579
  %v581 = vrcp.pop %v467
  %v582 = vmul.f32 1.0, %v581
  %v583 = vrcp.pop %v468
  %v584 = vmul.f32 1.0, %v583
  %v585 = vrcp.pop %v469
  %v586 = vmul.f32 1.0, %v585
  %v587 = vrcp.pop %v470
  %v588 = vmul.f32 1.0, %v587
  %v589 = vrcp.pop %v471
  %v590 = vmul.f32 1.0, %v589
  %v591 = vrcp.pop %v472
  %v592 = vmul.f32 1.0, %v591
  %v593 = vrcp.pop %v473
  %v594 = vmul.f32 1.0, %v593
  %v595 = vrcp.pop %v474
  %v596 = vmul.f32 1.0, %v595
  %v597 = vrcp.pop %v475
  %v598 = vmul.f32 1.0, %v597
  %v599 = vrcp.pop %v476
  %v600 = vmul.f32 1.0, %v599
  %v601 = vrcp.pop %v477
  %v602 = vmul.f32 1.0, %v601
  %v603 = vrcp.pop %v478
  %v604 = vmul.f32 1.0, %v603
  %v605 = vrcp.pop %v479
  %v606 = vmul.f32 1.0, %v605
  %v607 = vrcp.pop %v480
  %v608 = vmul.f32 1.0, %v607
  %v609 = vmul.f32 %v161, %v482
  %v610 = vmul.f32 %v162, %v484
  %v611 = vmul.f32 %v163, %v486
  %v612 = vmul.f32 %v164, %v488
  %v613 = vmul.f32 %v165, %v490
  %v614 = vmul.f32 %v166, %v492
  %v615 = vmul.f32 %v167, %v494
  %v616 = vmul.f32 %v168, %v496
  %v617 = vmul.f32 %v169, %v498
  %v618 = vmul.f32 %v170, %v500
  %v619 = vmul.f32 %v171, %v502
  %v620 = vmul.f32 %v172, %v504
  %v621 = vmul.f32 %v173, %v506
  %v622 = vmul.f32 %v174, %v508
  %v623 = vmul.f32 %v175, %v510
  %v624 = vmul.f32 %v176, %v512
  %v625 = vmul.f32 %v177, %v514
  %v626 = vmul.f32 %v178, %v516
  %v627 = vmul.f32 %v179, %v518
  %v628 = vmul.f32 %v180, %v520
  %v629 = vmul.f32 %v181, %v522
  %v630 = vmul.f32 %v182, %v524
  %v631 = vmul.f32 %v183, %v526
  %v632 = vmul.f32 %v184, %v528
  %v633 = vmul.f32 %v185, %v530
  %v634 = vmul.f32 %v186, %v532
  %v635 = vmul.f32 %v187, %v534
  %v636 = vmul.f32 %v188, %v536
  %v637 = vmul.f32 %v189, %v538
  %v638 = vmul.f32 %v190, %v540
  %v639 = vmul.f32 %v191, %v542
  %v640 = vmul.f32 %v192, %v544
  %v641 = vmul.f32 %v193, %v546
  %v642 = vmul.f32 %v194, %v548
  %v643 = vmul.f32 %v195, %v550
  %v644 = vmul.f32 %v196, %v552
  %v645 = vmul.f32 %v197, %v554
  %v646 = vmul.f32 %v198, %v556
  %v647 = vmul.f32 %v199, %v558
  %v648 = vmul.f32 %v200, %v560
  %v649 = vmul.f32 %v201, %v562
  %v650 = vmul.f32 %v202, %v564
  %v651 = vmul.f32 %v203, %v566
  %v652 = vmul.f32 %v204, %v568
  %v653 = vmul.f32 %v205, %v570
  %v654 = vmul.f32 %v206, %v572
  %v655 = vmul.f32 %v207, %v574
  %v656 = vmul.f32 %v208, %v576
  %v657 = vmul.f32 %v209, %v578
  %v658 = vmul.f32 %v210, %v580
  %v659 = vmul.f32 %v211, %v582
  %v660 = vmul.f32 %v212, %v584
  %v661 = vmul.f32 %v213, %v586
  %v662 = vmul.f32 %v214, %v588
  %v663 = vmul.f32 %v215, %v590
  %v664 = vmul.f32 %v216, %v592
  %v665 = vmul.f32 %v217, %v594
  %v666 = vmul.f32 %v218, %v596
  %v667 = vmul.f32 %v219, %v598
  %v668 = vmul.f32 %v220, %v600
  %v669 = vmul.f32 %v221, %v602
  %v670 = vmul.f32 %v222, %v604
  %v671 = vmul.f32 %v223, %v606
  %v672 = vmul.f32 %v224, %v608
  %v673 = vld [vmem:[%s3] sm:$0xff]
  %v674 = vld [vmem:[%s3 + $0x8] sm:$0xff]
  %vm675 = vcmask 130048
  %v677 = vsel %vm675, %v609, 0
  %v680 = vsel %vm675, %v610, 0
  %v683 = vsel %vm675, %v611, 0
  %v686 = vsel %vm675, %v612, 0
  %v689 = vsel %vm675, %v613, 0
  %v692 = vsel %vm675, %v614, 0
  %v695 = vsel %vm675, %v615, 0
  %v698 = vsel %vm675, %v616, 0
  %v701 = vsel %vm675, %v617, 0
  %v704 = vsel %vm675, %v618, 0
  %v707 = vsel %vm675, %v619, 0
  %v710 = vsel %vm675, %v620, 0
  %v713 = vsel %vm675, %v621, 0
  %v716 = vsel %vm675, %v622, 0
  %v719 = vsel %vm675, %v623, 0
  %v722 = vsel %vm675, %v624, 0
  %v725 = vsel %vm675, %v625, 0
  %v728 = vsel %vm675, %v626, 0
  %v731 = vsel %vm675, %v627, 0
  %v734 = vsel %vm675, %v628, 0
  %v737 = vsel %vm675, %v629, 0
  %v740 = vsel %vm675, %v630, 0
  %v743 = vsel %vm675, %v631, 0
  %v746 = vsel %vm675, %v632, 0
  %v749 = vsel %vm675, %v633, 0
  %v752 = vsel %vm675, %v634, 0
  %v755 = vsel %vm675, %v635, 0
  %v758 = vsel %vm675, %v636, 0
  %v761 = vsel %vm675, %v637, 0
  %v764 = vsel %vm675, %v638, 0
  %v767 = vsel %vm675, %v639, 0
  %v770 = vsel %vm675, %v640, 0
  %v773 = vsel %vm675, %v641, 0
  %v776 = vsel %vm675, %v642, 0
  %v779 = vsel %vm675, %v643, 0
  %v782 = vsel %vm675, %v644, 0
  %v785 = vsel %vm675, %v645, 0
  %v788 = vsel %vm675, %v646, 0
  %v791 = vsel %vm675, %v647, 0
  %v794 = vsel %vm675, %v648, 0
  %v797 = vsel %vm675, %v649, 0
  %v800 = vsel %vm675, %v650, 0
  %v803 = vsel %vm675, %v651, 0
  %v806 = vsel %vm675, %v652, 0
  %v809 = vsel %vm675, %v653, 0
  %v812 = vsel %vm675, %v654, 0
  %v815 = vsel %vm675, %v655, 0
  %v818 = vsel %vm675, %v656, 0
  %v821 = vsel %vm675, %v657, 0
  %v824 = vsel %vm675, %v658, 0
  %v827 = vsel %vm675, %v659, 0
  %v830 = vsel %vm675, %v660, 0
  %v833 = vsel %vm675, %v661, 0
  %v836 = vsel %vm675, %v662, 0
  %v839 = vsel %vm675, %v663, 0
  %v842 = vsel %vm675, %v664, 0
  %v845 = vsel %vm675, %v665, 0
  %v848 = vsel %vm675, %v666, 0
  %v851 = vsel %vm675, %v667, 0
  %v854 = vsel %vm675, %v668, 0
  %v857 = vsel %vm675, %v669, 0
  %v860 = vsel %vm675, %v670, 0
  %v863 = vsel %vm675, %v671, 0
  %v866 = vsel %vm675, %v672, 0
  %868 = vmatprep.subr.mxu0 0.0
  %869 = vmatpush1.msra.mxu0 0.0
  %870 = vmatprep.subr.mxu0 0.0
  %871 = vmatpush1.msra.mxu0 0.0
  %872 = vmatprep.subr.mxu0 0.0
  %873 = vmatpush1.msra.mxu0 0.0
  %874 = vmatprep.subr.mxu0 0.0
  %875 = vmatpush1.msra.mxu0 0.0
  %876 = vmatprep.subr.mxu0 0.0
  %877 = vmatpush1.msra.mxu0 0.0
  %878 = vmatprep.subr.mxu0 0.0
  %879 = vmatpush1.msra.mxu0 0.0
  %880 = vmatprep.subr.mxu0 0.0
  %881 = vmatpush1.msra.mxu0 0.0
  %882 = vmatprep.subr.mxu0 0.0
  %883 = vmatpush1.msra.mxu0 0.0
  %884 = vmatprep.subr.mxu0 0.0
  %885 = vmatpush1.msra.mxu0 0.0
  %886 = vmatprep.subr.mxu0 0.0
  %887 = vmatpush1.msra.mxu0 0.0
  %888 = vmatprep.subr.mxu0 0.0
  %889 = vmatpush1.msra.mxu0 0.0
  %890 = vmatprep.subr.mxu0 0.0
  %891 = vmatpush1.msra.mxu0 0.0
  %892 = vmatprep.subr.mxu0 0.0
  %893 = vmatpush1.msra.mxu0 0.0
  %894 = vmatprep.subr.mxu0 0.0
  %895 = vmatpush1.msra.mxu0 0.0
  %896 = vmatprep.subr.mxu0 0.0
  %897 = vmatpush1.msra.mxu0 %v674
  %898 = vmatprep.subr.mxu0 0.0
  %899 = vmatpush1.msra.mxu0 %v673
  %900 = vmatprep.subr.mxu0 0.0
  %901 = vmatpush2.msra.mxu0 0.0
  %902 = vmatprep.subr.mxu0 0.0
  %903 = vmatpush2.msra.mxu0 0.0
  %904 = vmatprep.subr.mxu0 0.0
  %905 = vmatpush2.msra.mxu0 0.0
  %906 = vmatprep.subr.mxu0 0.0
  %907 = vmatpush2.msra.mxu0 0.0
  %908 = vmatprep.subr.mxu0 0.0
  %909 = vmatpush2.msra.mxu0 0.0
  %910 = vmatprep.subr.mxu0 0.0
  %911 = vmatpush2.msra.mxu0 0.0
  %912 = vmatprep.subr.mxu0 0.0
  %913 = vmatpush2.msra.mxu0 0.0
  %914 = vmatprep.subr.mxu0 0.0
  %915 = vmatpush2.msra.mxu0 0.0
  %916 = vmatprep.subr.mxu0 0.0
  %917 = vmatpush2.msra.mxu0 0.0
  %918 = vmatprep.subr.mxu0 0.0
  %919 = vmatpush2.msra.mxu0 0.0
  %920 = vmatprep.subr.mxu0 0.0
  %921 = vmatpush2.msra.mxu0 0.0
  %922 = vmatprep.subr.mxu0 0.0
  %923 = vmatpush2.msra.mxu0 0.0
  %924 = vmatprep.subr.mxu0 0.0
  %925 = vmatpush2.msra.mxu0 0.0
  %926 = vmatprep.subr.mxu0 0.0
  %927 = vmatpush2.msra.mxu0 0.0
  %928 = vmatprep.subr.mxu0 0.0
  %929 = vmatpush2.msra.mxu0 0.0
  %930 = vmatprep.subr.mxu0 0.0
  %931 = vmatpush2.msra.mxu0 0.0
  %932 = vmatprep.mubr.f32.mxu0 0.0
  %933 = vmatmul.mubr.f32.gmra.mxu0 %v677
  %v934 = vpop.f32.mrf.mxu0
  %v935 = vadd.f32 0.0, %v934
  %v936 = vpop.f32.mrf.mxu0
  %937 = vmatprep.mubr.f32.mxu0 0.0
  %938 = vmatmul.mubr.f32.gmra.mxu0 %v680
  %v939 = vpop.f32.mrf.mxu0
  %v940 = vadd.f32 0.0, %v939
  %v941 = vpop.f32.mrf.mxu0
  %942 = vmatprep.mubr.f32.mxu0 0.0
  %943 = vmatmul.mubr.f32.gmra.mxu0 %v683
  %v944 = vpop.f32.mrf.mxu0
  %v945 = vadd.f32 0.0, %v944
  %v946 = vpop.f32.mrf.mxu0
  %947 = vmatprep.mubr.f32.mxu0 0.0
  %948 = vmatmul.mubr.f32.gmra.mxu0 %v686
  %v949 = vpop.f32.mrf.mxu0
  %v950 = vadd.f32 0.0, %v949
  %v951 = vpop.f32.mrf.mxu0
  %952 = vmatprep.mubr.f32.mxu0 0.0
  %953 = vmatmul.mubr.f32.gmra.mxu0 %v689
  %v954 = vpop.f32.mrf.mxu0
  %v955 = vadd.f32 0.0, %v954
  %v956 = vpop.f32.mrf.mxu0
  %957 = vmatprep.mubr.f32.mxu0 0.0
  %958 = vmatmul.mubr.f32.gmra.mxu0 %v692
  %v959 = vpop.f32.mrf.mxu0
  %v960 = vadd.f32 0.0, %v959
  %v961 = vpop.f32.mrf.mxu0
  %962 = vmatprep.mubr.f32.mxu0 0.0
  %963 = vmatmul.mubr.f32.gmra.mxu0 %v695
  %v964 = vpop.f32.mrf.mxu0
  %v965 = vadd.f32 0.0, %v964
  %v966 = vpop.f32.mrf.mxu0
  %967 = vmatprep.mubr.f32.mxu0 0.0
  %968 = vmatmul.mubr.f32.gmra.mxu0 %v698
  %v969 = vpop.f32.mrf.mxu0
  %v970 = vadd.f32 0.0, %v969
  %v971 = vpop.f32.mrf.mxu0
  %972 = vmatprep.mubr.f32.mxu0 0.0
  %973 = vmatmul.mubr.f32.gmra.mxu0 %v701
  %v974 = vpop.f32.mrf.mxu0
  %v975 = vadd.f32 0.0, %v974
  %v976 = vpop.f32.mrf.mxu0
  %977 = vmatprep.mubr.f32.mxu0 0.0
  %978 = vmatmul.mubr.f32.gmra.mxu0 %v704
  %v979 = vpop.f32.mrf.mxu0
  %v980 = vadd.f32 0.0, %v979
  %v981 = vpop.f32.mrf.mxu0
  %982 = vmatprep.mubr.f32.mxu0 0.0
  %983 = vmatmul.mubr.f32.gmra.mxu0 %v707
  %v984 = vpop.f32.mrf.mxu0
  %v985 = vadd.f32 0.0, %v984
  %v986 = vpop.f32.mrf.mxu0
  %987 = vmatprep.mubr.f32.mxu0 0.0
  %988 = vmatmul.mubr.f32.gmra.mxu0 %v710
  %v989 = vpop.f32.mrf.mxu0
  %v990 = vadd.f32 0.0, %v989
  %v991 = vpop.f32.mrf.mxu0
  %992 = vmatprep.mubr.f32.mxu0 0.0
  %993 = vmatmul.mubr.f32.gmra.mxu0 %v713
  %v994 = vpop.f32.mrf.mxu0
  %v995 = vadd.f32 0.0, %v994
  %v996 = vpop.f32.mrf.mxu0
  %997 = vmatprep.mubr.f32.mxu0 0.0
  %998 = vmatmul.mubr.f32.gmra.mxu0 %v716
  %v999 = vpop.f32.mrf.mxu0
  %v1000 = vadd.f32 0.0, %v999
  %v1001 = vpop.f32.mrf.mxu0
  %1002 = vmatprep.mubr.f32.mxu0 0.0
  %1003 = vmatmul.mubr.f32.gmra.mxu0 %v719
  %v1004 = vpop.f32.mrf.mxu0
  %v1005 = vadd.f32 0.0, %v1004
  %v1006 = vpop.f32.mrf.mxu0
  %1007 = vmatprep.mubr.f32.mxu0 0.0
  %1008 = vmatmul.mubr.f32.gmra.mxu0 %v722
  %v1009 = vpop.f32.mrf.mxu0
  %v1010 = vadd.f32 0.0, %v1009
  %v1011 = vpop.f32.mrf.mxu0
  %1012 = vmatprep.mubr.f32.mxu0 0.0
  %1013 = vmatmul.mubr.f32.gmra.mxu0 %v725
  %v1014 = vpop.f32.mrf.mxu0
  %v1015 = vadd.f32 0.0, %v1014
  %v1016 = vpop.f32.mrf.mxu0
  %1017 = vmatprep.mubr.f32.mxu0 0.0
  %1018 = vmatmul.mubr.f32.gmra.mxu0 %v728
  %v1019 = vpop.f32.mrf.mxu0
  %v1020 = vadd.f32 0.0, %v1019
  %v1021 = vpop.f32.mrf.mxu0
  %1022 = vmatprep.mubr.f32.mxu0 0.0
  %1023 = vmatmul.mubr.f32.gmra.mxu0 %v731
  %v1024 = vpop.f32.mrf.mxu0
  %v1025 = vadd.f32 0.0, %v1024
  %v1026 = vpop.f32.mrf.mxu0
  %1027 = vmatprep.mubr.f32.mxu0 0.0
  %1028 = vmatmul.mubr.f32.gmra.mxu0 %v734
  %v1029 = vpop.f32.mrf.mxu0
  %v1030 = vadd.f32 0.0, %v1029
  %v1031 = vpop.f32.mrf.mxu0
  %1032 = vmatprep.mubr.f32.mxu0 0.0
  %1033 = vmatmul.mubr.f32.gmra.mxu0 %v737
  %v1034 = vpop.f32.mrf.mxu0
  %v1035 = vadd.f32 0.0, %v1034
  %v1036 = vpop.f32.mrf.mxu0
  %1037 = vmatprep.mubr.f32.mxu0 0.0
  %1038 = vmatmul.mubr.f32.gmra.mxu0 %v740
  %v1039 = vpop.f32.mrf.mxu0
  %v1040 = vadd.f32 0.0, %v1039
  %v1041 = vpop.f32.mrf.mxu0
  %1042 = vmatprep.mubr.f32.mxu0 0.0
  %1043 = vmatmul.mubr.f32.gmra.mxu0 %v743
  %v1044 = vpop.f32.mrf.mxu0
  %v1045 = vadd.f32 0.0, %v1044
  %v1046 = vpop.f32.mrf.mxu0
  %1047 = vmatprep.mubr.f32.mxu0 0.0
  %1048 = vmatmul.mubr.f32.gmra.mxu0 %v746
  %v1049 = vpop.f32.mrf.mxu0
  %v1050 = vadd.f32 0.0, %v1049
  %v1051 = vpop.f32.mrf.mxu0
  %1052 = vmatprep.mubr.f32.mxu0 0.0
  %1053 = vmatmul.mubr.f32.gmra.mxu0 %v749
  %v1054 = vpop.f32.mrf.mxu0
  %v1055 = vadd.f32 0.0, %v1054
  %v1056 = vpop.f32.mrf.mxu0
  %1057 = vmatprep.mubr.f32.mxu0 0.0
  %1058 = vmatmul.mubr.f32.gmra.mxu0 %v752
  %v1059 = vpop.f32.mrf.mxu0
  %v1060 = vadd.f32 0.0, %v1059
  %v1061 = vpop.f32.mrf.mxu0
  %1062 = vmatprep.mubr.f32.mxu0 0.0
  %1063 = vmatmul.mubr.f32.gmra.mxu0 %v755
  %v1064 = vpop.f32.mrf.mxu0
  %v1065 = vadd.f32 0.0, %v1064
  %v1066 = vpop.f32.mrf.mxu0
  %1067 = vmatprep.mubr.f32.mxu0 0.0
  %1068 = vmatmul.mubr.f32.gmra.mxu0 %v758
  %v1069 = vpop.f32.mrf.mxu0
  %v1070 = vadd.f32 0.0, %v1069
  %v1071 = vpop.f32.mrf.mxu0
  %1072 = vmatprep.mubr.f32.mxu0 0.0
  %1073 = vmatmul.mubr.f32.gmra.mxu0 %v761
  %v1074 = vpop.f32.mrf.mxu0
  %v1075 = vadd.f32 0.0, %v1074
  %v1076 = vpop.f32.mrf.mxu0
  %1077 = vmatprep.mubr.f32.mxu0 0.0
  %1078 = vmatmul.mubr.f32.gmra.mxu0 %v764
  %v1079 = vpop.f32.mrf.mxu0
  %v1080 = vadd.f32 0.0, %v1079
  %v1081 = vpop.f32.mrf.mxu0
  %1082 = vmatprep.mubr.f32.mxu0 0.0
  %1083 = vmatmul.mubr.f32.gmra.mxu0 %v767
  %v1084 = vpop.f32.mrf.mxu0
  %v1085 = vadd.f32 0.0, %v1084
  %v1086 = vpop.f32.mrf.mxu0
  %1087 = vmatprep.mubr.f32.mxu0 0.0
  %1088 = vmatmul.mubr.f32.gmra.mxu0 %v770
  %v1089 = vpop.f32.mrf.mxu0
  %v1090 = vadd.f32 0.0, %v1089
  %v1091 = vpop.f32.mrf.mxu0
  %1092 = vmatprep.mubr.f32.mxu0 0.0
  %1093 = vmatmul.mubr.f32.gmra.mxu0 %v773
  %v1094 = vpop.f32.mrf.mxu0
  %v1095 = vadd.f32 0.0, %v1094
  %v1096 = vpop.f32.mrf.mxu0
  %1097 = vmatprep.mubr.f32.mxu0 0.0
  %1098 = vmatmul.mubr.f32.gmra.mxu0 %v776
  %v1099 = vpop.f32.mrf.mxu0
  %v1100 = vadd.f32 0.0, %v1099
  %v1101 = vpop.f32.mrf.mxu0
  %1102 = vmatprep.mubr.f32.mxu0 0.0
  %1103 = vmatmul.mubr.f32.gmra.mxu0 %v779
  %v1104 = vpop.f32.mrf.mxu0
  %v1105 = vadd.f32 0.0, %v1104
  %v1106 = vpop.f32.mrf.mxu0
  %1107 = vmatprep.mubr.f32.mxu0 0.0
  %1108 = vmatmul.mubr.f32.gmra.mxu0 %v782
  %v1109 = vpop.f32.mrf.mxu0
  %v1110 = vadd.f32 0.0, %v1109
  %v1111 = vpop.f32.mrf.mxu0
  %1112 = vmatprep.mubr.f32.mxu0 0.0
  %1113 = vmatmul.mubr.f32.gmra.mxu0 %v785
  %v1114 = vpop.f32.mrf.mxu0
  %v1115 = vadd.f32 0.0, %v1114
  %v1116 = vpop.f32.mrf.mxu0
  %1117 = vmatprep.mubr.f32.mxu0 0.0
  %1118 = vmatmul.mubr.f32.gmra.mxu0 %v788
  %v1119 = vpop.f32.mrf.mxu0
  %v1120 = vadd.f32 0.0, %v1119
  %v1121 = vpop.f32.mrf.mxu0
  %1122 = vmatprep.mubr.f32.mxu0 0.0
  %1123 = vmatmul.mubr.f32.gmra.mxu0 %v791
  %v1124 = vpop.f32.mrf.mxu0
  %v1125 = vadd.f32 0.0, %v1124
  %v1126 = vpop.f32.mrf.mxu0
  %1127 = vmatprep.mubr.f32.mxu0 0.0
  %1128 = vmatmul.mubr.f32.gmra.mxu0 %v794
  %v1129 = vpop.f32.mrf.mxu0
  %v1130 = vadd.f32 0.0, %v1129
  %v1131 = vpop.f32.mrf.mxu0
  %1132 = vmatprep.mubr.f32.mxu0 0.0
  %1133 = vmatmul.mubr.f32.gmra.mxu0 %v797
  %v1134 = vpop.f32.mrf.mxu0
  %v1135 = vadd.f32 0.0, %v1134
  %v1136 = vpop.f32.mrf.mxu0
  %1137 = vmatprep.mubr.f32.mxu0 0.0
  %1138 = vmatmul.mubr.f32.gmra.mxu0 %v800
  %v1139 = vpop.f32.mrf.mxu0
  %v1140 = vadd.f32 0.0, %v1139
  %v1141 = vpop.f32.mrf.mxu0
  %1142 = vmatprep.mubr.f32.mxu0 0.0
  %1143 = vmatmul.mubr.f32.gmra.mxu0 %v803
  %v1144 = vpop.f32.mrf.mxu0
  %v1145 = vadd.f32 0.0, %v1144
  %v1146 = vpop.f32.mrf.mxu0
  %1147 = vmatprep.mubr.f32.mxu0 0.0
  %1148 = vmatmul.mubr.f32.gmra.mxu0 %v806
  %v1149 = vpop.f32.mrf.mxu0
  %v1150 = vadd.f32 0.0, %v1149
  %v1151 = vpop.f32.mrf.mxu0
  %1152 = vmatprep.mubr.f32.mxu0 0.0
  %1153 = vmatmul.mubr.f32.gmra.mxu0 %v809
  %v1154 = vpop.f32.mrf.mxu0
  %v1155 = vadd.f32 0.0, %v1154
  %v1156 = vpop.f32.mrf.mxu0
  %1157 = vmatprep.mubr.f32.mxu0 0.0
  %1158 = vmatmul.mubr.f32.gmra.mxu0 %v812
  %v1159 = vpop.f32.mrf.mxu0
  %v1160 = vadd.f32 0.0, %v1159
  %v1161 = vpop.f32.mrf.mxu0
  %1162 = vmatprep.mubr.f32.mxu0 0.0
  %1163 = vmatmul.mubr.f32.gmra.mxu0 %v815
  %v1164 = vpop.f32.mrf.mxu0
  %v1165 = vadd.f32 0.0, %v1164
  %v1166 = vpop.f32.mrf.mxu0
  %1167 = vmatprep.mubr.f32.mxu0 0.0
  %1168 = vmatmul.mubr.f32.gmra.mxu0 %v818
  %v1169 = vpop.f32.mrf.mxu0
  %v1170 = vadd.f32 0.0, %v1169
  %v1171 = vpop.f32.mrf.mxu0
  %1172 = vmatprep.mubr.f32.mxu0 0.0
  %1173 = vmatmul.mubr.f32.gmra.mxu0 %v821
  %v1174 = vpop.f32.mrf.mxu0
  %v1175 = vadd.f32 0.0, %v1174
  %v1176 = vpop.f32.mrf.mxu0
  %1177 = vmatprep.mubr.f32.mxu0 0.0
  %1178 = vmatmul.mubr.f32.gmra.mxu0 %v824
  %v1179 = vpop.f32.mrf.mxu0
  %v1180 = vadd.f32 0.0, %v1179
  %v1181 = vpop.f32.mrf.mxu0
  %1182 = vmatprep.mubr.f32.mxu0 0.0
  %1183 = vmatmul.mubr.f32.gmra.mxu0 %v827
  %v1184 = vpop.f32.mrf.mxu0
  %v1185 = vadd.f32 0.0, %v1184
  %v1186 = vpop.f32.mrf.mxu0
  %1187 = vmatprep.mubr.f32.mxu0 0.0
  %1188 = vmatmul.mubr.f32.gmra.mxu0 %v830
  %v1189 = vpop.f32.mrf.mxu0
  %v1190 = vadd.f32 0.0, %v1189
  %v1191 = vpop.f32.mrf.mxu0
  %1192 = vmatprep.mubr.f32.mxu0 0.0
  %1193 = vmatmul.mubr.f32.gmra.mxu0 %v833
  %v1194 = vpop.f32.mrf.mxu0
  %v1195 = vadd.f32 0.0, %v1194
  %v1196 = vpop.f32.mrf.mxu0
  %1197 = vmatprep.mubr.f32.mxu0 0.0
  %1198 = vmatmul.mubr.f32.gmra.mxu0 %v836
  %v1199 = vpop.f32.mrf.mxu0
  %v1200 = vadd.f32 0.0, %v1199
  %v1201 = vpop.f32.mrf.mxu0
  %1202 = vmatprep.mubr.f32.mxu0 0.0
  %1203 = vmatmul.mubr.f32.gmra.mxu0 %v839
  %v1204 = vpop.f32.mrf.mxu0
  %v1205 = vadd.f32 0.0, %v1204
  %v1206 = vpop.f32.mrf.mxu0
  %1207 = vmatprep.mubr.f32.mxu0 0.0
  %1208 = vmatmul.mubr.f32.gmra.mxu0 %v842
  %v1209 = vpop.f32.mrf.mxu0
  %v1210 = vadd.f32 0.0, %v1209
  %v1211 = vpop.f32.mrf.mxu0
  %1212 = vmatprep.mubr.f32.mxu0 0.0
  %1213 = vmatmul.mubr.f32.gmra.mxu0 %v845
  %v1214 = vpop.f32.mrf.mxu0
  %v1215 = vadd.f32 0.0, %v1214
  %v1216 = vpop.f32.mrf.mxu0
  %1217 = vmatprep.mubr.f32.mxu0 0.0
  %1218 = vmatmul.mubr.f32.gmra.mxu0 %v848
  %v1219 = vpop.f32.mrf.mxu0
  %v1220 = vadd.f32 0.0, %v1219
  %v1221 = vpop.f32.mrf.mxu0
  %1222 = vmatprep.mubr.f32.mxu0 0.0
  %1223 = vmatmul.mubr.f32.gmra.mxu0 %v851
  %v1224 = vpop.f32.mrf.mxu0
  %v1225 = vadd.f32 0.0, %v1224
  %v1226 = vpop.f32.mrf.mxu0
  %1227 = vmatprep.mubr.f32.mxu0 0.0
  %1228 = vmatmul.mubr.f32.gmra.mxu0 %v854
  %v1229 = vpop.f32.mrf.mxu0
  %v1230 = vadd.f32 0.0, %v1229
  %v1231 = vpop.f32.mrf.mxu0
  %1232 = vmatprep.mubr.f32.mxu0 0.0
  %1233 = vmatmul.mubr.f32.gmra.mxu0 %v857
  %v1234 = vpop.f32.mrf.mxu0
  %v1235 = vadd.f32 0.0, %v1234
  %v1236 = vpop.f32.mrf.mxu0
  %1237 = vmatprep.mubr.f32.mxu0 0.0
  %1238 = vmatmul.mubr.f32.gmra.mxu0 %v860
  %v1239 = vpop.f32.mrf.mxu0
  %v1240 = vadd.f32 0.0, %v1239
  %v1241 = vpop.f32.mrf.mxu0
  %1242 = vmatprep.mubr.f32.mxu0 0.0
  %1243 = vmatmul.mubr.f32.gmra.mxu0 %v863
  %v1244 = vpop.f32.mrf.mxu0
  %v1245 = vadd.f32 0.0, %v1244
  %v1246 = vpop.f32.mrf.mxu0
  %1247 = vmatprep.mubr.f32.mxu0 0.0
  %1248 = vmatmul.mubr.f32.gmra.mxu0 %v866
  %v1249 = vpop.f32.mrf.mxu0
  %v1250 = vadd.f32 0.0, %v1249
  %v1251 = vpop.f32.mrf.mxu0
  %1252 = vdwg.mxu0
  %vm1253 = vcmask 64512
  %v1254 = vsel %vm1253, %v935, 0.0
  %v1255 = vsel %vm1253, %v940, 0.0
  %v1256 = vadd.f32 %v1254, %v1255
  %v1257 = vsel %vm1253, %v945, 0.0
  %v1258 = vadd.f32 %v1256, %v1257
  %v1259 = vsel %vm1253, %v950, 0.0
  %v1260 = vadd.f32 %v1258, %v1259
  %v1261 = vsel %vm1253, %v955, 0.0
  %v1262 = vadd.f32 %v1260, %v1261
  %v1263 = vsel %vm1253, %v960, 0.0
  %v1264 = vadd.f32 %v1262, %v1263
  %v1265 = vsel %vm1253, %v965, 0.0
  %v1266 = vadd.f32 %v1264, %v1265
  %v1267 = vsel %vm1253, %v970, 0.0
  %v1268 = vadd.f32 %v1266, %v1267
  %v1269 = vsel %vm1253, %v975, 0.0
  %v1270 = vadd.f32 %v1268, %v1269
  %v1271 = vsel %vm1253, %v980, 0.0
  %v1272 = vadd.f32 %v1270, %v1271
  %v1273 = vsel %vm1253, %v985, 0.0
  %v1274 = vadd.f32 %v1272, %v1273
  %v1275 = vsel %vm1253, %v990, 0.0
  %v1276 = vadd.f32 %v1274, %v1275
  %v1277 = vsel %vm1253, %v995, 0.0
  %v1278 = vadd.f32 %v1276, %v1277
  %v1279 = vsel %vm1253, %v1000, 0.0
  %v1280 = vadd.f32 %v1278, %v1279
  %v1281 = vsel %vm1253, %v1005, 0.0
  %v1282 = vadd.f32 %v1280, %v1281
  %v1283 = vsel %vm1253, %v1010, 0.0
  %v1284 = vadd.f32 %v1282, %v1283
  %v1285 = vsel %vm1253, %v1015, 0.0
  %v1286 = vadd.f32 %v1284, %v1285
  %v1287 = vsel %vm1253, %v1020, 0.0
  %v1288 = vadd.f32 %v1286, %v1287
  %v1289 = vsel %vm1253, %v1025, 0.0
  %v1290 = vadd.f32 %v1288, %v1289
  %v1291 = vsel %vm1253, %v1030, 0.0
  %v1292 = vadd.f32 %v1290, %v1291
  %v1293 = vsel %vm1253, %v1035, 0.0
  %v1294 = vadd.f32 %v1292, %v1293
  %v1295 = vsel %vm1253, %v1040, 0.0
  %v1296 = vadd.f32 %v1294, %v1295
  %v1297 = vsel %vm1253, %v1045, 0.0
  %v1298 = vadd.f32 %v1296, %v1297
  %v1299 = vsel %vm1253, %v1050, 0.0
  %v1300 = vadd.f32 %v1298, %v1299
  %v1301 = vsel %vm1253, %v1055, 0.0
  %v1302 = vadd.f32 %v1300, %v1301
  %v1303 = vsel %vm1253, %v1060, 0.0
  %v1304 = vadd.f32 %v1302, %v1303
  %v1305 = vsel %vm1253, %v1065, 0.0
  %v1306 = vadd.f32 %v1304, %v1305
  %v1307 = vsel %vm1253, %v1070, 0.0
  %v1308 = vadd.f32 %v1306, %v1307
  %v1309 = vsel %vm1253, %v1075, 0.0
  %v1310 = vadd.f32 %v1308, %v1309
  %v1311 = vsel %vm1253, %v1080, 0.0
  %v1312 = vadd.f32 %v1310, %v1311
  %v1313 = vsel %vm1253, %v1085, 0.0
  %v1314 = vadd.f32 %v1312, %v1313
  %v1315 = vsel %vm1253, %v1090, 0.0
  %v1316 = vadd.f32 %v1314, %v1315
  %v1317 = vsel %vm1253, %v1095, 0.0
  %v1318 = vadd.f32 %v1316, %v1317
  %v1319 = vsel %vm1253, %v1100, 0.0
  %v1320 = vadd.f32 %v1318, %v1319
  %v1321 = vsel %vm1253, %v1105, 0.0
  %v1322 = vadd.f32 %v1320, %v1321
  %v1323 = vsel %vm1253, %v1110, 0.0
  %v1324 = vadd.f32 %v1322, %v1323
  %v1325 = vsel %vm1253, %v1115, 0.0
  %v1326 = vadd.f32 %v1324, %v1325
  %v1327 = vsel %vm1253, %v1120, 0.0
  %v1328 = vadd.f32 %v1326, %v1327
  %v1329 = vsel %vm1253, %v1125, 0.0
  %v1330 = vadd.f32 %v1328, %v1329
  %v1331 = vsel %vm1253, %v1130, 0.0
  %v1332 = vadd.f32 %v1330, %v1331
  %v1333 = vsel %vm1253, %v1135, 0.0
  %v1334 = vadd.f32 %v1332, %v1333
  %v1335 = vsel %vm1253, %v1140, 0.0
  %v1336 = vadd.f32 %v1334, %v1335
  %v1337 = vsel %vm1253, %v1145, 0.0
  %v1338 = vadd.f32 %v1336, %v1337
  %v1339 = vsel %vm1253, %v1150, 0.0
  %v1340 = vadd.f32 %v1338, %v1339
  %v1341 = vsel %vm1253, %v1155, 0.0
  %v1342 = vadd.f32 %v1340, %v1341
  %v1343 = vsel %vm1253, %v1160, 0.0
  %v1344 = vadd.f32 %v1342, %v1343
  %v1345 = vsel %vm1253, %v1165, 0.0
  %v1346 = vadd.f32 %v1344, %v1345
  %v1347 = vsel %vm1253, %v1170, 0.0
  %v1348 = vadd.f32 %v1346, %v1347
  %v1349 = vsel %vm1253, %v1175, 0.0
  %v1350 = vadd.f32 %v1348, %v1349
  %v1351 = vsel %vm1253, %v1180, 0.0
  %v1352 = vadd.f32 %v1350, %v1351
  %v1353 = vsel %vm1253, %v1185, 0.0
  %v1354 = vadd.f32 %v1352, %v1353
  %v1355 = vsel %vm1253, %v1190, 0.0
  %v1356 = vadd.f32 %v1354, %v1355
  %v1357 = vsel %vm1253, %v1195, 0.0
  %v1358 = vadd.f32 %v1356, %v1357
  %v1359 = vsel %vm1253, %v1200, 0.0
  %v1360 = vadd.f32 %v1358, %v1359
  %v1361 = vsel %vm1253, %v1205, 0.0
  %v1362 = vadd.f32 %v1360, %v1361
  %v1363 = vsel %vm1253, %v1210, 0.0
  %v1364 = vadd.f32 %v1362, %v1363
  %v1365 = vsel %vm1253, %v1215, 0.0
  %v1366 = vadd.f32 %v1364, %v1365
  %v1367 = vsel %vm1253, %v1220, 0.0
  %v1368 = vadd.f32 %v1366, %v1367
  %v1369 = vsel %vm1253, %v1225, 0.0
  %v1370 = vadd.f32 %v1368, %v1369
  %v1371 = vsel %vm1253, %v1230, 0.0
  %v1372 = vadd.f32 %v1370, %v1371
  %v1373 = vsel %vm1253, %v1235, 0.0
  %v1374 = vadd.f32 %v1372, %v1373
  %v1375 = vsel %vm1253, %v1240, 0.0
  %v1376 = vadd.f32 %v1374, %v1375
  %v1377 = vsel %vm1253, %v1245, 0.0
  %v1378 = vadd.f32 %v1376, %v1377
  %v1379 = vsel %vm1253, %v1250, 0.0
  %v1380 = vadd.f32 %v1378, %v1379
  %v1381 = vrot.slane %v1380, 4
  %v1382 = vadd.f32 %v1380, %v1381
  %v1383 = vrot.slane %v1382, 2
  %v1384 = vadd.f32 %v1382, %v1383
  %v1385 = vrot.slane %v1384, 1
  %v1386 = vadd.f32 %v1384, %v1385
  %vm1387 = vcmask 57344
  %1388 = vst.msk [vmem:[%s5] sm:$0x1] %vm1387, %v1386
  %v1389 = vmul.f32 %v935, %v935
  %v1390 = vmul.f32 %v940, %v940
  %v1391 = vmul.f32 %v945, %v945
  %v1392 = vmul.f32 %v950, %v950
  %v1393 = vmul.f32 %v955, %v955
  %v1394 = vmul.f32 %v960, %v960
  %v1395 = vmul.f32 %v965, %v965
  %v1396 = vmul.f32 %v970, %v970
  %v1397 = vmul.f32 %v975, %v975
  %v1398 = vmul.f32 %v980, %v980
  %v1399 = vmul.f32 %v985, %v985
  %v1400 = vmul.f32 %v990, %v990
  %v1401 = vmul.f32 %v995, %v995
  %v1402 = vmul.f32 %v1000, %v1000
  %v1403 = vmul.f32 %v1005, %v1005
  %v1404 = vmul.f32 %v1010, %v1010
  %v1405 = vmul.f32 %v1015, %v1015
  %v1406 = vmul.f32 %v1020, %v1020
  %v1407 = vmul.f32 %v1025, %v1025
  %v1408 = vmul.f32 %v1030, %v1030
  %v1409 = vmul.f32 %v1035, %v1035
  %v1410 = vmul.f32 %v1040, %v1040
  %v1411 = vmul.f32 %v1045, %v1045
  %v1412 = vmul.f32 %v1050, %v1050
  %v1413 = vmul.f32 %v1055, %v1055
  %v1414 = vmul.f32 %v1060, %v1060
  %v1415 = vmul.f32 %v1065, %v1065
  %v1416 = vmul.f32 %v1070, %v1070
  %v1417 = vmul.f32 %v1075, %v1075
  %v1418 = vmul.f32 %v1080, %v1080
  %v1419 = vmul.f32 %v1085, %v1085
  %v1420 = vmul.f32 %v1090, %v1090
  %v1421 = vmul.f32 %v1095, %v1095
  %v1422 = vmul.f32 %v1100, %v1100
  %v1423 = vmul.f32 %v1105, %v1105
  %v1424 = vmul.f32 %v1110, %v1110
  %v1425 = vmul.f32 %v1115, %v1115
  %v1426 = vmul.f32 %v1120, %v1120
  %v1427 = vmul.f32 %v1125, %v1125
  %v1428 = vmul.f32 %v1130, %v1130
  %v1429 = vmul.f32 %v1135, %v1135
  %v1430 = vmul.f32 %v1140, %v1140
  %v1431 = vmul.f32 %v1145, %v1145
  %v1432 = vmul.f32 %v1150, %v1150
  %v1433 = vmul.f32 %v1155, %v1155
  %v1434 = vmul.f32 %v1160, %v1160
  %v1435 = vmul.f32 %v1165, %v1165
  %v1436 = vmul.f32 %v1170, %v1170
  %v1437 = vmul.f32 %v1175, %v1175
  %v1438 = vmul.f32 %v1180, %v1180
  %v1439 = vmul.f32 %v1185, %v1185
  %v1440 = vmul.f32 %v1190, %v1190
  %v1441 = vmul.f32 %v1195, %v1195
  %v1442 = vmul.f32 %v1200, %v1200
  %v1443 = vmul.f32 %v1205, %v1205
  %v1444 = vmul.f32 %v1210, %v1210
  %v1445 = vmul.f32 %v1215, %v1215
  %v1446 = vmul.f32 %v1220, %v1220
  %v1447 = vmul.f32 %v1225, %v1225
  %v1448 = vmul.f32 %v1230, %v1230
  %v1449 = vmul.f32 %v1235, %v1235
  %v1450 = vmul.f32 %v1240, %v1240
  %v1451 = vmul.f32 %v1245, %v1245
  %v1452 = vmul.f32 %v1250, %v1250
  %v1453 = vsel %vm1253, %v1389, 0.0
  %v1454 = vsel %vm1253, %v1390, 0.0
  %v1455 = vadd.f32 %v1453, %v1454
  %v1456 = vsel %vm1253, %v1391, 0.0
  %v1457 = vadd.f32 %v1455, %v1456
  %v1458 = vsel %vm1253, %v1392, 0.0
  %v1459 = vadd.f32 %v1457, %v1458
  %v1460 = vsel %vm1253, %v1393, 0.0
  %v1461 = vadd.f32 %v1459, %v1460
  %v1462 = vsel %vm1253, %v1394, 0.0
  %v1463 = vadd.f32 %v1461, %v1462
  %v1464 = vsel %vm1253, %v1395, 0.0
  %v1465 = vadd.f32 %v1463, %v1464
  %v1466 = vsel %vm1253, %v1396, 0.0
  %v1467 = vadd.f32 %v1465, %v1466
  %v1468 = vsel %vm1253, %v1397, 0.0
  %v1469 = vadd.f32 %v1467, %v1468
  %v1470 = vsel %vm1253, %v1398, 0.0
  %v1471 = vadd.f32 %v1469, %v1470
  %v1472 = vsel %vm1253, %v1399, 0.0
  %v1473 = vadd.f32 %v1471, %v1472
  %v1474 = vsel %vm1253, %v1400, 0.0
  %v1475 = vadd.f32 %v1473, %v1474
  %v1476 = vsel %vm1253, %v1401, 0.0
  %v1477 = vadd.f32 %v1475, %v1476
  %v1478 = vsel %vm1253, %v1402, 0.0
  %v1479 = vadd.f32 %v1477, %v1478
  %v1480 = vsel %vm1253, %v1403, 0.0
  %v1481 = vadd.f32 %v1479, %v1480
  %v1482 = vsel %vm1253, %v1404, 0.0
  %v1483 = vadd.f32 %v1481, %v1482
  %v1484 = vsel %vm1253, %v1405, 0.0
  %v1485 = vadd.f32 %v1483, %v1484
  %v1486 = vsel %vm1253, %v1406, 0.0
  %v1487 = vadd.f32 %v1485, %v1486
  %v1488 = vsel %vm1253, %v1407, 0.0
  %v1489 = vadd.f32 %v1487, %v1488
  %v1490 = vsel %vm1253, %v1408, 0.0
  %v1491 = vadd.f32 %v1489, %v1490
  %v1492 = vsel %vm1253, %v1409, 0.0
  %v1493 = vadd.f32 %v1491, %v1492
  %v1494 = vsel %vm1253, %v1410, 0.0
  %v1495 = vadd.f32 %v1493, %v1494
  %v1496 = vsel %vm1253, %v1411, 0.0
  %v1497 = vadd.f32 %v1495, %v1496
  %v1498 = vsel %vm1253, %v1412, 0.0
  %v1499 = vadd.f32 %v1497, %v1498
  %v1500 = vsel %vm1253, %v1413, 0.0
  %v1501 = vadd.f32 %v1499, %v1500
  %v1502 = vsel %vm1253, %v1414, 0.0
  %v1503 = vadd.f32 %v1501, %v1502
  %v1504 = vsel %vm1253, %v1415, 0.0
  %v1505 = vadd.f32 %v1503, %v1504
  %v1506 = vsel %vm1253, %v1416, 0.0
  %v1507 = vadd.f32 %v1505, %v1506
  %v1508 = vsel %vm1253, %v1417, 0.0
  %v1509 = vadd.f32 %v1507, %v1508
  %v1510 = vsel %vm1253, %v1418, 0.0
  %v1511 = vadd.f32 %v1509, %v1510
  %v1512 = vsel %vm1253, %v1419, 0.0
  %v1513 = vadd.f32 %v1511, %v1512
  %v1514 = vsel %vm1253, %v1420, 0.0
  %v1515 = vadd.f32 %v1513, %v1514
  %v1516 = vsel %vm1253, %v1421, 0.0
  %v1517 = vadd.f32 %v1515, %v1516
  %v1518 = vsel %vm1253, %v1422, 0.0
  %v1519 = vadd.f32 %v1517, %v1518
  %v1520 = vsel %vm1253, %v1423, 0.0
  %v1521 = vadd.f32 %v1519, %v1520
  %v1522 = vsel %vm1253, %v1424, 0.0
  %v1523 = vadd.f32 %v1521, %v1522
  %v1524 = vsel %vm1253, %v1425, 0.0
  %v1525 = vadd.f32 %v1523, %v1524
  %v1526 = vsel %vm1253, %v1426, 0.0
  %v1527 = vadd.f32 %v1525, %v1526
  %v1528 = vsel %vm1253, %v1427, 0.0
  %v1529 = vadd.f32 %v1527, %v1528
  %v1530 = vsel %vm1253, %v1428, 0.0
  %v1531 = vadd.f32 %v1529, %v1530
  %v1532 = vsel %vm1253, %v1429, 0.0
  %v1533 = vadd.f32 %v1531, %v1532
  %v1534 = vsel %vm1253, %v1430, 0.0
  %v1535 = vadd.f32 %v1533, %v1534
  %v1536 = vsel %vm1253, %v1431, 0.0
  %v1537 = vadd.f32 %v1535, %v1536
  %v1538 = vsel %vm1253, %v1432, 0.0
  %v1539 = vadd.f32 %v1537, %v1538
  %v1540 = vsel %vm1253, %v1433, 0.0
  %v1541 = vadd.f32 %v1539, %v1540
  %v1542 = vsel %vm1253, %v1434, 0.0
  %v1543 = vadd.f32 %v1541, %v1542
  %v1544 = vsel %vm1253, %v1435, 0.0
  %v1545 = vadd.f32 %v1543, %v1544
  %v1546 = vsel %vm1253, %v1436, 0.0
  %v1547 = vadd.f32 %v1545, %v1546
  %v1548 = vsel %vm1253, %v1437, 0.0
  %v1549 = vadd.f32 %v1547, %v1548
  %v1550 = vsel %vm1253, %v1438, 0.0
  %v1551 = vadd.f32 %v1549, %v1550
  %v1552 = vsel %vm1253, %v1439, 0.0
  %v1553 = vadd.f32 %v1551, %v1552
  %v1554 = vsel %vm1253, %v1440, 0.0
  %v1555 = vadd.f32 %v1553, %v1554
  %v1556 = vsel %vm1253, %v1441, 0.0
  %v1557 = vadd.f32 %v1555, %v1556
  %v1558 = vsel %vm1253, %v1442, 0.0
  %v1559 = vadd.f32 %v1557, %v1558
  %v1560 = vsel %vm1253, %v1443, 0.0
  %v1561 = vadd.f32 %v1559, %v1560
  %v1562 = vsel %vm1253, %v1444, 0.0
  %v1563 = vadd.f32 %v1561, %v1562
  %v1564 = vsel %vm1253, %v1445, 0.0
  %v1565 = vadd.f32 %v1563, %v1564
  %v1566 = vsel %vm1253, %v1446, 0.0
  %v1567 = vadd.f32 %v1565, %v1566
  %v1568 = vsel %vm1253, %v1447, 0.0
  %v1569 = vadd.f32 %v1567, %v1568
  %v1570 = vsel %vm1253, %v1448, 0.0
  %v1571 = vadd.f32 %v1569, %v1570
  %v1572 = vsel %vm1253, %v1449, 0.0
  %v1573 = vadd.f32 %v1571, %v1572
  %v1574 = vsel %vm1253, %v1450, 0.0
  %v1575 = vadd.f32 %v1573, %v1574
  %v1576 = vsel %vm1253, %v1451, 0.0
  %v1577 = vadd.f32 %v1575, %v1576
  %v1578 = vsel %vm1253, %v1452, 0.0
  %v1579 = vadd.f32 %v1577, %v1578
  %v1580 = vrot.slane %v1579, 4
  %v1581 = vadd.f32 %v1579, %v1580
  %v1582 = vrot.slane %v1581, 2
  %v1583 = vadd.f32 %v1581, %v1582
  %v1584 = vrot.slane %v1583, 1
  %v1585 = vadd.f32 %v1583, %v1584
  %1586 = vst.msk [vmem:[%s5 + $0x1] sm:$0x1] %vm1387, %v1585
  %1587 = vst.msk [vmem:[%s4] sm:$0xff] %vm1253, %v935
  %1588 = vst.msk [vmem:[%s4 + $0x8] sm:$0xff] %vm1253, %v940
  %1589 = vst.msk [vmem:[%s4 + $0x10] sm:$0xff] %vm1253, %v945
  %1590 = vst.msk [vmem:[%s4 + $0x18] sm:$0xff] %vm1253, %v950
  %1591 = vst.msk [vmem:[%s4 + $0x20] sm:$0xff] %vm1253, %v955
  %1592 = vst.msk [vmem:[%s4 + $0x28] sm:$0xff] %vm1253, %v960
  %1593 = vst.msk [vmem:[%s4 + $0x30] sm:$0xff] %vm1253, %v965
  %1594 = vst.msk [vmem:[%s4 + $0x38] sm:$0xff] %vm1253, %v970
  %1595 = vst.msk [vmem:[%s4 + $0x40] sm:$0xff] %vm1253, %v975
  %1596 = vst.msk [vmem:[%s4 + $0x48] sm:$0xff] %vm1253, %v980
  %1597 = vst.msk [vmem:[%s4 + $0x50] sm:$0xff] %vm1253, %v985
  %1598 = vst.msk [vmem:[%s4 + $0x58] sm:$0xff] %vm1253, %v990
  %1599 = vst.msk [vmem:[%s4 + $0x60] sm:$0xff] %vm1253, %v995
  %1600 = vst.msk [vmem:[%s4 + $0x68] sm:$0xff] %vm1253, %v1000
  %1601 = vst.msk [vmem:[%s4 + $0x70] sm:$0xff] %vm1253, %v1005
  %1602 = vst.msk [vmem:[%s4 + $0x78] sm:$0xff] %vm1253, %v1010
  %1603 = vst.msk [vmem:[%s4 + $0x80] sm:$0xff] %vm1253, %v1015
  %1604 = vst.msk [vmem:[%s4 + $0x88] sm:$0xff] %vm1253, %v1020
  %1605 = vst.msk [vmem:[%s4 + $0x90] sm:$0xff] %vm1253, %v1025
  %1606 = vst.msk [vmem:[%s4 + $0x98] sm:$0xff] %vm1253, %v1030
  %1607 = vst.msk [vmem:[%s4 + $0xa0] sm:$0xff] %vm1253, %v1035
  %1608 = vst.msk [vmem:[%s4 + $0xa8] sm:$0xff] %vm1253, %v1040
  %1609 = vst.msk [vmem:[%s4 + $0xb0] sm:$0xff] %vm1253, %v1045
  %1610 = vst.msk [vmem:[%s4 + $0xb8] sm:$0xff] %vm1253, %v1050
  %1611 = vst.msk [vmem:[%s4 + $0xc0] sm:$0xff] %vm1253, %v1055
  %1612 = vst.msk [vmem:[%s4 + $0xc8] sm:$0xff] %vm1253, %v1060
  %1613 = vst.msk [vmem:[%s4 + $0xd0] sm:$0xff] %vm1253, %v1065
  %1614 = vst.msk [vmem:[%s4 + $0xd8] sm:$0xff] %vm1253, %v1070
  %1615 = vst.msk [vmem:[%s4 + $0xe0] sm:$0xff] %vm1253, %v1075
  %1616 = vst.msk [vmem:[%s4 + $0xe8] sm:$0xff] %vm1253, %v1080
  %1617 = vst.msk [vmem:[%s4 + $0xf0] sm:$0xff] %vm1253, %v1085
  %1618 = vst.msk [vmem:[%s4 + $0xf8] sm:$0xff] %vm1253, %v1090
  %1619 = vst.msk [vmem:[%s4 + $0x100] sm:$0xff] %vm1253, %v1095
  %1620 = vst.msk [vmem:[%s4 + $0x108] sm:$0xff] %vm1253, %v1100
  %1621 = vst.msk [vmem:[%s4 + $0x110] sm:$0xff] %vm1253, %v1105
  %1622 = vst.msk [vmem:[%s4 + $0x118] sm:$0xff] %vm1253, %v1110
  %1623 = vst.msk [vmem:[%s4 + $0x120] sm:$0xff] %vm1253, %v1115
  %1624 = vst.msk [vmem:[%s4 + $0x128] sm:$0xff] %vm1253, %v1120
  %1625 = vst.msk [vmem:[%s4 + $0x130] sm:$0xff] %vm1253, %v1125
  %1626 = vst.msk [vmem:[%s4 + $0x138] sm:$0xff] %vm1253, %v1130
  %1627 = vst.msk [vmem:[%s4 + $0x140] sm:$0xff] %vm1253, %v1135
  %1628 = vst.msk [vmem:[%s4 + $0x148] sm:$0xff] %vm1253, %v1140
  %1629 = vst.msk [vmem:[%s4 + $0x150] sm:$0xff] %vm1253, %v1145
  %1630 = vst.msk [vmem:[%s4 + $0x158] sm:$0xff] %vm1253, %v1150
  %1631 = vst.msk [vmem:[%s4 + $0x160] sm:$0xff] %vm1253, %v1155
  %1632 = vst.msk [vmem:[%s4 + $0x168] sm:$0xff] %vm1253, %v1160
  %1633 = vst.msk [vmem:[%s4 + $0x170] sm:$0xff] %vm1253, %v1165
  %1634 = vst.msk [vmem:[%s4 + $0x178] sm:$0xff] %vm1253, %v1170
  %1635 = vst.msk [vmem:[%s4 + $0x180] sm:$0xff] %vm1253, %v1175
  %1636 = vst.msk [vmem:[%s4 + $0x188] sm:$0xff] %vm1253, %v1180
  %1637 = vst.msk [vmem:[%s4 + $0x190] sm:$0xff] %vm1253, %v1185
  %1638 = vst.msk [vmem:[%s4 + $0x198] sm:$0xff] %vm1253, %v1190
  %1639 = vst.msk [vmem:[%s4 + $0x1a0] sm:$0xff] %vm1253, %v1195
  %1640 = vst.msk [vmem:[%s4 + $0x1a8] sm:$0xff] %vm1253, %v1200
  %1641 = vst.msk [vmem:[%s4 + $0x1b0] sm:$0xff] %vm1253, %v1205
  %1642 = vst.msk [vmem:[%s4 + $0x1b8] sm:$0xff] %vm1253, %v1210
  %1643 = vst.msk [vmem:[%s4 + $0x1c0] sm:$0xff] %vm1253, %v1215
  %1644 = vst.msk [vmem:[%s4 + $0x1c8] sm:$0xff] %vm1253, %v1220
  %1645 = vst.msk [vmem:[%s4 + $0x1d0] sm:$0xff] %vm1253, %v1225
  %1646 = vst.msk [vmem:[%s4 + $0x1d8] sm:$0xff] %vm1253, %v1230
  %1647 = vst.msk [vmem:[%s4 + $0x1e0] sm:$0xff] %vm1253, %v1235
  %1648 = vst.msk [vmem:[%s4 + $0x1e8] sm:$0xff] %vm1253, %v1240
  %1649 = vst.msk [vmem:[%s4 + $0x1f0] sm:$0xff] %vm1253, %v1245
  %1650 = vst.msk [vmem:[%s4 + $0x1f8] sm:$0xff] %vm1253, %v1250
  // Predicated region
  $region18: #{mbconv_forward.6} parent=0 // pred_check
    _
  $region19: #{mbconv_forward.6} parent=0 // pred_check_branch
    %1652 = sbr.rel (0) target = $region21
  $region20: #{mbconv_forward.6} parent=0 // pred_region
    _
  $region21: #{mbconv_forward.6} parent=0 // pred_fallthru
    _
  // Predicated region
  $region22: #{mbconv_forward.6} parent=0 // pred_check
    _
  $region23: #{mbconv_forward.6} parent=0 // pred_check_branch
    %1654 = sbr.rel (0) target = $region25
  $region24: #{mbconv_forward.6} parent=0 // pred_region
    _
  $region25: #{mbconv_forward.6} parent=0 // pred_fallthru
    _
  // Predicated region
  $region26: #{mbconv_forward.6} parent=0 // pred_check
    _
  $region27: #{mbconv_forward.6} parent=0 // pred_check_branch
    %1656 = sbr.rel (0) target = $region29
  $region28: #{mbconv_forward.6} parent=0 // pred_region
    _
  $region29: #{mbconv_forward.6} parent=0 // pred_fallthru
    _
  // Predicated region
  $region30: #{mbconv_forward.6} parent=0 // pred_check
    _
  $region31: #{mbconv_forward.6} parent=0 // pred_check_branch
    %1658 = sbr.rel (0) target = $region33
  $region32: #{mbconv_forward.6} parent=0 // pred_region
    _
  $region33: #{mbconv_forward.6} parent=0 // pred_fallthru
    _

// kernel: mbconv_forward.5
$region0: #{mbconv_forward.5}
  #allocation0 [shape = 'u32[]', space=smem, size = 0x4, offset = 0x4, fixed_abs, tag = 'smem constant byte address 0x4 - core index']
  #allocation1 [shape = 'u32[144,128]{1,0:T(1,128)}', space=vmem, size = 0x12000, scoped, tag = 'internal scratch']
  #allocation2 [shape = 'f32[18,18,16]{2,1,0:T(8,128)}', space=vmem, size = 0x36000, scoped, tag = 'scratch operand']
  %s0 = inlined_call_operand.vmem [shape: f32[2,16,16,4], index: 0, kind: input, shape index: {}]
  %s1 = inlined_call_operand.vmem [shape: f32[4,16], index: 1, kind: input, shape index: {}]
  %s2 = inlined_call_operand.vmem [shape: f32[1,16], index: 2, kind: input, shape index: {}]
  %s3 = inlined_call_operand.vmem [shape: f32[1,16], index: 3, kind: input, shape index: {}]
  %s4 = inlined_call_operand.vmem [shape: f32[9,16], index: 4, kind: input, shape index: {}]
  %s5 = inlined_call_operand.vmem [shape: f32[2,16,16,16], index: 5, kind: output, shape index: {0}]
  %s6 = inlined_call_operand.vmem [shape: f32[2,2,16], index: 6, kind: output, shape index: {1}]
  %7 = xla_tuple %s5, %s6
  %s8 = sld [smem:[#allocation0]]
  $region61: #{mbconv_forward.5} parent=0
    _
  %s10 = ssub.s32 1, %s8
  %s11 = scalar_select 0, %s10, %s8
  loop: start=0, step=1, limit=4
  $region2: #{mbconv_forward.5} parent=0 // loop_pre_header
    _
  $region3: #{mbconv_forward.5} parent=0 // loop_header
    %s13 = sphi 0, %s17
    %p14 = scmp.ge.s32.totalorder %s13, 4
    %s23 = sphi 0, %s25
    %s26 = sphi 0, %s23
    %s27 = sphi 0, %s26
    %s43 = sphi 0, %s27
    %s47 = sphi 0, %s47
    %s49 = sphi 0, %s47
    %s50 = sphi 0, %s49
    %s64 = sphi 0, %s50
    %s68 = sphi 0, %s68
    %s70 = sphi 0, %s68
    %s71 = sphi 0, %s70
    %s85 = sphi 0, %s71
    %s89 = sphi 0, %s89
    %s91 = sphi 0, %s89
    %s92 = sphi 0, %s91
    %s106 = sphi 0, %s92
    %s110 = sphi 0, %s110
    %s112 = sphi 0, %s110
    %s113 = sphi 0, %s112
    %s127 = sphi 0, %s113
    %s133 = sphi 0, %s135
    %s136 = sphi 0, %s133
    %s137 = sphi 0, %s136
    %s153 = sphi 0, %s137
    %s159 = sphi 0, %s161
    %s162 = sphi 0, %s159
    %s163 = sphi 0, %s162
    %s179 = sphi 0, %s163
  $region4: #{mbconv_forward.5} parent=0 // loop_header_branch
    %16 = sbr.rel (%p14) target = $region8
  $region5: #{mbconv_forward.5} parent=0 // loop_body
    %s18 = ssub.s32 %s13, 1
    %s19 = ssub.s32 %s13, 2
    %s20 = sadd.s32 %s13, 1
    %s21 = ssub.s32 %s13, %s20
    %p22 = scmp.eq.s32.totalorder %s21, 0
    %s24 = sadd.s32 %s23, 1
    %s25 = scalar_select %p22, %s23, %s24
    %p28 = pneg %p22
    %p29 = scmp.eq.s32.totalorder %s13, 1
    %p30 = por %p28, %p29
    %p31 = scmp.ne.s32.totalorder %s23, %s26
    %p32 = scmp.eq.s32.totalorder %s13, 0
    %p33 = por %p31, %p32
    %p34 = scmp.ne.s32.totalorder %s23, %s26
    %p35 = scmp.eq.s32.totalorder %s18, 1
    %p36 = por %p34, %p35
    %p37 = scmp.ne.s32.totalorder %s26, %s27
    %p38 = scmp.eq.s32.totalorder %s18, 0
    %p39 = por %p37, %p38
    %p40 = scmp.ne.s32.totalorder %s26, %s27
    %p41 = scmp.eq.s32.totalorder %s19, 1
    %p42 = por %p40, %p41
    %p44 = scmp.ne.s32.totalorder %s27, %s43
    %p45 = scmp.eq.s32.totalorder %s19, 0
    %p46 = por %p44, %p45
    %s48 = sadd.s32 %s47, 1
    %p51 = scmp.eq.s32.totalorder %s13, 1
    %p52 = scmp.ne.s32.totalorder %s47, %s49
    %p53 = scmp.eq.s32.totalorder %s13, 0
    %p54 = por %p52, %p53
    %p55 = scmp.ne.s32.totalorder %s47, %s49
    %p56 = scmp.eq.s32.totalorder %s18, 1
    %p57 = por %p55, %p56
    %p58 = scmp.ne.s32.totalorder %s49, %s50
    %p59 = scmp.eq.s32.totalorder %s18, 0
    %p60 = por %p58, %p59
    %p61 = scmp.ne.s32.totalorder %s49, %s50
    %p62 = scmp.eq.s32.totalorder %s19, 1
    %p63 = por %p61, %p62
    %p65 = scmp.ne.s32.totalorder %s50, %s64
    %p66 = scmp.eq.s32.totalorder %s19, 0
    %p67 = por %p65, %p66
    %s69 = sadd.s32 %s68, 1
    %p72 = scmp.eq.s32.totalorder %s13, 1
    %p73 = scmp.ne.s32.totalorder %s68, %s70
    %p74 = scmp.eq.s32.totalorder %s13, 0
    %p75 = por %p73, %p74
    %p76 = scmp.ne.s32.totalorder %s68, %s70
    %p77 = scmp.eq.s32.totalorder %s18, 1
    %p78 = por %p76, %p77
    %p79 = scmp.ne.s32.totalorder %s70, %s71
    %p80 = scmp.eq.s32.totalorder %s18, 0
    %p81 = por %p79, %p80
    %p82 = scmp.ne.s32.totalorder %s70, %s71
    %p83 = scmp.eq.s32.totalorder %s19, 1
    %p84 = por %p82, %p83
    %p86 = scmp.ne.s32.totalorder %s71, %s85
    %p87 = scmp.eq.s32.totalorder %s19, 0
    %p88 = por %p86, %p87
    %s90 = sadd.s32 %s89, 1
    %p93 = scmp.eq.s32.totalorder %s13, 1
    %p94 = scmp.ne.s32.totalorder %s89, %s91
    %p95 = scmp.eq.s32.totalorder %s13, 0
    %p96 = por %p94, %p95
    %p97 = scmp.ne.s32.totalorder %s89, %s91
    %p98 = scmp.eq.s32.totalorder %s18, 1
    %p99 = por %p97, %p98
    %p100 = scmp.ne.s32.totalorder %s91, %s92
    %p101 = scmp.eq.s32.totalorder %s18, 0
    %p102 = por %p100, %p101
    %p103 = scmp.ne.s32.totalorder %s91, %s92
    %p104 = scmp.eq.s32.totalorder %s19, 1
    %p105 = por %p103, %p104
    %p107 = scmp.ne.s32.totalorder %s92, %s106
    %p108 = scmp.eq.s32.totalorder %s19, 0
    %p109 = por %p107, %p108
    %s111 = sadd.s32 %s110, 1
    %p114 = scmp.eq.s32.totalorder %s13, 1
    %p115 = scmp.ne.s32.totalorder %s110, %s112
    %p116 = scmp.eq.s32.totalorder %s13, 0
    %p117 = por %p115, %p116
    %p118 = scmp.ne.s32.totalorder %s110, %s112
    %p119 = scmp.eq.s32.totalorder %s18, 1
    %p120 = por %p118, %p119
    %p121 = scmp.ne.s32.totalorder %s112, %s113
    %p122 = scmp.eq.s32.totalorder %s18, 0
    %p123 = por %p121, %p122
    %p124 = scmp.ne.s32.totalorder %s112, %s113
    %p125 = scmp.eq.s32.totalorder %s19, 1
    %p126 = por %p124, %p125
    %p128 = scmp.ne.s32.totalorder %s113, %s127
    %p129 = scmp.eq.s32.totalorder %s19, 0
    %p130 = por %p128, %p129
    %s131 = ssub.s32 %s13, %s20
    %p132 = scmp.eq.s32.totalorder %s131, 0
    %s134 = sadd.s32 %s133, 1
    %s135 = scalar_select %p132, %s133, %s134
    %p138 = pneg %p132
    %p139 = scmp.eq.s32.totalorder %s13, 1
    %p140 = por %p138, %p139
    %p141 = scmp.ne.s32.totalorder %s133, %s136
    %p142 = scmp.eq.s32.totalorder %s13, 0
    %p143 = por %p141, %p142
    %p144 = scmp.ne.s32.totalorder %s133, %s136
    %p145 = scmp.eq.s32.totalorder %s18, 1
    %p146 = por %p144, %p145
    %p147 = scmp.ne.s32.totalorder %s136, %s137
    %p148 = scmp.eq.s32.totalorder %s18, 0
    %p149 = por %p147, %p148
    %p150 = scmp.ne.s32.totalorder %s136, %s137
    %p151 = scmp.eq.s32.totalorder %s19, 1
    %p152 = por %p150, %p151
    %p154 = scmp.ne.s32.totalorder %s137, %s153
    %p155 = scmp.eq.s32.totalorder %s19, 0
    %p156 = por %p154, %p155
    %s157 = ssub.s32 %s13, %s20
    %p158 = scmp.eq.s32.totalorder %s157, 0
    %s160 = sadd.s32 %s159, 1
    %s161 = scalar_select %p158, %s159, %s160
    %p164 = pneg %p158
    %p165 = scmp.eq.s32.totalorder %s13, 1
    %p166 = por %p164, %p165
    %p167 = scmp.ne.s32.totalorder %s159, %s162
    %p168 = scmp.eq.s32.totalorder %s13, 0
    %p169 = por %p167, %p168
    %p170 = scmp.ne.s32.totalorder %s159, %s162
    %p171 = scmp.eq.s32.totalorder %s18, 1
    %p172 = por %p170, %p171
    %p173 = scmp.ne.s32.totalorder %s162, %s163
    %p174 = scmp.eq.s32.totalorder %s18, 0
    %p175 = por %p173, %p174
    %p176 = scmp.ne.s32.totalorder %s162, %s163
    %p177 = scmp.eq.s32.totalorder %s19, 1
    %p178 = por %p176, %p177
    %p180 = scmp.ne.s32.totalorder %s163, %s179
    %p181 = scmp.eq.s32.totalorder %s19, 0
    %p182 = por %p180, %p181
    %p183 = scmp.le.s32.totalorder 1, %s13
    %p184 = scmp.lt.s32.totalorder %s13, 3
    %p185 = pnand %p183, %p184
    %p186 = pneg %p185
    // Predicated region
    $region9: #{mbconv_forward.5} parent=5 // pred_check
      _
    $region10: #{mbconv_forward.5} parent=5 // pred_check_branch
      %188 = sbr.rel (%p185) target = $region12
    $region11: #{mbconv_forward.5} parent=5 // pred_region
      %s189 = ssub.s32 %s13, 1
      // Predicated region
      $region13: #{mbconv_forward.5} parent=11 // pred_check
        %p190 = pneg %p60
      $region14: #{mbconv_forward.5} parent=11 // pred_check_branch
        %192 = sbr.rel (%p190) target = $region16
      $region15: #{mbconv_forward.5} parent=11 // pred_region
        _
      $region16: #{mbconv_forward.5} parent=11 // pred_fallthru
        _
      // Predicated region
      $region17: #{mbconv_forward.5} parent=11 // pred_check
        %p193 = pneg %p81
      $region18: #{mbconv_forward.5} parent=11 // pred_check_branch
        %195 = sbr.rel (%p193) target = $region20
      $region19: #{mbconv_forward.5} parent=11 // pred_region
        _
      $region20: #{mbconv_forward.5} parent=11 // pred_fallthru
        _
      // Predicated region
      $region21: #{mbconv_forward.5} parent=11 // pred_check
        %p196 = pneg %p102
      $region22: #{mbconv_forward.5} parent=11 // pred_check_branch
        %198 = sbr.rel (%p196) target = $region24
      $region23: #{mbconv_forward.5} parent=11 // pred_region
        _
      $region24: #{mbconv_forward.5} parent=11 // pred_fallthru
        _
      // Predicated region
      $region25: #{mbconv_forward.5} parent=11 // pred_check
        %p199 = pneg %p123
      $region26: #{mbconv_forward.5} parent=11 // pred_check_branch
        %201 = sbr.rel (%p199) target = $region28
      $region27: #{mbconv_forward.5} parent=11 // pred_region
        _
      $region28: #{mbconv_forward.5} parent=11 // pred_fallthru
        _
    $region12: #{mbconv_forward.5} parent=5 // pred_fallthru
      _
    %p202 = scmp.lt.s32.totalorder %s13, 2
    // Predicated region
    $region29: #{mbconv_forward.5} parent=5 // pred_check
      %p203 = pneg %p202
    $region30: #{mbconv_forward.5} parent=5 // pred_check_branch
      %205 = sbr.rel (%p203) target = $region32
    $region31: #{mbconv_forward.5} parent=5 // pred_region
      // Predicated region
      $region33: #{mbconv_forward.5} parent=31 // pred_check
        %p206 = pneg %p33
      $region34: #{mbconv_forward.5} parent=31 // pred_check_branch
        %208 = sbr.rel (%p206) target = $region36
      $region35: #{mbconv_forward.5} parent=31 // pred_region
        %p209 = scmp.lt.s32.totalorder %s13, 1
        %s210 = scalar_select %p209, %s13, 1
        %s211 = smul.addr %s210, 32
        %s212 = smul.addr %s211, 8
        %s213 = scalar_lea.vmem %s0, %s212
      $region36: #{mbconv_forward.5} parent=31 // pred_fallthru
        _
    $region32: #{mbconv_forward.5} parent=5 // pred_fallthru
      _
    %p214 = scmp.le.s32.totalorder 1, %s13
    %p215 = scmp.lt.s32.totalorder %s13, 3
    %p216 = pnand %p214, %p215
    %p217 = pneg %p216
    // Predicated region
    $region37: #{mbconv_forward.5} parent=5 // pred_check
      _
    $region38: #{mbconv_forward.5} parent=5 // pred_check_branch
      %219 = sbr.rel (%p216) target = $region40
    $region39: #{mbconv_forward.5} parent=5 // pred_region
      %s220 = ssub.s32 %s13, 1
      %p221 = scmp.lt.s32.totalorder %s18, 1
      %s222 = scalar_select %p221, %s18, 1
      %s223 = smul.addr %s222, 32
      %s224 = smul.addr %s223, 8
      %s225 = scalar_lea.vmem %s0, %s224
      %p226 = pneg %p39
      %p227 = pneg %p36
      %p228 = pneg %p60
      %p229 = pneg %p57
      %p230 = pneg %p81
      %p231 = pneg %p78
      %p232 = pneg %p102
      %p233 = pneg %p99
      %p234 = pneg %p123
      %p235 = pneg %p120
      %p236 = pneg %p149
      %p237 = pneg %p146
      %p238 = scmp.lt.s32.totalorder %s18, 1
      %s239 = scalar_select %p238, %s18, 1
      %s240 = smul.addr %s239, 32
      %s241 = smul.addr %s240, 8
      %s242 = scalar_lea.vmem %s5, %s241
      %p243 = pneg %p175
      %p244 = pneg %p172
      %p245 = scmp.lt.s32.totalorder %s18, 1
      %s246 = scalar_select %p245, %s18, 1
      %s247 = smul.addr %s246, 2
      %s248 = scalar_lea.vmem %s6, %s247
      %p249 = scmp.lt.s32.totalorder %s18, 1
      %s250 = scalar_select %p249, %s18, 1
      %s251 = smul.addr %s250, 32
      %s252 = smul.addr %s251, 8
      %s253 = scalar_lea.vmem %s0, %s252
      %p254 = scmp.lt.s32.totalorder %s18, 1
      %s255 = scalar_select %p254, %s18, 1
      %s256 = smul.addr %s255, 32
      %s257 = smul.addr %s256, 8
      %s258 = scalar_lea.vmem %s5, %s257
      %p259 = scmp.lt.s32.totalorder %s18, 1
      %s260 = scalar_select %p259, %s18, 1
      %s261 = smul.addr %s260, 2
      %s262 = scalar_lea.vmem %s6, %s261
      %v263 = vld [vmem:[%s253] sm:$0xff]
      %v264 = vld [vmem:[%s253 + $0x8] sm:$0xff]
      %v265 = vld [vmem:[%s253 + $0x10] sm:$0xff]
      %v266 = vld [vmem:[%s253 + $0x18] sm:$0xff]
      %v267 = vld [vmem:[%s253 + $0x20] sm:$0xff]
      %v268 = vld [vmem:[%s253 + $0x28] sm:$0xff]
      %v269 = vld [vmem:[%s253 + $0x30] sm:$0xff]
      %v270 = vld [vmem:[%s253 + $0x38] sm:$0xff]
      %v271 = vld [vmem:[%s253 + $0x40] sm:$0xff]
      %v272 = vld [vmem:[%s253 + $0x48] sm:$0xff]
      %v273 = vld [vmem:[%s253 + $0x50] sm:$0xff]
      %v274 = vld [vmem:[%s253 + $0x58] sm:$0xff]
      %v275 = vld [vmem:[%s253 + $0x60] sm:$0xff]
      %v276 = vld [vmem:[%s253 + $0x68] sm:$0xff]
      %v277 = vld [vmem:[%s253 + $0x70] sm:$0xff]
      %v278 = vld [vmem:[%s253 + $0x78] sm:$0xff]
      %v279 = vld [vmem:[%s253 + $0x80] sm:$0xff]
      %v280 = vld [vmem:[%s253 + $0x88] sm:$0xff]
      %v281 = vld [vmem:[%s253 + $0x90] sm:$0xff]
      %v282 = vld [vmem:[%s253 + $0x98] sm:$0xff]
      %v283 = vld [vmem:[%s253 + $0xa0] sm:$0xff]
      %v284 = vld [vmem:[%s253 + $0xa8] sm:$0xff]
      %v285 = vld [vmem:[%s253 + $0xb0] sm:$0xff]
      %v286 = vld [vmem:[%s253 + $0xb8] sm:$0xff]
      %v287 = vld [vmem:[%s253 + $0xc0] sm:$0xff]
      %v288 = vld [vmem:[%s253 + $0xc8] sm:$0xff]
      %v289 = vld [vmem:[%s253 + $0xd0] sm:$0xff]
      %v290 = vld [vmem:[%s253 + $0xd8] sm:$0xff]
      %v291 = vld [vmem:[%s253 + $0xe0] sm:$0xff]
      %v292 = vld [vmem:[%s253 + $0xe8] sm:$0xff]
      %v293 = vld [vmem:[%s253 + $0xf0] sm:$0xff]
      %v294 = vld [vmem:[%s253 + $0xf8] sm:$0xff]
      %v295 = vld [vmem:[%s1] sm:$0xf]
      %vm296 = vcmask 31744
      %v298 = vsel %vm296, %v263, 0
      %v301 = vsel %vm296, %v264, 0
      %v304 = vsel %vm296, %v265, 0
      %v307 = vsel %vm296, %v266, 0
      %v310 = vsel %vm296, %v267, 0
      %v313 = vsel %vm296, %v268, 0
      %v316 = vsel %vm296, %v269, 0
      %v319 = vsel %vm296, %v270, 0
      %v322 = vsel %vm296, %v271, 0
      %v325 = vsel %vm296, %v272, 0
      %v328 = vsel %vm296, %v273, 0
      %v331 = vsel %vm296, %v274, 0
      %v334 = vsel %vm296, %v275, 0
      %v337 = vsel %vm296, %v276, 0
      %v340 = vsel %vm296, %v277, 0
      %v343 = vsel %vm296, %v278, 0
      %v346 = vsel %vm296, %v279, 0
      %v349 = vsel %vm296, %v280, 0
      %v352 = vsel %vm296, %v281, 0
      %v355 = vsel %vm296, %v282, 0
      %v358 = vsel %vm296, %v283, 0
      %v361 = vsel %vm296, %v284, 0
      %v364 = vsel %vm296, %v285, 0
      %v367 = vsel %vm296, %v286, 0
      %v370 = vsel %vm296, %v287, 0
      %v373 = vsel %vm296, %v288, 0
      %v376 = vsel %vm296, %v289, 0
      %v379 = vsel %vm296, %v290, 0
      %v382 = vsel %vm296, %v291, 0
      %v385 = vsel %vm296, %v292, 0
      %v388 = vsel %vm296, %v293, 0
      %v391 = vsel %vm296, %v294, 0
      %vm393 = vcmask 1043456
      %v395 = vsel %vm393, %v295, 0
      %397 = vmatprep.subr.mxu0 0.0
      %398 = vmatpush1.msra.mxu0 0.0
      %399 = vmatprep.subr.mxu0 0.0
      %400 = vmatpush1.msra.mxu0 0.0
      %401 = vmatprep.subr.mxu0 0.0
      %402 = vmatpush1.msra.mxu0 0.0
      %403 = vmatprep.subr.mxu0 0.0
      %404 = vmatpush1.msra.mxu0 0.0
      %405 = vmatprep.subr.mxu0 0.0
      %406 = vmatpush1.msra.mxu0 0.0
      %407 = vmatprep.subr.mxu0 0.0
      %408 = vmatpush1.msra.mxu0 0.0
      %409 = vmatprep.subr.mxu0 0.0
      %410 = vmatpush1.msra.mxu0 0.0
      %411 = vmatprep.subr.mxu0 0.0
      %412 = vmatpush1.msra.mxu0 0.0
      %413 = vmatprep.subr.mxu0 0.0
      %414 = vmatpush1.msra.mxu0 0.0
      %415 = vmatprep.subr.mxu0 0.0
      %416 = vmatpush1.msra.mxu0 0.0
      %417 = vmatprep.subr.mxu0 0.0
      %418 = vmatpush1.msra.mxu0 0.0
      %419 = vmatprep.subr.mxu0 0.0
      %420 = vmatpush1.msra.mxu0 0.0
      %421 = vmatprep.subr.mxu0 0.0
      %422 = vmatpush1.msra.mxu0 0.0
      %423 = vmatprep.subr.mxu0 0.0
      %424 = vmatpush1.msra.mxu0 0.0
      %425 = vmatprep.subr.mxu0 0.0
      %426 = vmatpush1.msra.mxu0 0.0
      %427 = vmatprep.subr.mxu0 0.0
      %428 = vmatpush1.msra.mxu0 %v395
      %429 = vmatprep.subr.mxu0 0.0
      %430 = vmatpush2.msra.mxu0 0.0
      %431 = vmatprep.subr.mxu0 0.0
      %432 = vmatpush2.msra.mxu0 0.0
      %433 = vmatprep.subr.mxu0 0.0
      %434 = vmatpush2.msra.mxu0 0.0
      %435 = vmatprep.subr.mxu0 0.0
      %436 = vmatpush2.msra.mxu0 0.0
      %437 = vmatprep.subr.mxu0 0.0
      %438 = vmatpush2.msra.mxu0 0.0
      %439 = vmatprep.subr.mxu0 0.0
      %440 = vmatpush2.msra.mxu0 0.0
      %441 = vmatprep.subr.mxu0 0.0
      %442 = vmatpush2.msra.mxu0 0.0
      %443 = vmatprep.subr.mxu0 0.0
      %444 = vmatpush2.msra.mxu0 0.0
      %445 = vmatprep.subr.mxu0 0.0
      %446 = vmatpush2.msra.mxu0 0.0
      %447 = vmatprep.subr.mxu0 0.0
      %448 = vmatpush2.msra.mxu0 0.0
      %449 = vmatprep.subr.mxu0 0.0
      %450 = vmatpush2.msra.mxu0 0.0
      %451 = vmatprep.subr.mxu0 0.0
      %452 = vmatpush2.msra.mxu0 0.0
      %453 = vmatprep.subr.mxu0 0.0
      %454 = vmatpush2.msra.mxu0 0.0
      %455 = vmatprep.subr.mxu0 0.0
      %456 = vmatpush2.msra.mxu0 0.0
      %457 = vmatprep.subr.mxu0 0.0
      %458 = vmatpush2.msra.mxu0 0.0
      %459 = vmatprep.subr.mxu0 0.0
      %460 = vmatpush2.msra.mxu0 0.0
      %461 = vmatprep.mubr.f32.mxu0 0.0
      %462 = vmatmul.mubr.f32.gmra.mxu0 %v298
      %v463 = vpop.f32.mrf.mxu0
      %v464 = vadd.f32 0.0, %v463
      %v465 = vpop.f32.mrf.mxu0
      %466 = vmatprep.mubr.f32.mxu0 0.0
      %467 = vmatmul.mubr.f32.gmra.mxu0 %v301
      %v468 = vpop.f32.mrf.mxu0
      %v469 = vadd.f32 0.0, %v468
      %v470 = vpop.f32.mrf.mxu0
      %471 = vmatprep.mubr.f32.mxu0 0.0
      %472 = vmatmul.mubr.f32.gmra.mxu0 %v304
      %v473 = vpop.f32.mrf.mxu0
      %v474 = vadd.f32 0.0, %v473
      %v475 = vpop.f32.mrf.mxu0
      %476 = vmatprep.mubr.f32.mxu0 0.0
      %477 = vmatmul.mubr.f32.gmra.mxu0 %v307
      %v478 = vpop.f32.mrf.mxu0
      %v479 = vadd.f32 0.0, %v478
      %v480 = vpop.f32.mrf.mxu0
      %481 = vmatprep.mubr.f32.mxu0 0.0
      %482 = vmatmul.mubr.f32.gmra.mxu0 %v310
      %v483 = vpop.f32.mrf.mxu0
      %v484 = vadd.f32 0.0, %v483
      %v485 = vpop.f32.mrf.mxu0
      %486 = vmatprep.mubr.f32.mxu0 0.0
      %487 = vmatmul.mubr.f32.gmra.mxu0 %v313
      %v488 = vpop.f32.mrf.mxu0
      %v489 = vadd.f32 0.0, %v488
      %v490 = vpop.f32.mrf.mxu0
      %491 = vmatprep.mubr.f32.mxu0 0.0
      %492 = vmatmul.mubr.f32.gmra.mxu0 %v316
      %v493 = vpop.f32.mrf.mxu0
      %v494 = vadd.f32 0.0, %v493
      %v495 = vpop.f32.mrf.mxu0
      %496 = vmatprep.mubr.f32.mxu0 0.0
      %497 = vmatmul.mubr.f32.gmra.mxu0 %v319
      %v498 = vpop.f32.mrf.mxu0
      %v499 = vadd.f32 0.0, %v498
      %v500 = vpop.f32.mrf.mxu0
      %501 = vmatprep.mubr.f32.mxu0 0.0
      %502 = vmatmul.mubr.f32.gmra.mxu0 %v322
      %v503 = vpop.f32.mrf.mxu0
      %v504 = vadd.f32 0.0, %v503
      %v505 = vpop.f32.mrf.mxu0
      %506 = vmatprep.mubr.f32.mxu0 0.0
      %507 = vmatmul.mubr.f32.gmra.mxu0 %v325
      %v508 = vpop.f32.mrf.mxu0
      %v509 = vadd.f32 0.0, %v508
      %v510 = vpop.f32.mrf.mxu0
      %511 = vmatprep.mubr.f32.mxu0 0.0
      %512 = vmatmul.mubr.f32.gmra.mxu0 %v328
      %v513 = vpop.f32.mrf.mxu0
      %v514 = vadd.f32 0.0, %v513
      %v515 = vpop.f32.mrf.mxu0
      %516 = vmatprep.mubr.f32.mxu0 0.0
      %517 = vmatmul.mubr.f32.gmra.mxu0 %v331
      %v518 = vpop.f32.mrf.mxu0
      %v519 = vadd.f32 0.0, %v518
      %v520 = vpop.f32.mrf.mxu0
      %521 = vmatprep.mubr.f32.mxu0 0.0
      %522 = vmatmul.mubr.f32.gmra.mxu0 %v334
      %v523 = vpop.f32.mrf.mxu0
      %v524 = vadd.f32 0.0, %v523
      %v525 = vpop.f32.mrf.mxu0
      %526 = vmatprep.mubr.f32.mxu0 0.0
      %527 = vmatmul.mubr.f32.gmra.mxu0 %v337
      %v528 = vpop.f32.mrf.mxu0
      %v529 = vadd.f32 0.0, %v528
      %v530 = vpop.f32.mrf.mxu0
      %531 = vmatprep.mubr.f32.mxu0 0.0
      %532 = vmatmul.mubr.f32.gmra.mxu0 %v340
      %v533 = vpop.f32.mrf.mxu0
      %v534 = vadd.f32 0.0, %v533
      %v535 = vpop.f32.mrf.mxu0
      %536 = vmatprep.mubr.f32.mxu0 0.0
      %537 = vmatmul.mubr.f32.gmra.mxu0 %v343
      %v538 = vpop.f32.mrf.mxu0
      %v539 = vadd.f32 0.0, %v538
      %v540 = vpop.f32.mrf.mxu0
      %541 = vmatprep.mubr.f32.mxu0 0.0
      %542 = vmatmul.mubr.f32.gmra.mxu0 %v346
      %v543 = vpop.f32.mrf.mxu0
      %v544 = vadd.f32 0.0, %v543
      %v545 = vpop.f32.mrf.mxu0
      %546 = vmatprep.mubr.f32.mxu0 0.0
      %547 = vmatmul.mubr.f32.gmra.mxu0 %v349
      %v548 = vpop.f32.mrf.mxu0
      %v549 = vadd.f32 0.0, %v548
      %v550 = vpop.f32.mrf.mxu0
      %551 = vmatprep.mubr.f32.mxu0 0.0
      %552 = vmatmul.mubr.f32.gmra.mxu0 %v352
      %v553 = vpop.f32.mrf.mxu0
      %v554 = vadd.f32 0.0, %v553
      %v555 = vpop.f32.mrf.mxu0
      %556 = vmatprep.mubr.f32.mxu0 0.0
      %557 = vmatmul.mubr.f32.gmra.mxu0 %v355
      %v558 = vpop.f32.mrf.mxu0
      %v559 = vadd.f32 0.0, %v558
      %v560 = vpop.f32.mrf.mxu0
      %561 = vmatprep.mubr.f32.mxu0 0.0
      %562 = vmatmul.mubr.f32.gmra.mxu0 %v358
      %v563 = vpop.f32.mrf.mxu0
      %v564 = vadd.f32 0.0, %v563
      %v565 = vpop.f32.mrf.mxu0
      %566 = vmatprep.mubr.f32.mxu0 0.0
      %567 = vmatmul.mubr.f32.gmra.mxu0 %v361
      %v568 = vpop.f32.mrf.mxu0
      %v569 = vadd.f32 0.0, %v568
      %v570 = vpop.f32.mrf.mxu0
      %571 = vmatprep.mubr.f32.mxu0 0.0
      %572 = vmatmul.mubr.f32.gmra.mxu0 %v364
      %v573 = vpop.f32.mrf.mxu0
      %v574 = vadd.f32 0.0, %v573
      %v575 = vpop.f32.mrf.mxu0
      %576 = vmatprep.mubr.f32.mxu0 0.0
      %577 = vmatmul.mubr.f32.gmra.mxu0 %v367
      %v578 = vpop.f32.mrf.mxu0
      %v579 = vadd.f32 0.0, %v578
      %v580 = vpop.f32.mrf.mxu0
      %581 = vmatprep.mubr.f32.mxu0 0.0
      %582 = vmatmul.mubr.f32.gmra.mxu0 %v370
      %v583 = vpop.f32.mrf.mxu0
      %v584 = vadd.f32 0.0, %v583
      %v585 = vpop.f32.mrf.mxu0
      %586 = vmatprep.mubr.f32.mxu0 0.0
      %587 = vmatmul.mubr.f32.gmra.mxu0 %v373
      %v588 = vpop.f32.mrf.mxu0
      %v589 = vadd.f32 0.0, %v588
      %v590 = vpop.f32.mrf.mxu0
      %591 = vmatprep.mubr.f32.mxu0 0.0
      %592 = vmatmul.mubr.f32.gmra.mxu0 %v376
      %v593 = vpop.f32.mrf.mxu0
      %v594 = vadd.f32 0.0, %v593
      %v595 = vpop.f32.mrf.mxu0
      %596 = vmatprep.mubr.f32.mxu0 0.0
      %597 = vmatmul.mubr.f32.gmra.mxu0 %v379
      %v598 = vpop.f32.mrf.mxu0
      %v599 = vadd.f32 0.0, %v598
      %v600 = vpop.f32.mrf.mxu0
      %601 = vmatprep.mubr.f32.mxu0 0.0
      %602 = vmatmul.mubr.f32.gmra.mxu0 %v382
      %v603 = vpop.f32.mrf.mxu0
      %v604 = vadd.f32 0.0, %v603
      %v605 = vpop.f32.mrf.mxu0
      %606 = vmatprep.mubr.f32.mxu0 0.0
      %607 = vmatmul.mubr.f32.gmra.mxu0 %v385
      %v608 = vpop.f32.mrf.mxu0
      %v609 = vadd.f32 0.0, %v608
      %v610 = vpop.f32.mrf.mxu0
      %611 = vmatprep.mubr.f32.mxu0 0.0
      %612 = vmatmul.mubr.f32.gmra.mxu0 %v388
      %v613 = vpop.f32.mrf.mxu0
      %v614 = vadd.f32 0.0, %v613
      %v615 = vpop.f32.mrf.mxu0
      %616 = vmatprep.mubr.f32.mxu0 0.0
      %617 = vmatmul.mubr.f32.gmra.mxu0 %v391
      %v618 = vpop.f32.mrf.mxu0
      %v619 = vadd.f32 0.0, %v618
      %v620 = vpop.f32.mrf.mxu0
      %621 = vdwg.mxu0
      %v622 = vld [vmem:[%s2] sm:$0x1]
      %v624 = vlaneseq
      %v625 = vshrl.u32 %v624, 7
      %v626 = vsub.s32 0, %v625
      %v627 = vrot.slane %v622, %v626
      %v629 = vmul.f32 %v464, %v627
      %v630 = vmul.f32 %v469, %v627
      %v631 = vmul.f32 %v474, %v627
      %v632 = vmul.f32 %v479, %v627
      %v633 = vmul.f32 %v484, %v627
      %v634 = vmul.f32 %v489, %v627
      %v635 = vmul.f32 %v494, %v627
      %v636 = vmul.f32 %v499, %v627
      %v637 = vmul.f32 %v504, %v627
      %v638 = vmul.f32 %v509, %v627
      %v639 = vmul.f32 %v514, %v627
      %v640 = vmul.f32 %v519, %v627
      %v641 = vmul.f32 %v524, %v627
      %v642 = vmul.f32 %v529, %v627
      %v643 = vmul.f32 %v534, %v627
      %v644 = vmul.f32 %v539, %v627
      %v645 = vmul.f32 %v544, %v627
      %v646 = vmul.f32 %v549, %v627
      %v647 = vmul.f32 %v554, %v627
      %v648 = vmul.f32 %v559, %v627
      %v649 = vmul.f32 %v564, %v627
      %v650 = vmul.f32 %v569, %v627
      %v651 = vmul.f32 %v574, %v627
      %v652 = vmul.f32 %v579, %v627
      %v653 = vmul.f32 %v584, %v627
      %v654 = vmul.f32 %v589, %v627
      %v655 = vmul.f32 %v594, %v627
      %v656 = vmul.f32 %v599, %v627
      %v657 = vmul.f32 %v604, %v627
      %v658 = vmul.f32 %v609, %v627
      %v659 = vmul.f32 %v614, %v627
      %v660 = vmul.f32 %v619, %v627
      %v661 = vld [vmem:[%s3] sm:$0x1]
      %v663 = vlaneseq
      %v664 = vshrl.u32 %v663, 7
      %v665 = vsub.s32 0, %v664
      %v666 = vrot.slane %v661, %v665
      %v668 = vadd.f32 %v629, %v666
      %v669 = vadd.f32 %v630, %v666
      %v670 = vadd.f32 %v631, %v666
      %v671 = vadd.f32 %v632, %v666
      %v672 = vadd.f32 %v633, %v666
      %v673 = vadd.f32 %v634, %v666
      %v674 = vadd.f32 %v635, %v666
      %v675 = vadd.f32 %v636, %v666
      %v676 = vadd.f32 %v637, %v666
      %v677 = vadd.f32 %v638, %v666
      %v678 = vadd.f32 %v639, %v666
      %v679 = vadd.f32 %v640, %v666
      %v680 = vadd.f32 %v641, %v666
      %v681 = vadd.f32 %v642, %v666
      %v682 = vadd.f32 %v643, %v666
      %v683 = vadd.f32 %v644, %v666
      %v684 = vadd.f32 %v645, %v666
      %v685 = vadd.f32 %v646, %v666
      %v686 = vadd.f32 %v647, %v666
      %v687 = vadd.f32 %v648, %v666
      %v688 = vadd.f32 %v649, %v666
      %v689 = vadd.f32 %v650, %v666
      %v690 = vadd.f32 %v651, %v666
      %v691 = vadd.f32 %v652, %v666
      %v692 = vadd.f32 %v653, %v666
      %v693 = vadd.f32 %v654, %v666
      %v694 = vadd.f32 %v655, %v666
      %v695 = vadd.f32 %v656, %v666
      %v696 = vadd.f32 %v657, %v666
      %v697 = vadd.f32 %v658, %v666
      %v698 = vadd.f32 %v659, %v666
      %v699 = vadd.f32 %v660, %v666
      %v700 = vsub.f32 0.0, %v668
      %v701 = vsub.f32 0.0, %v669
      %v702 = vsub.f32 0.0, %v670
      %v703 = vsub.f32 0.0, %v671
      %v704 = vsub.f32 0.0, %v672
      %v705 = vsub.f32 0.0, %v673
      %v706 = vsub.f32 0.0, %v674
      %v707 = vsub.f32 0.0, %v675
      %v708 = vsub.f32 0.0, %v676
      %v709 = vsub.f32 0.0, %v677
      %v710 = vsub.f32 0.0, %v678
      %v711 = vsub.f32 0.0, %v679
      %v712 = vsub.f32 0.0, %v680
      %v713 = vsub.f32 0.0, %v681
      %v714 = vsub.f32 0.0, %v682
      %v715 = vsub.f32 0.0, %v683
      %v716 = vsub.f32 0.0, %v684
      %v717 = vsub.f32 0.0, %v685
      %v718 = vsub.f32 0.0, %v686
      %v719 = vsub.f32 0.0, %v687
      %v720 = vsub.f32 0.0, %v688
      %v721 = vsub.f32 0.0, %v689
      %v722 = vsub.f32 0.0, %v690
      %v723 = vsub.f32 0.0, %v691
      %v724 = vsub.f32 0.0, %v692
      %v725 = vsub.f32 0.0, %v693
      %v726 = vsub.f32 0.0, %v694
      %v727 = vsub.f32 0.0, %v695
      %v728 = vsub.f32 0.0, %v696
      %v729 = vsub.f32 0.0, %v697
      %v730 = vsub.f32 0.0, %v698
      %v731 = vsub.f32 0.0, %v699
      %v732 = vmul.f32 %v700, 1.442695
      %v733 = vpow.pop %v732
      %v734 = vmul.f32 %v701, 1.442695
      %v735 = vpow.pop %v734
      %v736 = vmul.f32 %v702, 1.442695
      %v737 = vpow.pop %v736
      %v738 = vmul.f32 %v703, 1.442695
      %v739 = vpow.pop %v738
      %v740 = vmul.f32 %v704, 1.442695
      %v741 = vpow.pop %v740
      %v742 = vmul.f32 %v705, 1.442695
      %v743 = vpow.pop %v742
      %v744 = vmul.f32 %v706, 1.442695
      %v745 = vpow.pop %v744
      %v746 = vmul.f32 %v707, 1.442695
      %v747 = vpow.pop %v746
      %v748 = vmul.f32 %v708, 1.442695
      %v749 = vpow.pop %v748
      %v750 = vmul.f32 %v709, 1.442695
      %v751 = vpow.pop %v750
      %v752 = vmul.f32 %v710, 1.442695
      %v753 = vpow.pop %v752
      %v754 = vmul.f32 %v711, 1.442695
      %v755 = vpow.pop %v754
      %v756 = vmul.f32 %v712, 1.442695
      %v757 = vpow.pop %v756
      %v758 = vmul.f32 %v713, 1.442695
      %v759 = vpow.pop %v758
      %v760 = vmul.f32 %v714, 1.442695
      %v761 = vpow.pop %v760
      %v762 = vmul.f32 %v715, 1.442695
      %v763 = vpow.pop %v762
      %v764 = vmul.f32 %v716, 1.442695
      %v765 = vpow.pop %v764
      %v766 = vmul.f32 %v717, 1.442695
      %v767 = vpow.pop %v766
      %v768 = vmul.f32 %v718, 1.442695
      %v769 = vpow.pop %v768
      %v770 = vmul.f32 %v719, 1.442695
      %v771 = vpow.pop %v770
      %v772 = vmul.f32 %v720, 1.442695
      %v773 = vpow.pop %v772
      %v774 = vmul.f32 %v721, 1.442695
      %v775 = vpow.pop %v774
      %v776 = vmul.f32 %v722, 1.442695
      %v777 = vpow.pop %v776
      %v778 = vmul.f32 %v723, 1.442695
      %v779 = vpow.pop %v778
      %v780 = vmul.f32 %v724, 1.442695
      %v781 = vpow.pop %v780
      %v782 = vmul.f32 %v725, 1.442695
      %v783 = vpow.pop %v782
      %v784 = vmul.f32 %v726, 1.442695
      %v785 = vpow.pop %v784
      %v786 = vmul.f32 %v727, 1.442695
      %v787 = vpow.pop %v786
      %v788 = vmul.f32 %v728, 1.442695
      %v789 = vpow.pop %v788
      %v790 = vmul.f32 %v729, 1.442695
      %v791 = vpow.pop %v790
      %v792 = vmul.f32 %v730, 1.442695
      %v793 = vpow.pop %v792
      %v794 = vmul.f32 %v731, 1.442695
      %v795 = vpow.pop %v794
      %v796 = vadd.f32 %v733, 1.0
      %v797 = vadd.f32 %v735, 1.0
      %v798 = vadd.f32 %v737, 1.0
      %v799 = vadd.f32 %v739, 1.0
      %v800 = vadd.f32 %v741, 1.0
      %v801 = vadd.f32 %v743, 1.0
      %v802 = vadd.f32 %v745, 1.0
      %v803 = vadd.f32 %v747, 1.0
      %v804 = vadd.f32 %v749, 1.0
      %v805 = vadd.f32 %v751, 1.0
      %v806 = vadd.f32 %v753, 1.0
      %v807 = vadd.f32 %v755, 1.0
      %v808 = vadd.f32 %v757, 1.0
      %v809 = vadd.f32 %v759, 1.0
      %v810 = vadd.f32 %v761, 1.0
      %v811 = vadd.f32 %v763, 1.0
      %v812 = vadd.f32 %v765, 1.0
      %v813 = vadd.f32 %v767, 1.0
      %v814 = vadd.f32 %v769, 1.0
      %v815 = vadd.f32 %v771, 1.0
      %v816 = vadd.f32 %v773, 1.0
      %v817 = vadd.f32 %v775, 1.0
      %v818 = vadd.f32 %v777, 1.0
      %v819 = vadd.f32 %v779, 1.0
      %v820 = vadd.f32 %v781, 1.0
      %v821 = vadd.f32 %v783, 1.0
      %v822 = vadd.f32 %v785, 1.0
      %v823 = vadd.f32 %v787, 1.0
      %v824 = vadd.f32 %v789, 1.0
      %v825 = vadd.f32 %v791, 1.0
      %v826 = vadd.f32 %v793, 1.0
      %v827 = vadd.f32 %v795, 1.0
      %v828 = vrcp.pop %v796
      %v829 = vmul.f32 1.0, %v828
      %v830 = vrcp.pop %v797
      %v831 = vmul.f32 1.0, %v830
      %v832 = vrcp.pop %v798
      %v833 = vmul.f32 1.0, %v832
      %v834 = vrcp.pop %v799
      %v835 = vmul.f32 1.0, %v834
      %v836 = vrcp.pop %v800
      %v837 = vmul.f32 1.0, %v836
      %v838 = vrcp.pop %v801
      %v839 = vmul.f32 1.0, %v838
      %v840 = vrcp.pop %v802
      %v841 = vmul.f32 1.0, %v840
      %v842 = vrcp.pop %v803
      %v843 = vmul.f32 1.0, %v842
      %v844 = vrcp.pop %v804
      %v845 = vmul.f32 1.0, %v844
      %v846 = vrcp.pop %v805
      %v847 = vmul.f32 1.0, %v846
      %v848 = vrcp.pop %v806
      %v849 = vmul.f32 1.0, %v848
      %v850 = vrcp.pop %v807
      %v851 = vmul.f32 1.0, %v850
      %v852 = vrcp.pop %v808
      %v853 = vmul.f32 1.0, %v852
      %v854 = vrcp.pop %v809
      %v855 = vmul.f32 1.0, %v854
      %v856 = vrcp.pop %v810
      %v857 = vmul.f32 1.0, %v856
      %v858 = vrcp.pop %v811
      %v859 = vmul.f32 1.0, %v858
      %v860 = vrcp.pop %v812
      %v861 = vmul.f32 1.0, %v860
      %v862 = vrcp.pop %v813
      %v863 = vmul.f32 1.0, %v862
      %v864 = vrcp.pop %v814
      %v865 = vmul.f32 1.0, %v864
      %v866 = vrcp.pop %v815
      %v867 = vmul.f32 1.0, %v866
      %v868 = vrcp.pop %v816
      %v869 = vmul.f32 1.0, %v868
      %v870 = vrcp.pop %v817
      %v871 = vmul.f32 1.0, %v870
      %v872 = vrcp.pop %v818
      %v873 = vmul.f32 1.0, %v872
      %v874 = vrcp.pop %v819
      %v875 = vmul.f32 1.0, %v874
      %v876 = vrcp.pop %v820
      %v877 = vmul.f32 1.0, %v876
      %v878 = vrcp.pop %v821
      %v879 = vmul.f32 1.0, %v878
      %v880 = vrcp.pop %v822
      %v881 = vmul.f32 1.0, %v880
      %v882 = vrcp.pop %v823
      %v883 = vmul.f32 1.0, %v882
      %v884 = vrcp.pop %v824
      %v885 = vmul.f32 1.0, %v884
      %v886 = vrcp.pop %v825
      %v887 = vmul.f32 1.0, %v886
      %v888 = vrcp.pop %v826
      %v889 = vmul.f32 1.0, %v888
      %v890 = vrcp.pop %v827
      %v891 = vmul.f32 1.0, %v890
      %v892 = vmul.f32 %v668, %v829
      %v893 = vmul.f32 %v669, %v831
      %v894 = vmul.f32 %v670, %v833
      %v895 = vmul.f32 %v671, %v835
      %v896 = vmul.f32 %v672, %v837
      %v897 = vmul.f32 %v673, %v839
      %v898 = vmul.f32 %v674, %v841
      %v899 = vmul.f32 %v675, %v843
      %v900 = vmul.f32 %v676, %v845
      %v901 = vmul.f32 %v677, %v847
      %v902 = vmul.f32 %v678, %v849
      %v903 = vmul.f32 %v679, %v851
      %v904 = vmul.f32 %v680, %v853
      %v905 = vmul.f32 %v681, %v855
      %v906 = vmul.f32 %v682, %v857
      %v907 = vmul.f32 %v683, %v859
      %v908 = vmul.f32 %v684, %v861
      %v909 = vmul.f32 %v685, %v863
      %v910 = vmul.f32 %v686, %v865
      %v911 = vmul.f32 %v687, %v867
      %v912 = vmul.f32 %v688, %v869
      %v913 = vmul.f32 %v689, %v871
      %v914 = vmul.f32 %v690, %v873
      %v915 = vmul.f32 %v691, %v875
      %v916 = vmul.f32 %v692, %v877
      %v917 = vmul.f32 %v693, %v879
      %v918 = vmul.f32 %v694, %v881
      %v919 = vmul.f32 %v695, %v883
      %v920 = vmul.f32 %v696, %v885
      %v921 = vmul.f32 %v697, %v887
      %v922 = vmul.f32 %v698, %v889
      %v923 = vmul.f32 %v699, %v891
      %vm924 = vcmask 130048
      %925 = vst.msk [vmem:[#allocation2] sm:$0xff] %vm924, 0.0
      %926 = vst.msk [vmem:[#allocation2 + $0x8] sm:$0xff] %vm924, 0.0
      %vm927 = vcmask 123904
      %928 = vst.msk [vmem:[#allocation2 + $0x10] sm:$0x3] %vm927, 0.0
      %s929 = scalar_lea.vmem [#allocation2], 408
      %930 = vst.msk [vmem:[%s929] sm:$0xff] %vm924, 0.0
      %931 = vst.msk [vmem:[%s929 + $0x8] sm:$0xff] %vm924, 0.0
      %932 = vst.msk [vmem:[%s929 + $0x10] sm:$0x3] %vm927, 0.0
      %vm933 = vcmask 122880
      %934 = vst.msk [vmem:[#allocation2] sm:$0x1] %vm933, 0.0
      %935 = vst.msk [vmem:[#allocation2 + $0x18] sm:$0x1] %vm933, 0.0
      %936 = vst.msk [vmem:[#allocation2 + $0x30] sm:$0x1] %vm933, 0.0
      %937 = vst.msk [vmem:[#allocation2 + $0x48] sm:$0x1] %vm933, 0.0
      %938 = vst.msk [vmem:[#allocation2 + $0x60] sm:$0x1] %vm933, 0.0
      %939 = vst.msk [vmem:[#allocation2 + $0x78] sm:$0x1] %vm933, 0.0
      %940 = vst.msk [vmem:[#allocation2 + $0x90] sm:$0x1] %vm933, 0.0
      %941 = vst.msk [vmem:[#allocation2 + $0xa8] sm:$0x1] %vm933, 0.0
      %942 = vst.msk [vmem:[#allocation2 + $0xc0] sm:$0x1] %vm933, 0.0
      %943 = vst.msk [vmem:[#allocation2 + $0xd8] sm:$0x1] %vm933, 0.0
      %944 = vst.msk [vmem:[#allocation2 + $0xf0] sm:$0x1] %vm933, 0.0
      %945 = vst.msk [vmem:[#allocation2 + $0x108] sm:$0x1] %vm933, 0.0
      %946 = vst.msk [vmem:[#allocation2 + $0x120] sm:$0x1] %vm933, 0.0
      %947 = vst.msk [vmem:[#allocation2 + $0x138] sm:$0x1] %vm933, 0.0
      %948 = vst.msk [vmem:[#allocation2 + $0x150] sm:$0x1] %vm933, 0.0
      %949 = vst.msk [vmem:[#allocation2 + $0x168] sm:$0x1] %vm933, 0.0
      %950 = vst.msk [vmem:[#allocation2 + $0x180] sm:$0x1] %vm933, 0.0
      %951 = vst.msk [vmem:[#allocation2 + $0x198] sm:$0x1] %vm933, 0.0
      %952 = vst.msk [vmem:[#allocation2 + $0x11] sm:$0x1] %vm933, 0.0
      %953 = vst.msk [vmem:[#allocation2 + $0x29] sm:$0x1] %vm933, 0.0
      %954 = vst.msk [vmem:[#allocation2 + $0x41] sm:$0x1] %vm933, 0.0
      %955 = vst.msk [vmem:[#allocation2 + $0x59] sm:$0x1] %vm933, 0.0
      %956 = vst.msk [vmem:[#allocation2 + $0x71] sm:$0x1] %vm933, 0.0
      %957 = vst.msk [vmem:[#allocation2 + $0x89] sm:$0x1] %vm933, 0.0
      %958 = vst.msk [vmem:[#allocation2 + $0xa1] sm:$0x1] %vm933, 0.0
      %959 = vst.msk [vmem:[#allocation2 + $0xb9] sm:$0x1] %vm933, 0.0
      %960 = vst.msk [vmem:[#allocation2 + $0xd1] sm:$0x1] %vm933, 0.0
      %961 = vst.msk [vmem:[#allocation2 + $0xe9] sm:$0x1] %vm933, 0.0
      %962 = vst.msk [vmem:[#allocation2 + $0x101] sm:$0x1] %vm933, 0.0
      %963 = vst.msk [vmem:[#allocation2 + $0x119] sm:$0x1] %vm933, 0.0
      %964 = vst.msk [vmem:[#allocation2 + $0x131] sm:$0x1] %vm933, 0.0
      %965 = vst.msk [vmem:[#allocation2 + $0x149] sm:$0x1] %vm933, 0.0
      %966 = vst.msk [vmem:[#allocation2 + $0x161] sm:$0x1] %vm933, 0.0
      %967 = vst.msk [vmem:[#allocation2 + $0x179] sm:$0x1] %vm933, 0.0
      %968 = vst.msk [vmem:[#allocation2 + $0x191] sm:$0x1] %vm933, 0.0
      %969 = vst.msk [vmem:[#allocation2 + $0x1a9] sm:$0x1] %vm933, 0.0
      %s970 = scalar_lea.vmem [#allocation2], 24
      %971 = vst.msk [vmem:[%s970 + $0x1] sm:$0xff] %vm924, %v892
      %972 = vst.msk [vmem:[%s970 + $0x9] sm:$0xff] %vm924, %v893
      %973 = vst.msk [vmem:[%s970 + $0x19] sm:$0xff] %vm924, %v894
      %974 = vst.msk [vmem:[%s970 + $0x21] sm:$0xff] %vm924, %v895
      %975 = vst.msk [vmem:[%s970 + $0x31] sm:$0xff] %vm924, %v896
      %976 = vst.msk [vmem:[%s970 + $0x39] sm:$0xff] %vm924, %v897
      %977 = vst.msk [vmem:[%s970 + $0x49] sm:$0xff] %vm924, %v898
      %978 = vst.msk [vmem:[%s970 + $0x51] sm:$0xff] %vm924, %v899
      %979 = vst.msk [vmem:[%s970 + $0x61] sm:$0xff] %vm924, %v900
      %980 = vst.msk [vmem:[%s970 + $0x69] sm:$0xff] %vm924, %v901
      %981 = vst.msk [vmem:[%s970 + $0x79] sm:$0xff] %vm924, %v902
      %982 = vst.msk [vmem:[%s970 + $0x81] sm:$0xff] %vm924, %v903
      %983 = vst.msk [vmem:[%s970 + $0x91] sm:$0xff] %vm924, %v904
      %984 = vst.msk [vmem:[%s970 + $0x99] sm:$0xff] %vm924, %v905
      %985 = vst.msk [vmem:[%s970 + $0xa9] sm:$0xff] %vm924, %v906
      %986 = vst.msk [vmem:[%s970 + $0xb1] sm:$0xff] %vm924, %v907
      %987 = vst.msk [vmem:[%s970 + $0xc1] sm:$0xff] %vm924, %v908
      %988 = vst.msk [vmem:[%s970 + $0xc9] sm:$0xff] %vm924, %v909
      %989 = vst.msk [vmem:[%s970 + $0xd9] sm:$0xff] %vm924, %v910
      %990 = vst.msk [vmem:[%s970 + $0xe1] sm:$0xff] %vm924, %v911
      %991 = vst.msk [vmem:[%s970 + $0xf1] sm:$0xff] %vm924, %v912
      %992 = vst.msk [vmem:[%s970 + $0xf9] sm:$0xff] %vm924, %v913
      %993 = vst.msk [vmem:[%s970 + $0x109] sm:$0xff] %vm924, %v914
      %994 = vst.msk [vmem:[%s970 + $0x111] sm:$0xff] %vm924, %v915
      %995 = vst.msk [vmem:[%s970 + $0x121] sm:$0xff] %vm924, %v916
      %996 = vst.msk [vmem:[%s970 + $0x129] sm:$0xff] %vm924, %v917
      %997 = vst.msk [vmem:[%s970 + $0x139] sm:$0xff] %vm924, %v918
      %998 = vst.msk [vmem:[%s970 + $0x141] sm:$0xff] %vm924, %v919
      %999 = vst.msk [vmem:[%s970 + $0x151] sm:$0xff] %vm924, %v920
      %1000 = vst.msk [vmem:[%s970 + $0x159] sm:$0xff] %vm924, %v921
      %1001 = vst.msk [vmem:[%s970 + $0x169] sm:$0xff] %vm924, %v922
      %1002 = vst.msk [vmem:[%s970 + $0x171] sm:$0xff] %vm924, %v923
      %v1003 = vld [vmem:[%s4] sm:$0xff]
      %v1004 = vld [vmem:[%s4 + $0x8] sm:$0x1]
      %v1005 = vld [vmem:[#allocation2] sm:$0xff]
      %v1006 = vld [vmem:[#allocation2 + $0x8] sm:$0xff]
      %v1007 = vld [vmem:[#allocation2 + $0x10] sm:$0x3]
      %v1008 = vld [vmem:[#allocation2 + $0x18] sm:$0xff]
      %v1009 = vld [vmem:[#allocation2 + $0x20] sm:$0xff]
      %v1010 = vld [vmem:[#allocation2 + $0x28] sm:$0x3]
      %v1011 = vld [vmem:[#allocation2 + $0x30] sm:$0xff]
      %v1012 = vld [vmem:[#allocation2 + $0x38] sm:$0xff]
      %v1013 = vld [vmem:[#allocation2 + $0x40] sm:$0x3]
      %v1014 = vld [vmem:[#allocation2 + $0x48] sm:$0xff]
      %v1015 = vld [vmem:[#allocation2 + $0x50] sm:$0xff]
      %v1016 = vld [vmem:[#allocation2 + $0x58] sm:$0x3]
      %v1017 = vld [vmem:[#allocation2 + $0x60] sm:$0xff]
      %v1018 = vld [vmem:[#allocation2 + $0x68] sm:$0xff]
      %v1019 = vld [vmem:[#allocation2 + $0x70] sm:$0x3]
      %v1020 = vld [vmem:[#allocation2 + $0x78] sm:$0xff]
      %v1021 = vld [vmem:[#allocation2 + $0x80] sm:$0xff]
      %v1022 = vld [vmem:[#allocation2 + $0x88] sm:$0x3]
      %v1023 = vld [vmem:[#allocation2 + $0x90] sm:$0xff]
      %v1024 = vld [vmem:[#allocation2 + $0x98] sm:$0xff]
      %v1025 = vld [vmem:[#allocation2 + $0xa0] sm:$0x3]
      %v1026 = vld [vmem:[#allocation2 + $0xa8] sm:$0xff]
      %v1027 = vld [vmem:[#allocation2 + $0xb0] sm:$0xff]
      %v1028 = vld [vmem:[#allocation2 + $0xb8] sm:$0x3]
      %v1029 = vld [vmem:[#allocation2 + $0xc0] sm:$0xff]
      %v1030 = vld [vmem:[#allocation2 + $0xc8] sm:$0xff]
      %v1031 = vld [vmem:[#allocation2 + $0xd0] sm:$0x3]
      %v1032 = vld [vmem:[#allocation2 + $0xd8] sm:$0xff]
      %v1033 = vld [vmem:[#allocation2 + $0xe0] sm:$0xff]
      %v1034 = vld [vmem:[#allocation2 + $0xe8] sm:$0x3]
      %v1035 = vld [vmem:[#allocation2 + $0xf0] sm:$0xff]
      %v1036 = vld [vmem:[#allocation2 + $0xf8] sm:$0xff]
      %v1037 = vld [vmem:[#allocation2 + $0x100] sm:$0x3]
      %v1038 = vld [vmem:[#allocation2 + $0x108] sm:$0xff]
      %v1039 = vld [vmem:[#allocation2 + $0x110] sm:$0xff]
      %v1040 = vld [vmem:[#allocation2 + $0x118] sm:$0x3]
      %v1041 = vld [vmem:[#allocation2 + $0x120] sm:$0xff]
      %v1042 = vld [vmem:[#allocation2 + $0x128] sm:$0xff]
      %v1043 = vld [vmem:[#allocation2 + $0x130] sm:$0x3]
      %v1044 = vld [vmem:[#allocation2 + $0x138] sm:$0xff]
      %v1045 = vld [vmem:[#allocation2 + $0x140] sm:$0xff]
      %v1046 = vld [vmem:[#allocation2 + $0x148] sm:$0x3]
      %v1047 = vld [vmem:[#allocation2 + $0x150] sm:$0xff]
      %v1048 = vld [vmem:[#allocation2 + $0x158] sm:$0xff]
      %v1049 = vld [vmem:[#allocation2 + $0x160] sm:$0x3]
      %v1050 = vld [vmem:[#allocation2 + $0x168] sm:$0xff]
      %v1051 = vld [vmem:[#allocation2 + $0x170] sm:$0xff]
      %v1052 = vld [vmem:[#allocation2 + $0x178] sm:$0x3]
      %v1053 = vlaneseq
      %v1054 = vshrl.u32 %v1053, 7
      %v1055 = vsub.s32 0, %v1054
      %v1056 = vrot.slane %v1003, %v1055
      %v1057 = vmul.f32 %v1005, %v1056
      %v1058 = vmul.f32 %v1006, %v1056
      %v1059 = vmul.f32 %v1008, %v1056
      %v1060 = vmul.f32 %v1009, %v1056
      %v1061 = vmul.f32 %v1011, %v1056
      %v1062 = vmul.f32 %v1012, %v1056
      %v1063 = vmul.f32 %v1014, %v1056
      %v1064 = vmul.f32 %v1015, %v1056
      %v1065 = vmul.f32 %v1017, %v1056
      %v1066 = vmul.f32 %v1018, %v1056
      %v1067 = vmul.f32 %v1020, %v1056
      %v1068 = vmul.f32 %v1021, %v1056
      %v1069 = vmul.f32 %v1023, %v1056
      %v1070 = vmul.f32 %v1024, %v1056
      %v1071 = vmul.f32 %v1026, %v1056
      %v1072 = vmul.f32 %v1027, %v1056
      %v1073 = vmul.f32 %v1029, %v1056
      %v1074 = vmul.f32 %v1030, %v1056
      %v1075 = vmul.f32 %v1032, %v1056
      %v1076 = vmul.f32 %v1033, %v1056
      %v1077 = vmul.f32 %v1035, %v1056
      %v1078 = vmul.f32 %v1036, %v1056
      %v1079 = vmul.f32 %v1038, %v1056
      %v1080 = vmul.f32 %v1039, %v1056
      %v1081 = vmul.f32 %v1041, %v1056
      %v1082 = vmul.f32 %v1042, %v1056
      %v1083 = vmul.f32 %v1044, %v1056
      %v1084 = vmul.f32 %v1045, %v1056
      %v1085 = vmul.f32 %v1047, %v1056
      %v1086 = vmul.f32 %v1048, %v1056
      %v1087 = vmul.f32 %v1050, %v1056
      %v1088 = vmul.f32 %v1051, %v1056
      %v1089 = vadd.f32 %v1057, 0.0
      %v1090 = vadd.f32 %v1058, 0.0
      %v1091 = vadd.f32 %v1059, 0.0
      %v1092 = vadd.f32 %v1060, 0.0
      %v1093 = vadd.f32 %v1061, 0.0
      %v1094 = vadd.f32 %v1062, 0.0
      %v1095 = vadd.f32 %v1063, 0.0
      %v1096 = vadd.f32 %v1064, 0.0
      %v1097 = vadd.f32 %v1065, 0.0
      %v1098 = vadd.f32 %v1066, 0.0
      %v1099 = vadd.f32 %v1067, 0.0
      %v1100 = vadd.f32 %v1068, 0.0
      %v1101 = vadd.f32 %v1069, 0.0
      %v1102 = vadd.f32 %v1070, 0.0
      %v1103 = vadd.f32 %v1071, 0.0
      %v1104 = vadd.f32 %v1072, 0.0
      %v1105 = vadd.f32 %v1073, 0.0
      %v1106 = vadd.f32 %v1074, 0.0
      %v1107 = vadd.f32 %v1075, 0.0
      %v1108 = vadd.f32 %v1076, 0.0
      %v1109 = vadd.f32 %v1077, 0.0
      %v1110 = vadd.f32 %v1078, 0.0
      %v1111 = vadd.f32 %v1079, 0.0
      %v1112 = vadd.f32 %v1080, 0.0
      %v1113 = vadd.f32 %v1081, 0.0
      %v1114 = vadd.f32 %v1082, 0.0
      %v1115 = vadd.f32 %v1083, 0.0
      %v1116 = vadd.f32 %v1084, 0.0
      %v1117 = vadd.f32 %v1085, 0.0
      %v1118 = vadd.f32 %v1086, 0.0
      %v1119 = vadd.f32 %v1087, 0.0
      %v1120 = vadd.f32 %v1088, 0.0
      %v1121 = vlaneseq
      %v1122 = vshrl.u32 %v1121, 7
      %v1123 = vsub.s32 1, %v1122
      %v1124 = vrot.slane %v1003, %v1123
      %v1125 = vmul.f32 %v1005, %v1124
      %v1126 = vmul.f32 %v1006, %v1124
      %v1127 = vmul.f32 %v1007, %v1124
      %v1128 = vmul.f32 %v1008, %v1124
      %v1129 = vmul.f32 %v1009, %v1124
      %v1130 = vmul.f32 %v1010, %v1124
      %v1131 = vmul.f32 %v1011, %v1124
      %v1132 = vmul.f32 %v1012, %v1124
      %v1133 = vmul.f32 %v1013, %v1124
      %v1134 = vmul.f32 %v1014, %v1124
      %v1135 = vmul.f32 %v1015, %v1124
      %v1136 = vmul.f32 %v1016, %v1124
      %v1137 = vmul.f32 %v1017, %v1124
      %v1138 = vmul.f32 %v1018, %v1124
      %v1139 = vmul.f32 %v1019, %v1124
      %v1140 = vmul.f32 %v1020, %v1124
      %v1141 = vmul.f32 %v1021, %v1124
      %v1142 = vmul.f32 %v1022, %v1124
      %v1143 = vmul.f32 %v1023, %v1124
      %v1144 = vmul.f32 %v1024, %v1124
      %v1145 = vmul.f32 %v1025, %v1124
      %v1146 = vmul.f32 %v1026, %v1124
      %v1147 = vmul.f32 %v1027, %v1124
      %v1148 = vmul.f32 %v1028, %v1124
      %v1149 = vmul.f32 %v1029, %v1124
      %v1150 = vmul.f32 %v1030, %v1124
      %v1151 = vmul.f32 %v1031, %v1124
      %v1152 = vmul.f32 %v1032, %v1124
      %v1153 = vmul.f32 %v1033, %v1124
      %v1154 = vmul.f32 %v1034, %v1124
      %v1155 = vmul.f32 %v1035, %v1124
      %v1156 = vmul.f32 %v1036, %v1124
      %v1157 = vmul.f32 %v1037, %v1124
      %v1158 = vmul.f32 %v1038, %v1124
      %v1159 = vmul.f32 %v1039, %v1124
      %v1160 = vmul.f32 %v1040, %v1124
      %v1161 = vmul.f32 %v1041, %v1124
      %v1162 = vmul.f32 %v1042, %v1124
      %v1163 = vmul.f32 %v1043, %v1124
      %v1164 = vmul.f32 %v1044, %v1124
      %v1165 = vmul.f32 %v1045, %v1124
      %v1166 = vmul.f32 %v1046, %v1124
      %v1167 = vmul.f32 %v1047, %v1124
      %v1168 = vmul.f32 %v1048, %v1124
      %v1169 = vmul.f32 %v1049, %v1124
      %v1170 = vmul.f32 %v1050, %v1124
      %v1171 = vmul.f32 %v1051, %v1124
      %v1172 = vmul.f32 %v1052, %v1124
      %vm1221 = vcmask 1046528
      %v1222 = vrot.slane %v1125, 1
      %v1223 = vrot.slane %v1126, 1
      %v1224 = vsel %vm1221, %v1222, %v1223
      %v1225 = vrot.slane %v1127, 1
      %v1226 = vsel %vm1221, %v1223, %v1225
      %v1227 = vrot.slane %v1128, 1
      %v1228 = vrot.slane %v1129, 1
      %v1229 = vsel %vm1221, %v1227, %v1228
      %v1230 = vrot.slane %v1130, 1
      %v1231 = vsel %vm1221, %v1228, %v1230
      %v1232 = vrot.slane %v1131, 1
      %v1233 = vrot.slane %v1132, 1
      %v1234 = vsel %vm1221, %v1232, %v1233
      %v1235 = vrot.slane %v1133, 1
      %v1236 = vsel %vm1221, %v1233, %v1235
      %v1237 = vrot.slane %v1134, 1
      %v1238 = vrot.slane %v1135, 1
      %v1239 = vsel %vm1221, %v1237, %v1238
      %v1240 = vrot.slane %v1136, 1
      %v1241 = vsel %vm1221, %v1238, %v1240
      %v1242 = vrot.slane %v1137, 1
      %v1243 = vrot.slane %v1138, 1
      %v1244 = vsel %vm1221, %v1242, %v1243
      %v1245 = vrot.slane %v1139, 1
      %v1246 = vsel %vm1221, %v1243, %v1245
      %v1247 = vrot.slane %v1140, 1
      %v1248 = vrot.slane %v1141, 1
      %v1249 = vsel %vm1221, %v1247, %v1248
      %v1250 = vrot.slane %v1142, 1
      %v1251 = vsel %vm1221, %v1248, %v1250
      %v1252 = vrot.slane %v1143, 1
      %v1253 = vrot.slane %v1144, 1
      %v1254 = vsel %vm1221, %v1252, %v1253
      %v1255 = vrot.slane %v1145, 1
      %v1256 = vsel %vm1221, %v1253, %v1255
      %v1257 = vrot.slane %v1146, 1
      %v1258 = vrot.slane %v1147, 1
      %v1259 = vsel %vm1221, %v1257, %v1258
      %v1260 = vrot.slane %v1148, 1
      %v1261 = vsel %vm1221, %v1258, %v1260
      %v1262 = vrot.slane %v1149, 1
      %v1263 = vrot.slane %v1150, 1
      %v1264 = vsel %vm1221, %v1262, %v1263
      %v1265 = vrot.slane %v1151, 1
      %v1266 = vsel %vm1221, %v1263, %v1265
      %v1267 = vrot.slane %v1152, 1
      %v1268 = vrot.slane %v1153, 1
      %v1269 = vsel %vm1221, %v1267, %v1268
      %v1270 = vrot.slane %v1154, 1
      %v1271 = vsel %vm1221, %v1268, %v1270
      %v1272 = vrot.slane %v1155, 1
      %v1273 = vrot.slane %v1156, 1
      %v1274 = vsel %vm1221, %v1272, %v1273
      %v1275 = vrot.slane %v1157, 1
      %v1276 = vsel %vm1221, %v1273, %v1275
      %v1277 = vrot.slane %v1158, 1
      %v1278 = vrot.slane %v1159, 1
      %v1279 = vsel %vm1221, %v1277, %v1278
      %v1280 = vrot.slane %v1160, 1
      %v1281 = vsel %vm1221, %v1278, %v1280
      %v1282 = vrot.slane %v1161, 1
      %v1283 = vrot.slane %v1162, 1
      %v1284 = vsel %vm1221, %v1282, %v1283
      %v1285 = vrot.slane %v1163, 1
      %v1286 = vsel %vm1221, %v1283, %v1285
      %v1287 = vrot.slane %v1164, 1
      %v1288 = vrot.slane %v1165, 1
      %v1289 = vsel %vm1221, %v1287, %v1288
      %v1290 = vrot.slane %v1166, 1
      %v1291 = vsel %vm1221, %v1288, %v1290
      %v1292 = vrot.slane %v1167, 1
      %v1293 = vrot.slane %v1168, 1
      %v1294 = vsel %vm1221, %v1292, %v1293
      %v1295 = vrot.slane %v1169, 1
      %v1296 = vsel %vm1221, %v1293, %v1295
      %v1297 = vrot.slane %v1170, 1
      %v1298 = vrot.slane %v1171, 1
      %v1299 = vsel %vm1221, %v1297, %v1298
      %v1300 = vrot.slane %v1172, 1
      %v1301 = vsel %vm1221, %v1298, %v1300
      %v1334 = vadd.f32 %v1089, %v1224
      %v1335 = vadd.f32 %v1090, %v1226
      %v1336 = vadd.f32 %v1091, %v1229
      %v1337 = vadd.f32 %v1092, %v1231
      %v1338 = vadd.f32 %v1093, %v1234
      %v1339 = vadd.f32 %v1094, %v1236
      %v1340 = vadd.f32 %v1095, %v1239
      %v1341 = vadd.f32 %v1096, %v1241
      %v1342 = vadd.f32 %v1097, %v1244
      %v1343 = vadd.f32 %v1098, %v1246
      %v1344 = vadd.f32 %v1099, %v1249
      %v1345 = vadd.f32 %v1100, %v1251
      %v1346 = vadd.f32 %v1101, %v1254
      %v1347 = vadd.f32 %v1102, %v1256
      %v1348 = vadd.f32 %v1103, %v1259
      %v1349 = vadd.f32 %v1104, %v1261
      %v1350 = vadd.f32 %v1105, %v1264
      %v1351 = vadd.f32 %v1106, %v1266
      %v1352 = vadd.f32 %v1107, %v1269
      %v1353 = vadd.f32 %v1108, %v1271
      %v1354 = vadd.f32 %v1109, %v1274
      %v1355 = vadd.f32 %v1110, %v1276
      %v1356 = vadd.f32 %v1111, %v1279
      %v1357 = vadd.f32 %v1112, %v1281
      %v1358 = vadd.f32 %v1113, %v1284
      %v1359 = vadd.f32 %v1114, %v1286
      %v1360 = vadd.f32 %v1115, %v1289
      %v1361 = vadd.f32 %v1116, %v1291
      %v1362 = vadd.f32 %v1117, %v1294
      %v1363 = vadd.f32 %v1118, %v1296
      %v1364 = vadd.f32 %v1119, %v1299
      %v1365 = vadd.f32 %v1120, %v1301
      %v1366 = vlaneseq
      %v1367 = vshrl.u32 %v1366, 7
      %v1368 = vsub.s32 2, %v1367
      %v1369 = vrot.slane %v1003, %v1368
      %v1370 = vmul.f32 %v1005, %v1369
      %v1371 = vmul.f32 %v1006, %v1369
      %v1372 = vmul.f32 %v1007, %v1369
      %v1373 = vmul.f32 %v1008, %v1369
      %v1374 = vmul.f32 %v1009, %v1369
      %v1375 = vmul.f32 %v1010, %v1369
      %v1376 = vmul.f32 %v1011, %v1369
      %v1377 = vmul.f32 %v1012, %v1369
      %v1378 = vmul.f32 %v1013, %v1369
      %v1379 = vmul.f32 %v1014, %v1369
      %v1380 = vmul.f32 %v1015, %v1369
      %v1381 = vmul.f32 %v1016, %v1369
      %v1382 = vmul.f32 %v1017, %v1369
      %v1383 = vmul.f32 %v1018, %v1369
      %v1384 = vmul.f32 %v1019, %v1369
      %v1385 = vmul.f32 %v1020, %v1369
      %v1386 = vmul.f32 %v1021, %v1369
      %v1387 = vmul.f32 %v1022, %v1369
      %v1388 = vmul.f32 %v1023, %v1369
      %v1389 = vmul.f32 %v1024, %v1369
      %v1390 = vmul.f32 %v1025, %v1369
      %v1391 = vmul.f32 %v1026, %v1369
      %v1392 = vmul.f32 %v1027, %v1369
      %v1393 = vmul.f32 %v1028, %v1369
      %v1394 = vmul.f32 %v1029, %v1369
      %v1395 = vmul.f32 %v1030, %v1369
      %v1396 = vmul.f32 %v1031, %v1369
      %v1397 = vmul.f32 %v1032, %v1369
      %v1398 = vmul.f32 %v1033, %v1369
      %v1399 = vmul.f32 %v1034, %v1369
      %v1400 = vmul.f32 %v1035, %v1369
      %v1401 = vmul.f32 %v1036, %v1369
      %v1402 = vmul.f32 %v1037, %v1369
      %v1403 = vmul.f32 %v1038, %v1369
      %v1404 = vmul.f32 %v1039, %v1369
      %v1405 = vmul.f32 %v1040, %v1369
      %v1406 = vmul.f32 %v1041, %v1369
      %v1407 = vmul.f32 %v1042, %v1369
      %v1408 = vmul.f32 %v1043, %v1369
      %v1409 = vmul.f32 %v1044, %v1369
      %v1410 = vmul.f32 %v1045, %v1369
      %v1411 = vmul.f32 %v1046, %v1369
      %v1412 = vmul.f32 %v1047, %v1369
      %v1413 = vmul.f32 %v1048, %v1369
      %v1414 = vmul.f32 %v1049, %v1369
      %v1415 = vmul.f32 %v1050, %v1369
      %v1416 = vmul.f32 %v1051, %v1369
      %v1417 = vmul.f32 %v1052, %v1369
      %vm1466 = vcmask 1045504
      %v1467 = vrot.slane %v1370, 2
      %v1468 = vrot.slane %v1371, 2
      %v1469 = vsel %vm1466, %v1467, %v1468
      %v1470 = vrot.slane %v1372, 2
      %v1471 = vsel %vm1466, %v1468, %v1470
      %v1472 = vrot.slane %v1373, 2
      %v1473 = vrot.slane %v1374, 2
      %v1474 = vsel %vm1466, %v1472, %v1473
      %v1475 = vrot.slane %v1375, 2
      %v1476 = vsel %vm1466, %v1473, %v1475
      %v1477 = vrot.slane %v1376, 2
      %v1478 = vrot.slane %v1377, 2
      %v1479 = vsel %vm1466, %v1477, %v1478
      %v1480 = vrot.slane %v1378, 2
      %v1481 = vsel %vm1466, %v1478, %v1480
      %v1482 = vrot.slane %v1379, 2
      %v1483 = vrot.slane %v1380, 2
      %v1484 = vsel %vm1466, %v1482, %v1483
      %v1485 = vrot.slane %v1381, 2
      %v1486 = vsel %vm1466, %v1483, %v1485
      %v1487 = vrot.slane %v1382, 2
      %v1488 = vrot.slane %v1383, 2
      %v1489 = vsel %vm1466, %v1487, %v1488
      %v1490 = vrot.slane %v1384, 2
      %v1491 = vsel %vm1466, %v1488, %v1490
      %v1492 = vrot.slane %v1385, 2
      %v1493 = vrot.slane %v1386, 2
      %v1494 = vsel %vm1466, %v1492, %v1493
      %v1495 = vrot.slane %v1387, 2
      %v1496 = vsel %vm1466, %v1493, %v1495
      %v1497 = vrot.slane %v1388, 2
      %v1498 = vrot.slane %v1389, 2
      %v1499 = vsel %vm1466, %v1497, %v1498
      %v1500 = vrot.slane %v1390, 2
      %v1501 = vsel %vm1466, %v1498, %v1500
      %v1502 = vrot.slane %v1391, 2
      %v1503 = vrot.slane %v1392, 2
      %v1504 = vsel %vm1466, %v1502, %v1503
      %v1505 = vrot.slane %v1393, 2
      %v1506 = vsel %vm1466, %v1503, %v1505
      %v1507 = vrot.slane %v1394, 2
      %v1508 = vrot.slane %v1395, 2
      %v1509 = vsel %vm1466, %v1507, %v1508
      %v1510 = vrot.slane %v1396, 2
      %v1511 = vsel %vm1466, %v1508, %v1510
      %v1512 = vrot.slane %v1397, 2
      %v1513 = vrot.slane %v1398, 2
      %v1514 = vsel %vm1466, %v1512, %v1513
      %v1515 = vrot.slane %v1399, 2
      %v1516 = vsel %vm1466, %v1513, %v1515
      %v1517 = vrot.slane %v1400, 2
      %v1518 = vrot.slane %v1401, 2
      %v1519 = vsel %vm1466, %v1517, %v1518
      %v1520 = vrot.slane %v1402, 2
      %v1521 = vsel %vm1466, %v1518, %v1520
      %v1522 = vrot.slane %v1403, 2
      %v1523 = vrot.slane %v1404, 2
      %v1524 = vsel %vm1466, %v1522, %v1523
      %v1525 = vrot.slane %v1405, 2
      %v1526 = vsel %vm1466, %v1523, %v1525
      %v1527 = vrot.slane %v1406, 2
      %v1528 = vrot.slane %v1407, 2
      %v1529 = vsel %vm1466, %v1527, %v1528
      %v1530 = vrot.slane %v1408, 2
      %v1531 = vsel %vm1466, %v1528, %v1530
      %v1532 = vrot.slane %v1409, 2
      %v1533 = vrot.slane %v1410, 2
      %v1534 = vsel %vm1466, %v1532, %v1533
      %v1535 = vrot.slane %v1411, 2
      %v1536 = vsel %vm1466, %v1533, %v1535
      %v1537 = vrot.slane %v1412, 2
      %v1538 = vrot.slane %v1413, 2
      %v1539 = vsel %vm1466, %v1537, %v1538
      %v1540 = vrot.slane %v1414, 2
      %v1541 = vsel %vm1466, %v1538, %v1540
      %v1542 = vrot.slane %v1415, 2
      %v1543 = vrot.slane %v1416, 2
      %v1544 = vsel %vm1466, %v1542, %v1543
      %v1545 = vrot.slane %v1417, 2
      %v1546 = vsel %vm1466, %v1543, %v1545
      %v1579 = vadd.f32 %v1334, %v1469
      %v1580 = vadd.f32 %v1335, %v1471
      %v1581 = vadd.f32 %v1336, %v1474
      %v1582 = vadd.f32 %v1337, %v1476
      %v1583 = vadd.f32 %v1338, %v1479
      %v1584 = vadd.f32 %v1339, %v1481
      %v1585 = vadd.f32 %v1340, %v1484
      %v1586 = vadd.f32 %v1341, %v1486
      %v1587 = vadd.f32 %v1342, %v1489
      %v1588 = vadd.f32 %v1343, %v1491
      %v1589 = vadd.f32 %v1344, %v1494
      %v1590 = vadd.f32 %v1345, %v1496
      %v1591 = vadd.f32 %v1346, %v1499
      %v1592 = vadd.f32 %v1347, %v1501
      %v1593 = vadd.f32 %v1348, %v1504
      %v1594 = vadd.f32 %v1349, %v1506
      %v1595 = vadd.f32 %v1350, %v1509
      %v1596 = vadd.f32 %v1351, %v1511
      %v1597 = vadd.f32 %v1352, %v1514
      %v1598 = vadd.f32 %v1353, %v1516
      %v1599 = vadd.f32 %v1354, %v1519
      %v1600 = vadd.f32 %v1355, %v1521
      %v1601 = vadd.f32 %v1356, %v1524
      %v1602 = vadd.f32 %v1357, %v1526
      %v1603 = vadd.f32 %v1358, %v1529
      %v1604 = vadd.f32 %v1359, %v1531
      %v1605 = vadd.f32 %v1360, %v1534
      %v1606 = vadd.f32 %v1361, %v1536
      %v1607 = vadd.f32 %v1362, %v1539
      %v1608 = vadd.f32 %v1363, %v1541
      %v1609 = vadd.f32 %v1364, %v1544
      %v1610 = vadd.f32 %v1365, %v1546
      %v1611 = vld [vmem:[%s970] sm:$0xff]
      %v1612 = vld [vmem:[%s970 + $0x8] sm:$0xff]
      %v1613 = vld [vmem:[%s970 + $0x10] sm:$0x3]
      %v1614 = vld [vmem:[%s970 + $0x18] sm:$0xff]
      %v1615 = vld [vmem:[%s970 + $0x20] sm:$0xff]
      %v1616 = vld [vmem:[%s970 + $0x28] sm:$0x3]
      %v1617 = vld [vmem:[%s970 + $0x30] sm:$0xff]
      %v1618 = vld [vmem:[%s970 + $0x38] sm:$0xff]
      %v1619 = vld [vmem:[%s970 + $0x40] sm:$0x3]
      %v1620 = vld [vmem:[%s970 + $0x48] sm:$0xff]
      %v1621 = vld [vmem:[%s970 + $0x50] sm:$0xff]
      %v1622 = vld [vmem:[%s970 + $0x58] sm:$0x3]
      %v1623 = vld [vmem:[%s970 + $0x60] sm:$0xff]
      %v1624 = vld [vmem:[%s970 + $0x68] sm:$0xff]
      %v1625 = vld [vmem:[%s970 + $0x70] sm:$0x3]
      %v1626 = vld [vmem:[%s970 + $0x78] sm:$0xff]
      %v1627 = vld [vmem:[%s970 + $0x80] sm:$0xff]
      %v1628 = vld [vmem:[%s970 + $0x88] sm:$0x3]
      %v1629 = vld [vmem:[%s970 + $0x90] sm:$0xff]
      %v1630 = vld [vmem:[%s970 + $0x98] sm:$0xff]
      %v1631 = vld [vmem:[%s970 + $0xa0] sm:$0x3]
      %v1632 = vld [vmem:[%s970 + $0xa8] sm:$0xff]
      %v1633 = vld [vmem:[%s970 + $0xb0] sm:$0xff]
      %v1634 = vld [vmem:[%s970 + $0xb8] sm:$0x3]
      %v1635 = vld [vmem:[%s970 + $0xc0] sm:$0xff]
      %v1636 = vld [vmem:[%s970 + $0xc8] sm:$0xff]
      %v1637 = vld [vmem:[%s970 + $0xd0] sm:$0x3]
      %v1638 = vld [vmem:[%s970 + $0xd8] sm:$0xff]
      %v1639 = vld [vmem:[%s970 + $0xe0] sm:$0xff]
      %v1640 = vld [vmem:[%s970 + $0xe8] sm:$0x3]
      %v1641 = vld [vmem:[%s970 + $0xf0] sm:$0xff]
      %v1642 = vld [vmem:[%s970 + $0xf8] sm:$0xff]
      %v1643 = vld [vmem:[%s970 + $0x100] sm:$0x3]
      %v1644 = vld [vmem:[%s970 + $0x108] sm:$0xff]
      %v1645 = vld [vmem:[%s970 + $0x110] sm:$0xff]
      %v1646 = vld [vmem:[%s970 + $0x118] sm:$0x3]
      %v1647 = vld [vmem:[%s970 + $0x120] sm:$0xff]
      %v1648 = vld [vmem:[%s970 + $0x128] sm:$0xff]
      %v1649 = vld [vmem:[%s970 + $0x130] sm:$0x3]
      %v1650 = vld [vmem:[%s970 + $0x138] sm:$0xff]
      %v1651 = vld [vmem:[%s970 + $0x140] sm:$0xff]
      %v1652 = vld [vmem:[%s970 + $0x148] sm:$0x3]
      %v1653 = vld [vmem:[%s970 + $0x150] sm:$0xff]
      %v1654 = vld [vmem:[%s970 + $0x158] sm:$0xff]
      %v1655 = vld [vmem:[%s970 + $0x160] sm:$0x3]
      %v1656 = vld [vmem:[%s970 + $0x168] sm:$0xff]
      %v1657 = vld [vmem:[%s970 + $0x170] sm:$0xff]
      %v1658 = vld [vmem:[%s970 + $0x178] sm:$0x3]
      %v1659 = vlaneseq
      %v1660 = vshrl.u32 %v1659, 7
      %v1661 = vsub.s32 3, %v1660
      %v1662 = vrot.slane %v1003, %v1661
      %v1663 = vmul.f32 %v1611, %v1662
      %v1664 = vmul.f32 %v1612, %v1662
      %v1665 = vmul.f32 %v1614, %v1662
      %v1666 = vmul.f32 %v1615, %v1662
      %v1667 = vmul.f32 %v1617, %v1662
      %v1668 = vmul.f32 %v1618, %v1662
      %v1669 = vmul.f32 %v1620, %v1662
      %v1670 = vmul.f32 %v1621, %v1662
      %v1671 = vmul.f32 %v1623, %v1662
      %v1672 = vmul.f32 %v1624, %v1662
      %v1673 = vmul.f32 %v1626, %v1662
      %v1674 = vmul.f32 %v1627, %v1662
      %v1675 = vmul.f32 %v1629, %v1662
      %v1676 = vmul.f32 %v1630, %v1662
      %v1677 = vmul.f32 %v1632, %v1662
      %v1678 = vmul.f32 %v1633, %v1662
      %v1679 = vmul.f32 %v1635, %v1662
      %v1680 = vmul.f32 %v1636, %v1662
      %v1681 = vmul.f32 %v1638, %v1662
      %v1682 = vmul.f32 %v1639, %v1662
      %v1683 = vmul.f32 %v1641, %v1662
      %v1684 = vmul.f32 %v1642, %v1662
      %v1685 = vmul.f32 %v1644, %v1662
      %v1686 = vmul.f32 %v1645, %v1662
      %v1687 = vmul.f32 %v1647, %v1662
      %v1688 = vmul.f32 %v1648, %v1662
      %v1689 = vmul.f32 %v1650, %v1662
      %v1690 = vmul.f32 %v1651, %v1662
      %v1691 = vmul.f32 %v1653, %v1662
      %v1692 = vmul.f32 %v1654, %v1662
      %v1693 = vmul.f32 %v1656, %v1662
      %v1694 = vmul.f32 %v1657, %v1662
      %v1695 = vadd.f32 %v1579, %v1663
      %v1696 = vadd.f32 %v1580, %v1664
      %v1697 = vadd.f32 %v1581, %v1665
      %v1698 = vadd.f32 %v1582, %v1666
      %v1699 = vadd.f32 %v1583, %v1667
      %v1700 = vadd.f32 %v1584, %v1668
      %v1701 = vadd.f32 %v1585, %v1669
      %v1702 = vadd.f32 %v1586, %v1670
      %v1703 = vadd.f32 %v1587, %v1671
      %v1704 = vadd.f32 %v1588, %v1672
      %v1705 = vadd.f32 %v1589, %v1673
      %v1706 = vadd.f32 %v1590, %v1674
      %v1707 = vadd.f32 %v1591, %v1675
      %v1708 = vadd.f32 %v1592, %v1676
      %v1709 = vadd.f32 %v1593, %v1677
      %v1710 = vadd.f32 %v1594, %v1678
      %v1711 = vadd.f32 %v1595, %v1679
      %v1712 = vadd.f32 %v1596, %v1680
      %v1713 = vadd.f32 %v1597, %v1681
      %v1714 = vadd.f32 %v1598, %v1682
      %v1715 = vadd.f32 %v1599, %v1683
      %v1716 = vadd.f32 %v1600, %v1684
      %v1717 = vadd.f32 %v1601, %v1685
      %v1718 = vadd.f32 %v1602, %v1686
      %v1719 = vadd.f32 %v1603, %v1687
      %v1720 = vadd.f32 %v1604, %v1688
      %v1721 = vadd.f32 %v1605, %v1689
      %v1722 = vadd.f32 %v1606, %v1690
      %v1723 = vadd.f32 %v1607, %v1691
      %v1724 = vadd.f32 %v1608, %v1692
      %v1725 = vadd.f32 %v1609, %v1693
      %v1726 = vadd.f32 %v1610, %v1694
      %v1727 = vlaneseq
      %v1728 = vshrl.u32 %v1727, 7
      %v1729 = vsub.s32 4, %v1728
      %v1730 = vrot.slane %v1003, %v1729
      %v1731 = vmul.f32 %v1611, %v1730
      %v1732 = vmul.f32 %v1612, %v1730
      %v1733 = vmul.f32 %v1613, %v1730
      %v1734 = vmul.f32 %v1614, %v1730
      %v1735 = vmul.f32 %v1615, %v1730
      %v1736 = vmul.f32 %v1616, %v1730
      %v1737 = vmul.f32 %v1617, %v1730
      %v1738 = vmul.f32 %v1618, %v1730
      %v1739 = vmul.f32 %v1619, %v1730
      %v1740 = vmul.f32 %v1620, %v1730
      %v1741 = vmul.f32 %v1621, %v1730
      %v1742 = vmul.f32 %v1622, %v1730
      %v1743 = vmul.f32 %v1623, %v1730
      %v1744 = vmul.f32 %v1624, %v1730
      %v1745 = vmul.f32 %v1625, %v1730
      %v1746 = vmul.f32 %v1626, %v1730
      %v1747 = vmul.f32 %v1627, %v1730
      %v1748 = vmul.f32 %v1628, %v1730
      %v1749 = vmul.f32 %v1629, %v1730
      %v1750 = vmul.f32 %v1630, %v1730
      %v1751 = vmul.f32 %v1631, %v1730
      %v1752 = vmul.f32 %v1632, %v1730
      %v1753 = vmul.f32 %v1633, %v1730
      %v1754 = vmul.f32 %v1634, %v1730
      %v1755 = vmul.f32 %v1635, %v1730
      %v1756 = vmul.f32 %v1636, %v1730
      %v1757 = vmul.f32 %v1637, %v1730
      %v1758 = vmul.f32 %v1638, %v1730
      %v1759 = vmul.f32 %v1639, %v1730
      %v1760 = vmul.f32 %v1640, %v1730
      %v1761 = vmul.f32 %v1641, %v1730
      %v1762 = vmul.f32 %v1642, %v1730
      %v1763 = vmul.f32 %v1643, %v1730
      %v1764 = vmul.f32 %v1644, %v1730
      %v1765 = vmul.f32 %v1645, %v1730
      %v1766 = vmul.f32 %v1646, %v1730
      %v1767 = vmul.f32 %v1647, %v1730
      %v1768 = vmul.f32 %v1648, %v1730
      %v1769 = vmul.f32 %v1649, %v1730
      %v1770 = vmul.f32 %v1650, %v1730
      %v1771 = vmul.f32 %v1651, %v1730
      %v1772 = vmul.f32 %v1652, %v1730
      %v1773 = vmul.f32 %v1653, %v1730
      %v1774 = vmul.f32 %v1654, %v1730
      %v1775 = vmul.f32 %v1655, %v1730
      %v1776 = vmul.f32 %v1656, %v1730
      %v1777 = vmul.f32 %v1657, %v1730
      %v1778 = vmul.f32 %v1658, %v1730
      %v1827 = vrot.slane %v1731, 1
      %v1828 = vrot.slane %v1732, 1
      %v1829 = vsel %vm1221, %v1827, %v1828
      %v1830 = vrot.slane %v1733, 1
      %v1831 = vsel %vm1221, %v1828, %v1830
      %v1832 = vrot.slane %v1734, 1
      %v1833 = vrot.slane %v1735, 1
      %v1834 = vsel %vm1221, %v1832, %v1833
      %v1835 = vrot.slane %v1736, 1
      %v1836 = vsel %vm1221, %v1833, %v1835
      %v1837 = vrot.slane %v1737, 1
      %v1838 = vrot.slane %v1738, 1
      %v1839 = vsel %vm1221, %v1837, %v1838
      %v1840 = vrot.slane %v1739, 1
      %v1841 = vsel %vm1221, %v1838, %v1840
      %v1842 = vrot.slane %v1740, 1
      %v1843 = vrot.slane %v1741, 1
      %v1844 = vsel %vm1221, %v1842, %v1843
      %v1845 = vrot.slane %v1742, 1
      %v1846 = vsel %vm1221, %v1843, %v1845
      %v1847 = vrot.slane %v1743, 1
      %v1848 = vrot.slane %v1744, 1
      %v1849 = vsel %vm1221, %v1847, %v1848
      %v1850 = vrot.slane %v1745, 1
      %v1851 = vsel %vm1221, %v1848, %v1850
      %v1852 = vrot.slane %v1746, 1
      %v1853 = vrot.slane %v1747, 1
      %v1854 = vsel %vm1221, %v1852, %v1853
      %v1855 = vrot.slane %v1748, 1
      %v1856 = vsel %vm1221, %v1853, %v1855
      %v1857 = vrot.slane %v1749, 1
      %v1858 = vrot.slane %v1750, 1
      %v1859 = vsel %vm1221, %v1857, %v1858
      %v1860 = vrot.slane %v1751, 1
      %v1861 = vsel %vm1221, %v1858, %v1860
      %v1862 = vrot.slane %v1752, 1
      %v1863 = vrot.slane %v1753, 1
      %v1864 = vsel %vm1221, %v1862, %v1863
      %v1865 = vrot.slane %v1754, 1
      %v1866 = vsel %vm1221, %v1863, %v1865
      %v1867 = vrot.slane %v1755, 1
      %v1868 = vrot.slane %v1756, 1
      %v1869 = vsel %vm1221, %v1867, %v1868
      %v1870 = vrot.slane %v1757, 1
      %v1871 = vsel %vm1221, %v1868, %v1870
      %v1872 = vrot.slane %v1758, 1
      %v1873 = vrot.slane %v1759, 1
      %v1874 = vsel %vm1221, %v1872, %v1873
      %v1875 = vrot.slane %v1760, 1
      %v1876 = vsel %vm1221, %v1873, %v1875
      %v1877 = vrot.slane %v1761, 1
      %v1878 = vrot.slane %v1762, 1
      %v1879 = vsel %vm1221, %v1877, %v1878
      %v1880 = vrot.slane %v1763, 1
      %v1881 = vsel %vm1221, %v1878, %v1880
      %v1882 = vrot.slane %v1764, 1
      %v1883 = vrot.slane %v1765, 1
      %v1884 = vsel %vm1221, %v1882, %v1883
      %v1885 = vrot.slane %v1766, 1
      %v1886 = vsel %vm1221, %v1883, %v1885
      %v1887 = vrot.slane %v1767, 1
      %v1888 = vrot.slane %v1768, 1
      %v1889 = vsel %vm1221, %v1887, %v1888
      %v1890 = vrot.slane %v1769, 1
      %v1891 = vsel %vm1221, %v1888, %v1890
      %v1892 = vrot.slane %v1770, 1
      %v1893 = vrot.slane %v1771, 1
      %v1894 = vsel %vm1221, %v1892, %v1893
      %v1895 = vrot.slane %v1772, 1
      %v1896 = vsel %vm1221, %v1893, %v1895
      %v1897 = vrot.slane %v1773, 1
      %v1898 = vrot.slane %v1774, 1
      %v1899 = vsel %vm1221, %v1897, %v1898
      %v1900 = vrot.slane %v1775, 1
      %v1901 = vsel %vm1221, %v1898, %v1900
      %v1902 = vrot.slane %v1776, 1
      %v1903 = vrot.slane %v1777, 1
      %v1904 = vsel %vm1221, %v1902, %v1903
      %v1905 = vrot.slane %v1778, 1
      %v1906 = vsel %vm1221, %v1903, %v1905
      %v1939 = vadd.f32 %v1695, %v1829
      %v1940 = vadd.f32 %v1696, %v1831
      %v1941 = vadd.f32 %v1697, %v1834
      %v1942 = vadd.f32 %v1698, %v1836
      %v1943 = vadd.f32 %v1699, %v1839
      %v1944 = vadd.f32 %v1700, %v1841
      %v1945 = vadd.f32 %v1701, %v1844
      %v1946 = vadd.f32 %v1702, %v1846
      %v1947 = vadd.f32 %v1703, %v1849
      %v1948 = vadd.f32 %v1704, %v1851
      %v1949 = vadd.f32 %v1705, %v1854
      %v1950 = vadd.f32 %v1706, %v1856
      %v1951 = vadd.f32 %v1707, %v1859
      %v1952 = vadd.f32 %v1708, %v1861
      %v1953 = vadd.f32 %v1709, %v1864
      %v1954 = vadd.f32 %v1710, %v1866
      %v1955 = vadd.f32 %v1711, %v1869
      %v1956 = vadd.f32 %v1712, %v1871
      %v1957 = vadd.f32 %v1713, %v1874
      %v1958 = vadd.f32 %v1714, %v1876
      %v1959 = vadd.f32 %v1715, %v1879
      %v1960 = vadd.f32 %v1716, %v1881
      %v1961 = vadd.f32 %v1717, %v1884
      %v1962 = vadd.f32 %v1718, %v1886
      %v1963 = vadd.f32 %v1719, %v1889
      %v1964 = vadd.f32 %v1720, %v1891
      %v1965 = vadd.f32 %v1721, %v1894
      %v1966 = vadd.f32 %v1722, %v1896
      %v1967 = vadd.f32 %v1723, %v1899
      %v1968 = vadd.f32 %v1724, %v1901
      %v1969 = vadd.f32 %v1725, %v1904
      %v1970 = vadd.f32 %v1726, %v1906
      %v1971 = vlaneseq
      %v1972 = vshrl.u32 %v1971, 7
      %v1973 = vsub.s32 5, %v1972
      %v1974 = vrot.slane %v1003, %v1973
      %v1975 = vmul.f32 %v1611, %v1974
      %v1976 = vmul.f32 %v1612, %v1974
      %v1977 = vmul.f32 %v1613, %v1974
      %v1978 = vmul.f32 %v1614, %v1974
      %v1979 = vmul.f32 %v1615, %v1974
      %v1980 = vmul.f32 %v1616, %v1974
      %v1981 = vmul.f32 %v1617, %v1974
      %v1982 = vmul.f32 %v1618, %v1974
      %v1983 = vmul.f32 %v1619, %v1974
      %v1984 = vmul.f32 %v1620, %v1974
      %v1985 = vmul.f32 %v1621, %v1974
      %v1986 = vmul.f32 %v1622, %v1974
      %v1987 = vmul.f32 %v1623, %v1974
      %v1988 = vmul.f32 %v1624, %v1974
      %v1989 = vmul.f32 %v1625, %v1974
      %v1990 = vmul.f32 %v1626, %v1974
      %v1991 = vmul.f32 %v1627, %v1974
      %v1992 = vmul.f32 %v1628, %v1974
      %v1993 = vmul.f32 %v1629, %v1974
      %v1994 = vmul.f32 %v1630, %v1974
      %v1995 = vmul.f32 %v1631, %v1974
      %v1996 = vmul.f32 %v1632, %v1974
      %v1997 = vmul.f32 %v1633, %v1974
      %v1998 = vmul.f32 %v1634, %v1974
      %v1999 = vmul.f32 %v1635, %v1974
      %v2000 = vmul.f32 %v1636, %v1974
      %v2001 = vmul.f32 %v1637, %v1974
      %v2002 = vmul.f32 %v1638, %v1974
      %v2003 = vmul.f32 %v1639, %v1974
      %v2004 = vmul.f32 %v1640, %v1974
      %v2005 = vmul.f32 %v1641, %v1974
      %v2006 = vmul.f32 %v1642, %v1974
      %v2007 = vmul.f32 %v1643, %v1974
      %v2008 = vmul.f32 %v1644, %v1974
      %v2009 = vmul.f32 %v1645, %v1974
      %v2010 = vmul.f32 %v1646, %v1974
      %v2011 = vmul.f32 %v1647, %v1974
      %v2012 = vmul.f32 %v1648, %v1974
      %v2013 = vmul.f32 %v1649, %v1974
      %v2014 = vmul.f32 %v1650, %v1974
      %v2015 = vmul.f32 %v1651, %v1974
      %v2016 = vmul.f32 %v1652, %v1974
      %v2017 = vmul.f32 %v1653, %v1974
      %v2018 = vmul.f32 %v1654, %v1974
      %v2019 = vmul.f32 %v1655, %v1974
      %v2020 = vmul.f32 %v1656, %v1974
      %v2021 = vmul.f32 %v1657, %v1974
      %v2022 = vmul.f32 %v1658, %v1974
      %v2071 = vrot.slane %v1975, 2
      %v2072 = vrot.slane %v1976, 2
      %v2073 = vsel %vm1466, %v2071, %v2072
      %v2074 = vrot.slane %v1977, 2
      %v2075 = vsel %vm1466, %v2072, %v2074
      %v2076 = vrot.slane %v1978, 2
      %v2077 = vrot.slane %v1979, 2
      %v2078 = vsel %vm1466, %v2076, %v2077
      %v2079 = vrot.slane %v1980, 2
      %v2080 = vsel %vm1466, %v2077, %v2079
      %v2081 = vrot.slane %v1981, 2
      %v2082 = vrot.slane %v1982, 2
      %v2083 = vsel %vm1466, %v2081, %v2082
      %v2084 = vrot.slane %v1983, 2
      %v2085 = vsel %vm1466, %v2082, %v2084
      %v2086 = vrot.slane %v1984, 2
      %v2087 = vrot.slane %v1985, 2
      %v2088 = vsel %vm1466, %v2086, %v2087
      %v2089 = vrot.slane %v1986, 2
      %v2090 = vsel %vm1466, %v2087, %v2089
      %v2091 = vrot.slane %v1987, 2
      %v2092 = vrot.slane %v1988, 2
      %v2093 = vsel %vm1466, %v2091, %v2092
      %v2094 = vrot.slane %v1989, 2
      %v2095 = vsel %vm1466, %v2092, %v2094
      %v2096 = vrot.slane %v1990, 2
      %v2097 = vrot.slane %v1991, 2
      %v2098 = vsel %vm1466, %v2096, %v2097
      %v2099 = vrot.slane %v1992, 2
      %v2100 = vsel %vm1466, %v2097, %v2099
      %v2101 = vrot.slane %v1993, 2
      %v2102 = vrot.slane %v1994, 2
      %v2103 = vsel %vm1466, %v2101, %v2102
      %v2104 = vrot.slane %v1995, 2
      %v2105 = vsel %vm1466, %v2102, %v2104
      %v2106 = vrot.slane %v1996, 2
      %v2107 = vrot.slane %v1997, 2
      %v2108 = vsel %vm1466, %v2106, %v2107
      %v2109 = vrot.slane %v1998, 2
      %v2110 = vsel %vm1466, %v2107, %v2109
      %v2111 = vrot.slane %v1999, 2
      %v2112 = vrot.slane %v2000, 2
      %v2113 = vsel %vm1466, %v2111, %v2112
      %v2114 = vrot.slane %v2001, 2
      %v2115 = vsel %vm1466, %v2112, %v2114
      %v2116 = vrot.slane %v2002, 2
      %v2117 = vrot.slane %v2003, 2
      %v2118 = vsel %vm1466, %v2116, %v2117
      %v2119 = vrot.slane %v2004, 2
      %v2120 = vsel %vm1466, %v2117, %v2119
      %v2121 = vrot.slane %v2005, 2
      %v2122 = vrot.slane %v2006, 2
      %v2123 = vsel %vm1466, %v2121, %v2122
      %v2124 = vrot.slane %v2007, 2
      %v2125 = vsel %vm1466, %v2122, %v2124
      %v2126 = vrot.slane %v2008, 2
      %v2127 = vrot.slane %v2009, 2
      %v2128 = vsel %vm1466, %v2126, %v2127
      %v2129 = vrot.slane %v2010, 2
      %v2130 = vsel %vm1466, %v2127, %v2129
      %v2131 = vrot.slane %v2011, 2
      %v2132 = vrot.slane %v2012, 2
      %v2133 = vsel %vm1466, %v2131, %v2132
      %v2134 = vrot.slane %v2013, 2
      %v2135 = vsel %vm1466, %v2132, %v2134
      %v2136 = vrot.slane %v2014, 2
      %v2137 = vrot.slane %v2015, 2
      %v2138 = vsel %vm1466, %v2136, %v2137
      %v2139 = vrot.slane %v2016, 2
      %v2140 = vsel %vm1466, %v2137, %v2139
      %v2141 = vrot.slane %v2017, 2
      %v2142 = vrot.slane %v2018, 2
      %v2143 = vsel %vm1466, %v2141, %v2142
      %v2144 = vrot.slane %v2019, 2
      %v2145 = vsel %vm1466, %v2142, %v2144
      %v2146 = vrot.slane %v2020, 2
      %v2147 = vrot.slane %v2021, 2
      %v2148 = vsel %vm1466, %v2146, %v2147
      %v2149 = vrot.slane %v2022, 2
      %v2150 = vsel %vm1466, %v2147, %v2149
      %v2183 = vadd.f32 %v1939, %v2073
      %v2184 = vadd.f32 %v1940, %v2075
      %v2185 = vadd.f32 %v1941, %v2078
      %v2186 = vadd.f32 %v1942, %v2080
      %v2187 = vadd.f32 %v1943, %v2083
      %v2188 = vadd.f32 %v1944, %v2085
      %v2189 = vadd.f32 %v1945, %v2088
      %v2190 = vadd.f32 %v1946, %v2090
      %v2191 = vadd.f32 %v1947, %v2093
      %v2192 = vadd.f32 %v1948, %v2095
      %v2193 = vadd.f32 %v1949, %v2098
      %v2194 = vadd.f32 %v1950, %v2100
      %v2195 = vadd.f32 %v1951, %v2103
      %v2196 = vadd.f32 %v1952, %v2105
      %v2197 = vadd.f32 %v1953, %v2108
      %v2198 = vadd.f32 %v1954, %v2110
      %v2199 = vadd.f32 %v1955, %v2113
      %v2200 = vadd.f32 %v1956, %v2115
      %v2201 = vadd.f32 %v1957, %v2118
      %v2202 = vadd.f32 %v1958, %v2120
      %v2203 = vadd.f32 %v1959, %v2123
      %v2204 = vadd.f32 %v1960, %v2125
      %v2205 = vadd.f32 %v1961, %v2128
      %v2206 = vadd.f32 %v1962, %v2130
      %v2207 = vadd.f32 %v1963, %v2133
      %v2208 = vadd.f32 %v1964, %v2135
      %v2209 = vadd.f32 %v1965, %v2138
      %v2210 = vadd.f32 %v1966, %v2140
      %v2211 = vadd.f32 %v1967, %v2143
      %v2212 = vadd.f32 %v1968, %v2145
      %v2213 = vadd.f32 %v1969, %v2148
      %v2214 = vadd.f32 %v1970, %v2150
      %s2215 = scalar_lea.vmem [#allocation2], 48
      %v2216 = vld [vmem:[%s2215] sm:$0xff]
      %v2217 = vld [vmem:[%s2215 + $0x8] sm:$0xff]
      %v2218 = vld [vmem:[%s2215 + $0x10] sm:$0x3]
      %v2219 = vld [vmem:[%s2215 + $0x18] sm:$0xff]
      %v2220 = vld [vmem:[%s2215 + $0x20] sm:$0xff]
      %v2221 = vld [vmem:[%s2215 + $0x28] sm:$0x3]
      %v2222 = vld [vmem:[%s2215 + $0x30] sm:$0xff]
      %v2223 = vld [vmem:[%s2215 + $0x38] sm:$0xff]
      %v2224 = vld [vmem:[%s2215 + $0x40] sm:$0x3]
      %v2225 = vld [vmem:[%s2215 + $0x48] sm:$0xff]
      %v2226 = vld [vmem:[%s2215 + $0x50] sm:$0xff]
      %v2227 = vld [vmem:[%s2215 + $0x58] sm:$0x3]
      %v2228 = vld [vmem:[%s2215 + $0x60] sm:$0xff]
      %v2229 = vld [vmem:[%s2215 + $0x68] sm:$0xff]
      %v2230 = vld [vmem:[%s2215 + $0x70] sm:$0x3]
      %v2231 = vld [vmem:[%s2215 + $0x78] sm:$0xff]
      %v2232 = vld [vmem:[%s2215 + $0x80] sm:$0xff]
      %v2233 = vld [vmem:[%s2215 + $0x88] sm:$0x3]
      %v2234 = vld [vmem:[%s2215 + $0x90] sm:$0xff]
      %v2235 = vld [vmem:[%s2215 + $0x98] sm:$0xff]
      %v2236 = vld [vmem:[%s2215 + $0xa0] sm:$0x3]
      %v2237 = vld [vmem:[%s2215 + $0xa8] sm:$0xff]
      %v2238 = vld [vmem:[%s2215 + $0xb0] sm:$0xff]
      %v2239 = vld [vmem:[%s2215 + $0xb8] sm:$0x3]
      %v2240 = vld [vmem:[%s2215 + $0xc0] sm:$0xff]
      %v2241 = vld [vmem:[%s2215 + $0xc8] sm:$0xff]
      %v2242 = vld [vmem:[%s2215 + $0xd0] sm:$0x3]
      %v2243 = vld [vmem:[%s2215 + $0xd8] sm:$0xff]
      %v2244 = vld [vmem:[%s2215 + $0xe0] sm:$0xff]
      %v2245 = vld [vmem:[%s2215 + $0xe8] sm:$0x3]
      %v2246 = vld [vmem:[%s2215 + $0xf0] sm:$0xff]
      %v2247 = vld [vmem:[%s2215 + $0xf8] sm:$0xff]
      %v2248 = vld [vmem:[%s2215 + $0x100] sm:$0x3]
      %v2249 = vld [vmem:[%s2215 + $0x108] sm:$0xff]
      %v2250 = vld [vmem:[%s2215 + $0x110] sm:$0xff]
      %v2251 = vld [vmem:[%s2215 + $0x118] sm:$0x3]
      %v2252 = vld [vmem:[%s2215 + $0x120] sm:$0xff]
      %v2253 = vld [vmem:[%s2215 + $0x128] sm:$0xff]
      %v2254 = vld [vmem:[%s2215 + $0x130] sm:$0x3]
      %v2255 = vld [vmem:[%s2215 + $0x138] sm:$0xff]
      %v2256 = vld [vmem:[%s2215 + $0x140] sm:$0xff]
      %v2257 = vld [vmem:[%s2215 + $0x148] sm:$0x3]
      %v2258 = vld [vmem:[%s2215 + $0x150] sm:$0xff]
      %v2259 = vld [vmem:[%s2215 + $0x158] sm:$0xff]
      %v2260 = vld [vmem:[%s2215 + $0x160] sm:$0x3]
      %v2261 = vld [vmem:[%s2215 + $0x168] sm:$0xff]
      %v2262 = vld [vmem:[%s2215 + $0x170] sm:$0xff]
      %v2263 = vld [vmem:[%s2215 + $0x178] sm:$0x3]
      %v2264 = vlaneseq
      %v2265 = vshrl.u32 %v2264, 7
      %v2266 = vsub.s32 6, %v2265
      %v2267 = vrot.slane %v1003, %v2266
      %v2268 = vmul.f32 %v2216, %v2267
      %v2269 = vmul.f32 %v2217, %v2267
      %v2270 = vmul.f32 %v2219, %v2267
      %v2271 = vmul.f32 %v2220, %v2267
      %v2272 = vmul.f32 %v2222, %v2267
      %v2273 = vmul.f32 %v2223, %v2267
      %v2274 = vmul.f32 %v2225, %v2267
      %v2275 = vmul.f32 %v2226, %v2267
      %v2276 = vmul.f32 %v2228, %v2267
      %v2277 = vmul.f32 %v2229, %v2267
      %v2278 = vmul.f32 %v2231, %v2267
      %v2279 = vmul.f32 %v2232, %v2267
      %v2280 = vmul.f32 %v2234, %v2267
      %v2281 = vmul.f32 %v2235, %v2267
      %v2282 = vmul.f32 %v2237, %v2267
      %v2283 = vmul.f32 %v2238, %v2267
      %v2284 = vmul.f32 %v2240, %v2267
      %v2285 = vmul.f32 %v2241, %v2267
      %v2286 = vmul.f32 %v2243, %v2267
      %v2287 = vmul.f32 %v2244, %v2267
      %v2288 = vmul.f32 %v2246, %v2267
      %v2289 = vmul.f32 %v2247, %v2267
      %v2290 = vmul.f32 %v2249, %v2267
      %v2291 = vmul.f32 %v2250, %v2267
      %v2292 = vmul.f32 %v2252, %v2267
      %v2293 = vmul.f32 %v2253, %v2267
      %v2294 = vmul.f32 %v2255, %v2267
      %v2295 = vmul.f32 %v2256, %v2267
      %v2296 = vmul.f32 %v2258, %v2267
      %v2297 = vmul.f32 %v2259, %v2267
      %v2298 = vmul.f32 %v2261, %v2267
      %v2299 = vmul.f32 %v2262, %v2267
      %v2300 = vadd.f32 %v2183, %v2268
      %v2301 = vadd.f32 %v2184, %v2269
      %v2302 = vadd.f32 %v2185, %v2270
      %v2303 = vadd.f32 %v2186, %v2271
      %v2304 = vadd.f32 %v2187, %v2272
      %v2305 = vadd.f32 %v2188, %v2273
      %v2306 = vadd.f32 %v2189, %v2274
      %v2307 = vadd.f32 %v2190, %v2275
      %v2308 = vadd.f32 %v2191, %v2276
      %v2309 = vadd.f32 %v2192, %v2277
      %v2310 = vadd.f32 %v2193, %v2278
      %v2311 = vadd.f32 %v2194, %v2279
      %v2312 = vadd.f32 %v2195, %v2280
      %v2313 = vadd.f32 %v2196, %v2281
      %v2314 = vadd.f32 %v2197, %v2282
      %v2315 = vadd.f32 %v2198, %v2283
      %v2316 = vadd.f32 %v2199, %v2284
      %v2317 = vadd.f32 %v2200, %v2285
      %v2318 = vadd.f32 %v2201, %v2286
      %v2319 = vadd.f32 %v2202, %v2287
      %v2320 = vadd.f32 %v2203, %v2288
      %v2321 = vadd.f32 %v2204, %v2289
      %v2322 = vadd.f32 %v2205, %v2290
      %v2323 = vadd.f32 %v2206, %v2291
      %v2324 = vadd.f32 %v2207, %v2292
      %v2325 = vadd.f32 %v2208, %v2293
      %v2326 = vadd.f32 %v2209, %v2294
      %v2327 = vadd.f32 %v2210, %v2295
      %v2328 = vadd.f32 %v2211, %v2296
      %v2329 = vadd.f32 %v2212, %v2297
      %v2330 = vadd.f32 %v2213, %v2298
      %v2331 = vadd.f32 %v2214, %v2299
      %v2332 = vlaneseq
      %v2333 = vshrl.u32 %v2332, 7
      %v2334 = vsub.s32 7, %v2333
      %v2335 = vrot.slane %v1003, %v2334
      %v2336 = vmul.f32 %v2216, %v2335
      %v2337 = vmul.f32 %v2217, %v2335
      %v2338 = vmul.f32 %v2218, %v2335
      %v2339 = vmul.f32 %v2219, %v2335
      %v2340 = vmul.f32 %v2220, %v2335
      %v2341 = vmul.f32 %v2221, %v2335
      %v2342 = vmul.f32 %v2222, %v2335
      %v2343 = vmul.f32 %v2223, %v2335
      %v2344 = vmul.f32 %v2224, %v2335
      %v2345 = vmul.f32 %v2225, %v2335
      %v2346 = vmul.f32 %v2226, %v2335
      %v2347 = vmul.f32 %v2227, %v2335
      %v2348 = vmul.f32 %v2228, %v2335
      %v2349 = vmul.f32 %v2229, %v2335
      %v2350 = vmul.f32 %v2230, %v2335
      %v2351 = vmul.f32 %v2231, %v2335
      %v2352 = vmul.f32 %v2232, %v2335
      %v2353 = vmul.f32 %v2233, %v2335
      %v2354 = vmul.f32 %v2234, %v2335
      %v2355 = vmul.f32 %v2235, %v2335
      %v2356 = vmul.f32 %v2236, %v2335
      %v2357 = vmul.f32 %v2237, %v2335
      %v2358 = vmul.f32 %v2238, %v2335
      %v2359 = vmul.f32 %v2239, %v2335
      %v2360 = vmul.f32 %v2240, %v2335
      %v2361 = vmul.f32 %v2241, %v2335
      %v2362 = vmul.f32 %v2242, %v2335
      %v2363 = vmul.f32 %v2243, %v2335
      %v2364 = vmul.f32 %v2244, %v2335
      %v2365 = vmul.f32 %v2245, %v2335
      %v2366 = vmul.f32 %v2246, %v2335
      %v2367 = vmul.f32 %v2247, %v2335
      %v2368 = vmul.f32 %v2248, %v2335
      %v2369 = vmul.f32 %v2249, %v2335
      %v2370 = vmul.f32 %v2250, %v2335
      %v2371 = vmul.f32 %v2251, %v2335
      %v2372 = vmul.f32 %v2252, %v2335
      %v2373 = vmul.f32 %v2253, %v2335
      %v2374 = vmul.f32 %v2254, %v2335
      %v2375 = vmul.f32 %v2255, %v2335
      %v2376 = vmul.f32 %v2256, %v2335
      %v2377 = vmul.f32 %v2257, %v2335
      %v2378 = vmul.f32 %v2258, %v2335
      %v2379 = vmul.f32 %v2259, %v2335
      %v2380 = vmul.f32 %v2260, %v2335
      %v2381 = vmul.f32 %v2261, %v2335
      %v2382 = vmul.f32 %v2262, %v2335
      %v2383 = vmul.f32 %v2263, %v2335
      %v2432 = vrot.slane %v2336, 1
      %v2433 = vrot.slane %v2337, 1
      %v2434 = vsel %vm1221, %v2432, %v2433
      %v2435 = vrot.slane %v2338, 1
      %v2436 = vsel %vm1221, %v2433, %v2435
      %v2437 = vrot.slane %v2339, 1
      %v2438 = vrot.slane %v2340, 1
      %v2439 = vsel %vm1221, %v2437, %v2438
      %v2440 = vrot.slane %v2341, 1
      %v2441 = vsel %vm1221, %v2438, %v2440
      %v2442 = vrot.slane %v2342, 1
      %v2443 = vrot.slane %v2343, 1
      %v2444 = vsel %vm1221, %v2442, %v2443
      %v2445 = vrot.slane %v2344, 1
      %v2446 = vsel %vm1221, %v2443, %v2445
      %v2447 = vrot.slane %v2345, 1
      %v2448 = vrot.slane %v2346, 1
      %v2449 = vsel %vm1221, %v2447, %v2448
      %v2450 = vrot.slane %v2347, 1
      %v2451 = vsel %vm1221, %v2448, %v2450
      %v2452 = vrot.slane %v2348, 1
      %v2453 = vrot.slane %v2349, 1
      %v2454 = vsel %vm1221, %v2452, %v2453
      %v2455 = vrot.slane %v2350, 1
      %v2456 = vsel %vm1221, %v2453, %v2455
      %v2457 = vrot.slane %v2351, 1
      %v2458 = vrot.slane %v2352, 1
      %v2459 = vsel %vm1221, %v2457, %v2458
      %v2460 = vrot.slane %v2353, 1
      %v2461 = vsel %vm1221, %v2458, %v2460
      %v2462 = vrot.slane %v2354, 1
      %v2463 = vrot.slane %v2355, 1
      %v2464 = vsel %vm1221, %v2462, %v2463
      %v2465 = vrot.slane %v2356, 1
      %v2466 = vsel %vm1221, %v2463, %v2465
      %v2467 = vrot.slane %v2357, 1
      %v2468 = vrot.slane %v2358, 1
      %v2469 = vsel %vm1221, %v2467, %v2468
      %v2470 = vrot.slane %v2359, 1
      %v2471 = vsel %vm1221, %v2468, %v2470
      %v2472 = vrot.slane %v2360, 1
      %v2473 = vrot.slane %v2361, 1
      %v2474 = vsel %vm1221, %v2472, %v2473
      %v2475 = vrot.slane %v2362, 1
      %v2476 = vsel %vm1221, %v2473, %v2475
      %v2477 = vrot.slane %v2363, 1
      %v2478 = vrot.slane %v2364, 1
      %v2479 = vsel %vm1221, %v2477, %v2478
      %v2480 = vrot.slane %v2365, 1
      %v2481 = vsel %vm1221, %v2478, %v2480
      %v2482 = vrot.slane %v2366, 1
      %v2483 = vrot.slane %v2367, 1
      %v2484 = vsel %vm1221, %v2482, %v2483
      %v2485 = vrot.slane %v2368, 1
      %v2486 = vsel %vm1221, %v2483, %v2485
      %v2487 = vrot.slane %v2369, 1
      %v2488 = vrot.slane %v2370, 1
      %v2489 = vsel %vm1221, %v2487, %v2488
      %v2490 = vrot.slane %v2371, 1
      %v2491 = vsel %vm1221, %v2488, %v2490
      %v2492 = vrot.slane %v2372, 1
      %v2493 = vrot.slane %v2373, 1
      %v2494 = vsel %vm1221, %v2492, %v2493
      %v2495 = vrot.slane %v2374, 1
      %v2496 = vsel %vm1221, %v2493, %v2495
      %v2497 = vrot.slane %v2375, 1
      %v2498 = vrot.slane %v2376, 1
      %v2499 = vsel %vm1221, %v2497, %v2498
      %v2500 = vrot.slane %v2377, 1
      %v2501 = vsel %vm1221, %v2498, %v2500
      %v2502 = vrot.slane %v2378, 1
      %v2503 = vrot.slane %v2379, 1
      %v2504 = vsel %vm1221, %v2502, %v2503
      %v2505 = vrot.slane %v2380, 1
      %v2506 = vsel %vm1221, %v2503, %v2505
      %v2507 = vrot.slane %v2381, 1
      %v2508 = vrot.slane %v2382, 1
      %v2509 = vsel %vm1221, %v2507, %v2508
      %v2510 = vrot.slane %v2383, 1
      %v2511 = vsel %vm1221, %v2508, %v2510
      %v2544 = vadd.f32 %v2300, %v2434
      %v2545 = vadd.f32 %v2301, %v2436
      %v2546 = vadd.f32 %v2302, %v2439
      %v2547 = vadd.f32 %v2303, %v2441
      %v2548 = vadd.f32 %v2304, %v2444
      %v2549 = vadd.f32 %v2305, %v2446
      %v2550 = vadd.f32 %v2306, %v2449
      %v2551 = vadd.f32 %v2307, %v2451
      %v2552 = vadd.f32 %v2308, %v2454
      %v2553 = vadd.f32 %v2309, %v2456
      %v2554 = vadd.f32 %v2310, %v2459
      %v2555 = vadd.f32 %v2311, %v2461
      %v2556 = vadd.f32 %v2312, %v2464
      %v2557 = vadd.f32 %v2313, %v2466
      %v2558 = vadd.f32 %v2314, %v2469
      %v2559 = vadd.f32 %v2315, %v2471
      %v2560 = vadd.f32 %v2316, %v2474
      %v2561 = vadd.f32 %v2317, %v2476
      %v2562 = vadd.f32 %v2318, %v2479
      %v2563 = vadd.f32 %v2319, %v2481
      %v2564 = vadd.f32 %v2320, %v2484
      %v2565 = vadd.f32 %v2321, %v2486
      %v2566 = vadd.f32 %v2322, %v2489
      %v2567 = vadd.f32 %v2323, %v2491
      %v2568 = vadd.f32 %v2324, %v2494
      %v2569 = vadd.f32 %v2325, %v2496
      %v2570 = vadd.f32 %v2326, %v2499
      %v2571 = vadd.f32 %v2327, %v2501
      %v2572 = vadd.f32 %v2328, %v2504
      %v2573 = vadd.f32 %v2329, %v2506
      %v2574 = vadd.f32 %v2330, %v2509
      %v2575 = vadd.f32 %v2331, %v2511
      %v2576 = vlaneseq
      %v2577 = vshrl.u32 %v2576, 7
      %v2578 = vsub.s32 0, %v2577
      %v2579 = vrot.slane %v1004, %v2578
      %v2580 = vmul.f32 %v2216, %v2579
      %v2581 = vmul.f32 %v2217, %v2579
      %v2582 = vmul.f32 %v2218, %v2579
      %v2583 = vmul.f32 %v2219, %v2579
      %v2584 = vmul.f32 %v2220, %v2579
      %v2585 = vmul.f32 %v2221, %v2579
      %v2586 = vmul.f32 %v2222, %v2579
      %v2587 = vmul.f32 %v2223, %v2579
      %v2588 = vmul.f32 %v2224, %v2579
      %v2589 = vmul.f32 %v2225, %v2579
      %v2590 = vmul.f32 %v2226, %v2579
      %v2591 = vmul.f32 %v2227, %v2579
      %v2592 = vmul.f32 %v2228, %v2579
      %v2593 = vmul.f32 %v2229, %v2579
      %v2594 = vmul.f32 %v2230, %v2579
      %v2595 = vmul.f32 %v2231, %v2579
      %v2596 = vmul.f32 %v2232, %v2579
      %v2597 = vmul.f32 %v2233, %v2579
      %v2598 = vmul.f32 %v2234, %v2579
      %v2599 = vmul.f32 %v2235, %v2579
      %v2600 = vmul.f32 %v2236, %v2579
      %v2601 = vmul.f32 %v2237, %v2579
      %v2602 = vmul.f32 %v2238, %v2579
      %v2603 = vmul.f32 %v2239, %v2579
      %v2604 = vmul.f32 %v2240, %v2579
      %v2605 = vmul.f32 %v2241, %v2579
      %v2606 = vmul.f32 %v2242, %v2579
      %v2607 = vmul.f32 %v2243, %v2579
      %v2608 = vmul.f32 %v2244, %v2579
      %v2609 = vmul.f32 %v2245, %v2579
      %v2610 = vmul.f32 %v2246, %v2579
      %v2611 = vmul.f32 %v2247, %v2579
      %v2612 = vmul.f32 %v2248, %v2579
      %v2613 = vmul.f32 %v2249, %v2579
      %v2614 = vmul.f32 %v2250, %v2579
      %v2615 = vmul.f32 %v2251, %v2579
      %v2616 = vmul.f32 %v2252, %v2579
      %v2617 = vmul.f32 %v2253, %v2579
      %v2618 = vmul.f32 %v2254, %v2579
      %v2619 = vmul.f32 %v2255, %v2579
      %v2620 = vmul.f32 %v2256, %v2579
      %v2621 = vmul.f32 %v2257, %v2579
      %v2622 = vmul.f32 %v2258, %v2579
      %v2623 = vmul.f32 %v2259, %v2579
      %v2624 = vmul.f32 %v2260, %v2579
      %v2625 = vmul.f32 %v2261, %v2579
      %v2626 = vmul.f32 %v2262, %v2579
      %v2627 = vmul.f32 %v2263, %v2579
      %v2676 = vrot.slane %v2580, 2
      %v2677 = vrot.slane %v2581, 2
      %v2678 = vsel %vm1466, %v2676, %v2677
      %v2679 = vrot.slane %v2582, 2
      %v2680 = vsel %vm1466, %v2677, %v2679
      %v2681 = vrot.slane %v2583, 2
      %v2682 = vrot.slane %v2584, 2
      %v2683 = vsel %vm1466, %v2681, %v2682
      %v2684 = vrot.slane %v2585, 2
      %v2685 = vsel %vm1466, %v2682, %v2684
      %v2686 = vrot.slane %v2586, 2
      %v2687 = vrot.slane %v2587, 2
      %v2688 = vsel %vm1466, %v2686, %v2687
      %v2689 = vrot.slane %v2588, 2
      %v2690 = vsel %vm1466, %v2687, %v2689
      %v2691 = vrot.slane %v2589, 2
      %v2692 = vrot.slane %v2590, 2
      %v2693 = vsel %vm1466, %v2691, %v2692
      %v2694 = vrot.slane %v2591, 2
      %v2695 = vsel %vm1466, %v2692, %v2694
      %v2696 = vrot.slane %v2592, 2
      %v2697 = vrot.slane %v2593, 2
      %v2698 = vsel %vm1466, %v2696, %v2697
      %v2699 = vrot.slane %v2594, 2
      %v2700 = vsel %vm1466, %v2697, %v2699
      %v2701 = vrot.slane %v2595, 2
      %v2702 = vrot.slane %v2596, 2
      %v2703 = vsel %vm1466, %v2701, %v2702
      %v2704 = vrot.slane %v2597, 2
      %v2705 = vsel %vm1466, %v2702, %v2704
      %v2706 = vrot.slane %v2598, 2
      %v2707 = vrot.slane %v2599, 2
      %v2708 = vsel %vm1466, %v2706, %v2707
      %v2709 = vrot.slane %v2600, 2
      %v2710 = vsel %vm1466, %v2707, %v2709
      %v2711 = vrot.slane %v2601, 2
      %v2712 = vrot.slane %v2602, 2
      %v2713 = vsel %vm1466, %v2711, %v2712
      %v2714 = vrot.slane %v2603, 2
      %v2715 = vsel %vm1466, %v2712, %v2714
      %v2716 = vrot.slane %v2604, 2
      %v2717 = vrot.slane %v2605, 2
      %v2718 = vsel %vm1466, %v2716, %v2717
      %v2719 = vrot.slane %v2606, 2
      %v2720 = vsel %vm1466, %v2717, %v2719
      %v2721 = vrot.slane %v2607, 2
      %v2722 = vrot.slane %v2608, 2
      %v2723 = vsel %vm1466, %v2721, %v2722
      %v2724 = vrot.slane %v2609, 2
      %v2725 = vsel %vm1466, %v2722, %v2724
      %v2726 = vrot.slane %v2610, 2
      %v2727 = vrot.slane %v2611, 2
      %v2728 = vsel %vm1466, %v2726, %v2727
      %v2729 = vrot.slane %v2612, 2
      %v2730 = vsel %vm1466, %v2727, %v2729
      %v2731 = vrot.slane %v2613, 2
      %v2732 = vrot.slane %v2614, 2
      %v2733 = vsel %vm1466, %v2731, %v2732
      %v2734 = vrot.slane %v2615, 2
      %v2735 = vsel %vm1466, %v2732, %v2734
      %v2736 = vrot.slane %v2616, 2
      %v2737 = vrot.slane %v2617, 2
      %v2738 = vsel %vm1466, %v2736, %v2737
      %v2739 = vrot.slane %v2618, 2
      %v2740 = vsel %vm1466, %v2737, %v2739
      %v2741 = vrot.slane %v2619, 2
      %v2742 = vrot.slane %v2620, 2
      %v2743 = vsel %vm1466, %v2741, %v2742
      %v2744 = vrot.slane %v2621, 2
      %v2745 = vsel %vm1466, %v2742, %v2744
      %v2746 = vrot.slane %v2622, 2
      %v2747 = vrot.slane %v2623, 2
      %v2748 = vsel %vm1466, %v2746, %v2747
      %v2749 = vrot.slane %v2624, 2
      %v2750 = vsel %vm1466, %v2747, %v2749
      %v2751 = vrot.slane %v2625, 2
      %v2752 = vrot.slane %v2626, 2
      %v2753 = vsel %vm1466, %v2751, %v2752
      %v2754 = vrot.slane %v2627, 2
      %v2755 = vsel %vm1466, %v2752, %v2754
      %v2788 = vadd.f32 %v2544, %v2678
      %v2789 = vadd.f32 %v2545, %v2680
      %v2790 = vadd.f32 %v2546, %v2683
      %v2791 = vadd.f32 %v2547, %v2685
      %v2792 = vadd.f32 %v2548, %v2688
      %v2793 = vadd.f32 %v2549, %v2690
      %v2794 = vadd.f32 %v2550, %v2693
      %v2795 = vadd.f32 %v2551, %v2695
      %v2796 = vadd.f32 %v2552, %v2698
      %v2797 = vadd.f32 %v2553, %v2700
      %v2798 = vadd.f32 %v2554, %v2703
      %v2799 = vadd.f32 %v2555, %v2705
      %v2800 = vadd.f32 %v2556, %v2708
      %v2801 = vadd.f32 %v2557, %v2710
      %v2802 = vadd.f32 %v2558, %v2713
      %v2803 = vadd.f32 %v2559, %v2715
      %v2804 = vadd.f32 %v2560, %v2718
      %v2805 = vadd.f32 %v2561, %v2720
      %v2806 = vadd.f32 %v2562, %v2723
      %v2807 = vadd.f32 %v2563, %v2725
      %v2808 = vadd.f32 %v2564, %v2728
      %v2809 = vadd.f32 %v2565, %v2730
      %v2810 = vadd.f32 %v2566, %v2733
      %v2811 = vadd.f32 %v2567, %v2735
      %v2812 = vadd.f32 %v2568, %v2738
      %v2813 = vadd.f32 %v2569, %v2740
      %v2814 = vadd.f32 %v2570, %v2743
      %v2815 = vadd.f32 %v2571, %v2745
      %v2816 = vadd.f32 %v2572, %v2748
      %v2817 = vadd.f32 %v2573, %v2750
      %v2818 = vadd.f32 %v2574, %v2753
      %v2819 = vadd.f32 %v2575, %v2755
      %v2820 = vsel %vm924, %v2788, 0.0
      %v2821 = vsel %vm924, %v2789, 0.0
      %v2822 = vadd.f32 %v2820, %v2821
      %v2823 = vsel %vm924, %v2790, 0.0
      %v2824 = vadd.f32 %v2822, %v2823
      %v2825 = vsel %vm924, %v2791, 0.0
      %v2826 = vadd.f32 %v2824, %v2825
      %v2827 = vsel %vm924, %v2792, 0.0
      %v2828 = vadd.f32 %v2826, %v2827
      %v2829 = vsel %vm924, %v2793, 0.0
      %v2830 = vadd.f32 %v2828, %v2829
      %v2831 = vsel %vm924, %v2794, 0.0
      %v2832 = vadd.f32 %v2830, %v2831
      %v2833 = vsel %vm924, %v2795, 0.0
      %v2834 = vadd.f32 %v2832, %v2833
      %v2835 = vsel %vm924, %v2796, 0.0
      %v2836 = vadd.f32 %v2834, %v2835
      %v2837 = vsel %vm924, %v2797, 0.0
      %v2838 = vadd.f32 %v2836, %v2837
      %v2839 = vsel %vm924, %v2798, 0.0
      %v2840 = vadd.f32 %v2838, %v2839
      %v2841 = vsel %vm924, %v2799, 0.0
      %v2842 = vadd.f32 %v2840, %v2841
      %v2843 = vsel %vm924, %v2800, 0.0
      %v2844 = vadd.f32 %v2842, %v2843
      %v2845 = vsel %vm924, %v2801, 0.0
      %v2846 = vadd.f32 %v2844, %v2845
      %v2847 = vsel %vm924, %v2802, 0.0
      %v2848 = vadd.f32 %v2846, %v2847
      %v2849 = vsel %vm924, %v2803, 0.0
      %v2850 = vadd.f32 %v2848, %v2849
      %v2851 = vsel %vm924, %v2804, 0.0
      %v2852 = vadd.f32 %v2850, %v2851
      %v2853 = vsel %vm924, %v2805, 0.0
      %v2854 = vadd.f32 %v2852, %v2853
      %v2855 = vsel %vm924, %v2806, 0.0
      %v2856 = vadd.f32 %v2854, %v2855
      %v2857 = vsel %vm924, %v2807, 0.0
      %v2858 = vadd.f32 %v2856, %v2857
      %v2859 = vsel %vm924, %v2808, 0.0
      %v2860 = vadd.f32 %v2858, %v2859
      %v2861 = vsel %vm924, %v2809, 0.0
      %v2862 = vadd.f32 %v2860, %v2861
      %v2863 = vsel %vm924, %v2810, 0.0
      %v2864 = vadd.f32 %v2862, %v2863
      %v2865 = vsel %vm924, %v2811, 0.0
      %v2866 = vadd.f32 %v2864, %v2865
      %v2867 = vsel %vm924, %v2812, 0.0
      %v2868 = vadd.f32 %v2866, %v2867
      %v2869 = vsel %vm924, %v2813, 0.0
      %v2870 = vadd.f32 %v2868, %v2869
      %v2871 = vsel %vm924, %v2814, 0.0
      %v2872 = vadd.f32 %v2870, %v2871
      %v2873 = vsel %vm924, %v2815, 0.0
      %v2874 = vadd.f32 %v2872, %v2873
      %v2875 = vsel %vm924, %v2816, 0.0
      %v2876 = vadd.f32 %v2874, %v2875
      %v2877 = vsel %vm924, %v2817, 0.0
      %v2878 = vadd.f32 %v2876, %v2877
      %v2879 = vsel %vm924, %v2818, 0.0
      %v2880 = vadd.f32 %v2878, %v2879
      %v2881 = vsel %vm924, %v2819, 0.0
      %v2882 = vadd.f32 %v2880, %v2881
      %v2883 = vrot.slane %v2882, 4
      %v2884 = vadd.f32 %v2882, %v2883
      %v2885 = vrot.slane %v2884, 2
      %v2886 = vadd.f32 %v2884, %v2885
      %v2887 = vrot.slane %v2886, 1
      %v2888 = vadd.f32 %v2886, %v2887
      %2889 = vst.msk [vmem:[%s262] sm:$0x1] %vm933, %v2888
      %v2890 = vmul.f32 %v2788, %v2788
      %v2891 = vmul.f32 %v2789, %v2789
      %v2892 = vmul.f32 %v2790, %v2790
      %v2893 = vmul.f32 %v2791, %v2791
      %v2894 = vmul.f32 %v2792, %v2792
      %v2895 = vmul.f32 %v2793, %v2793
      %v2896 = vmul.f32 %v2794, %v2794
      %v2897 = vmul.f32 %v2795, %v2795
      %v2898 = vmul.f32 %v2796, %v2796
      %v2899 = vmul.f32 %v2797, %v2797
      %v2900 = vmul.f32 %v2798, %v2798
      %v2901 = vmul.f32 %v2799, %v2799
      %v2902 = vmul.f32 %v2800, %v2800
      %v2903 = vmul.f32 %v2801, %v2801
      %v2904 = vmul.f32 %v2802, %v2802
      %v2905 = vmul.f32 %v2803, %v2803
      %v2906 = vmul.f32 %v2804, %v2804
      %v2907 = vmul.f32 %v2805, %v2805
      %v2908 = vmul.f32 %v2806, %v2806
      %v2909 = vmul.f32 %v2807, %v2807
      %v2910 = vmul.f32 %v2808, %v2808
      %v2911 = vmul.f32 %v2809, %v2809
      %v2912 = vmul.f32 %v2810, %v2810
      %v2913 = vmul.f32 %v2811, %v2811
      %v2914 = vmul.f32 %v2812, %v2812
      %v2915 = vmul.f32 %v2813, %v2813
      %v2916 = vmul.f32 %v2814, %v2814
      %v2917 = vmul.f32 %v2815, %v2815
      %v2918 = vmul.f32 %v2816, %v2816
      %v2919 = vmul.f32 %v2817, %v2817
      %v2920 = vmul.f32 %v2818, %v2818
      %v2921 = vmul.f32 %v2819, %v2819
      %v2922 = vsel %vm924, %v2890, 0.0
      %v2923 = vsel %vm924, %v2891, 0.0
      %v2924 = vadd.f32 %v2922, %v2923
      %v2925 = vsel %vm924, %v2892, 0.0
      %v2926 = vadd.f32 %v2924, %v2925
      %v2927 = vsel %vm924, %v2893, 0.0
      %v2928 = vadd.f32 %v2926, %v2927
      %v2929 = vsel %vm924, %v2894, 0.0
      %v2930 = vadd.f32 %v2928, %v2929
      %v2931 = vsel %vm924, %v2895, 0.0
      %v2932 = vadd.f32 %v2930, %v2931
      %v2933 = vsel %vm924, %v2896, 0.0
      %v2934 = vadd.f32 %v2932, %v2933
      %v2935 = vsel %vm924, %v2897, 0.0
      %v2936 = vadd.f32 %v2934, %v2935
      %v2937 = vsel %vm924, %v2898, 0.0
      %v2938 = vadd.f32 %v2936, %v2937
      %v2939 = vsel %vm924, %v2899, 0.0
      %v2940 = vadd.f32 %v2938, %v2939
      %v2941 = vsel %vm924, %v2900, 0.0
      %v2942 = vadd.f32 %v2940, %v2941
      %v2943 = vsel %vm924, %v2901, 0.0
      %v2944 = vadd.f32 %v2942, %v2943
      %v2945 = vsel %vm924, %v2902, 0.0
      %v2946 = vadd.f32 %v2944, %v2945
      %v2947 = vsel %vm924, %v2903, 0.0
      %v2948 = vadd.f32 %v2946, %v2947
      %v2949 = vsel %vm924, %v2904, 0.0
      %v2950 = vadd.f32 %v2948, %v2949
      %v2951 = vsel %vm924, %v2905, 0.0
      %v2952 = vadd.f32 %v2950, %v2951
      %v2953 = vsel %vm924, %v2906, 0.0
      %v2954 = vadd.f32 %v2952, %v2953
      %v2955 = vsel %vm924, %v2907, 0.0
      %v2956 = vadd.f32 %v2954, %v2955
      %v2957 = vsel %vm924, %v2908, 0.0
      %v2958 = vadd.f32 %v2956, %v2957
      %v2959 = vsel %vm924, %v2909, 0.0
      %v2960 = vadd.f32 %v2958, %v2959
      %v2961 = vsel %vm924, %v2910, 0.0
      %v2962 = vadd.f32 %v2960, %v2961
      %v2963 = vsel %vm924, %v2911, 0.0
      %v2964 = vadd.f32 %v2962, %v2963
      %v2965 = vsel %vm924, %v2912, 0.0
      %v2966 = vadd.f32 %v2964, %v2965
      %v2967 = vsel %vm924, %v2913, 0.0
      %v2968 = vadd.f32 %v2966, %v2967
      %v2969 = vsel %vm924, %v2914, 0.0
      %v2970 = vadd.f32 %v2968, %v2969
      %v2971 = vsel %vm924, %v2915, 0.0
      %v2972 = vadd.f32 %v2970, %v2971
      %v2973 = vsel %vm924, %v2916, 0.0
      %v2974 = vadd.f32 %v2972, %v2973
      %v2975 = vsel %vm924, %v2917, 0.0
      %v2976 = vadd.f32 %v2974, %v2975
      %v2977 = vsel %vm924, %v2918, 0.0
      %v2978 = vadd.f32 %v2976, %v2977
      %v2979 = vsel %vm924, %v2919, 0.0
      %v2980 = vadd.f32 %v2978, %v2979
      %v2981 = vsel %vm924, %v2920, 0.0
      %v2982 = vadd.f32 %v2980, %v2981
      %v2983 = vsel %vm924, %v2921, 0.0
      %v2984 = vadd.f32 %v2982, %v2983
      %v2985 = vrot.slane %v2984, 4
      %v2986 = vadd.f32 %v2984, %v2985
      %v2987 = vrot.slane %v2986, 2
      %v2988 = vadd.f32 %v2986, %v2987
      %v2989 = vrot.slane %v2988, 1
      %v2990 = vadd.f32 %v2988, %v2989
      %2991 = vst.msk [vmem:[%s262 + $0x1] sm:$0x1] %vm933, %v2990
      %2992 = vst.msk [vmem:[%s258] sm:$0xff] %vm924, %v2788
      %2993 = vst.msk [vmem:[%s258 + $0x8] sm:$0xff] %vm924, %v2789
      %2994 = vst.msk [vmem:[%s258 + $0x10] sm:$0xff] %vm924, %v2790
      %2995 = vst.msk [vmem:[%s258 + $0x18] sm:$0xff] %vm924, %v2791
      %2996 = vst.msk [vmem:[%s258 + $0x20] sm:$0xff] %vm924, %v2792
      %2997 = vst.msk [vmem:[%s258 + $0x28] sm:$0xff] %vm924, %v2793
      %2998 = vst.msk [vmem:[%s258 + $0x30] sm:$0xff] %vm924, %v2794
      %2999 = vst.msk [vmem:[%s258 + $0x38] sm:$0xff] %vm924, %v2795
      %3000 = vst.msk [vmem:[%s258 + $0x40] sm:$0xff] %vm924, %v2796
      %3001 = vst.msk [vmem:[%s258 + $0x48] sm:$0xff] %vm924, %v2797
      %3002 = vst.msk [vmem:[%s258 + $0x50] sm:$0xff] %vm924, %v2798
      %3003 = vst.msk [vmem:[%s258 + $0x58] sm:$0xff] %vm924, %v2799
      %3004 = vst.msk [vmem:[%s258 + $0x60] sm:$0xff] %vm924, %v2800
      %3005 = vst.msk [vmem:[%s258 + $0x68] sm:$0xff] %vm924, %v2801
      %3006 = vst.msk [vmem:[%s258 + $0x70] sm:$0xff] %vm924, %v2802
      %3007 = vst.msk [vmem:[%s258 + $0x78] sm:$0xff] %vm924, %v2803
      %3008 = vst.msk [vmem:[%s258 + $0x80] sm:$0xff] %vm924, %v2804
      %3009 = vst.msk [vmem:[%s258 + $0x88] sm:$0xff] %vm924, %v2805
      %3010 = vst.msk [vmem:[%s258 + $0x90] sm:$0xff] %vm924, %v2806
      %3011 = vst.msk [vmem:[%s258 + $0x98] sm:$0xff] %vm924, %v2807
      %3012 = vst.msk [vmem:[%s258 + $0xa0] sm:$0xff] %vm924, %v2808
      %3013 = vst.msk [vmem:[%s258 + $0xa8] sm:$0xff] %vm924, %v2809
      %3014 = vst.msk [vmem:[%s258 + $0xb0] sm:$0xff] %vm924, %v2810
      %3015 = vst.msk [vmem:[%s258 + $0xb8] sm:$0xff] %vm924, %v2811
      %3016 = vst.msk [vmem:[%s258 + $0xc0] sm:$0xff] %vm924, %v2812
      %3017 = vst.msk [vmem:[%s258 + $0xc8] sm:$0xff] %vm924, %v2813
      %3018 = vst.msk [vmem:[%s258 + $0xd0] sm:$0xff] %vm924, %v2814
      %3019 = vst.msk [vmem:[%s258 + $0xd8] sm:$0xff] %vm924, %v2815
      %3020 = vst.msk [vmem:[%s258 + $0xe0] sm:$0xff] %vm924, %v2816
      %3021 = vst.msk [vmem:[%s258 + $0xe8] sm:$0xff] %vm924, %v2817
      %3022 = vst.msk [vmem:[%s258 + $0xf0] sm:$0xff] %vm924, %v2818
      %3023 = vst.msk [vmem:[%s258 + $0xf8] sm:$0xff] %vm924, %v2819
      %p3024 = scmp.lt.s32.totalorder %s18, 1
      %s3025 = scalar_select %p3024, %s18, 1
      %s3026 = smul.addr %s3025, 32
      %s3027 = smul.addr %s3026, 8
      %s3028 = scalar_lea.vmem %s5, %s3027
      %p3029 = scmp.lt.s32.totalorder %s18, 1
      %s3030 = scalar_select %p3029, %s18, 1
      %s3031 = smul.addr %s3030, 2
      %s3032 = scalar_lea.vmem %s6, %s3031
      // Predicated region
      $region41: #{mbconv_forward.5} parent=39 // pred_check
        %p3033 = pneg %p146
      $region42: #{mbconv_forward.5} parent=39 // pred_check_branch
        %3035 = sbr.rel (%p3033) target = $region44
      $region43: #{mbconv_forward.5} parent=39 // pred_region
        _
      $region44: #{mbconv_forward.5} parent=39 // pred_fallthru
        _
      // Predicated region
      $region45: #{mbconv_forward.5} parent=39 // pred_check
        %p3036 = pneg %p172
      $region46: #{mbconv_forward.5} parent=39 // pred_check_branch
        %3038 = sbr.rel (%p3036) target = $region48
      $region47: #{mbconv_forward.5} parent=39 // pred_region
        _
      $region48: #{mbconv_forward.5} parent=39 // pred_fallthru
        _
    $region40: #{mbconv_forward.5} parent=5 // pred_fallthru
      _
    %p3039 = scmp.le.s32.totalorder 2, %s13
    // Predicated region
    $region49: #{mbconv_forward.5} parent=5 // pred_check
      %p3040 = pneg %p3039
    $region50: #{mbconv_forward.5} parent=5 // pred_check_branch
      %3042 = sbr.rel (%p3040) target = $region52
    $region51: #{mbconv_forward.5} parent=5 // pred_region
      %s3043 = ssub.s32 %s13, 2
      // Predicated region
      $region53: #{mbconv_forward.5} parent=51 // pred_check
        %p3044 = pneg %p152
      $region54: #{mbconv_forward.5} parent=51 // pred_check_branch
        %3046 = sbr.rel (%p3044) target = $region56
      $region55: #{mbconv_forward.5} parent=51 // pred_region
        %p3047 = scmp.lt.s32.totalorder %s19, 1
        %s3048 = scalar_select %p3047, %s19, 1
        %s3049 = smul.addr %s3048, 32
        %s3050 = smul.addr %s3049, 8
        %s3051 = scalar_lea.vmem %s5, %s3050
      $region56: #{mbconv_forward.5} parent=51 // pred_fallthru
        _
      // Predicated region
      $region57: #{mbconv_forward.5} parent=51 // pred_check
        %p3052 = pneg %p178
      $region58: #{mbconv_forward.5} parent=51 // pred_check_branch
        %3054 = sbr.rel (%p3052) target = $region60
      $region59: #{mbconv_forward.5} parent=51 // pred_region
        %p3055 = scmp.lt.s32.totalorder %s19, 1
        %s3056 = scalar_select %p3055, %s19, 1
        %s3057 = smul.addr %s3056, 2
        %s3058 = scalar_lea.vmem %s6, %s3057
      $region60: #{mbconv_forward.5} parent=51 // pred_fallthru
        _
    $region52: #{mbconv_forward.5} parent=5 // pred_fallthru
      _
  $region6: #{mbconv_forward.5} parent=0 // loop_footer
    %s17 = sadd.s32 1, %s13
  $region7: #{mbconv_forward.5} parent=0 // loop_footer_branch
    %12 = sbr.rel target = $region3
  $region8: #{mbconv_forward.5} parent=0 // loop_exit
    _

</llo_original>
